<compile_context>
chip_gen: v5e
topology: v5e:2x2
jax: 0.10.0
libtpu: 0.0.40
codegen_flags: <defaults>
</compile_context>

<pallas_src>
import functools
import numpy as np
import jax
import jax.numpy as jnp
from jax import lax
from jax.experimental import pallas as pl
from jax.experimental.pallas import tpu as pltpu

KH = KW = 4            # conv kernel size
EPS = 1e-5             # InstanceNorm2d eps
NEG_SLOPE = 0.2        # LeakyReLU slope
BLUR = np.array([1.0, 3.0, 3.0, 1.0], np.float32)   # BlurPool filt_size=4


def _unet_down_kernel(x_ref, w_ref, bh_ref, bwt_ref, mask_ref, o_ref, *,
                      nb, c_in, hc, wc, wp_pad, ho, wo, cb):
    lp = hc * wp_pad                         # flat conv-output lanes (incl. junk lanes j >= wc)
    inv_n = 1.0 / float(hc * wc)

    w2 = w_ref[...]                          # (cb, 16*Cin)  bf16, column order (kh, kw, ci)
    bh = bh_ref[...]                         # (Ho, Hc)      bf16
    bwt = bwt_ref[...]                       # (128, Wo)     bf16, rows j >= Wc are zero
    mask = mask_ref[...]                     # (1, lp)       f32, 1.0 on valid lanes

    for b in range(nb):                      # static unroll over the batch block
        xf = x_ref[b]                        # (Cin, P) bf16: flat padded image, 128-lane rows

        # ---- Conv2d(Cin, Cout, 4, s=1, p=1, bias=False): 16 accumulated per-tap matmuls ----
        acc = None
        for kh in range(KH):
            for kw in range(KW):
                tap = kh * KW + kw
                off = kh * wp_pad + kw                       # static; 128-aligned for kw == 0
                win = xf[:, off:off + lp]                    # (Cin, lp) bf16
                part = jnp.dot(w2[:, tap * c_in:(tap + 1) * c_in], win,
                               preferred_element_type=jnp.float32)
                acc = part if acc is None else acc + part    # (cb, lp) f32

        # ---- InstanceNorm2d (affine=False, biased var, eps=1e-5), valid lanes only ----
        mean = jnp.sum(acc * mask, axis=1, keepdims=True) * inv_n     # (cb, 1)
        centered = (acc - mean) * mask                                # junk lanes -> 0
        var = jnp.sum(centered * centered, axis=1, keepdims=True) * inv_n
        y = centered * lax.rsqrt(var + EPS)

        # ---- LeakyReLU(0.2) ----
        y = jnp.where(y > 0, y, NEG_SLOPE * y).astype(jnp.bfloat16)   # bf16 for the blur matmuls

        # ---- BlurPool: reflect pad (1,2), [1,3,3,1]x[1,3,3,1]/64, stride 2 (separable) ----
        # W-blur: one merged matmul, M = cb*Hc (not Cout tiny batched matmuls)
        y2 = y.reshape(cb * hc, wp_pad)                               # (cb*Hc, 128)
        z = jnp.dot(y2, bwt, preferred_element_type=jnp.float32)      # (cb*Hc, Wo) f32
        # H-blur: small transpose then one merged matmul, output already lane-dense
        zt = (z.astype(jnp.bfloat16)
               .reshape(cb, hc, wo)
               .transpose(1, 0, 2)
               .reshape(hc, cb * wo))                                 # (Hc, cb*Wo)
        out = jnp.dot(bh, zt, preferred_element_type=jnp.float32)     # (Ho, cb*Wo) f32

        o_ref[b] = out.astype(o_ref.dtype)


def _blur_downsample_matrix(size_in):
    """B (n_out, size_in): reflect-pad(1,2) + correlate [1,3,3,1]/8 + stride 2 along one axis."""
    pad_idx = [1] + list(range(size_in)) + [size_in - 2, size_in - 3]
    n_out = (len(pad_idx) - 4) // 2 + 1
    a = BLUR / BLUR.sum()
    B = np.zeros((n_out, size_in), np.float32)
    for o in range(n_out):
        for t in range(4):
            B[o, pad_idx[2 * o + t]] += a[t]
    return B, n_out


def unet_down(x, w):
    """x: (N, Cin, H, W) f32 NCHW; w: (Cout, Cin, 4, 4) conv weight. Returns (N, Cout, Ho, Wo)."""
    n, c_in, h, wdt = x.shape
    c_out = w.shape[0]
    hp, wp = h + 2, wdt + 2                      # zero pad 1 for the conv
    hc, wc = hp - KH + 1, wp - KW + 1            # conv output size (stride 1)
    wp_pad = ((wp + 127) // 128) * 128           # 128-lane row stride (lane-aligned windows)
    lp = hc * wp_pad
    hp1 = hp + 1                                 # one extra zero row keeps all 16 windows in bounds
    p = hp1 * wp_pad                             # flat per-channel extent (multiple of 128)

    # flat, lane-aligned, zero-padded NCHW image in bf16
    xp = jnp.pad(x, ((0, 0), (0, 0), (1, 1 + (hp1 - hp)), (1, 1 + (wp_pad - wp))))
    xp = xp.reshape(n, c_in, p).astype(jnp.bfloat16)

    # conv weight -> (Cout, 16*Cin), column order (kh, kw, ci); bf16 for the MXU
    w2 = jnp.transpose(w, (0, 2, 3, 1)).reshape(c_out, KH * KW * c_in).astype(jnp.bfloat16)

    # separable blur matrices (tiny, dense; all coefficients are multiples of 1/8 -> exact bf16)
    bh_np, ho = _blur_downsample_matrix(hc)                 # (Ho, Hc)
    bw_np, wo = _blur_downsample_matrix(wc)                 # (Wo, Wc)
    bwt_np = np.zeros((wp_pad, wo), np.float32)             # junk lanes j >= Wc get zero weight
    bwt_np[:wc, :] = bw_np.T
    bh = jnp.asarray(bh_np, jnp.bfloat16)
    bwt = jnp.asarray(bwt_np, jnp.bfloat16)

    # validity mask over the flat conv-output lanes (1.0 where column j < Wc)
    mask_np = np.zeros((hc, wp_pad), np.float32)
    mask_np[:, :wc] = 1.0
    mask = jnp.asarray(mask_np.reshape(1, lp))

    # batch block: amortise per-grid-step overhead (largest divisor of N up to 8)
    nb = 1
    for d in range(min(n, 8), 0, -1):
        if n % d == 0:
            nb = d
            break

    # Cout block: MXU-sized rows at production channel counts, full Cout otherwise
    cb = 128 if (c_out % 128 == 0) else c_out
    n_cb = c_out // cb

    kernel = functools.partial(_unet_down_kernel, nb=nb, c_in=c_in, hc=hc, wc=wc,
                               wp_pad=wp_pad, ho=ho, wo=wo, cb=cb)

    flops = (2 * n * c_out * (KH * KW * c_in) * lp          # conv
             + 2 * n * (c_out * hc) * wp_pad * wo           # W-blur
             + 2 * n * ho * hc * (c_out * wo))              # H-blur
    bytes_accessed = (int(xp.size) * 2 + int(w2.size) * 2 + int(bh.size) * 2
                      + int(bwt.size) * 2 + int(mask.size) * 4 + n * ho * c_out * wo * 4)
    cost = pl.CostEstimate(flops=int(flops), transcendentals=int(n * c_out),
                           bytes_accessed=int(bytes_accessed))

    out_flat = pl.pallas_call(
        kernel,
        out_shape=jax.ShapeDtypeStruct((n, ho, c_out * wo), jnp.float32),
        grid_spec=pltpu.PrefetchScalarGridSpec(
            num_scalar_prefetch=0,
            grid=(n // nb, n_cb),
            in_specs=[
                pl.BlockSpec((nb, c_in, p), lambda g, c: (g, 0, 0)),
                pl.BlockSpec((cb, KH * KW * c_in), lambda g, c: (c, 0)),
                pl.BlockSpec((ho, hc), lambda g, c: (0, 0)),
                pl.BlockSpec((wp_pad, wo), lambda g, c: (0, 0)),
                pl.BlockSpec((1, lp), lambda g, c: (0, 0)),
            ],
            out_specs=pl.BlockSpec((nb, ho, cb * wo), lambda g, c: (g, 0, c)),
        ),
        compiler_params=pltpu.CompilerParams(
            dimension_semantics=("parallel", "parallel"),
            vmem_limit_bytes=32 * 1024 * 1024),
        cost_estimate=cost,
    )(xp, w2, bh, bwt, mask)

    # lane-dense (N, Ho, Cout*Wo) -> NCHW on the wrapper side (cheap XLA reshape/transpose)
    return out_flat.reshape(n, ho, c_out, wo).transpose(0, 2, 1, 3)


def unet_down_ref(x, w):
    """Pure-JAX reference matching the PyTorch module semantics (f32)."""
    y = lax.conv_general_dilated(x, w, (1, 1), ((1, 1), (1, 1)),
                                 dimension_numbers=("NCHW", "OIHW", "NCHW"),
                                 precision=lax.Precision.HIGHEST)
    mean = jnp.mean(y, axis=(2, 3), keepdims=True)
    var = jnp.mean((y - mean) ** 2, axis=(2, 3), keepdims=True)
    y = (y - mean) * lax.rsqrt(var + EPS)
    y = jnp.where(y > 0, y, NEG_SLOPE * y)
    c = y.shape[1]
    yp = jnp.pad(y, ((0, 0), (0, 0), (1, 2), (1, 2)), mode="reflect")
    a = BLUR / BLUR.sum()
    f2 = np.outer(a, a).astype(np.float32)
    filt = jnp.asarray(np.tile(f2[None, None], (c, 1, 1, 1)))   # (C,1,4,4) depthwise
    return lax.conv_general_dilated(yp, filt, (2, 2), "VALID",
                                    dimension_numbers=("NCHW", "OIHW", "NCHW"),
                                    feature_group_count=c,
                                    precision=lax.Precision.HIGHEST)


if __name__ == "__main__":
    key = jax.random.PRNGKey(0)
    kx, kw = jax.random.split(key)
    N, CIN, H, W = 2, 4, 16, 16
    COUT = 8
    x = jax.random.normal(kx, (N, CIN, H, W), jnp.float32)
    w = jax.random.normal(kw, (COUT, CIN, 4, 4), jnp.float32) * 0.1   # deterministic params

    out = unet_down(x, w)
    jax.block_until_ready(out)

    ref = unet_down_ref(x, w)
    assert out.shape == ref.shape == (N, COUT, 8, 8), (out.shape, ref.shape)
    err = float(jnp.max(jnp.abs(out - ref)))
    # bf16 MXU conv + bf16 blur vs f32 reference: expected max abs err a few 1e-2 at worst.
    if err < 5e-2:
        print("KERNEL_OK")
    else:
        print(f"MISMATCH max_abs_err={err}")
</pallas_src>

<mosaic_0001>
module attributes {stable_mosaic.version = 11 : i64} {
  func.func @_unet_down_kernel(%arg0: i32, %arg1: i32, %arg2: memref<2x4x2432xbf16, #tpu.memory_space<vmem>>, %arg3: memref<8x64xbf16, #tpu.memory_space<vmem>>, %arg4: memref<8x15xbf16, #tpu.memory_space<vmem>>, %arg5: memref<128x8xbf16, #tpu.memory_space<vmem>>, %arg6: memref<1x1920xf32, #tpu.memory_space<vmem>>, %arg7: memref<2x8x64xf32, #tpu.memory_space<vmem>>) attributes {dimension_semantics = [#tpu.dimension_semantics<parallel>, #tpu.dimension_semantics<parallel>], iteration_bounds = array<i64: 1, 1>, scalar_prefetch = 0 : i64, scratch_operands = 0 : i64, tpu.core_type = #tpu.core_type<tc>, window_params = [{transform_indices = @transform_0, window_bounds = array<i64: 2, 4, 2432>}, {transform_indices = @transform_1, window_bounds = array<i64: 8, 64>}, {pipeline_mode = #tpu.pipeline_mode<synchronous>, transform_indices = @transform_2, window_bounds = array<i64: 8, 15>}, {pipeline_mode = #tpu.pipeline_mode<synchronous>, transform_indices = @transform_3, window_bounds = array<i64: 128, 8>}, {pipeline_mode = #tpu.pipeline_mode<synchronous>, transform_indices = @transform_4, window_bounds = array<i64: 1, 1920>}, {transform_indices = @transform_5, window_bounds = array<i64: 2, 8, 64>}]} {
    %c0 = arith.constant 0 : index
    %c0_0 = arith.constant 0 : index
    %0 = vector.load %arg3[%c0, %c0_0] : memref<8x64xbf16, #tpu.memory_space<vmem>>, vector<8x64xbf16>
    %c0_1 = arith.constant 0 : index
    %c0_2 = arith.constant 0 : index
    %1 = vector.load %arg4[%c0_1, %c0_2] : memref<8x15xbf16, #tpu.memory_space<vmem>>, vector<8x15xbf16>
    %c0_3 = arith.constant 0 : index
    %c0_4 = arith.constant 0 : index
    %2 = vector.load %arg5[%c0_3, %c0_4] : memref<128x8xbf16, #tpu.memory_space<vmem>>, vector<128x8xbf16>
    %c0_5 = arith.constant 0 : index
    %c0_6 = arith.constant 0 : index
    %3 = vector.load %arg6[%c0_5, %c0_6] : memref<1x1920xf32, #tpu.memory_space<vmem>>, vector<1x1920xf32>
    %c0_7 = arith.constant 0 : index
    %c0_8 = arith.constant 0 : index
    %c0_9 = arith.constant 0 : index
    %4 = vector.load %arg2[%c0_7, %c0_8, %c0_9] : memref<2x4x2432xbf16, #tpu.memory_space<vmem>>, vector<1x4x2432xbf16>
    %5 = vector.shape_cast %4 : vector<1x4x2432xbf16> to vector<4x2432xbf16>
    %6 = vector.extract_strided_slice %5 {offsets = [0, 0], sizes = [4, 1920], strides = [1, 1]} : vector<4x2432xbf16> to vector<4x1920xbf16>
    %7 = vector.extract_strided_slice %0 {offsets = [0, 0], sizes = [8, 4], strides = [1, 1]} : vector<8x64xbf16> to vector<8x4xbf16>
    %cst = arith.constant dense<0.000000e+00> : vector<8x1920xf32>
    %8 = tpu.matmul %7, %6, %cst {dimension_numbers = #tpu.dot_dimension_numbers<[1], [0], [0], [1], [0, 0, 1, 1], [], []>} : vector<8x4xbf16>, vector<4x1920xbf16>, vector<8x1920xf32> -> vector<8x1920xf32>
    %9 = vector.extract_strided_slice %5 {offsets = [0, 1], sizes = [4, 1920], strides = [1, 1]} : vector<4x2432xbf16> to vector<4x1920xbf16>
    %10 = vector.extract_strided_slice %0 {offsets = [0, 4], sizes = [8, 4], strides = [1, 1]} : vector<8x64xbf16> to vector<8x4xbf16>
    %cst_10 = arith.constant dense<0.000000e+00> : vector<8x1920xf32>
    %11 = tpu.matmul %10, %9, %cst_10 {dimension_numbers = #tpu.dot_dimension_numbers<[1], [0], [0], [1], [0, 0, 1, 1], [], []>} : vector<8x4xbf16>, vector<4x1920xbf16>, vector<8x1920xf32> -> vector<8x1920xf32>
    %12 = arith.addf %8, %11 : vector<8x1920xf32>
    %13 = vector.extract_strided_slice %5 {offsets = [0, 2], sizes = [4, 1920], strides = [1, 1]} : vector<4x2432xbf16> to vector<4x1920xbf16>
    %14 = vector.extract_strided_slice %0 {offsets = [0, 8], sizes = [8, 4], strides = [1, 1]} : vector<8x64xbf16> to vector<8x4xbf16>
    %cst_11 = arith.constant dense<0.000000e+00> : vector<8x1920xf32>
    %15 = tpu.matmul %14, %13, %cst_11 {dimension_numbers = #tpu.dot_dimension_numbers<[1], [0], [0], [1], [0, 0, 1, 1], [], []>} : vector<8x4xbf16>, vector<4x1920xbf16>, vector<8x1920xf32> -> vector<8x1920xf32>
    %16 = arith.addf %12, %15 : vector<8x1920xf32>
    %17 = vector.extract_strided_slice %5 {offsets = [0, 3], sizes = [4, 1920], strides = [1, 1]} : vector<4x2432xbf16> to vector<4x1920xbf16>
    %18 = vector.extract_strided_slice %0 {offsets = [0, 12], sizes = [8, 4], strides = [1, 1]} : vector<8x64xbf16> to vector<8x4xbf16>
    %cst_12 = arith.constant dense<0.000000e+00> : vector<8x1920xf32>
    %19 = tpu.matmul %18, %17, %cst_12 {dimension_numbers = #tpu.dot_dimension_numbers<[1], [0], [0], [1], [0, 0, 1, 1], [], []>} : vector<8x4xbf16>, vector<4x1920xbf16>, vector<8x1920xf32> -> vector<8x1920xf32>
    %20 = arith.addf %16, %19 : vector<8x1920xf32>
    %21 = vector.extract_strided_slice %5 {offsets = [0, 128], sizes = [4, 1920], strides = [1, 1]} : vector<4x2432xbf16> to vector<4x1920xbf16>
    %22 = vector.extract_strided_slice %0 {offsets = [0, 16], sizes = [8, 4], strides = [1, 1]} : vector<8x64xbf16> to vector<8x4xbf16>
    %cst_13 = arith.constant dense<0.000000e+00> : vector<8x1920xf32>
    %23 = tpu.matmul %22, %21, %cst_13 {dimension_numbers = #tpu.dot_dimension_numbers<[1], [0], [0], [1], [0, 0, 1, 1], [], []>} : vector<8x4xbf16>, vector<4x1920xbf16>, vector<8x1920xf32> -> vector<8x1920xf32>
    %24 = arith.addf %20, %23 : vector<8x1920xf32>
    %25 = vector.extract_strided_slice %5 {offsets = [0, 129], sizes = [4, 1920], strides = [1, 1]} : vector<4x2432xbf16> to vector<4x1920xbf16>
    %26 = vector.extract_strided_slice %0 {offsets = [0, 20], sizes = [8, 4], strides = [1, 1]} : vector<8x64xbf16> to vector<8x4xbf16>
    %cst_14 = arith.constant dense<0.000000e+00> : vector<8x1920xf32>
    %27 = tpu.matmul %26, %25, %cst_14 {dimension_numbers = #tpu.dot_dimension_numbers<[1], [0], [0], [1], [0, 0, 1, 1], [], []>} : vector<8x4xbf16>, vector<4x1920xbf16>, vector<8x1920xf32> -> vector<8x1920xf32>
    %28 = arith.addf %24, %27 : vector<8x1920xf32>
    %29 = vector.extract_strided_slice %5 {offsets = [0, 130], sizes = [4, 1920], strides = [1, 1]} : vector<4x2432xbf16> to vector<4x1920xbf16>
    %30 = vector.extract_strided_slice %0 {offsets = [0, 24], sizes = [8, 4], strides = [1, 1]} : vector<8x64xbf16> to vector<8x4xbf16>
    %cst_15 = arith.constant dense<0.000000e+00> : vector<8x1920xf32>
    %31 = tpu.matmul %30, %29, %cst_15 {dimension_numbers = #tpu.dot_dimension_numbers<[1], [0], [0], [1], [0, 0, 1, 1], [], []>} : vector<8x4xbf16>, vector<4x1920xbf16>, vector<8x1920xf32> -> vector<8x1920xf32>
    %32 = arith.addf %28, %31 : vector<8x1920xf32>
    %33 = vector.extract_strided_slice %5 {offsets = [0, 131], sizes = [4, 1920], strides = [1, 1]} : vector<4x2432xbf16> to vector<4x1920xbf16>
    %34 = vector.extract_strided_slice %0 {offsets = [0, 28], sizes = [8, 4], strides = [1, 1]} : vector<8x64xbf16> to vector<8x4xbf16>
    %cst_16 = arith.constant dense<0.000000e+00> : vector<8x1920xf32>
    %35 = tpu.matmul %34, %33, %cst_16 {dimension_numbers = #tpu.dot_dimension_numbers<[1], [0], [0], [1], [0, 0, 1, 1], [], []>} : vector<8x4xbf16>, vector<4x1920xbf16>, vector<8x1920xf32> -> vector<8x1920xf32>
    %36 = arith.addf %32, %35 : vector<8x1920xf32>
    %37 = vector.extract_strided_slice %5 {offsets = [0, 256], sizes = [4, 1920], strides = [1, 1]} : vector<4x2432xbf16> to vector<4x1920xbf16>
    %38 = vector.extract_strided_slice %0 {offsets = [0, 32], sizes = [8, 4], strides = [1, 1]} : vector<8x64xbf16> to vector<8x4xbf16>
    %cst_17 = arith.constant dense<0.000000e+00> : vector<8x1920xf32>
    %39 = tpu.matmul %38, %37, %cst_17 {dimension_numbers = #tpu.dot_dimension_numbers<[1], [0], [0], [1], [0, 0, 1, 1], [], []>} : vector<8x4xbf16>, vector<4x1920xbf16>, vector<8x1920xf32> -> vector<8x1920xf32>
    %40 = arith.addf %36, %39 : vector<8x1920xf32>
    %41 = vector.extract_strided_slice %5 {offsets = [0, 257], sizes = [4, 1920], strides = [1, 1]} : vector<4x2432xbf16> to vector<4x1920xbf16>
    %42 = vector.extract_strided_slice %0 {offsets = [0, 36], sizes = [8, 4], strides = [1, 1]} : vector<8x64xbf16> to vector<8x4xbf16>
    %cst_18 = arith.constant dense<0.000000e+00> : vector<8x1920xf32>
    %43 = tpu.matmul %42, %41, %cst_18 {dimension_numbers = #tpu.dot_dimension_numbers<[1], [0], [0], [1], [0, 0, 1, 1], [], []>} : vector<8x4xbf16>, vector<4x1920xbf16>, vector<8x1920xf32> -> vector<8x1920xf32>
    %44 = arith.addf %40, %43 : vector<8x1920xf32>
    %45 = vector.extract_strided_slice %5 {offsets = [0, 258], sizes = [4, 1920], strides = [1, 1]} : vector<4x2432xbf16> to vector<4x1920xbf16>
    %46 = vector.extract_strided_slice %0 {offsets = [0, 40], sizes = [8, 4], strides = [1, 1]} : vector<8x64xbf16> to vector<8x4xbf16>
    %cst_19 = arith.constant dense<0.000000e+00> : vector<8x1920xf32>
    %47 = tpu.matmul %46, %45, %cst_19 {dimension_numbers = #tpu.dot_dimension_numbers<[1], [0], [0], [1], [0, 0, 1, 1], [], []>} : vector<8x4xbf16>, vector<4x1920xbf16>, vector<8x1920xf32> -> vector<8x1920xf32>
    %48 = arith.addf %44, %47 : vector<8x1920xf32>
    %49 = vector.extract_strided_slice %5 {offsets = [0, 259], sizes = [4, 1920], strides = [1, 1]} : vector<4x2432xbf16> to vector<4x1920xbf16>
    %50 = vector.extract_strided_slice %0 {offsets = [0, 44], sizes = [8, 4], strides = [1, 1]} : vector<8x64xbf16> to vector<8x4xbf16>
    %cst_20 = arith.constant dense<0.000000e+00> : vector<8x1920xf32>
    %51 = tpu.matmul %50, %49, %cst_20 {dimension_numbers = #tpu.dot_dimension_numbers<[1], [0], [0], [1], [0, 0, 1, 1], [], []>} : vector<8x4xbf16>, vector<4x1920xbf16>, vector<8x1920xf32> -> vector<8x1920xf32>
    %52 = arith.addf %48, %51 : vector<8x1920xf32>
    %53 = vector.extract_strided_slice %5 {offsets = [0, 384], sizes = [4, 1920], strides = [1, 1]} : vector<4x2432xbf16> to vector<4x1920xbf16>
    %54 = vector.extract_strided_slice %0 {offsets = [0, 48], sizes = [8, 4], strides = [1, 1]} : vector<8x64xbf16> to vector<8x4xbf16>
    %cst_21 = arith.constant dense<0.000000e+00> : vector<8x1920xf32>
    %55 = tpu.matmul %54, %53, %cst_21 {dimension_numbers = #tpu.dot_dimension_numbers<[1], [0], [0], [1], [0, 0, 1, 1], [], []>} : vector<8x4xbf16>, vector<4x1920xbf16>, vector<8x1920xf32> -> vector<8x1920xf32>
    %56 = arith.addf %52, %55 : vector<8x1920xf32>
    %57 = vector.extract_strided_slice %5 {offsets = [0, 385], sizes = [4, 1920], strides = [1, 1]} : vector<4x2432xbf16> to vector<4x1920xbf16>
    %58 = vector.extract_strided_slice %0 {offsets = [0, 52], sizes = [8, 4], strides = [1, 1]} : vector<8x64xbf16> to vector<8x4xbf16>
    %cst_22 = arith.constant dense<0.000000e+00> : vector<8x1920xf32>
    %59 = tpu.matmul %58, %57, %cst_22 {dimension_numbers = #tpu.dot_dimension_numbers<[1], [0], [0], [1], [0, 0, 1, 1], [], []>} : vector<8x4xbf16>, vector<4x1920xbf16>, vector<8x1920xf32> -> vector<8x1920xf32>
    %60 = arith.addf %56, %59 : vector<8x1920xf32>
    %61 = vector.extract_strided_slice %5 {offsets = [0, 386], sizes = [4, 1920], strides = [1, 1]} : vector<4x2432xbf16> to vector<4x1920xbf16>
    %62 = vector.extract_strided_slice %0 {offsets = [0, 56], sizes = [8, 4], strides = [1, 1]} : vector<8x64xbf16> to vector<8x4xbf16>
    %cst_23 = arith.constant dense<0.000000e+00> : vector<8x1920xf32>
    %63 = tpu.matmul %62, %61, %cst_23 {dimension_numbers = #tpu.dot_dimension_numbers<[1], [0], [0], [1], [0, 0, 1, 1], [], []>} : vector<8x4xbf16>, vector<4x1920xbf16>, vector<8x1920xf32> -> vector<8x1920xf32>
    %64 = arith.addf %60, %63 : vector<8x1920xf32>
    %65 = vector.extract_strided_slice %5 {offsets = [0, 387], sizes = [4, 1920], strides = [1, 1]} : vector<4x2432xbf16> to vector<4x1920xbf16>
    %66 = vector.extract_strided_slice %0 {offsets = [0, 60], sizes = [8, 4], strides = [1, 1]} : vector<8x64xbf16> to vector<8x4xbf16>
    %cst_24 = arith.constant dense<0.000000e+00> : vector<8x1920xf32>
    %67 = tpu.matmul %66, %65, %cst_24 {dimension_numbers = #tpu.dot_dimension_numbers<[1], [0], [0], [1], [0, 0, 1, 1], [], []>} : vector<8x4xbf16>, vector<4x1920xbf16>, vector<8x1920xf32> -> vector<8x1920xf32>
    %68 = arith.addf %64, %67 : vector<8x1920xf32>
    %69 = vector.broadcast %3 : vector<1x1920xf32> to vector<8x1920xf32>
    %70 = arith.mulf %68, %69 : vector<8x1920xf32>
    %cst_25 = arith.constant dense<0.000000e+00> : vector<8xf32>
    %71 = vector.multi_reduction <add>, %70, %cst_25 [1] : vector<8x1920xf32> to vector<8xf32>
    %72 = vector.shape_cast %71 : vector<8xf32> to vector<8x1xf32>
    %cst_26 = arith.constant 0.00444444455 : f32
    %73 = vector.broadcast %cst_26 : f32 to vector<8x1xf32>
    %74 = arith.mulf %72, %73 : vector<8x1xf32>
    %75 = vector.broadcast %74 : vector<8x1xf32> to vector<8x1920xf32>
    %76 = arith.subf %68, %75 : vector<8x1920xf32>
    %77 = vector.broadcast %3 : vector<1x1920xf32> to vector<8x1920xf32>
    %78 = arith.mulf %76, %77 : vector<8x1920xf32>
    %79 = arith.mulf %78, %78 : vector<8x1920xf32>
    %cst_27 = arith.constant dense<0.000000e+00> : vector<8xf32>
    %80 = vector.multi_reduction <add>, %79, %cst_27 [1] : vector<8x1920xf32> to vector<8xf32>
    %81 = vector.shape_cast %80 : vector<8xf32> to vector<8x1xf32>
    %cst_28 = arith.constant 0.00444444455 : f32
    %82 = vector.broadcast %cst_28 : f32 to vector<8x1xf32>
    %83 = arith.mulf %81, %82 : vector<8x1xf32>
    %cst_29 = arith.constant 9.99999974E-6 : f32
    %84 = vector.broadcast %cst_29 : f32 to vector<8x1xf32>
    %85 = arith.addf %83, %84 : vector<8x1xf32>
    %86 = math.rsqrt %85 : vector<8x1xf32>
    %87 = vector.broadcast %86 : vector<8x1xf32> to vector<8x1920xf32>
    %88 = arith.mulf %78, %87 : vector<8x1920xf32>
    %cst_30 = arith.constant 0.000000e+00 : f32
    %89 = vector.broadcast %cst_30 : f32 to vector<8x1920xf32>
    %90 = arith.cmpf ogt, %88, %89 : vector<8x1920xf32>
    %cst_31 = arith.constant 2.000000e-01 : f32
    %91 = vector.broadcast %cst_31 : f32 to vector<8x1920xf32>
    %92 = arith.mulf %91, %88 : vector<8x1920xf32>
    %93 = arith.select %90, %88, %92 : vector<8x1920xi1>, vector<8x1920xf32>
    %94 = arith.truncf %93 : vector<8x1920xf32> to vector<8x1920xbf16>
    %95 = vector.shape_cast %94 : vector<8x1920xbf16> to vector<120x128xbf16>
    %cst_32 = arith.constant dense<0.000000e+00> : vector<120x8xf32>
    %96 = tpu.matmul %95, %2, %cst_32 {dimension_numbers = #tpu.dot_dimension_numbers<[1], [0], [0], [1], [0, 0, 1, 1], [], []>} : vector<120x128xbf16>, vector<128x8xbf16>, vector<120x8xf32> -> vector<120x8xf32>
    %97 = arith.truncf %96 : vector<120x8xf32> to vector<120x8xbf16>
    %98 = vector.shape_cast %97 : vector<120x8xbf16> to vector<8x15x8xbf16>
    %99 = tpu.transpose %98, [1, 0, 2] : vector<8x15x8xbf16> -> vector<15x8x8xbf16>
    %100 = vector.shape_cast %99 : vector<15x8x8xbf16> to vector<15x64xbf16>
    %cst_33 = arith.constant dense<0.000000e+00> : vector<8x64xf32>
    %101 = tpu.matmul %1, %100, %cst_33 {dimension_numbers = #tpu.dot_dimension_numbers<[1], [0], [0], [1], [0, 0, 1, 1], [], []>} : vector<8x15xbf16>, vector<15x64xbf16>, vector<8x64xf32> -> vector<8x64xf32>
    %c0_34 = arith.constant 0 : index
    %c0_35 = arith.constant 0 : index
    %c0_36 = arith.constant 0 : index
    %102 = vector.load %arg7[%c0_34, %c0_35, %c0_36] : memref<2x8x64xf32, #tpu.memory_space<vmem>>, vector<1x8x64xf32>
    %103 = vector.shape_cast %102 : vector<1x8x64xf32> to vector<8x64xf32>
    %104 = vector.shape_cast %101 : vector<8x64xf32> to vector<1x8x64xf32>
    tpu.vector_store %arg7[%c0_34, %c0_35, %c0_36], %104 {strides = array<i32>} : memref<2x8x64xf32, #tpu.memory_space<vmem>>, vector<1x8x64xf32>,
    %c1 = arith.constant 1 : index
    %c0_37 = arith.constant 0 : index
    %c0_38 = arith.constant 0 : index
    %105 = vector.load %arg2[%c1, %c0_37, %c0_38] : memref<2x4x2432xbf16, #tpu.memory_space<vmem>>, vector<1x4x2432xbf16>
    %106 = vector.shape_cast %105 : vector<1x4x2432xbf16> to vector<4x2432xbf16>
    %107 = vector.extract_strided_slice %106 {offsets = [0, 0], sizes = [4, 1920], strides = [1, 1]} : vector<4x2432xbf16> to vector<4x1920xbf16>
    %108 = vector.extract_strided_slice %0 {offsets = [0, 0], sizes = [8, 4], strides = [1, 1]} : vector<8x64xbf16> to vector<8x4xbf16>
    %cst_39 = arith.constant dense<0.000000e+00> : vector<8x1920xf32>
    %109 = tpu.matmul %108, %107, %cst_39 {dimension_numbers = #tpu.dot_dimension_numbers<[1], [0], [0], [1], [0, 0, 1, 1], [], []>} : vector<8x4xbf16>, vector<4x1920xbf16>, vector<8x1920xf32> -> vector<8x1920xf32>
    %110 = vector.extract_strided_slice %106 {offsets = [0, 1], sizes = [4, 1920], strides = [1, 1]} : vector<4x2432xbf16> to vector<4x1920xbf16>
    %111 = vector.extract_strided_slice %0 {offsets = [0, 4], sizes = [8, 4], strides = [1, 1]} : vector<8x64xbf16> to vector<8x4xbf16>
    %cst_40 = arith.constant dense<0.000000e+00> : vector<8x1920xf32>
    %112 = tpu.matmul %111, %110, %cst_40 {dimension_numbers = #tpu.dot_dimension_numbers<[1], [0], [0], [1], [0, 0, 1, 1], [], []>} : vector<8x4xbf16>, vector<4x1920xbf16>, vector<8x1920xf32> -> vector<8x1920xf32>
    %113 = arith.addf %109, %112 : vector<8x1920xf32>
    %114 = vector.extract_strided_slice %106 {offsets = [0, 2], sizes = [4, 1920], strides = [1, 1]} : vector<4x2432xbf16> to vector<4x1920xbf16>
    %115 = vector.extract_strided_slice %0 {offsets = [0, 8], sizes = [8, 4], strides = [1, 1]} : vector<8x64xbf16> to vector<8x4xbf16>
    %cst_41 = arith.constant dense<0.000000e+00> : vector<8x1920xf32>
    %116 = tpu.matmul %115, %114, %cst_41 {dimension_numbers = #tpu.dot_dimension_numbers<[1], [0], [0], [1], [0, 0, 1, 1], [], []>} : vector<8x4xbf16>, vector<4x1920xbf16>, vector<8x1920xf32> -> vector<8x1920xf32>
    %117 = arith.addf %113, %116 : vector<8x1920xf32>
    %118 = vector.extract_strided_slice %106 {offsets = [0, 3], sizes = [4, 1920], strides = [1, 1]} : vector<4x2432xbf16> to vector<4x1920xbf16>
    %119 = vector.extract_strided_slice %0 {offsets = [0, 12], sizes = [8, 4], strides = [1, 1]} : vector<8x64xbf16> to vector<8x4xbf16>
    %cst_42 = arith.constant dense<0.000000e+00> : vector<8x1920xf32>
    %120 = tpu.matmul %119, %118, %cst_42 {dimension_numbers = #tpu.dot_dimension_numbers<[1], [0], [0], [1], [0, 0, 1, 1], [], []>} : vector<8x4xbf16>, vector<4x1920xbf16>, vector<8x1920xf32> -> vector<8x1920xf32>
    %121 = arith.addf %117, %120 : vector<8x1920xf32>
    %122 = vector.extract_strided_slice %106 {offsets = [0, 128], sizes = [4, 1920], strides = [1, 1]} : vector<4x2432xbf16> to vector<4x1920xbf16>
    %123 = vector.extract_strided_slice %0 {offsets = [0, 16], sizes = [8, 4], strides = [1, 1]} : vector<8x64xbf16> to vector<8x4xbf16>
    %cst_43 = arith.constant dense<0.000000e+00> : vector<8x1920xf32>
    %124 = tpu.matmul %123, %122, %cst_43 {dimension_numbers = #tpu.dot_dimension_numbers<[1], [0], [0], [1], [0, 0, 1, 1], [], []>} : vector<8x4xbf16>, vector<4x1920xbf16>, vector<8x1920xf32> -> vector<8x1920xf32>
    %125 = arith.addf %121, %124 : vector<8x1920xf32>
    %126 = vector.extract_strided_slice %106 {offsets = [0, 129], sizes = [4, 1920], strides = [1, 1]} : vector<4x2432xbf16> to vector<4x1920xbf16>
    %127 = vector.extract_strided_slice %0 {offsets = [0, 20], sizes = [8, 4], strides = [1, 1]} : vector<8x64xbf16> to vector<8x4xbf16>
    %cst_44 = arith.constant dense<0.000000e+00> : vector<8x1920xf32>
    %128 = tpu.matmul %127, %126, %cst_44 {dimension_numbers = #tpu.dot_dimension_numbers<[1], [0], [0], [1], [0, 0, 1, 1], [], []>} : vector<8x4xbf16>, vector<4x1920xbf16>, vector<8x1920xf32> -> vector<8x1920xf32>
    %129 = arith.addf %125, %128 : vector<8x1920xf32>
    %130 = vector.extract_strided_slice %106 {offsets = [0, 130], sizes = [4, 1920], strides = [1, 1]} : vector<4x2432xbf16> to vector<4x1920xbf16>
    %131 = vector.extract_strided_slice %0 {offsets = [0, 24], sizes = [8, 4], strides = [1, 1]} : vector<8x64xbf16> to vector<8x4xbf16>
    %cst_45 = arith.constant dense<0.000000e+00> : vector<8x1920xf32>
    %132 = tpu.matmul %131, %130, %cst_45 {dimension_numbers = #tpu.dot_dimension_numbers<[1], [0], [0], [1], [0, 0, 1, 1], [], []>} : vector<8x4xbf16>, vector<4x1920xbf16>, vector<8x1920xf32> -> vector<8x1920xf32>
    %133 = arith.addf %129, %132 : vector<8x1920xf32>
    %134 = vector.extract_strided_slice %106 {offsets = [0, 131], sizes = [4, 1920], strides = [1, 1]} : vector<4x2432xbf16> to vector<4x1920xbf16>
    %135 = vector.extract_strided_slice %0 {offsets = [0, 28], sizes = [8, 4], strides = [1, 1]} : vector<8x64xbf16> to vector<8x4xbf16>
    %cst_46 = arith.constant dense<0.000000e+00> : vector<8x1920xf32>
    %136 = tpu.matmul %135, %134, %cst_46 {dimension_numbers = #tpu.dot_dimension_numbers<[1], [0], [0], [1], [0, 0, 1, 1], [], []>} : vector<8x4xbf16>, vector<4x1920xbf16>, vector<8x1920xf32> -> vector<8x1920xf32>
    %137 = arith.addf %133, %136 : vector<8x1920xf32>
    %138 = vector.extract_strided_slice %106 {offsets = [0, 256], sizes = [4, 1920], strides = [1, 1]} : vector<4x2432xbf16> to vector<4x1920xbf16>
    %139 = vector.extract_strided_slice %0 {offsets = [0, 32], sizes = [8, 4], strides = [1, 1]} : vector<8x64xbf16> to vector<8x4xbf16>
    %cst_47 = arith.constant dense<0.000000e+00> : vector<8x1920xf32>
    %140 = tpu.matmul %139, %138, %cst_47 {dimension_numbers = #tpu.dot_dimension_numbers<[1], [0], [0], [1], [0, 0, 1, 1], [], []>} : vector<8x4xbf16>, vector<4x1920xbf16>, vector<8x1920xf32> -> vector<8x1920xf32>
    %141 = arith.addf %137, %140 : vector<8x1920xf32>
    %142 = vector.extract_strided_slice %106 {offsets = [0, 257], sizes = [4, 1920], strides = [1, 1]} : vector<4x2432xbf16> to vector<4x1920xbf16>
    %143 = vector.extract_strided_slice %0 {offsets = [0, 36], sizes = [8, 4], strides = [1, 1]} : vector<8x64xbf16> to vector<8x4xbf16>
    %cst_48 = arith.constant dense<0.000000e+00> : vector<8x1920xf32>
    %144 = tpu.matmul %143, %142, %cst_48 {dimension_numbers = #tpu.dot_dimension_numbers<[1], [0], [0], [1], [0, 0, 1, 1], [], []>} : vector<8x4xbf16>, vector<4x1920xbf16>, vector<8x1920xf32> -> vector<8x1920xf32>
    %145 = arith.addf %141, %144 : vector<8x1920xf32>
    %146 = vector.extract_strided_slice %106 {offsets = [0, 258], sizes = [4, 1920], strides = [1, 1]} : vector<4x2432xbf16> to vector<4x1920xbf16>
    %147 = vector.extract_strided_slice %0 {offsets = [0, 40], sizes = [8, 4], strides = [1, 1]} : vector<8x64xbf16> to vector<8x4xbf16>
    %cst_49 = arith.constant dense<0.000000e+00> : vector<8x1920xf32>
    %148 = tpu.matmul %147, %146, %cst_49 {dimension_numbers = #tpu.dot_dimension_numbers<[1], [0], [0], [1], [0, 0, 1, 1], [], []>} : vector<8x4xbf16>, vector<4x1920xbf16>, vector<8x1920xf32> -> vector<8x1920xf32>
    %149 = arith.addf %145, %148 : vector<8x1920xf32>
    %150 = vector.extract_strided_slice %106 {offsets = [0, 259], sizes = [4, 1920], strides = [1, 1]} : vector<4x2432xbf16> to vector<4x1920xbf16>
    %151 = vector.extract_strided_slice %0 {offsets = [0, 44], sizes = [8, 4], strides = [1, 1]} : vector<8x64xbf16> to vector<8x4xbf16>
    %cst_50 = arith.constant dense<0.000000e+00> : vector<8x1920xf32>
    %152 = tpu.matmul %151, %150, %cst_50 {dimension_numbers = #tpu.dot_dimension_numbers<[1], [0], [0], [1], [0, 0, 1, 1], [], []>} : vector<8x4xbf16>, vector<4x1920xbf16>, vector<8x1920xf32> -> vector<8x1920xf32>
    %153 = arith.addf %149, %152 : vector<8x1920xf32>
    %154 = vector.extract_strided_slice %106 {offsets = [0, 384], sizes = [4, 1920], strides = [1, 1]} : vector<4x2432xbf16> to vector<4x1920xbf16>
    %155 = vector.extract_strided_slice %0 {offsets = [0, 48], sizes = [8, 4], strides = [1, 1]} : vector<8x64xbf16> to vector<8x4xbf16>
    %cst_51 = arith.constant dense<0.000000e+00> : vector<8x1920xf32>
    %156 = tpu.matmul %155, %154, %cst_51 {dimension_numbers = #tpu.dot_dimension_numbers<[1], [0], [0], [1], [0, 0, 1, 1], [], []>} : vector<8x4xbf16>, vector<4x1920xbf16>, vector<8x1920xf32> -> vector<8x1920xf32>
    %157 = arith.addf %153, %156 : vector<8x1920xf32>
    %158 = vector.extract_strided_slice %106 {offsets = [0, 385], sizes = [4, 1920], strides = [1, 1]} : vector<4x2432xbf16> to vector<4x1920xbf16>
    %159 = vector.extract_strided_slice %0 {offsets = [0, 52], sizes = [8, 4], strides = [1, 1]} : vector<8x64xbf16> to vector<8x4xbf16>
    %cst_52 = arith.constant dense<0.000000e+00> : vector<8x1920xf32>
    %160 = tpu.matmul %159, %158, %cst_52 {dimension_numbers = #tpu.dot_dimension_numbers<[1], [0], [0], [1], [0, 0, 1, 1], [], []>} : vector<8x4xbf16>, vector<4x1920xbf16>, vector<8x1920xf32> -> vector<8x1920xf32>
    %161 = arith.addf %157, %160 : vector<8x1920xf32>
    %162 = vector.extract_strided_slice %106 {offsets = [0, 386], sizes = [4, 1920], strides = [1, 1]} : vector<4x2432xbf16> to vector<4x1920xbf16>
    %163 = vector.extract_strided_slice %0 {offsets = [0, 56], sizes = [8, 4], strides = [1, 1]} : vector<8x64xbf16> to vector<8x4xbf16>
    %cst_53 = arith.constant dense<0.000000e+00> : vector<8x1920xf32>
    %164 = tpu.matmul %163, %162, %cst_53 {dimension_numbers = #tpu.dot_dimension_numbers<[1], [0], [0], [1], [0, 0, 1, 1], [], []>} : vector<8x4xbf16>, vector<4x1920xbf16>, vector<8x1920xf32> -> vector<8x1920xf32>
    %165 = arith.addf %161, %164 : vector<8x1920xf32>
    %166 = vector.extract_strided_slice %106 {offsets = [0, 387], sizes = [4, 1920], strides = [1, 1]} : vector<4x2432xbf16> to vector<4x1920xbf16>
    %167 = vector.extract_strided_slice %0 {offsets = [0, 60], sizes = [8, 4], strides = [1, 1]} : vector<8x64xbf16> to vector<8x4xbf16>
    %cst_54 = arith.constant dense<0.000000e+00> : vector<8x1920xf32>
    %168 = tpu.matmul %167, %166, %cst_54 {dimension_numbers = #tpu.dot_dimension_numbers<[1], [0], [0], [1], [0, 0, 1, 1], [], []>} : vector<8x4xbf16>, vector<4x1920xbf16>, vector<8x1920xf32> -> vector<8x1920xf32>
    %169 = arith.addf %165, %168 : vector<8x1920xf32>
    %170 = vector.broadcast %3 : vector<1x1920xf32> to vector<8x1920xf32>
    %171 = arith.mulf %169, %170 : vector<8x1920xf32>
    %cst_55 = arith.constant dense<0.000000e+00> : vector<8xf32>
    %172 = vector.multi_reduction <add>, %171, %cst_55 [1] : vector<8x1920xf32> to vector<8xf32>
    %173 = vector.shape_cast %172 : vector<8xf32> to vector<8x1xf32>
    %cst_56 = arith.constant 0.00444444455 : f32
    %174 = vector.broadcast %cst_56 : f32 to vector<8x1xf32>
    %175 = arith.mulf %173, %174 : vector<8x1xf32>
    %176 = vector.broadcast %175 : vector<8x1xf32> to vector<8x1920xf32>
    %177 = arith.subf %169, %176 : vector<8x1920xf32>
    %178 = vector.broadcast %3 : vector<1x1920xf32> to vector<8x1920xf32>
    %179 = arith.mulf %177, %178 : vector<8x1920xf32>
    %180 = arith.mulf %179, %179 : vector<8x1920xf32>
    %cst_57 = arith.constant dense<0.000000e+00> : vector<8xf32>
    %181 = vector.multi_reduction <add>, %180, %cst_57 [1] : vector<8x1920xf32> to vector<8xf32>
    %182 = vector.shape_cast %181 : vector<8xf32> to vector<8x1xf32>
    %cst_58 = arith.constant 0.00444444455 : f32
    %183 = vector.broadcast %cst_58 : f32 to vector<8x1xf32>
    %184 = arith.mulf %182, %183 : vector<8x1xf32>
    %cst_59 = arith.constant 9.99999974E-6 : f32
    %185 = vector.broadcast %cst_59 : f32 to vector<8x1xf32>
    %186 = arith.addf %184, %185 : vector<8x1xf32>
    %187 = math.rsqrt %186 : vector<8x1xf32>
    %188 = vector.broadcast %187 : vector<8x1xf32> to vector<8x1920xf32>
    %189 = arith.mulf %179, %188 : vector<8x1920xf32>
    %cst_60 = arith.constant 0.000000e+00 : f32
    %190 = vector.broadcast %cst_60 : f32 to vector<8x1920xf32>
    %191 = arith.cmpf ogt, %189, %190 : vector<8x1920xf32>
    %cst_61 = arith.constant 2.000000e-01 : f32
    %192 = vector.broadcast %cst_61 : f32 to vector<8x1920xf32>
    %193 = arith.mulf %192, %189 : vector<8x1920xf32>
    %194 = arith.select %191, %189, %193 : vector<8x1920xi1>, vector<8x1920xf32>
    %195 = arith.truncf %194 : vector<8x1920xf32> to vector<8x1920xbf16>
    %196 = vector.shape_cast %195 : vector<8x1920xbf16> to vector<120x128xbf16>
    %cst_62 = arith.constant dense<0.000000e+00> : vector<120x8xf32>
    %197 = tpu.matmul %196, %2, %cst_62 {dimension_numbers = #tpu.dot_dimension_numbers<[1], [0], [0], [1], [0, 0, 1, 1], [], []>} : vector<120x128xbf16>, vector<128x8xbf16>, vector<120x8xf32> -> vector<120x8xf32>
    %198 = arith.truncf %197 : vector<120x8xf32> to vector<120x8xbf16>
    %199 = vector.shape_cast %198 : vector<120x8xbf16> to vector<8x15x8xbf16>
    %200 = tpu.transpose %199, [1, 0, 2] : vector<8x15x8xbf16> -> vector<15x8x8xbf16>
    %201 = vector.shape_cast %200 : vector<15x8x8xbf16> to vector<15x64xbf16>
    %cst_63 = arith.constant dense<0.000000e+00> : vector<8x64xf32>
    %202 = tpu.matmul %1, %201, %cst_63 {dimension_numbers = #tpu.dot_dimension_numbers<[1], [0], [0], [1], [0, 0, 1, 1], [], []>} : vector<8x15xbf16>, vector<15x64xbf16>, vector<8x64xf32> -> vector<8x64xf32>
    %c1_64 = arith.constant 1 : index
    %c0_65 = arith.constant 0 : index
    %c0_66 = arith.constant 0 : index
    %203 = vector.load %arg7[%c1_64, %c0_65, %c0_66] : memref<2x8x64xf32, #tpu.memory_space<vmem>>, vector<1x8x64xf32>
    %204 = vector.shape_cast %203 : vector<1x8x64xf32> to vector<8x64xf32>
    %205 = vector.shape_cast %202 : vector<8x64xf32> to vector<1x8x64xf32>
    tpu.vector_store %arg7[%c1_64, %c0_65, %c0_66], %205 {strides = array<i32>} : memref<2x8x64xf32, #tpu.memory_space<vmem>>, vector<1x8x64xf32>,
    return
  }
  func.func @transform_0(%arg0: i32, %arg1: i32) -> (i32, i32, i32) {
    %c0_i32 = arith.constant 0 : i32
    %c0_i32_0 = arith.constant 0 : i32
    %c0_i32_1 = arith.constant 0 : i32
    return %arg0, %c0_i32, %c0_i32_0 : i32, i32, i32
  }
  func.func @transform_1(%arg0: i32, %arg1: i32) -> (i32, i32) {
    %c0_i32 = arith.constant 0 : i32
    %c0_i32_0 = arith.constant 0 : i32
    return %arg1, %c0_i32 : i32, i32
  }
  func.func @transform_2(%arg0: i32, %arg1: i32) -> (i32, i32) {
    %c0_i32 = arith.constant 0 : i32
    %c0_i32_0 = arith.constant 0 : i32
    %c0_i32_1 = arith.constant 0 : i32
    return %c0_i32, %c0_i32_0 : i32, i32
  }
  func.func @transform_3(%arg0: i32, %arg1: i32) -> (i32, i32) {
    %c0_i32 = arith.constant 0 : i32
    %c0_i32_0 = arith.constant 0 : i32
    %c0_i32_1 = arith.constant 0 : i32
    return %c0_i32, %c0_i32_0 : i32, i32
  }
  func.func @transform_4(%arg0: i32, %arg1: i32) -> (i32, i32) {
    %c0_i32 = arith.constant 0 : i32
    %c0_i32_0 = arith.constant 0 : i32
    %c0_i32_1 = arith.constant 0 : i32
    return %c0_i32, %c0_i32_0 : i32, i32
  }
  func.func @transform_5(%arg0: i32, %arg1: i32) -> (i32, i32, i32) {
    %c0_i32 = arith.constant 0 : i32
    %c0_i32_0 = arith.constant 0 : i32
    return %arg0, %c0_i32, %arg1 : i32, i32, i32
  }
}

</mosaic_0001>

<llo_original>
// kernel: tpu_custom_call.1
$region0: #{tpu_custom_call.1}
  #allocation0 [shape = 'u32[]', space=smem, size = 0x4, offset = 0x4, fixed_abs, tag = 'smem constant byte address 0x4 - core index']
  #allocation1 [shape = 'u32[72,128]{1,0:T(1,128)}', space=vmem, size = 0x9000, scoped, tag = 'internal scratch']
  %s0 = inlined_call_operand.hbm [shape: bf16[2,4,2432], index: 0, kind: input, shape index: {}]
  %s1 = inlined_call_operand.vmem [shape: bf16[8,64], index: 1, kind: input, shape index: {}]
  %s2 = inlined_call_operand.vmem [shape: bf16[8,15], index: 2, kind: input, shape index: {}]
  %s3 = inlined_call_operand.vmem [shape: bf16[128,8], index: 3, kind: input, shape index: {}]
  %s4 = inlined_call_operand.vmem [shape: f32[1,1920], index: 4, kind: input, shape index: {}]
  %s5 = inlined_call_operand.hbm [shape: f32[2,8,64], index: 5, kind: output, shape index: {}]
  %s6 = sld [smem:[#allocation0]]
  $region34: #{tpu_custom_call.1} parent=0
    _
  %s8 = ssub.s32 1, %s6
  %s9 = scalar_select 0, %s8, %s6
  $region1: #{tpu_custom_call.1} parent=0
    #allocation2 [shape = 'u8[38912]{0}', space=vmem, size = 0x9800, scoped, tag = 'input window, operand 0, single buffered']
    #allocation3 [shape = 's32[1]{0}', space=sflag, size = 0x4, scoped, tag = 'scoped memory for tpu_custom_call.1']
    #allocation4 [shape = 's32[1]{0}', space=sflag, size = 0x4, scoped, tag = 'scoped memory for tpu_custom_call.1']
    #allocation5 [shape = 'u8[8192]{0}', space=vmem, size = 0x2000, scoped, tag = 'output window, operand 0, single buffered']
    %10 = vsyncpa [#allocation3], 0
    %11 = vsyncpa [#allocation4], 0
    // Predicated region
    $region2: #{tpu_custom_call.1} parent=1 // pred_check
      _
    $region3: #{tpu_custom_call.1} parent=1 // pred_check_branch
      %13 = sbr.rel (0) target = $region5
    $region4: #{tpu_custom_call.1} parent=1 // pred_region
      %15 = vsyncadd [#allocation3], 0
      %s16 = sshll.u32 %s0, 4
      %s17 = int_to_ptr.hbm [resolvable:$true] %s16
      %s18 = sshll.u32 [#allocation2], 4
      %s19 = int_to_ptr.vmem [resolvable:$true] %s18
      %24 = dma.hbm_to_vmem [thread:$0]  %s17, 1216, %s19, [#allocation3], 608, 608, 38
    $region5: #{tpu_custom_call.1} parent=1 // pred_fallthru
      _
    // Predicated region
    $region6: #{tpu_custom_call.1} parent=1 // pred_check
      _
    $region7: #{tpu_custom_call.1} parent=1 // pred_check_branch
      %26 = sbr.rel (0) target = $region9
    $region8: #{tpu_custom_call.1} parent=1 // pred_region
      _
    $region9: #{tpu_custom_call.1} parent=1 // pred_fallthru
      _
    // Predicated region
    $region10: #{tpu_custom_call.1} parent=1 // pred_check
      _
    $region11: #{tpu_custom_call.1} parent=1 // pred_check_branch
      %28 = sbr.rel (0) target = $region13
    $region12: #{tpu_custom_call.1} parent=1 // pred_region
      _
    $region13: #{tpu_custom_call.1} parent=1 // pred_fallthru
      _
    // Predicated region
    $region14: #{tpu_custom_call.1} parent=1 // pred_check
      _
    $region15: #{tpu_custom_call.1} parent=1 // pred_check_branch
      %30 = sbr.rel (0) target = $region17
    $region16: #{tpu_custom_call.1} parent=1 // pred_region
      _
    $region17: #{tpu_custom_call.1} parent=1 // pred_fallthru
      _
    // Predicated region
    $region18: #{tpu_custom_call.1} parent=1 // pred_check
      _
    $region19: #{tpu_custom_call.1} parent=1 // pred_check_branch
      %32 = sbr.rel (0) target = $region21
    $region20: #{tpu_custom_call.1} parent=1 // pred_region
      _
    $region21: #{tpu_custom_call.1} parent=1 // pred_fallthru
      _
    // Predicated region
    $region22: #{tpu_custom_call.1} parent=1 // pred_check
      _
    $region23: #{tpu_custom_call.1} parent=1 // pred_check_branch
      %34 = sbr.rel (0) target = $region25
    $region24: #{tpu_custom_call.1} parent=1 // pred_region
      %36 = dma.done [#allocation3], 1216
    $region25: #{tpu_custom_call.1} parent=1 // pred_fallthru
      _
    %v38 = vld [vmem:[%s1] sm:$0xf]
    %v39 = vld [vmem:[%s2] sm:$0xf]
    %v40 = vld [vmem:[%s3] sm:$0xf]
    %v41 = vld [vmem:[%s3 + $0x4] sm:$0xf]
    %v42 = vld [vmem:[%s3 + $0x8] sm:$0xf]
    %v43 = vld [vmem:[%s3 + $0xc] sm:$0xf]
    %v44 = vld [vmem:[%s3 + $0x10] sm:$0xf]
    %v45 = vld [vmem:[%s3 + $0x14] sm:$0xf]
    %v46 = vld [vmem:[%s3 + $0x18] sm:$0xf]
    %v47 = vld [vmem:[%s3 + $0x1c] sm:$0xf]
    %v48 = vld [vmem:[%s3 + $0x20] sm:$0xf]
    %v49 = vld [vmem:[%s3 + $0x24] sm:$0xf]
    %v50 = vld [vmem:[%s3 + $0x28] sm:$0xf]
    %v51 = vld [vmem:[%s3 + $0x2c] sm:$0xf]
    %v52 = vld [vmem:[%s3 + $0x30] sm:$0xf]
    %v53 = vld [vmem:[%s3 + $0x34] sm:$0xf]
    %v54 = vld [vmem:[%s3 + $0x38] sm:$0xf]
    %v55 = vld [vmem:[%s3 + $0x3c] sm:$0xf]
    %v56 = vld [vmem:[%s4] sm:$0xff]
    %v57 = vld [vmem:[%s4 + $0x8] sm:$0xff]
    %v58 = vld [vmem:[#allocation2] sm:$0xff]
    %v59 = vld [vmem:[#allocation2 + $0x8] sm:$0xff]
    %v60 = vld [vmem:[#allocation2 + $0x10] sm:$0xff]
    %v61 = vld [vmem:[#allocation2 + $0x18] sm:$0xff]
    %v62 = vld [vmem:[#allocation2 + $0x20] sm:$0x3f]
    %v64 = vunpack.c.l.b16 %v38
    %v65 = vpack.c.b16 %v64, %v64
    %66 = vrot.lane.b32.xlu0 %v65, 124
    %v67 = vpop.permute.xlu0 %66
    %69 = vst [vmem:[#allocation1] ss:$4 sm:$0xff] %v58
    %s71 = scalar_lea.vmem [#allocation1], 32
    %72 = vst [vmem:[%s71] ss:$4 sm:$0xff] %v59
    %v73 = vld.sshfl [vmem:[#allocation1] sm:$0xff pattern:$0x73625140]
    %v75 = vld.sshfl [vmem:[#allocation1 + $0x8] sm:$0xff pattern:$0x73625140]
    %v77 = vld.sshfl [vmem:[#allocation1 + $0x10] sm:$0xff pattern:$0x73625140]
    %v79 = vld.sshfl [vmem:[#allocation1 + $0x18] sm:$0xff pattern:$0x73625140]
    %v81 = vld.sshfl [vmem:[#allocation1 + $0x20] sm:$0xff pattern:$0x73625140]
    %v83 = vld.sshfl [vmem:[#allocation1 + $0x28] sm:$0xff pattern:$0x73625140]
    %v85 = vld.sshfl [vmem:[#allocation1 + $0x30] sm:$0xff pattern:$0x73625140]
    %v87 = vld.sshfl [vmem:[#allocation1 + $0x38] sm:$0xff pattern:$0x73625140]
    %90 = vst [vmem:[#allocation1] ss:$4 sm:$0xff] %v60
    %92 = vst [vmem:[%s71] ss:$4 sm:$0xff] %v61
    %v93 = vld.sshfl [vmem:[#allocation1] sm:$0xff pattern:$0x73625140]
    %v95 = vld.sshfl [vmem:[#allocation1 + $0x8] sm:$0xff pattern:$0x73625140]
    %v97 = vld.sshfl [vmem:[#allocation1 + $0x10] sm:$0xff pattern:$0x73625140]
    %v99 = vld.sshfl [vmem:[#allocation1 + $0x18] sm:$0xff pattern:$0x73625140]
    %v101 = vld.sshfl [vmem:[#allocation1 + $0x20] sm:$0xff pattern:$0x73625140]
    %v103 = vld.sshfl [vmem:[#allocation1 + $0x28] sm:$0xff pattern:$0x73625140]
    %v105 = vld.sshfl [vmem:[#allocation1 + $0x30] sm:$0xff pattern:$0x73625140]
    %v107 = vld.sshfl [vmem:[#allocation1 + $0x38] sm:$0xff pattern:$0x73625140]
    %109 = vrot.lane.b32.xlu0 %v73, 127
    %v110 = vpop.permute.xlu0 %109
    %111 = vrot.lane.b32.xlu0 %v75, 127
    %v112 = vpop.permute.xlu0 %111
    %113 = vrot.lane.b32.xlu0 %v77, 127
    %v114 = vpop.permute.xlu0 %113
    %115 = vrot.lane.b32.xlu0 %v79, 127
    %v116 = vpop.permute.xlu0 %115
    %117 = vrot.lane.b32.xlu0 %v81, 127
    %v118 = vpop.permute.xlu0 %117
    %119 = vrot.lane.b32.xlu0 %v83, 127
    %v120 = vpop.permute.xlu0 %119
    %121 = vrot.lane.b32.xlu0 %v85, 127
    %v122 = vpop.permute.xlu0 %121
    %123 = vrot.lane.b32.xlu0 %v87, 127
    %v124 = vpop.permute.xlu0 %123
    %125 = vrot.lane.b32.xlu0 %v93, 127
    %v126 = vpop.permute.xlu0 %125
    %127 = vrot.lane.b32.xlu0 %v95, 127
    %v128 = vpop.permute.xlu0 %127
    %129 = vrot.lane.b32.xlu0 %v97, 127
    %v130 = vpop.permute.xlu0 %129
    %131 = vrot.lane.b32.xlu0 %v99, 127
    %v132 = vpop.permute.xlu0 %131
    %133 = vrot.lane.b32.xlu0 %v101, 127
    %v134 = vpop.permute.xlu0 %133
    %135 = vrot.lane.b32.xlu0 %v103, 127
    %v136 = vpop.permute.xlu0 %135
    %137 = vrot.lane.b32.xlu0 %v105, 127
    %v138 = vpop.permute.xlu0 %137
    %139 = vrot.lane.b32.xlu0 %v107, 127
    %v140 = vpop.permute.xlu0 %139
    %vm141 = vcmask 1039360
    %v142 = vsel %vm141, %v110, %v112
    %v143 = vsel %vm141, %v112, %v114
    %v144 = vsel %vm141, %v114, %v116
    %v145 = vsel %vm141, %v116, %v118
    %v146 = vsel %vm141, %v118, %v120
    %v147 = vsel %vm141, %v120, %v122
    %v148 = vsel %vm141, %v122, %v124
    %v149 = vsel %vm141, %v124, %v126
    %v150 = vsel %vm141, %v126, %v128
    %v151 = vsel %vm141, %v128, %v130
    %v152 = vsel %vm141, %v130, %v132
    %v153 = vsel %vm141, %v132, %v134
    %v154 = vsel %vm141, %v134, %v136
    %v155 = vsel %vm141, %v136, %v138
    %v156 = vsel %vm141, %v138, %v140
    %vm157 = vcmask 31744
    %v159 = vsel %vm157, %v67, 0
    %vm161 = vcmask 1041408
    %v163 = vsel %vm161, %v142, 0
    %v166 = vsel %vm161, %v143, 0
    %v169 = vsel %vm161, %v144, 0
    %v172 = vsel %vm161, %v145, 0
    %v175 = vsel %vm161, %v146, 0
    %v178 = vsel %vm161, %v147, 0
    %v181 = vsel %vm161, %v148, 0
    %v184 = vsel %vm161, %v149, 0
    %v187 = vsel %vm161, %v150, 0
    %v190 = vsel %vm161, %v151, 0
    %v193 = vsel %vm161, %v152, 0
    %v196 = vsel %vm161, %v153, 0
    %v199 = vsel %vm161, %v154, 0
    %v202 = vsel %vm161, %v155, 0
    %v205 = vsel %vm161, %v156, 0
    %207 = vmatpush.bf16.msra.mxu0 0
    %208 = vmatpush.bf16.msra.mxu0 0
    %209 = vmatpush.bf16.msra.mxu0 0
    %210 = vmatpush.bf16.msra.mxu0 0
    %211 = vmatpush.bf16.msra.mxu0 0
    %212 = vmatpush.bf16.msra.mxu0 0
    %213 = vmatpush.bf16.msra.mxu0 0
    %214 = vmatpush.bf16.msra.mxu0 %v163
    %215 = vmatmul.bf16.gmra.mxu0 %v159
    %v216 = vpop.f32.mrf.mxu0
    %v217 = vadd.f32 0.0, %v216
    %v218 = vpop.f32.mrf.mxu0
    %219 = vdwg.mxu0
    %220 = vmatpush.bf16.msra.mxu0 0
    %221 = vmatpush.bf16.msra.mxu0 0
    %222 = vmatpush.bf16.msra.mxu0 0
    %223 = vmatpush.bf16.msra.mxu0 0
    %224 = vmatpush.bf16.msra.mxu0 0
    %225 = vmatpush.bf16.msra.mxu0 0
    %226 = vmatpush.bf16.msra.mxu0 0
    %227 = vmatpush.bf16.msra.mxu0 %v166
    %228 = vmatmul.bf16.gmra.mxu0 %v159
    %v229 = vpop.f32.mrf.mxu0
    %v230 = vadd.f32 0.0, %v229
    %v231 = vpop.f32.mrf.mxu0
    %232 = vdwg.mxu0
    %233 = vmatpush.bf16.msra.mxu0 0
    %234 = vmatpush.bf16.msra.mxu0 0
    %235 = vmatpush.bf16.msra.mxu0 0
    %236 = vmatpush.bf16.msra.mxu0 0
    %237 = vmatpush.bf16.msra.mxu0 0
    %238 = vmatpush.bf16.msra.mxu0 0
    %239 = vmatpush.bf16.msra.mxu0 0
    %240 = vmatpush.bf16.msra.mxu0 %v169
    %241 = vmatmul.bf16.gmra.mxu0 %v159
    %v242 = vpop.f32.mrf.mxu0
    %v243 = vadd.f32 0.0, %v242
    %v244 = vpop.f32.mrf.mxu0
    %245 = vdwg.mxu0
    %246 = vmatpush.bf16.msra.mxu0 0
    %247 = vmatpush.bf16.msra.mxu0 0
    %248 = vmatpush.bf16.msra.mxu0 0
    %249 = vmatpush.bf16.msra.mxu0 0
    %250 = vmatpush.bf16.msra.mxu0 0
    %251 = vmatpush.bf16.msra.mxu0 0
    %252 = vmatpush.bf16.msra.mxu0 0
    %253 = vmatpush.bf16.msra.mxu0 %v172
    %254 = vmatmul.bf16.gmra.mxu0 %v159
    %v255 = vpop.f32.mrf.mxu0
    %v256 = vadd.f32 0.0, %v255
    %v257 = vpop.f32.mrf.mxu0
    %258 = vdwg.mxu0
    %259 = vmatpush.bf16.msra.mxu0 0
    %260 = vmatpush.bf16.msra.mxu0 0
    %261 = vmatpush.bf16.msra.mxu0 0
    %262 = vmatpush.bf16.msra.mxu0 0
    %263 = vmatpush.bf16.msra.mxu0 0
    %264 = vmatpush.bf16.msra.mxu0 0
    %265 = vmatpush.bf16.msra.mxu0 0
    %266 = vmatpush.bf16.msra.mxu0 %v175
    %267 = vmatmul.bf16.gmra.mxu0 %v159
    %v268 = vpop.f32.mrf.mxu0
    %v269 = vadd.f32 0.0, %v268
    %v270 = vpop.f32.mrf.mxu0
    %271 = vdwg.mxu0
    %272 = vmatpush.bf16.msra.mxu0 0
    %273 = vmatpush.bf16.msra.mxu0 0
    %274 = vmatpush.bf16.msra.mxu0 0
    %275 = vmatpush.bf16.msra.mxu0 0
    %276 = vmatpush.bf16.msra.mxu0 0
    %277 = vmatpush.bf16.msra.mxu0 0
    %278 = vmatpush.bf16.msra.mxu0 0
    %279 = vmatpush.bf16.msra.mxu0 %v178
    %280 = vmatmul.bf16.gmra.mxu0 %v159
    %v281 = vpop.f32.mrf.mxu0
    %v282 = vadd.f32 0.0, %v281
    %v283 = vpop.f32.mrf.mxu0
    %284 = vdwg.mxu0
    %285 = vmatpush.bf16.msra.mxu0 0
    %286 = vmatpush.bf16.msra.mxu0 0
    %287 = vmatpush.bf16.msra.mxu0 0
    %288 = vmatpush.bf16.msra.mxu0 0
    %289 = vmatpush.bf16.msra.mxu0 0
    %290 = vmatpush.bf16.msra.mxu0 0
    %291 = vmatpush.bf16.msra.mxu0 0
    %292 = vmatpush.bf16.msra.mxu0 %v181
    %293 = vmatmul.bf16.gmra.mxu0 %v159
    %v294 = vpop.f32.mrf.mxu0
    %v295 = vadd.f32 0.0, %v294
    %v296 = vpop.f32.mrf.mxu0
    %297 = vdwg.mxu0
    %298 = vmatpush.bf16.msra.mxu0 0
    %299 = vmatpush.bf16.msra.mxu0 0
    %300 = vmatpush.bf16.msra.mxu0 0
    %301 = vmatpush.bf16.msra.mxu0 0
    %302 = vmatpush.bf16.msra.mxu0 0
    %303 = vmatpush.bf16.msra.mxu0 0
    %304 = vmatpush.bf16.msra.mxu0 0
    %305 = vmatpush.bf16.msra.mxu0 %v184
    %306 = vmatmul.bf16.gmra.mxu0 %v159
    %v307 = vpop.f32.mrf.mxu0
    %v308 = vadd.f32 0.0, %v307
    %v309 = vpop.f32.mrf.mxu0
    %310 = vdwg.mxu0
    %311 = vmatpush.bf16.msra.mxu0 0
    %312 = vmatpush.bf16.msra.mxu0 0
    %313 = vmatpush.bf16.msra.mxu0 0
    %314 = vmatpush.bf16.msra.mxu0 0
    %315 = vmatpush.bf16.msra.mxu0 0
    %316 = vmatpush.bf16.msra.mxu0 0
    %317 = vmatpush.bf16.msra.mxu0 0
    %318 = vmatpush.bf16.msra.mxu0 %v187
    %319 = vmatmul.bf16.gmra.mxu0 %v159
    %v320 = vpop.f32.mrf.mxu0
    %v321 = vadd.f32 0.0, %v320
    %v322 = vpop.f32.mrf.mxu0
    %323 = vdwg.mxu0
    %324 = vmatpush.bf16.msra.mxu0 0
    %325 = vmatpush.bf16.msra.mxu0 0
    %326 = vmatpush.bf16.msra.mxu0 0
    %327 = vmatpush.bf16.msra.mxu0 0
    %328 = vmatpush.bf16.msra.mxu0 0
    %329 = vmatpush.bf16.msra.mxu0 0
    %330 = vmatpush.bf16.msra.mxu0 0
    %331 = vmatpush.bf16.msra.mxu0 %v190
    %332 = vmatmul.bf16.gmra.mxu0 %v159
    %v333 = vpop.f32.mrf.mxu0
    %v334 = vadd.f32 0.0, %v333
    %v335 = vpop.f32.mrf.mxu0
    %336 = vdwg.mxu0
    %337 = vmatpush.bf16.msra.mxu0 0
    %338 = vmatpush.bf16.msra.mxu0 0
    %339 = vmatpush.bf16.msra.mxu0 0
    %340 = vmatpush.bf16.msra.mxu0 0
    %341 = vmatpush.bf16.msra.mxu0 0
    %342 = vmatpush.bf16.msra.mxu0 0
    %343 = vmatpush.bf16.msra.mxu0 0
    %344 = vmatpush.bf16.msra.mxu0 %v193
    %345 = vmatmul.bf16.gmra.mxu0 %v159
    %v346 = vpop.f32.mrf.mxu0
    %v347 = vadd.f32 0.0, %v346
    %v348 = vpop.f32.mrf.mxu0
    %349 = vdwg.mxu0
    %350 = vmatpush.bf16.msra.mxu0 0
    %351 = vmatpush.bf16.msra.mxu0 0
    %352 = vmatpush.bf16.msra.mxu0 0
    %353 = vmatpush.bf16.msra.mxu0 0
    %354 = vmatpush.bf16.msra.mxu0 0
    %355 = vmatpush.bf16.msra.mxu0 0
    %356 = vmatpush.bf16.msra.mxu0 0
    %357 = vmatpush.bf16.msra.mxu0 %v196
    %358 = vmatmul.bf16.gmra.mxu0 %v159
    %v359 = vpop.f32.mrf.mxu0
    %v360 = vadd.f32 0.0, %v359
    %v361 = vpop.f32.mrf.mxu0
    %362 = vdwg.mxu0
    %363 = vmatpush.bf16.msra.mxu0 0
    %364 = vmatpush.bf16.msra.mxu0 0
    %365 = vmatpush.bf16.msra.mxu0 0
    %366 = vmatpush.bf16.msra.mxu0 0
    %367 = vmatpush.bf16.msra.mxu0 0
    %368 = vmatpush.bf16.msra.mxu0 0
    %369 = vmatpush.bf16.msra.mxu0 0
    %370 = vmatpush.bf16.msra.mxu0 %v199
    %371 = vmatmul.bf16.gmra.mxu0 %v159
    %v372 = vpop.f32.mrf.mxu0
    %v373 = vadd.f32 0.0, %v372
    %v374 = vpop.f32.mrf.mxu0
    %375 = vdwg.mxu0
    %376 = vmatpush.bf16.msra.mxu0 0
    %377 = vmatpush.bf16.msra.mxu0 0
    %378 = vmatpush.bf16.msra.mxu0 0
    %379 = vmatpush.bf16.msra.mxu0 0
    %380 = vmatpush.bf16.msra.mxu0 0
    %381 = vmatpush.bf16.msra.mxu0 0
    %382 = vmatpush.bf16.msra.mxu0 0
    %383 = vmatpush.bf16.msra.mxu0 %v202
    %384 = vmatmul.bf16.gmra.mxu0 %v159
    %v385 = vpop.f32.mrf.mxu0
    %v386 = vadd.f32 0.0, %v385
    %v387 = vpop.f32.mrf.mxu0
    %388 = vdwg.mxu0
    %389 = vmatpush.bf16.msra.mxu0 0
    %390 = vmatpush.bf16.msra.mxu0 0
    %391 = vmatpush.bf16.msra.mxu0 0
    %392 = vmatpush.bf16.msra.mxu0 0
    %393 = vmatpush.bf16.msra.mxu0 0
    %394 = vmatpush.bf16.msra.mxu0 0
    %395 = vmatpush.bf16.msra.mxu0 0
    %396 = vmatpush.bf16.msra.mxu0 %v205
    %397 = vmatmul.bf16.gmra.mxu0 %v159
    %v398 = vpop.f32.mrf.mxu0
    %v399 = vadd.f32 0.0, %v398
    %v400 = vpop.f32.mrf.mxu0
    %401 = vdwg.mxu0
    %402 = vst [vmem:[#allocation1] ss:$4 sm:$0xff] %v58
    %s403 = scalar_lea.vmem [#allocation1], 32
    %404 = vst [vmem:[%s403] ss:$4 sm:$0xff] %v59
    %v405 = vld.sshfl [vmem:[#allocation1] sm:$0xff pattern:$0x73625140]
    %v406 = vld.sshfl [vmem:[#allocation1 + $0x8] sm:$0xff pattern:$0x73625140]
    %v407 = vld.sshfl [vmem:[#allocation1 + $0x10] sm:$0xff pattern:$0x73625140]
    %v408 = vld.sshfl [vmem:[#allocation1 + $0x18] sm:$0xff pattern:$0x73625140]
    %v409 = vld.sshfl [vmem:[#allocation1 + $0x20] sm:$0xff pattern:$0x73625140]
    %v410 = vld.sshfl [vmem:[#allocation1 + $0x28] sm:$0xff pattern:$0x73625140]
    %v411 = vld.sshfl [vmem:[#allocation1 + $0x30] sm:$0xff pattern:$0x73625140]
    %v412 = vld.sshfl [vmem:[#allocation1 + $0x38] sm:$0xff pattern:$0x73625140]
    %413 = vst [vmem:[#allocation1] ss:$4 sm:$0xff] %v60
    %414 = vst [vmem:[%s403] ss:$4 sm:$0xff] %v61
    %v415 = vld.sshfl [vmem:[#allocation1] sm:$0xff pattern:$0x73625140]
    %v416 = vld.sshfl [vmem:[#allocation1 + $0x8] sm:$0xff pattern:$0x73625140]
    %v417 = vld.sshfl [vmem:[#allocation1 + $0x10] sm:$0xff pattern:$0x73625140]
    %v418 = vld.sshfl [vmem:[#allocation1 + $0x18] sm:$0xff pattern:$0x73625140]
    %v419 = vld.sshfl [vmem:[#allocation1 + $0x20] sm:$0xff pattern:$0x73625140]
    %v420 = vld.sshfl [vmem:[#allocation1 + $0x28] sm:$0xff pattern:$0x73625140]
    %v421 = vld.sshfl [vmem:[#allocation1 + $0x30] sm:$0xff pattern:$0x73625140]
    %v423 = vsel %vm157, %v38, 0
    %v425 = vsel %vm161, %v405, 0
    %v427 = vsel %vm161, %v406, 0
    %v429 = vsel %vm161, %v407, 0
    %v431 = vsel %vm161, %v408, 0
    %v433 = vsel %vm161, %v409, 0
    %v435 = vsel %vm161, %v410, 0
    %v437 = vsel %vm161, %v411, 0
    %v439 = vsel %vm161, %v412, 0
    %v441 = vsel %vm161, %v415, 0
    %v443 = vsel %vm161, %v416, 0
    %v445 = vsel %vm161, %v417, 0
    %v447 = vsel %vm161, %v418, 0
    %v449 = vsel %vm161, %v419, 0
    %v451 = vsel %vm161, %v420, 0
    %v453 = vsel %vm161, %v421, 0
    %455 = vmatpush.bf16.msra.mxu0 0
    %456 = vmatpush.bf16.msra.mxu0 0
    %457 = vmatpush.bf16.msra.mxu0 0
    %458 = vmatpush.bf16.msra.mxu0 0
    %459 = vmatpush.bf16.msra.mxu0 0
    %460 = vmatpush.bf16.msra.mxu0 0
    %461 = vmatpush.bf16.msra.mxu0 0
    %462 = vmatpush.bf16.msra.mxu0 %v425
    %463 = vmatmul.bf16.gmra.mxu0 %v423
    %v464 = vpop.f32.mrf.mxu0
    %v465 = vadd.f32 %v217, %v464
    %v466 = vpop.f32.mrf.mxu0
    %467 = vdwg.mxu0
    %468 = vmatpush.bf16.msra.mxu0 0
    %469 = vmatpush.bf16.msra.mxu0 0
    %470 = vmatpush.bf16.msra.mxu0 0
    %471 = vmatpush.bf16.msra.mxu0 0
    %472 = vmatpush.bf16.msra.mxu0 0
    %473 = vmatpush.bf16.msra.mxu0 0
    %474 = vmatpush.bf16.msra.mxu0 0
    %475 = vmatpush.bf16.msra.mxu0 %v427
    %476 = vmatmul.bf16.gmra.mxu0 %v423
    %v477 = vpop.f32.mrf.mxu0
    %v478 = vadd.f32 %v230, %v477
    %v479 = vpop.f32.mrf.mxu0
    %480 = vdwg.mxu0
    %481 = vmatpush.bf16.msra.mxu0 0
    %482 = vmatpush.bf16.msra.mxu0 0
    %483 = vmatpush.bf16.msra.mxu0 0
    %484 = vmatpush.bf16.msra.mxu0 0
    %485 = vmatpush.bf16.msra.mxu0 0
    %486 = vmatpush.bf16.msra.mxu0 0
    %487 = vmatpush.bf16.msra.mxu0 0
    %488 = vmatpush.bf16.msra.mxu0 %v429
    %489 = vmatmul.bf16.gmra.mxu0 %v423
    %v490 = vpop.f32.mrf.mxu0
    %v491 = vadd.f32 %v243, %v490
    %v492 = vpop.f32.mrf.mxu0
    %493 = vdwg.mxu0
    %494 = vmatpush.bf16.msra.mxu0 0
    %495 = vmatpush.bf16.msra.mxu0 0
    %496 = vmatpush.bf16.msra.mxu0 0
    %497 = vmatpush.bf16.msra.mxu0 0
    %498 = vmatpush.bf16.msra.mxu0 0
    %499 = vmatpush.bf16.msra.mxu0 0
    %500 = vmatpush.bf16.msra.mxu0 0
    %501 = vmatpush.bf16.msra.mxu0 %v431
    %502 = vmatmul.bf16.gmra.mxu0 %v423
    %v503 = vpop.f32.mrf.mxu0
    %v504 = vadd.f32 %v256, %v503
    %v505 = vpop.f32.mrf.mxu0
    %506 = vdwg.mxu0
    %507 = vmatpush.bf16.msra.mxu0 0
    %508 = vmatpush.bf16.msra.mxu0 0
    %509 = vmatpush.bf16.msra.mxu0 0
    %510 = vmatpush.bf16.msra.mxu0 0
    %511 = vmatpush.bf16.msra.mxu0 0
    %512 = vmatpush.bf16.msra.mxu0 0
    %513 = vmatpush.bf16.msra.mxu0 0
    %514 = vmatpush.bf16.msra.mxu0 %v433
    %515 = vmatmul.bf16.gmra.mxu0 %v423
    %v516 = vpop.f32.mrf.mxu0
    %v517 = vadd.f32 %v269, %v516
    %v518 = vpop.f32.mrf.mxu0
    %519 = vdwg.mxu0
    %520 = vmatpush.bf16.msra.mxu0 0
    %521 = vmatpush.bf16.msra.mxu0 0
    %522 = vmatpush.bf16.msra.mxu0 0
    %523 = vmatpush.bf16.msra.mxu0 0
    %524 = vmatpush.bf16.msra.mxu0 0
    %525 = vmatpush.bf16.msra.mxu0 0
    %526 = vmatpush.bf16.msra.mxu0 0
    %527 = vmatpush.bf16.msra.mxu0 %v435
    %528 = vmatmul.bf16.gmra.mxu0 %v423
    %v529 = vpop.f32.mrf.mxu0
    %v530 = vadd.f32 %v282, %v529
    %v531 = vpop.f32.mrf.mxu0
    %532 = vdwg.mxu0
    %533 = vmatpush.bf16.msra.mxu0 0
    %534 = vmatpush.bf16.msra.mxu0 0
    %535 = vmatpush.bf16.msra.mxu0 0
    %536 = vmatpush.bf16.msra.mxu0 0
    %537 = vmatpush.bf16.msra.mxu0 0
    %538 = vmatpush.bf16.msra.mxu0 0
    %539 = vmatpush.bf16.msra.mxu0 0
    %540 = vmatpush.bf16.msra.mxu0 %v437
    %541 = vmatmul.bf16.gmra.mxu0 %v423
    %v542 = vpop.f32.mrf.mxu0
    %v543 = vadd.f32 %v295, %v542
    %v544 = vpop.f32.mrf.mxu0
    %545 = vdwg.mxu0
    %546 = vmatpush.bf16.msra.mxu0 0
    %547 = vmatpush.bf16.msra.mxu0 0
    %548 = vmatpush.bf16.msra.mxu0 0
    %549 = vmatpush.bf16.msra.mxu0 0
    %550 = vmatpush.bf16.msra.mxu0 0
    %551 = vmatpush.bf16.msra.mxu0 0
    %552 = vmatpush.bf16.msra.mxu0 0
    %553 = vmatpush.bf16.msra.mxu0 %v439
    %554 = vmatmul.bf16.gmra.mxu0 %v423
    %v555 = vpop.f32.mrf.mxu0
    %v556 = vadd.f32 %v308, %v555
    %v557 = vpop.f32.mrf.mxu0
    %558 = vdwg.mxu0
    %559 = vmatpush.bf16.msra.mxu0 0
    %560 = vmatpush.bf16.msra.mxu0 0
    %561 = vmatpush.bf16.msra.mxu0 0
    %562 = vmatpush.bf16.msra.mxu0 0
    %563 = vmatpush.bf16.msra.mxu0 0
    %564 = vmatpush.bf16.msra.mxu0 0
    %565 = vmatpush.bf16.msra.mxu0 0
    %566 = vmatpush.bf16.msra.mxu0 %v441
    %567 = vmatmul.bf16.gmra.mxu0 %v423
    %v568 = vpop.f32.mrf.mxu0
    %v569 = vadd.f32 %v321, %v568
    %v570 = vpop.f32.mrf.mxu0
    %571 = vdwg.mxu0
    %572 = vmatpush.bf16.msra.mxu0 0
    %573 = vmatpush.bf16.msra.mxu0 0
    %574 = vmatpush.bf16.msra.mxu0 0
    %575 = vmatpush.bf16.msra.mxu0 0
    %576 = vmatpush.bf16.msra.mxu0 0
    %577 = vmatpush.bf16.msra.mxu0 0
    %578 = vmatpush.bf16.msra.mxu0 0
    %579 = vmatpush.bf16.msra.mxu0 %v443
    %580 = vmatmul.bf16.gmra.mxu0 %v423
    %v581 = vpop.f32.mrf.mxu0
    %v582 = vadd.f32 %v334, %v581
    %v583 = vpop.f32.mrf.mxu0
    %584 = vdwg.mxu0
    %585 = vmatpush.bf16.msra.mxu0 0
    %586 = vmatpush.bf16.msra.mxu0 0
    %587 = vmatpush.bf16.msra.mxu0 0
    %588 = vmatpush.bf16.msra.mxu0 0
    %589 = vmatpush.bf16.msra.mxu0 0
    %590 = vmatpush.bf16.msra.mxu0 0
    %591 = vmatpush.bf16.msra.mxu0 0
    %592 = vmatpush.bf16.msra.mxu0 %v445
    %593 = vmatmul.bf16.gmra.mxu0 %v423
    %v594 = vpop.f32.mrf.mxu0
    %v595 = vadd.f32 %v347, %v594
    %v596 = vpop.f32.mrf.mxu0
    %597 = vdwg.mxu0
    %598 = vmatpush.bf16.msra.mxu0 0
    %599 = vmatpush.bf16.msra.mxu0 0
    %600 = vmatpush.bf16.msra.mxu0 0
    %601 = vmatpush.bf16.msra.mxu0 0
    %602 = vmatpush.bf16.msra.mxu0 0
    %603 = vmatpush.bf16.msra.mxu0 0
    %604 = vmatpush.bf16.msra.mxu0 0
    %605 = vmatpush.bf16.msra.mxu0 %v447
    %606 = vmatmul.bf16.gmra.mxu0 %v423
    %v607 = vpop.f32.mrf.mxu0
    %v608 = vadd.f32 %v360, %v607
    %v609 = vpop.f32.mrf.mxu0
    %610 = vdwg.mxu0
    %611 = vmatpush.bf16.msra.mxu0 0
    %612 = vmatpush.bf16.msra.mxu0 0
    %613 = vmatpush.bf16.msra.mxu0 0
    %614 = vmatpush.bf16.msra.mxu0 0
    %615 = vmatpush.bf16.msra.mxu0 0
    %616 = vmatpush.bf16.msra.mxu0 0
    %617 = vmatpush.bf16.msra.mxu0 0
    %618 = vmatpush.bf16.msra.mxu0 %v449
    %619 = vmatmul.bf16.gmra.mxu0 %v423
    %v620 = vpop.f32.mrf.mxu0
    %v621 = vadd.f32 %v373, %v620
    %v622 = vpop.f32.mrf.mxu0
    %623 = vdwg.mxu0
    %624 = vmatpush.bf16.msra.mxu0 0
    %625 = vmatpush.bf16.msra.mxu0 0
    %626 = vmatpush.bf16.msra.mxu0 0
    %627 = vmatpush.bf16.msra.mxu0 0
    %628 = vmatpush.bf16.msra.mxu0 0
    %629 = vmatpush.bf16.msra.mxu0 0
    %630 = vmatpush.bf16.msra.mxu0 0
    %631 = vmatpush.bf16.msra.mxu0 %v451
    %632 = vmatmul.bf16.gmra.mxu0 %v423
    %v633 = vpop.f32.mrf.mxu0
    %v634 = vadd.f32 %v386, %v633
    %v635 = vpop.f32.mrf.mxu0
    %636 = vdwg.mxu0
    %637 = vmatpush.bf16.msra.mxu0 0
    %638 = vmatpush.bf16.msra.mxu0 0
    %639 = vmatpush.bf16.msra.mxu0 0
    %640 = vmatpush.bf16.msra.mxu0 0
    %641 = vmatpush.bf16.msra.mxu0 0
    %642 = vmatpush.bf16.msra.mxu0 0
    %643 = vmatpush.bf16.msra.mxu0 0
    %644 = vmatpush.bf16.msra.mxu0 %v453
    %645 = vmatmul.bf16.gmra.mxu0 %v423
    %v646 = vpop.f32.mrf.mxu0
    %v647 = vadd.f32 %v399, %v646
    %v648 = vpop.f32.mrf.mxu0
    %649 = vdwg.mxu0
    %650 = vrot.lane.b32.xlu0 %v65, 120
    %v651 = vpop.permute.xlu0 %650
    %652 = vst [vmem:[#allocation1] ss:$4 sm:$0xff] %v58
    %s653 = scalar_lea.vmem [#allocation1], 32
    %654 = vst [vmem:[%s653] ss:$4 sm:$0xff] %v59
    %v655 = vld.sshfl [vmem:[#allocation1] sm:$0xff pattern:$0x73625140]
    %v657 = vld.sshfl [vmem:[#allocation1 + $0x8] sm:$0xff pattern:$0x73625140]
    %v659 = vld.sshfl [vmem:[#allocation1 + $0x10] sm:$0xff pattern:$0x73625140]
    %v661 = vld.sshfl [vmem:[#allocation1 + $0x18] sm:$0xff pattern:$0x73625140]
    %v663 = vld.sshfl [vmem:[#allocation1 + $0x20] sm:$0xff pattern:$0x73625140]
    %v665 = vld.sshfl [vmem:[#allocation1 + $0x28] sm:$0xff pattern:$0x73625140]
    %v667 = vld.sshfl [vmem:[#allocation1 + $0x30] sm:$0xff pattern:$0x73625140]
    %v669 = vld.sshfl [vmem:[#allocation1 + $0x38] sm:$0xff pattern:$0x73625140]
    %671 = vst [vmem:[#allocation1] ss:$4 sm:$0xff] %v60
    %672 = vst [vmem:[%s653] ss:$4 sm:$0xff] %v61
    %v673 = vld.sshfl [vmem:[#allocation1] sm:$0xff pattern:$0x73625140]
    %v675 = vld.sshfl [vmem:[#allocation1 + $0x8] sm:$0xff pattern:$0x73625140]
    %v677 = vld.sshfl [vmem:[#allocation1 + $0x10] sm:$0xff pattern:$0x73625140]
    %v679 = vld.sshfl [vmem:[#allocation1 + $0x18] sm:$0xff pattern:$0x73625140]
    %v681 = vld.sshfl [vmem:[#allocation1 + $0x20] sm:$0xff pattern:$0x73625140]
    %v683 = vld.sshfl [vmem:[#allocation1 + $0x28] sm:$0xff pattern:$0x73625140]
    %v685 = vld.sshfl [vmem:[#allocation1 + $0x30] sm:$0xff pattern:$0x73625140]
    %v687 = vld.sshfl [vmem:[#allocation1 + $0x38] sm:$0xff pattern:$0x73625140]
    %689 = vrot.lane.b32.xlu0 %v655, 126
    %v690 = vpop.permute.xlu0 %689
    %691 = vrot.lane.b32.xlu0 %v657, 126
    %v692 = vpop.permute.xlu0 %691
    %693 = vrot.lane.b32.xlu0 %v659, 126
    %v694 = vpop.permute.xlu0 %693
    %695 = vrot.lane.b32.xlu0 %v661, 126
    %v696 = vpop.permute.xlu0 %695
    %697 = vrot.lane.b32.xlu0 %v663, 126
    %v698 = vpop.permute.xlu0 %697
    %699 = vrot.lane.b32.xlu0 %v665, 126
    %v700 = vpop.permute.xlu0 %699
    %701 = vrot.lane.b32.xlu0 %v667, 126
    %v702 = vpop.permute.xlu0 %701
    %703 = vrot.lane.b32.xlu0 %v669, 126
    %v704 = vpop.permute.xlu0 %703
    %705 = vrot.lane.b32.xlu0 %v673, 126
    %v706 = vpop.permute.xlu0 %705
    %707 = vrot.lane.b32.xlu0 %v675, 126
    %v708 = vpop.permute.xlu0 %707
    %709 = vrot.lane.b32.xlu0 %v677, 126
    %v710 = vpop.permute.xlu0 %709
    %711 = vrot.lane.b32.xlu0 %v679, 126
    %v712 = vpop.permute.xlu0 %711
    %713 = vrot.lane.b32.xlu0 %v681, 126
    %v714 = vpop.permute.xlu0 %713
    %715 = vrot.lane.b32.xlu0 %v683, 126
    %v716 = vpop.permute.xlu0 %715
    %717 = vrot.lane.b32.xlu0 %v685, 126
    %v718 = vpop.permute.xlu0 %717
    %719 = vrot.lane.b32.xlu0 %v687, 126
    %v720 = vpop.permute.xlu0 %719
    %vm721 = vcmask 1031168
    %v722 = vsel %vm721, %v690, %v692
    %v723 = vsel %vm721, %v692, %v694
    %v724 = vsel %vm721, %v694, %v696
    %v725 = vsel %vm721, %v696, %v698
    %v726 = vsel %vm721, %v698, %v700
    %v727 = vsel %vm721, %v700, %v702
    %v728 = vsel %vm721, %v702, %v704
    %v729 = vsel %vm721, %v704, %v706
    %v730 = vsel %vm721, %v706, %v708
    %v731 = vsel %vm721, %v708, %v710
    %v732 = vsel %vm721, %v710, %v712
    %v733 = vsel %vm721, %v712, %v714
    %v734 = vsel %vm721, %v714, %v716
    %v735 = vsel %vm721, %v716, %v718
    %v736 = vsel %vm721, %v718, %v720
    %v738 = vsel %vm157, %v651, 0
    %v741 = vsel %vm161, %v722, 0
    %v744 = vsel %vm161, %v723, 0
    %v747 = vsel %vm161, %v724, 0
    %v750 = vsel %vm161, %v725, 0
    %v753 = vsel %vm161, %v726, 0
    %v756 = vsel %vm161, %v727, 0
    %v759 = vsel %vm161, %v728, 0
    %v762 = vsel %vm161, %v729, 0
    %v765 = vsel %vm161, %v730, 0
    %v768 = vsel %vm161, %v731, 0
    %v771 = vsel %vm161, %v732, 0
    %v774 = vsel %vm161, %v733, 0
    %v777 = vsel %vm161, %v734, 0
    %v780 = vsel %vm161, %v735, 0
    %v783 = vsel %vm161, %v736, 0
    %785 = vmatpush.bf16.msra.mxu0 0
    %786 = vmatpush.bf16.msra.mxu0 0
    %787 = vmatpush.bf16.msra.mxu0 0
    %788 = vmatpush.bf16.msra.mxu0 0
    %789 = vmatpush.bf16.msra.mxu0 0
    %790 = vmatpush.bf16.msra.mxu0 0
    %791 = vmatpush.bf16.msra.mxu0 0
    %792 = vmatpush.bf16.msra.mxu0 %v741
    %793 = vmatmul.bf16.gmra.mxu0 %v738
    %v794 = vpop.f32.mrf.mxu0
    %v795 = vadd.f32 0.0, %v794
    %v796 = vpop.f32.mrf.mxu0
    %797 = vdwg.mxu0
    %798 = vmatpush.bf16.msra.mxu0 0
    %799 = vmatpush.bf16.msra.mxu0 0
    %800 = vmatpush.bf16.msra.mxu0 0
    %801 = vmatpush.bf16.msra.mxu0 0
    %802 = vmatpush.bf16.msra.mxu0 0
    %803 = vmatpush.bf16.msra.mxu0 0
    %804 = vmatpush.bf16.msra.mxu0 0
    %805 = vmatpush.bf16.msra.mxu0 %v744
    %806 = vmatmul.bf16.gmra.mxu0 %v738
    %v807 = vpop.f32.mrf.mxu0
    %v808 = vadd.f32 0.0, %v807
    %v809 = vpop.f32.mrf.mxu0
    %810 = vdwg.mxu0
    %811 = vmatpush.bf16.msra.mxu0 0
    %812 = vmatpush.bf16.msra.mxu0 0
    %813 = vmatpush.bf16.msra.mxu0 0
    %814 = vmatpush.bf16.msra.mxu0 0
    %815 = vmatpush.bf16.msra.mxu0 0
    %816 = vmatpush.bf16.msra.mxu0 0
    %817 = vmatpush.bf16.msra.mxu0 0
    %818 = vmatpush.bf16.msra.mxu0 %v747
    %819 = vmatmul.bf16.gmra.mxu0 %v738
    %v820 = vpop.f32.mrf.mxu0
    %v821 = vadd.f32 0.0, %v820
    %v822 = vpop.f32.mrf.mxu0
    %823 = vdwg.mxu0
    %824 = vmatpush.bf16.msra.mxu0 0
    %825 = vmatpush.bf16.msra.mxu0 0
    %826 = vmatpush.bf16.msra.mxu0 0
    %827 = vmatpush.bf16.msra.mxu0 0
    %828 = vmatpush.bf16.msra.mxu0 0
    %829 = vmatpush.bf16.msra.mxu0 0
    %830 = vmatpush.bf16.msra.mxu0 0
    %831 = vmatpush.bf16.msra.mxu0 %v750
    %832 = vmatmul.bf16.gmra.mxu0 %v738
    %v833 = vpop.f32.mrf.mxu0
    %v834 = vadd.f32 0.0, %v833
    %v835 = vpop.f32.mrf.mxu0
    %836 = vdwg.mxu0
    %837 = vmatpush.bf16.msra.mxu0 0
    %838 = vmatpush.bf16.msra.mxu0 0
    %839 = vmatpush.bf16.msra.mxu0 0
    %840 = vmatpush.bf16.msra.mxu0 0
    %841 = vmatpush.bf16.msra.mxu0 0
    %842 = vmatpush.bf16.msra.mxu0 0
    %843 = vmatpush.bf16.msra.mxu0 0
    %844 = vmatpush.bf16.msra.mxu0 %v753
    %845 = vmatmul.bf16.gmra.mxu0 %v738
    %v846 = vpop.f32.mrf.mxu0
    %v847 = vadd.f32 0.0, %v846
    %v848 = vpop.f32.mrf.mxu0
    %849 = vdwg.mxu0
    %850 = vmatpush.bf16.msra.mxu0 0
    %851 = vmatpush.bf16.msra.mxu0 0
    %852 = vmatpush.bf16.msra.mxu0 0
    %853 = vmatpush.bf16.msra.mxu0 0
    %854 = vmatpush.bf16.msra.mxu0 0
    %855 = vmatpush.bf16.msra.mxu0 0
    %856 = vmatpush.bf16.msra.mxu0 0
    %857 = vmatpush.bf16.msra.mxu0 %v756
    %858 = vmatmul.bf16.gmra.mxu0 %v738
    %v859 = vpop.f32.mrf.mxu0
    %v860 = vadd.f32 0.0, %v859
    %v861 = vpop.f32.mrf.mxu0
    %862 = vdwg.mxu0
    %863 = vmatpush.bf16.msra.mxu0 0
    %864 = vmatpush.bf16.msra.mxu0 0
    %865 = vmatpush.bf16.msra.mxu0 0
    %866 = vmatpush.bf16.msra.mxu0 0
    %867 = vmatpush.bf16.msra.mxu0 0
    %868 = vmatpush.bf16.msra.mxu0 0
    %869 = vmatpush.bf16.msra.mxu0 0
    %870 = vmatpush.bf16.msra.mxu0 %v759
    %871 = vmatmul.bf16.gmra.mxu0 %v738
    %v872 = vpop.f32.mrf.mxu0
    %v873 = vadd.f32 0.0, %v872
    %v874 = vpop.f32.mrf.mxu0
    %875 = vdwg.mxu0
    %876 = vmatpush.bf16.msra.mxu0 0
    %877 = vmatpush.bf16.msra.mxu0 0
    %878 = vmatpush.bf16.msra.mxu0 0
    %879 = vmatpush.bf16.msra.mxu0 0
    %880 = vmatpush.bf16.msra.mxu0 0
    %881 = vmatpush.bf16.msra.mxu0 0
    %882 = vmatpush.bf16.msra.mxu0 0
    %883 = vmatpush.bf16.msra.mxu0 %v762
    %884 = vmatmul.bf16.gmra.mxu0 %v738
    %v885 = vpop.f32.mrf.mxu0
    %v886 = vadd.f32 0.0, %v885
    %v887 = vpop.f32.mrf.mxu0
    %888 = vdwg.mxu0
    %889 = vmatpush.bf16.msra.mxu0 0
    %890 = vmatpush.bf16.msra.mxu0 0
    %891 = vmatpush.bf16.msra.mxu0 0
    %892 = vmatpush.bf16.msra.mxu0 0
    %893 = vmatpush.bf16.msra.mxu0 0
    %894 = vmatpush.bf16.msra.mxu0 0
    %895 = vmatpush.bf16.msra.mxu0 0
    %896 = vmatpush.bf16.msra.mxu0 %v765
    %897 = vmatmul.bf16.gmra.mxu0 %v738
    %v898 = vpop.f32.mrf.mxu0
    %v899 = vadd.f32 0.0, %v898
    %v900 = vpop.f32.mrf.mxu0
    %901 = vdwg.mxu0
    %902 = vmatpush.bf16.msra.mxu0 0
    %903 = vmatpush.bf16.msra.mxu0 0
    %904 = vmatpush.bf16.msra.mxu0 0
    %905 = vmatpush.bf16.msra.mxu0 0
    %906 = vmatpush.bf16.msra.mxu0 0
    %907 = vmatpush.bf16.msra.mxu0 0
    %908 = vmatpush.bf16.msra.mxu0 0
    %909 = vmatpush.bf16.msra.mxu0 %v768
    %910 = vmatmul.bf16.gmra.mxu0 %v738
    %v911 = vpop.f32.mrf.mxu0
    %v912 = vadd.f32 0.0, %v911
    %v913 = vpop.f32.mrf.mxu0
    %914 = vdwg.mxu0
    %915 = vmatpush.bf16.msra.mxu0 0
    %916 = vmatpush.bf16.msra.mxu0 0
    %917 = vmatpush.bf16.msra.mxu0 0
    %918 = vmatpush.bf16.msra.mxu0 0
    %919 = vmatpush.bf16.msra.mxu0 0
    %920 = vmatpush.bf16.msra.mxu0 0
    %921 = vmatpush.bf16.msra.mxu0 0
    %922 = vmatpush.bf16.msra.mxu0 %v771
    %923 = vmatmul.bf16.gmra.mxu0 %v738
    %v924 = vpop.f32.mrf.mxu0
    %v925 = vadd.f32 0.0, %v924
    %v926 = vpop.f32.mrf.mxu0
    %927 = vdwg.mxu0
    %928 = vmatpush.bf16.msra.mxu0 0
    %929 = vmatpush.bf16.msra.mxu0 0
    %930 = vmatpush.bf16.msra.mxu0 0
    %931 = vmatpush.bf16.msra.mxu0 0
    %932 = vmatpush.bf16.msra.mxu0 0
    %933 = vmatpush.bf16.msra.mxu0 0
    %934 = vmatpush.bf16.msra.mxu0 0
    %935 = vmatpush.bf16.msra.mxu0 %v774
    %936 = vmatmul.bf16.gmra.mxu0 %v738
    %v937 = vpop.f32.mrf.mxu0
    %v938 = vadd.f32 0.0, %v937
    %v939 = vpop.f32.mrf.mxu0
    %940 = vdwg.mxu0
    %941 = vmatpush.bf16.msra.mxu0 0
    %942 = vmatpush.bf16.msra.mxu0 0
    %943 = vmatpush.bf16.msra.mxu0 0
    %944 = vmatpush.bf16.msra.mxu0 0
    %945 = vmatpush.bf16.msra.mxu0 0
    %946 = vmatpush.bf16.msra.mxu0 0
    %947 = vmatpush.bf16.msra.mxu0 0
    %948 = vmatpush.bf16.msra.mxu0 %v777
    %949 = vmatmul.bf16.gmra.mxu0 %v738
    %v950 = vpop.f32.mrf.mxu0
    %v951 = vadd.f32 0.0, %v950
    %v952 = vpop.f32.mrf.mxu0
    %953 = vdwg.mxu0
    %954 = vmatpush.bf16.msra.mxu0 0
    %955 = vmatpush.bf16.msra.mxu0 0
    %956 = vmatpush.bf16.msra.mxu0 0
    %957 = vmatpush.bf16.msra.mxu0 0
    %958 = vmatpush.bf16.msra.mxu0 0
    %959 = vmatpush.bf16.msra.mxu0 0
    %960 = vmatpush.bf16.msra.mxu0 0
    %961 = vmatpush.bf16.msra.mxu0 %v780
    %962 = vmatmul.bf16.gmra.mxu0 %v738
    %v963 = vpop.f32.mrf.mxu0
    %v964 = vadd.f32 0.0, %v963
    %v965 = vpop.f32.mrf.mxu0
    %966 = vdwg.mxu0
    %967 = vmatpush.bf16.msra.mxu0 0
    %968 = vmatpush.bf16.msra.mxu0 0
    %969 = vmatpush.bf16.msra.mxu0 0
    %970 = vmatpush.bf16.msra.mxu0 0
    %971 = vmatpush.bf16.msra.mxu0 0
    %972 = vmatpush.bf16.msra.mxu0 0
    %973 = vmatpush.bf16.msra.mxu0 0
    %974 = vmatpush.bf16.msra.mxu0 %v783
    %975 = vmatmul.bf16.gmra.mxu0 %v738
    %v976 = vpop.f32.mrf.mxu0
    %v977 = vadd.f32 0.0, %v976
    %v978 = vpop.f32.mrf.mxu0
    %979 = vdwg.mxu0
    %v980 = vadd.f32 %v465, %v795
    %v981 = vadd.f32 %v478, %v808
    %v982 = vadd.f32 %v491, %v821
    %v983 = vadd.f32 %v504, %v834
    %v984 = vadd.f32 %v517, %v847
    %v985 = vadd.f32 %v530, %v860
    %v986 = vadd.f32 %v543, %v873
    %v987 = vadd.f32 %v556, %v886
    %v988 = vadd.f32 %v569, %v899
    %v989 = vadd.f32 %v582, %v912
    %v990 = vadd.f32 %v595, %v925
    %v991 = vadd.f32 %v608, %v938
    %v992 = vadd.f32 %v621, %v951
    %v993 = vadd.f32 %v634, %v964
    %v994 = vadd.f32 %v647, %v977
    %995 = vrot.lane.b32.xlu0 %v65, 116
    %v996 = vpop.permute.xlu0 %995
    %997 = vst [vmem:[#allocation1] ss:$4 sm:$0xff] %v58
    %s998 = scalar_lea.vmem [#allocation1], 32
    %999 = vst [vmem:[%s998] ss:$4 sm:$0xff] %v59
    %v1000 = vld.sshfl [vmem:[#allocation1] sm:$0xff pattern:$0x73625140]
    %v1002 = vld.sshfl [vmem:[#allocation1 + $0x8] sm:$0xff pattern:$0x73625140]
    %v1004 = vld.sshfl [vmem:[#allocation1 + $0x10] sm:$0xff pattern:$0x73625140]
    %v1006 = vld.sshfl [vmem:[#allocation1 + $0x18] sm:$0xff pattern:$0x73625140]
    %v1008 = vld.sshfl [vmem:[#allocation1 + $0x20] sm:$0xff pattern:$0x73625140]
    %v1010 = vld.sshfl [vmem:[#allocation1 + $0x28] sm:$0xff pattern:$0x73625140]
    %v1012 = vld.sshfl [vmem:[#allocation1 + $0x30] sm:$0xff pattern:$0x73625140]
    %v1014 = vld.sshfl [vmem:[#allocation1 + $0x38] sm:$0xff pattern:$0x73625140]
    %1016 = vst [vmem:[#allocation1] ss:$4 sm:$0xff] %v60
    %1017 = vst [vmem:[%s998] ss:$4 sm:$0xff] %v61
    %v1018 = vld.sshfl [vmem:[#allocation1] sm:$0xff pattern:$0x73625140]
    %v1020 = vld.sshfl [vmem:[#allocation1 + $0x8] sm:$0xff pattern:$0x73625140]
    %v1022 = vld.sshfl [vmem:[#allocation1 + $0x10] sm:$0xff pattern:$0x73625140]
    %v1024 = vld.sshfl [vmem:[#allocation1 + $0x18] sm:$0xff pattern:$0x73625140]
    %v1026 = vld.sshfl [vmem:[#allocation1 + $0x20] sm:$0xff pattern:$0x73625140]
    %v1028 = vld.sshfl [vmem:[#allocation1 + $0x28] sm:$0xff pattern:$0x73625140]
    %v1030 = vld.sshfl [vmem:[#allocation1 + $0x30] sm:$0xff pattern:$0x73625140]
    %v1032 = vld.sshfl [vmem:[#allocation1 + $0x38] sm:$0xff pattern:$0x73625140]
    %1034 = vrot.lane.b32.xlu0 %v1000, 125
    %v1035 = vpop.permute.xlu0 %1034
    %1036 = vrot.lane.b32.xlu0 %v1002, 125
    %v1037 = vpop.permute.xlu0 %1036
    %1038 = vrot.lane.b32.xlu0 %v1004, 125
    %v1039 = vpop.permute.xlu0 %1038
    %1040 = vrot.lane.b32.xlu0 %v1006, 125
    %v1041 = vpop.permute.xlu0 %1040
    %1042 = vrot.lane.b32.xlu0 %v1008, 125
    %v1043 = vpop.permute.xlu0 %1042
    %1044 = vrot.lane.b32.xlu0 %v1010, 125
    %v1045 = vpop.permute.xlu0 %1044
    %1046 = vrot.lane.b32.xlu0 %v1012, 125
    %v1047 = vpop.permute.xlu0 %1046
    %1048 = vrot.lane.b32.xlu0 %v1014, 125
    %v1049 = vpop.permute.xlu0 %1048
    %1050 = vrot.lane.b32.xlu0 %v1018, 125
    %v1051 = vpop.permute.xlu0 %1050
    %1052 = vrot.lane.b32.xlu0 %v1020, 125
    %v1053 = vpop.permute.xlu0 %1052
    %1054 = vrot.lane.b32.xlu0 %v1022, 125
    %v1055 = vpop.permute.xlu0 %1054
    %1056 = vrot.lane.b32.xlu0 %v1024, 125
    %v1057 = vpop.permute.xlu0 %1056
    %1058 = vrot.lane.b32.xlu0 %v1026, 125
    %v1059 = vpop.permute.xlu0 %1058
    %1060 = vrot.lane.b32.xlu0 %v1028, 125
    %v1061 = vpop.permute.xlu0 %1060
    %1062 = vrot.lane.b32.xlu0 %v1030, 125
    %v1063 = vpop.permute.xlu0 %1062
    %1064 = vrot.lane.b32.xlu0 %v1032, 125
    %v1065 = vpop.permute.xlu0 %1064
    %vm1066 = vcmask 1022976
    %v1067 = vsel %vm1066, %v1035, %v1037
    %v1068 = vsel %vm1066, %v1037, %v1039
    %v1069 = vsel %vm1066, %v1039, %v1041
    %v1070 = vsel %vm1066, %v1041, %v1043
    %v1071 = vsel %vm1066, %v1043, %v1045
    %v1072 = vsel %vm1066, %v1045, %v1047
    %v1073 = vsel %vm1066, %v1047, %v1049
    %v1074 = vsel %vm1066, %v1049, %v1051
    %v1075 = vsel %vm1066, %v1051, %v1053
    %v1076 = vsel %vm1066, %v1053, %v1055
    %v1077 = vsel %vm1066, %v1055, %v1057
    %v1078 = vsel %vm1066, %v1057, %v1059
    %v1079 = vsel %vm1066, %v1059, %v1061
    %v1080 = vsel %vm1066, %v1061, %v1063
    %v1081 = vsel %vm1066, %v1063, %v1065
    %v1083 = vsel %vm157, %v996, 0
    %v1086 = vsel %vm161, %v1067, 0
    %v1089 = vsel %vm161, %v1068, 0
    %v1092 = vsel %vm161, %v1069, 0
    %v1095 = vsel %vm161, %v1070, 0
    %v1098 = vsel %vm161, %v1071, 0
    %v1101 = vsel %vm161, %v1072, 0
    %v1104 = vsel %vm161, %v1073, 0
    %v1107 = vsel %vm161, %v1074, 0
    %v1110 = vsel %vm161, %v1075, 0
    %v1113 = vsel %vm161, %v1076, 0
    %v1116 = vsel %vm161, %v1077, 0
    %v1119 = vsel %vm161, %v1078, 0
    %v1122 = vsel %vm161, %v1079, 0
    %v1125 = vsel %vm161, %v1080, 0
    %v1128 = vsel %vm161, %v1081, 0
    %1130 = vmatpush.bf16.msra.mxu0 0
    %1131 = vmatpush.bf16.msra.mxu0 0
    %1132 = vmatpush.bf16.msra.mxu0 0
    %1133 = vmatpush.bf16.msra.mxu0 0
    %1134 = vmatpush.bf16.msra.mxu0 0
    %1135 = vmatpush.bf16.msra.mxu0 0
    %1136 = vmatpush.bf16.msra.mxu0 0
    %1137 = vmatpush.bf16.msra.mxu0 %v1086
    %1138 = vmatmul.bf16.gmra.mxu0 %v1083
    %v1139 = vpop.f32.mrf.mxu0
    %v1140 = vadd.f32 0.0, %v1139
    %v1141 = vpop.f32.mrf.mxu0
    %1142 = vdwg.mxu0
    %1143 = vmatpush.bf16.msra.mxu0 0
    %1144 = vmatpush.bf16.msra.mxu0 0
    %1145 = vmatpush.bf16.msra.mxu0 0
    %1146 = vmatpush.bf16.msra.mxu0 0
    %1147 = vmatpush.bf16.msra.mxu0 0
    %1148 = vmatpush.bf16.msra.mxu0 0
    %1149 = vmatpush.bf16.msra.mxu0 0
    %1150 = vmatpush.bf16.msra.mxu0 %v1089
    %1151 = vmatmul.bf16.gmra.mxu0 %v1083
    %v1152 = vpop.f32.mrf.mxu0
    %v1153 = vadd.f32 0.0, %v1152
    %v1154 = vpop.f32.mrf.mxu0
    %1155 = vdwg.mxu0
    %1156 = vmatpush.bf16.msra.mxu0 0
    %1157 = vmatpush.bf16.msra.mxu0 0
    %1158 = vmatpush.bf16.msra.mxu0 0
    %1159 = vmatpush.bf16.msra.mxu0 0
    %1160 = vmatpush.bf16.msra.mxu0 0
    %1161 = vmatpush.bf16.msra.mxu0 0
    %1162 = vmatpush.bf16.msra.mxu0 0
    %1163 = vmatpush.bf16.msra.mxu0 %v1092
    %1164 = vmatmul.bf16.gmra.mxu0 %v1083
    %v1165 = vpop.f32.mrf.mxu0
    %v1166 = vadd.f32 0.0, %v1165
    %v1167 = vpop.f32.mrf.mxu0
    %1168 = vdwg.mxu0
    %1169 = vmatpush.bf16.msra.mxu0 0
    %1170 = vmatpush.bf16.msra.mxu0 0
    %1171 = vmatpush.bf16.msra.mxu0 0
    %1172 = vmatpush.bf16.msra.mxu0 0
    %1173 = vmatpush.bf16.msra.mxu0 0
    %1174 = vmatpush.bf16.msra.mxu0 0
    %1175 = vmatpush.bf16.msra.mxu0 0
    %1176 = vmatpush.bf16.msra.mxu0 %v1095
    %1177 = vmatmul.bf16.gmra.mxu0 %v1083
    %v1178 = vpop.f32.mrf.mxu0
    %v1179 = vadd.f32 0.0, %v1178
    %v1180 = vpop.f32.mrf.mxu0
    %1181 = vdwg.mxu0
    %1182 = vmatpush.bf16.msra.mxu0 0
    %1183 = vmatpush.bf16.msra.mxu0 0
    %1184 = vmatpush.bf16.msra.mxu0 0
    %1185 = vmatpush.bf16.msra.mxu0 0
    %1186 = vmatpush.bf16.msra.mxu0 0
    %1187 = vmatpush.bf16.msra.mxu0 0
    %1188 = vmatpush.bf16.msra.mxu0 0
    %1189 = vmatpush.bf16.msra.mxu0 %v1098
    %1190 = vmatmul.bf16.gmra.mxu0 %v1083
    %v1191 = vpop.f32.mrf.mxu0
    %v1192 = vadd.f32 0.0, %v1191
    %v1193 = vpop.f32.mrf.mxu0
    %1194 = vdwg.mxu0
    %1195 = vmatpush.bf16.msra.mxu0 0
    %1196 = vmatpush.bf16.msra.mxu0 0
    %1197 = vmatpush.bf16.msra.mxu0 0
    %1198 = vmatpush.bf16.msra.mxu0 0
    %1199 = vmatpush.bf16.msra.mxu0 0
    %1200 = vmatpush.bf16.msra.mxu0 0
    %1201 = vmatpush.bf16.msra.mxu0 0
    %1202 = vmatpush.bf16.msra.mxu0 %v1101
    %1203 = vmatmul.bf16.gmra.mxu0 %v1083
    %v1204 = vpop.f32.mrf.mxu0
    %v1205 = vadd.f32 0.0, %v1204
    %v1206 = vpop.f32.mrf.mxu0
    %1207 = vdwg.mxu0
    %1208 = vmatpush.bf16.msra.mxu0 0
    %1209 = vmatpush.bf16.msra.mxu0 0
    %1210 = vmatpush.bf16.msra.mxu0 0
    %1211 = vmatpush.bf16.msra.mxu0 0
    %1212 = vmatpush.bf16.msra.mxu0 0
    %1213 = vmatpush.bf16.msra.mxu0 0
    %1214 = vmatpush.bf16.msra.mxu0 0
    %1215 = vmatpush.bf16.msra.mxu0 %v1104
    %1216 = vmatmul.bf16.gmra.mxu0 %v1083
    %v1217 = vpop.f32.mrf.mxu0
    %v1218 = vadd.f32 0.0, %v1217
    %v1219 = vpop.f32.mrf.mxu0
    %1220 = vdwg.mxu0
    %1221 = vmatpush.bf16.msra.mxu0 0
    %1222 = vmatpush.bf16.msra.mxu0 0
    %1223 = vmatpush.bf16.msra.mxu0 0
    %1224 = vmatpush.bf16.msra.mxu0 0
    %1225 = vmatpush.bf16.msra.mxu0 0
    %1226 = vmatpush.bf16.msra.mxu0 0
    %1227 = vmatpush.bf16.msra.mxu0 0
    %1228 = vmatpush.bf16.msra.mxu0 %v1107
    %1229 = vmatmul.bf16.gmra.mxu0 %v1083
    %v1230 = vpop.f32.mrf.mxu0
    %v1231 = vadd.f32 0.0, %v1230
    %v1232 = vpop.f32.mrf.mxu0
    %1233 = vdwg.mxu0
    %1234 = vmatpush.bf16.msra.mxu0 0
    %1235 = vmatpush.bf16.msra.mxu0 0
    %1236 = vmatpush.bf16.msra.mxu0 0
    %1237 = vmatpush.bf16.msra.mxu0 0
    %1238 = vmatpush.bf16.msra.mxu0 0
    %1239 = vmatpush.bf16.msra.mxu0 0
    %1240 = vmatpush.bf16.msra.mxu0 0
    %1241 = vmatpush.bf16.msra.mxu0 %v1110
    %1242 = vmatmul.bf16.gmra.mxu0 %v1083
    %v1243 = vpop.f32.mrf.mxu0
    %v1244 = vadd.f32 0.0, %v1243
    %v1245 = vpop.f32.mrf.mxu0
    %1246 = vdwg.mxu0
    %1247 = vmatpush.bf16.msra.mxu0 0
    %1248 = vmatpush.bf16.msra.mxu0 0
    %1249 = vmatpush.bf16.msra.mxu0 0
    %1250 = vmatpush.bf16.msra.mxu0 0
    %1251 = vmatpush.bf16.msra.mxu0 0
    %1252 = vmatpush.bf16.msra.mxu0 0
    %1253 = vmatpush.bf16.msra.mxu0 0
    %1254 = vmatpush.bf16.msra.mxu0 %v1113
    %1255 = vmatmul.bf16.gmra.mxu0 %v1083
    %v1256 = vpop.f32.mrf.mxu0
    %v1257 = vadd.f32 0.0, %v1256
    %v1258 = vpop.f32.mrf.mxu0
    %1259 = vdwg.mxu0
    %1260 = vmatpush.bf16.msra.mxu0 0
    %1261 = vmatpush.bf16.msra.mxu0 0
    %1262 = vmatpush.bf16.msra.mxu0 0
    %1263 = vmatpush.bf16.msra.mxu0 0
    %1264 = vmatpush.bf16.msra.mxu0 0
    %1265 = vmatpush.bf16.msra.mxu0 0
    %1266 = vmatpush.bf16.msra.mxu0 0
    %1267 = vmatpush.bf16.msra.mxu0 %v1116
    %1268 = vmatmul.bf16.gmra.mxu0 %v1083
    %v1269 = vpop.f32.mrf.mxu0
    %v1270 = vadd.f32 0.0, %v1269
    %v1271 = vpop.f32.mrf.mxu0
    %1272 = vdwg.mxu0
    %1273 = vmatpush.bf16.msra.mxu0 0
    %1274 = vmatpush.bf16.msra.mxu0 0
    %1275 = vmatpush.bf16.msra.mxu0 0
    %1276 = vmatpush.bf16.msra.mxu0 0
    %1277 = vmatpush.bf16.msra.mxu0 0
    %1278 = vmatpush.bf16.msra.mxu0 0
    %1279 = vmatpush.bf16.msra.mxu0 0
    %1280 = vmatpush.bf16.msra.mxu0 %v1119
    %1281 = vmatmul.bf16.gmra.mxu0 %v1083
    %v1282 = vpop.f32.mrf.mxu0
    %v1283 = vadd.f32 0.0, %v1282
    %v1284 = vpop.f32.mrf.mxu0
    %1285 = vdwg.mxu0
    %1286 = vmatpush.bf16.msra.mxu0 0
    %1287 = vmatpush.bf16.msra.mxu0 0
    %1288 = vmatpush.bf16.msra.mxu0 0
    %1289 = vmatpush.bf16.msra.mxu0 0
    %1290 = vmatpush.bf16.msra.mxu0 0
    %1291 = vmatpush.bf16.msra.mxu0 0
    %1292 = vmatpush.bf16.msra.mxu0 0
    %1293 = vmatpush.bf16.msra.mxu0 %v1122
    %1294 = vmatmul.bf16.gmra.mxu0 %v1083
    %v1295 = vpop.f32.mrf.mxu0
    %v1296 = vadd.f32 0.0, %v1295
    %v1297 = vpop.f32.mrf.mxu0
    %1298 = vdwg.mxu0
    %1299 = vmatpush.bf16.msra.mxu0 0
    %1300 = vmatpush.bf16.msra.mxu0 0
    %1301 = vmatpush.bf16.msra.mxu0 0
    %1302 = vmatpush.bf16.msra.mxu0 0
    %1303 = vmatpush.bf16.msra.mxu0 0
    %1304 = vmatpush.bf16.msra.mxu0 0
    %1305 = vmatpush.bf16.msra.mxu0 0
    %1306 = vmatpush.bf16.msra.mxu0 %v1125
    %1307 = vmatmul.bf16.gmra.mxu0 %v1083
    %v1308 = vpop.f32.mrf.mxu0
    %v1309 = vadd.f32 0.0, %v1308
    %v1310 = vpop.f32.mrf.mxu0
    %1311 = vdwg.mxu0
    %1312 = vmatpush.bf16.msra.mxu0 0
    %1313 = vmatpush.bf16.msra.mxu0 0
    %1314 = vmatpush.bf16.msra.mxu0 0
    %1315 = vmatpush.bf16.msra.mxu0 0
    %1316 = vmatpush.bf16.msra.mxu0 0
    %1317 = vmatpush.bf16.msra.mxu0 0
    %1318 = vmatpush.bf16.msra.mxu0 0
    %1319 = vmatpush.bf16.msra.mxu0 %v1128
    %1320 = vmatmul.bf16.gmra.mxu0 %v1083
    %v1321 = vpop.f32.mrf.mxu0
    %v1322 = vadd.f32 0.0, %v1321
    %v1323 = vpop.f32.mrf.mxu0
    %1324 = vdwg.mxu0
    %v1325 = vadd.f32 %v980, %v1140
    %v1326 = vadd.f32 %v981, %v1153
    %v1327 = vadd.f32 %v982, %v1166
    %v1328 = vadd.f32 %v983, %v1179
    %v1329 = vadd.f32 %v984, %v1192
    %v1330 = vadd.f32 %v985, %v1205
    %v1331 = vadd.f32 %v986, %v1218
    %v1332 = vadd.f32 %v987, %v1231
    %v1333 = vadd.f32 %v988, %v1244
    %v1334 = vadd.f32 %v989, %v1257
    %v1335 = vadd.f32 %v990, %v1270
    %v1336 = vadd.f32 %v991, %v1283
    %v1337 = vadd.f32 %v992, %v1296
    %v1338 = vadd.f32 %v993, %v1309
    %v1339 = vadd.f32 %v994, %v1322
    %1340 = vrot.lane.b32.xlu0 %v65, 112
    %v1341 = vpop.permute.xlu0 %1340
    %1342 = vst [vmem:[#allocation1] ss:$4 sm:$0xff] %v58
    %s1343 = scalar_lea.vmem [#allocation1], 32
    %1344 = vst [vmem:[%s1343] ss:$4 sm:$0xff] %v59
    %v1345 = vld.sshfl [vmem:[#allocation1 + $0x8] sm:$0xff pattern:$0x73625140]
    %v1346 = vld.sshfl [vmem:[#allocation1 + $0x10] sm:$0xff pattern:$0x73625140]
    %v1347 = vld.sshfl [vmem:[#allocation1 + $0x18] sm:$0xff pattern:$0x73625140]
    %v1348 = vld.sshfl [vmem:[#allocation1 + $0x20] sm:$0xff pattern:$0x73625140]
    %v1349 = vld.sshfl [vmem:[#allocation1 + $0x28] sm:$0xff pattern:$0x73625140]
    %v1350 = vld.sshfl [vmem:[#allocation1 + $0x30] sm:$0xff pattern:$0x73625140]
    %v1351 = vld.sshfl [vmem:[#allocation1 + $0x38] sm:$0xff pattern:$0x73625140]
    %1352 = vst [vmem:[#allocation1] ss:$4 sm:$0xff] %v60
    %1353 = vst [vmem:[%s1343] ss:$4 sm:$0xff] %v61
    %v1354 = vld.sshfl [vmem:[#allocation1] sm:$0xff pattern:$0x73625140]
    %v1355 = vld.sshfl [vmem:[#allocation1 + $0x8] sm:$0xff pattern:$0x73625140]
    %v1356 = vld.sshfl [vmem:[#allocation1 + $0x10] sm:$0xff pattern:$0x73625140]
    %v1357 = vld.sshfl [vmem:[#allocation1 + $0x18] sm:$0xff pattern:$0x73625140]
    %v1358 = vld.sshfl [vmem:[#allocation1 + $0x20] sm:$0xff pattern:$0x73625140]
    %v1359 = vld.sshfl [vmem:[#allocation1 + $0x28] sm:$0xff pattern:$0x73625140]
    %v1360 = vld.sshfl [vmem:[#allocation1 + $0x30] sm:$0xff pattern:$0x73625140]
    %v1361 = vld.sshfl [vmem:[#allocation1 + $0x38] sm:$0xff pattern:$0x73625140]
    %v1363 = vsel %vm157, %v1341, 0
    %v1365 = vsel %vm161, %v1345, 0
    %v1367 = vsel %vm161, %v1346, 0
    %v1369 = vsel %vm161, %v1347, 0
    %v1371 = vsel %vm161, %v1348, 0
    %v1373 = vsel %vm161, %v1349, 0
    %v1375 = vsel %vm161, %v1350, 0
    %v1377 = vsel %vm161, %v1351, 0
    %v1379 = vsel %vm161, %v1354, 0
    %v1381 = vsel %vm161, %v1355, 0
    %v1383 = vsel %vm161, %v1356, 0
    %v1385 = vsel %vm161, %v1357, 0
    %v1387 = vsel %vm161, %v1358, 0
    %v1389 = vsel %vm161, %v1359, 0
    %v1391 = vsel %vm161, %v1360, 0
    %v1393 = vsel %vm161, %v1361, 0
    %1395 = vmatpush.bf16.msra.mxu0 0
    %1396 = vmatpush.bf16.msra.mxu0 0
    %1397 = vmatpush.bf16.msra.mxu0 0
    %1398 = vmatpush.bf16.msra.mxu0 0
    %1399 = vmatpush.bf16.msra.mxu0 0
    %1400 = vmatpush.bf16.msra.mxu0 0
    %1401 = vmatpush.bf16.msra.mxu0 0
    %1402 = vmatpush.bf16.msra.mxu0 %v1365
    %1403 = vmatmul.bf16.gmra.mxu0 %v1363
    %v1404 = vpop.f32.mrf.mxu0
    %v1405 = vadd.f32 0.0, %v1404
    %v1406 = vpop.f32.mrf.mxu0
    %1407 = vdwg.mxu0
    %1408 = vmatpush.bf16.msra.mxu0 0
    %1409 = vmatpush.bf16.msra.mxu0 0
    %1410 = vmatpush.bf16.msra.mxu0 0
    %1411 = vmatpush.bf16.msra.mxu0 0
    %1412 = vmatpush.bf16.msra.mxu0 0
    %1413 = vmatpush.bf16.msra.mxu0 0
    %1414 = vmatpush.bf16.msra.mxu0 0
    %1415 = vmatpush.bf16.msra.mxu0 %v1367
    %1416 = vmatmul.bf16.gmra.mxu0 %v1363
    %v1417 = vpop.f32.mrf.mxu0
    %v1418 = vadd.f32 0.0, %v1417
    %v1419 = vpop.f32.mrf.mxu0
    %1420 = vdwg.mxu0
    %1421 = vmatpush.bf16.msra.mxu0 0
    %1422 = vmatpush.bf16.msra.mxu0 0
    %1423 = vmatpush.bf16.msra.mxu0 0
    %1424 = vmatpush.bf16.msra.mxu0 0
    %1425 = vmatpush.bf16.msra.mxu0 0
    %1426 = vmatpush.bf16.msra.mxu0 0
    %1427 = vmatpush.bf16.msra.mxu0 0
    %1428 = vmatpush.bf16.msra.mxu0 %v1369
    %1429 = vmatmul.bf16.gmra.mxu0 %v1363
    %v1430 = vpop.f32.mrf.mxu0
    %v1431 = vadd.f32 0.0, %v1430
    %v1432 = vpop.f32.mrf.mxu0
    %1433 = vdwg.mxu0
    %1434 = vmatpush.bf16.msra.mxu0 0
    %1435 = vmatpush.bf16.msra.mxu0 0
    %1436 = vmatpush.bf16.msra.mxu0 0
    %1437 = vmatpush.bf16.msra.mxu0 0
    %1438 = vmatpush.bf16.msra.mxu0 0
    %1439 = vmatpush.bf16.msra.mxu0 0
    %1440 = vmatpush.bf16.msra.mxu0 0
    %1441 = vmatpush.bf16.msra.mxu0 %v1371
    %1442 = vmatmul.bf16.gmra.mxu0 %v1363
    %v1443 = vpop.f32.mrf.mxu0
    %v1444 = vadd.f32 0.0, %v1443
    %v1445 = vpop.f32.mrf.mxu0
    %1446 = vdwg.mxu0
    %1447 = vmatpush.bf16.msra.mxu0 0
    %1448 = vmatpush.bf16.msra.mxu0 0
    %1449 = vmatpush.bf16.msra.mxu0 0
    %1450 = vmatpush.bf16.msra.mxu0 0
    %1451 = vmatpush.bf16.msra.mxu0 0
    %1452 = vmatpush.bf16.msra.mxu0 0
    %1453 = vmatpush.bf16.msra.mxu0 0
    %1454 = vmatpush.bf16.msra.mxu0 %v1373
    %1455 = vmatmul.bf16.gmra.mxu0 %v1363
    %v1456 = vpop.f32.mrf.mxu0
    %v1457 = vadd.f32 0.0, %v1456
    %v1458 = vpop.f32.mrf.mxu0
    %1459 = vdwg.mxu0
    %1460 = vmatpush.bf16.msra.mxu0 0
    %1461 = vmatpush.bf16.msra.mxu0 0
    %1462 = vmatpush.bf16.msra.mxu0 0
    %1463 = vmatpush.bf16.msra.mxu0 0
    %1464 = vmatpush.bf16.msra.mxu0 0
    %1465 = vmatpush.bf16.msra.mxu0 0
    %1466 = vmatpush.bf16.msra.mxu0 0
    %1467 = vmatpush.bf16.msra.mxu0 %v1375
    %1468 = vmatmul.bf16.gmra.mxu0 %v1363
    %v1469 = vpop.f32.mrf.mxu0
    %v1470 = vadd.f32 0.0, %v1469
    %v1471 = vpop.f32.mrf.mxu0
    %1472 = vdwg.mxu0
    %1473 = vmatpush.bf16.msra.mxu0 0
    %1474 = vmatpush.bf16.msra.mxu0 0
    %1475 = vmatpush.bf16.msra.mxu0 0
    %1476 = vmatpush.bf16.msra.mxu0 0
    %1477 = vmatpush.bf16.msra.mxu0 0
    %1478 = vmatpush.bf16.msra.mxu0 0
    %1479 = vmatpush.bf16.msra.mxu0 0
    %1480 = vmatpush.bf16.msra.mxu0 %v1377
    %1481 = vmatmul.bf16.gmra.mxu0 %v1363
    %v1482 = vpop.f32.mrf.mxu0
    %v1483 = vadd.f32 0.0, %v1482
    %v1484 = vpop.f32.mrf.mxu0
    %1485 = vdwg.mxu0
    %1486 = vmatpush.bf16.msra.mxu0 0
    %1487 = vmatpush.bf16.msra.mxu0 0
    %1488 = vmatpush.bf16.msra.mxu0 0
    %1489 = vmatpush.bf16.msra.mxu0 0
    %1490 = vmatpush.bf16.msra.mxu0 0
    %1491 = vmatpush.bf16.msra.mxu0 0
    %1492 = vmatpush.bf16.msra.mxu0 0
    %1493 = vmatpush.bf16.msra.mxu0 %v1379
    %1494 = vmatmul.bf16.gmra.mxu0 %v1363
    %v1495 = vpop.f32.mrf.mxu0
    %v1496 = vadd.f32 0.0, %v1495
    %v1497 = vpop.f32.mrf.mxu0
    %1498 = vdwg.mxu0
    %1499 = vmatpush.bf16.msra.mxu0 0
    %1500 = vmatpush.bf16.msra.mxu0 0
    %1501 = vmatpush.bf16.msra.mxu0 0
    %1502 = vmatpush.bf16.msra.mxu0 0
    %1503 = vmatpush.bf16.msra.mxu0 0
    %1504 = vmatpush.bf16.msra.mxu0 0
    %1505 = vmatpush.bf16.msra.mxu0 0
    %1506 = vmatpush.bf16.msra.mxu0 %v1381
    %1507 = vmatmul.bf16.gmra.mxu0 %v1363
    %v1508 = vpop.f32.mrf.mxu0
    %v1509 = vadd.f32 0.0, %v1508
    %v1510 = vpop.f32.mrf.mxu0
    %1511 = vdwg.mxu0
    %1512 = vmatpush.bf16.msra.mxu0 0
    %1513 = vmatpush.bf16.msra.mxu0 0
    %1514 = vmatpush.bf16.msra.mxu0 0
    %1515 = vmatpush.bf16.msra.mxu0 0
    %1516 = vmatpush.bf16.msra.mxu0 0
    %1517 = vmatpush.bf16.msra.mxu0 0
    %1518 = vmatpush.bf16.msra.mxu0 0
    %1519 = vmatpush.bf16.msra.mxu0 %v1383
    %1520 = vmatmul.bf16.gmra.mxu0 %v1363
    %v1521 = vpop.f32.mrf.mxu0
    %v1522 = vadd.f32 0.0, %v1521
    %v1523 = vpop.f32.mrf.mxu0
    %1524 = vdwg.mxu0
    %1525 = vmatpush.bf16.msra.mxu0 0
    %1526 = vmatpush.bf16.msra.mxu0 0
    %1527 = vmatpush.bf16.msra.mxu0 0
    %1528 = vmatpush.bf16.msra.mxu0 0
    %1529 = vmatpush.bf16.msra.mxu0 0
    %1530 = vmatpush.bf16.msra.mxu0 0
    %1531 = vmatpush.bf16.msra.mxu0 0
    %1532 = vmatpush.bf16.msra.mxu0 %v1385
    %1533 = vmatmul.bf16.gmra.mxu0 %v1363
    %v1534 = vpop.f32.mrf.mxu0
    %v1535 = vadd.f32 0.0, %v1534
    %v1536 = vpop.f32.mrf.mxu0
    %1537 = vdwg.mxu0
    %1538 = vmatpush.bf16.msra.mxu0 0
    %1539 = vmatpush.bf16.msra.mxu0 0
    %1540 = vmatpush.bf16.msra.mxu0 0
    %1541 = vmatpush.bf16.msra.mxu0 0
    %1542 = vmatpush.bf16.msra.mxu0 0
    %1543 = vmatpush.bf16.msra.mxu0 0
    %1544 = vmatpush.bf16.msra.mxu0 0
    %1545 = vmatpush.bf16.msra.mxu0 %v1387
    %1546 = vmatmul.bf16.gmra.mxu0 %v1363
    %v1547 = vpop.f32.mrf.mxu0
    %v1548 = vadd.f32 0.0, %v1547
    %v1549 = vpop.f32.mrf.mxu0
    %1550 = vdwg.mxu0
    %1551 = vmatpush.bf16.msra.mxu0 0
    %1552 = vmatpush.bf16.msra.mxu0 0
    %1553 = vmatpush.bf16.msra.mxu0 0
    %1554 = vmatpush.bf16.msra.mxu0 0
    %1555 = vmatpush.bf16.msra.mxu0 0
    %1556 = vmatpush.bf16.msra.mxu0 0
    %1557 = vmatpush.bf16.msra.mxu0 0
    %1558 = vmatpush.bf16.msra.mxu0 %v1389
    %1559 = vmatmul.bf16.gmra.mxu0 %v1363
    %v1560 = vpop.f32.mrf.mxu0
    %v1561 = vadd.f32 0.0, %v1560
    %v1562 = vpop.f32.mrf.mxu0
    %1563 = vdwg.mxu0
    %1564 = vmatpush.bf16.msra.mxu0 0
    %1565 = vmatpush.bf16.msra.mxu0 0
    %1566 = vmatpush.bf16.msra.mxu0 0
    %1567 = vmatpush.bf16.msra.mxu0 0
    %1568 = vmatpush.bf16.msra.mxu0 0
    %1569 = vmatpush.bf16.msra.mxu0 0
    %1570 = vmatpush.bf16.msra.mxu0 0
    %1571 = vmatpush.bf16.msra.mxu0 %v1391
    %1572 = vmatmul.bf16.gmra.mxu0 %v1363
    %v1573 = vpop.f32.mrf.mxu0
    %v1574 = vadd.f32 0.0, %v1573
    %v1575 = vpop.f32.mrf.mxu0
    %1576 = vdwg.mxu0
    %1577 = vmatpush.bf16.msra.mxu0 0
    %1578 = vmatpush.bf16.msra.mxu0 0
    %1579 = vmatpush.bf16.msra.mxu0 0
    %1580 = vmatpush.bf16.msra.mxu0 0
    %1581 = vmatpush.bf16.msra.mxu0 0
    %1582 = vmatpush.bf16.msra.mxu0 0
    %1583 = vmatpush.bf16.msra.mxu0 0
    %1584 = vmatpush.bf16.msra.mxu0 %v1393
    %1585 = vmatmul.bf16.gmra.mxu0 %v1363
    %v1586 = vpop.f32.mrf.mxu0
    %v1587 = vadd.f32 0.0, %v1586
    %v1588 = vpop.f32.mrf.mxu0
    %1589 = vdwg.mxu0
    %v1590 = vadd.f32 %v1325, %v1405
    %v1591 = vadd.f32 %v1326, %v1418
    %v1592 = vadd.f32 %v1327, %v1431
    %v1593 = vadd.f32 %v1328, %v1444
    %v1594 = vadd.f32 %v1329, %v1457
    %v1595 = vadd.f32 %v1330, %v1470
    %v1596 = vadd.f32 %v1331, %v1483
    %v1597 = vadd.f32 %v1332, %v1496
    %v1598 = vadd.f32 %v1333, %v1509
    %v1599 = vadd.f32 %v1334, %v1522
    %v1600 = vadd.f32 %v1335, %v1535
    %v1601 = vadd.f32 %v1336, %v1548
    %v1602 = vadd.f32 %v1337, %v1561
    %v1603 = vadd.f32 %v1338, %v1574
    %v1604 = vadd.f32 %v1339, %v1587
    %1605 = vrot.lane.b32.xlu0 %v65, 108
    %v1606 = vpop.permute.xlu0 %1605
    %1607 = vst [vmem:[#allocation1] ss:$4 sm:$0xff] %v58
    %s1608 = scalar_lea.vmem [#allocation1], 32
    %1609 = vst [vmem:[%s1608] ss:$4 sm:$0xff] %v59
    %v1610 = vld.sshfl [vmem:[#allocation1 + $0x8] sm:$0xff pattern:$0x73625140]
    %v1612 = vld.sshfl [vmem:[#allocation1 + $0x10] sm:$0xff pattern:$0x73625140]
    %v1614 = vld.sshfl [vmem:[#allocation1 + $0x18] sm:$0xff pattern:$0x73625140]
    %v1616 = vld.sshfl [vmem:[#allocation1 + $0x20] sm:$0xff pattern:$0x73625140]
    %v1618 = vld.sshfl [vmem:[#allocation1 + $0x28] sm:$0xff pattern:$0x73625140]
    %v1620 = vld.sshfl [vmem:[#allocation1 + $0x30] sm:$0xff pattern:$0x73625140]
    %v1622 = vld.sshfl [vmem:[#allocation1 + $0x38] sm:$0xff pattern:$0x73625140]
    %1624 = vst [vmem:[#allocation1] ss:$4 sm:$0xff] %v60
    %1625 = vst [vmem:[%s1608] ss:$4 sm:$0xff] %v61
    %v1626 = vld.sshfl [vmem:[#allocation1] sm:$0xff pattern:$0x73625140]
    %v1628 = vld.sshfl [vmem:[#allocation1 + $0x8] sm:$0xff pattern:$0x73625140]
    %v1630 = vld.sshfl [vmem:[#allocation1 + $0x10] sm:$0xff pattern:$0x73625140]
    %v1632 = vld.sshfl [vmem:[#allocation1 + $0x18] sm:$0xff pattern:$0x73625140]
    %v1634 = vld.sshfl [vmem:[#allocation1 + $0x20] sm:$0xff pattern:$0x73625140]
    %v1636 = vld.sshfl [vmem:[#allocation1 + $0x28] sm:$0xff pattern:$0x73625140]
    %v1638 = vld.sshfl [vmem:[#allocation1 + $0x30] sm:$0xff pattern:$0x73625140]
    %v1640 = vld.sshfl [vmem:[#allocation1 + $0x38] sm:$0xff pattern:$0x73625140]
    %1643 = vst [vmem:[#allocation1] ss:$4 sm:$0xff] %v62
    %v1644 = vld.sshfl [vmem:[#allocation1] sm:$0xff pattern:$0x73625140]
    %1646 = vrot.lane.b32.xlu0 %v1610, 127
    %v1647 = vpop.permute.xlu0 %1646
    %1648 = vrot.lane.b32.xlu0 %v1612, 127
    %v1649 = vpop.permute.xlu0 %1648
    %1650 = vrot.lane.b32.xlu0 %v1614, 127
    %v1651 = vpop.permute.xlu0 %1650
    %1652 = vrot.lane.b32.xlu0 %v1616, 127
    %v1653 = vpop.permute.xlu0 %1652
    %1654 = vrot.lane.b32.xlu0 %v1618, 127
    %v1655 = vpop.permute.xlu0 %1654
    %1656 = vrot.lane.b32.xlu0 %v1620, 127
    %v1657 = vpop.permute.xlu0 %1656
    %1658 = vrot.lane.b32.xlu0 %v1622, 127
    %v1659 = vpop.permute.xlu0 %1658
    %1660 = vrot.lane.b32.xlu0 %v1626, 127
    %v1661 = vpop.permute.xlu0 %1660
    %1662 = vrot.lane.b32.xlu0 %v1628, 127
    %v1663 = vpop.permute.xlu0 %1662
    %1664 = vrot.lane.b32.xlu0 %v1630, 127
    %v1665 = vpop.permute.xlu0 %1664
    %1666 = vrot.lane.b32.xlu0 %v1632, 127
    %v1667 = vpop.permute.xlu0 %1666
    %1668 = vrot.lane.b32.xlu0 %v1634, 127
    %v1669 = vpop.permute.xlu0 %1668
    %1670 = vrot.lane.b32.xlu0 %v1636, 127
    %v1671 = vpop.permute.xlu0 %1670
    %1672 = vrot.lane.b32.xlu0 %v1638, 127
    %v1673 = vpop.permute.xlu0 %1672
    %1674 = vrot.lane.b32.xlu0 %v1640, 127
    %v1675 = vpop.permute.xlu0 %1674
    %1676 = vrot.lane.b32.xlu0 %v1644, 127
    %v1677 = vpop.permute.xlu0 %1676
    %v1678 = vsel %vm141, %v1647, %v1649
    %v1679 = vsel %vm141, %v1649, %v1651
    %v1680 = vsel %vm141, %v1651, %v1653
    %v1681 = vsel %vm141, %v1653, %v1655
    %v1682 = vsel %vm141, %v1655, %v1657
    %v1683 = vsel %vm141, %v1657, %v1659
    %v1684 = vsel %vm141, %v1659, %v1661
    %v1685 = vsel %vm141, %v1661, %v1663
    %v1686 = vsel %vm141, %v1663, %v1665
    %v1687 = vsel %vm141, %v1665, %v1667
    %v1688 = vsel %vm141, %v1667, %v1669
    %v1689 = vsel %vm141, %v1669, %v1671
    %v1690 = vsel %vm141, %v1671, %v1673
    %v1691 = vsel %vm141, %v1673, %v1675
    %v1692 = vsel %vm141, %v1675, %v1677
    %v1694 = vsel %vm157, %v1606, 0
    %v1697 = vsel %vm161, %v1678, 0
    %v1700 = vsel %vm161, %v1679, 0
    %v1703 = vsel %vm161, %v1680, 0
    %v1706 = vsel %vm161, %v1681, 0
    %v1709 = vsel %vm161, %v1682, 0
    %v1712 = vsel %vm161, %v1683, 0
    %v1715 = vsel %vm161, %v1684, 0
    %v1718 = vsel %vm161, %v1685, 0
    %v1721 = vsel %vm161, %v1686, 0
    %v1724 = vsel %vm161, %v1687, 0
    %v1727 = vsel %vm161, %v1688, 0
    %v1730 = vsel %vm161, %v1689, 0
    %v1733 = vsel %vm161, %v1690, 0
    %v1736 = vsel %vm161, %v1691, 0
    %v1739 = vsel %vm161, %v1692, 0
    %1741 = vmatpush.bf16.msra.mxu0 0
    %1742 = vmatpush.bf16.msra.mxu0 0
    %1743 = vmatpush.bf16.msra.mxu0 0
    %1744 = vmatpush.bf16.msra.mxu0 0
    %1745 = vmatpush.bf16.msra.mxu0 0
    %1746 = vmatpush.bf16.msra.mxu0 0
    %1747 = vmatpush.bf16.msra.mxu0 0
    %1748 = vmatpush.bf16.msra.mxu0 %v1697
    %1749 = vmatmul.bf16.gmra.mxu0 %v1694
    %v1750 = vpop.f32.mrf.mxu0
    %v1751 = vadd.f32 0.0, %v1750
    %v1752 = vpop.f32.mrf.mxu0
    %1753 = vdwg.mxu0
    %1754 = vmatpush.bf16.msra.mxu0 0
    %1755 = vmatpush.bf16.msra.mxu0 0
    %1756 = vmatpush.bf16.msra.mxu0 0
    %1757 = vmatpush.bf16.msra.mxu0 0
    %1758 = vmatpush.bf16.msra.mxu0 0
    %1759 = vmatpush.bf16.msra.mxu0 0
    %1760 = vmatpush.bf16.msra.mxu0 0
    %1761 = vmatpush.bf16.msra.mxu0 %v1700
    %1762 = vmatmul.bf16.gmra.mxu0 %v1694
    %v1763 = vpop.f32.mrf.mxu0
    %v1764 = vadd.f32 0.0, %v1763
    %v1765 = vpop.f32.mrf.mxu0
    %1766 = vdwg.mxu0
    %1767 = vmatpush.bf16.msra.mxu0 0
    %1768 = vmatpush.bf16.msra.mxu0 0
    %1769 = vmatpush.bf16.msra.mxu0 0
    %1770 = vmatpush.bf16.msra.mxu0 0
    %1771 = vmatpush.bf16.msra.mxu0 0
    %1772 = vmatpush.bf16.msra.mxu0 0
    %1773 = vmatpush.bf16.msra.mxu0 0
    %1774 = vmatpush.bf16.msra.mxu0 %v1703
    %1775 = vmatmul.bf16.gmra.mxu0 %v1694
    %v1776 = vpop.f32.mrf.mxu0
    %v1777 = vadd.f32 0.0, %v1776
    %v1778 = vpop.f32.mrf.mxu0
    %1779 = vdwg.mxu0
    %1780 = vmatpush.bf16.msra.mxu0 0
    %1781 = vmatpush.bf16.msra.mxu0 0
    %1782 = vmatpush.bf16.msra.mxu0 0
    %1783 = vmatpush.bf16.msra.mxu0 0
    %1784 = vmatpush.bf16.msra.mxu0 0
    %1785 = vmatpush.bf16.msra.mxu0 0
    %1786 = vmatpush.bf16.msra.mxu0 0
    %1787 = vmatpush.bf16.msra.mxu0 %v1706
    %1788 = vmatmul.bf16.gmra.mxu0 %v1694
    %v1789 = vpop.f32.mrf.mxu0
    %v1790 = vadd.f32 0.0, %v1789
    %v1791 = vpop.f32.mrf.mxu0
    %1792 = vdwg.mxu0
    %1793 = vmatpush.bf16.msra.mxu0 0
    %1794 = vmatpush.bf16.msra.mxu0 0
    %1795 = vmatpush.bf16.msra.mxu0 0
    %1796 = vmatpush.bf16.msra.mxu0 0
    %1797 = vmatpush.bf16.msra.mxu0 0
    %1798 = vmatpush.bf16.msra.mxu0 0
    %1799 = vmatpush.bf16.msra.mxu0 0
    %1800 = vmatpush.bf16.msra.mxu0 %v1709
    %1801 = vmatmul.bf16.gmra.mxu0 %v1694
    %v1802 = vpop.f32.mrf.mxu0
    %v1803 = vadd.f32 0.0, %v1802
    %v1804 = vpop.f32.mrf.mxu0
    %1805 = vdwg.mxu0
    %1806 = vmatpush.bf16.msra.mxu0 0
    %1807 = vmatpush.bf16.msra.mxu0 0
    %1808 = vmatpush.bf16.msra.mxu0 0
    %1809 = vmatpush.bf16.msra.mxu0 0
    %1810 = vmatpush.bf16.msra.mxu0 0
    %1811 = vmatpush.bf16.msra.mxu0 0
    %1812 = vmatpush.bf16.msra.mxu0 0
    %1813 = vmatpush.bf16.msra.mxu0 %v1712
    %1814 = vmatmul.bf16.gmra.mxu0 %v1694
    %v1815 = vpop.f32.mrf.mxu0
    %v1816 = vadd.f32 0.0, %v1815
    %v1817 = vpop.f32.mrf.mxu0
    %1818 = vdwg.mxu0
    %1819 = vmatpush.bf16.msra.mxu0 0
    %1820 = vmatpush.bf16.msra.mxu0 0
    %1821 = vmatpush.bf16.msra.mxu0 0
    %1822 = vmatpush.bf16.msra.mxu0 0
    %1823 = vmatpush.bf16.msra.mxu0 0
    %1824 = vmatpush.bf16.msra.mxu0 0
    %1825 = vmatpush.bf16.msra.mxu0 0
    %1826 = vmatpush.bf16.msra.mxu0 %v1715
    %1827 = vmatmul.bf16.gmra.mxu0 %v1694
    %v1828 = vpop.f32.mrf.mxu0
    %v1829 = vadd.f32 0.0, %v1828
    %v1830 = vpop.f32.mrf.mxu0
    %1831 = vdwg.mxu0
    %1832 = vmatpush.bf16.msra.mxu0 0
    %1833 = vmatpush.bf16.msra.mxu0 0
    %1834 = vmatpush.bf16.msra.mxu0 0
    %1835 = vmatpush.bf16.msra.mxu0 0
    %1836 = vmatpush.bf16.msra.mxu0 0
    %1837 = vmatpush.bf16.msra.mxu0 0
    %1838 = vmatpush.bf16.msra.mxu0 0
    %1839 = vmatpush.bf16.msra.mxu0 %v1718
    %1840 = vmatmul.bf16.gmra.mxu0 %v1694
    %v1841 = vpop.f32.mrf.mxu0
    %v1842 = vadd.f32 0.0, %v1841
    %v1843 = vpop.f32.mrf.mxu0
    %1844 = vdwg.mxu0
    %1845 = vmatpush.bf16.msra.mxu0 0
    %1846 = vmatpush.bf16.msra.mxu0 0
    %1847 = vmatpush.bf16.msra.mxu0 0
    %1848 = vmatpush.bf16.msra.mxu0 0
    %1849 = vmatpush.bf16.msra.mxu0 0
    %1850 = vmatpush.bf16.msra.mxu0 0
    %1851 = vmatpush.bf16.msra.mxu0 0
    %1852 = vmatpush.bf16.msra.mxu0 %v1721
    %1853 = vmatmul.bf16.gmra.mxu0 %v1694
    %v1854 = vpop.f32.mrf.mxu0
    %v1855 = vadd.f32 0.0, %v1854
    %v1856 = vpop.f32.mrf.mxu0
    %1857 = vdwg.mxu0
    %1858 = vmatpush.bf16.msra.mxu0 0
    %1859 = vmatpush.bf16.msra.mxu0 0
    %1860 = vmatpush.bf16.msra.mxu0 0
    %1861 = vmatpush.bf16.msra.mxu0 0
    %1862 = vmatpush.bf16.msra.mxu0 0
    %1863 = vmatpush.bf16.msra.mxu0 0
    %1864 = vmatpush.bf16.msra.mxu0 0
    %1865 = vmatpush.bf16.msra.mxu0 %v1724
    %1866 = vmatmul.bf16.gmra.mxu0 %v1694
    %v1867 = vpop.f32.mrf.mxu0
    %v1868 = vadd.f32 0.0, %v1867
    %v1869 = vpop.f32.mrf.mxu0
    %1870 = vdwg.mxu0
    %1871 = vmatpush.bf16.msra.mxu0 0
    %1872 = vmatpush.bf16.msra.mxu0 0
    %1873 = vmatpush.bf16.msra.mxu0 0
    %1874 = vmatpush.bf16.msra.mxu0 0
    %1875 = vmatpush.bf16.msra.mxu0 0
    %1876 = vmatpush.bf16.msra.mxu0 0
    %1877 = vmatpush.bf16.msra.mxu0 0
    %1878 = vmatpush.bf16.msra.mxu0 %v1727
    %1879 = vmatmul.bf16.gmra.mxu0 %v1694
    %v1880 = vpop.f32.mrf.mxu0
    %v1881 = vadd.f32 0.0, %v1880
    %v1882 = vpop.f32.mrf.mxu0
    %1883 = vdwg.mxu0
    %1884 = vmatpush.bf16.msra.mxu0 0
    %1885 = vmatpush.bf16.msra.mxu0 0
    %1886 = vmatpush.bf16.msra.mxu0 0
    %1887 = vmatpush.bf16.msra.mxu0 0
    %1888 = vmatpush.bf16.msra.mxu0 0
    %1889 = vmatpush.bf16.msra.mxu0 0
    %1890 = vmatpush.bf16.msra.mxu0 0
    %1891 = vmatpush.bf16.msra.mxu0 %v1730
    %1892 = vmatmul.bf16.gmra.mxu0 %v1694
    %v1893 = vpop.f32.mrf.mxu0
    %v1894 = vadd.f32 0.0, %v1893
    %v1895 = vpop.f32.mrf.mxu0
    %1896 = vdwg.mxu0
    %1897 = vmatpush.bf16.msra.mxu0 0
    %1898 = vmatpush.bf16.msra.mxu0 0
    %1899 = vmatpush.bf16.msra.mxu0 0
    %1900 = vmatpush.bf16.msra.mxu0 0
    %1901 = vmatpush.bf16.msra.mxu0 0
    %1902 = vmatpush.bf16.msra.mxu0 0
    %1903 = vmatpush.bf16.msra.mxu0 0
    %1904 = vmatpush.bf16.msra.mxu0 %v1733
    %1905 = vmatmul.bf16.gmra.mxu0 %v1694
    %v1906 = vpop.f32.mrf.mxu0
    %v1907 = vadd.f32 0.0, %v1906
    %v1908 = vpop.f32.mrf.mxu0
    %1909 = vdwg.mxu0
    %1910 = vmatpush.bf16.msra.mxu0 0
    %1911 = vmatpush.bf16.msra.mxu0 0
    %1912 = vmatpush.bf16.msra.mxu0 0
    %1913 = vmatpush.bf16.msra.mxu0 0
    %1914 = vmatpush.bf16.msra.mxu0 0
    %1915 = vmatpush.bf16.msra.mxu0 0
    %1916 = vmatpush.bf16.msra.mxu0 0
    %1917 = vmatpush.bf16.msra.mxu0 %v1736
    %1918 = vmatmul.bf16.gmra.mxu0 %v1694
    %v1919 = vpop.f32.mrf.mxu0
    %v1920 = vadd.f32 0.0, %v1919
    %v1921 = vpop.f32.mrf.mxu0
    %1922 = vdwg.mxu0
    %1923 = vmatpush.bf16.msra.mxu0 0
    %1924 = vmatpush.bf16.msra.mxu0 0
    %1925 = vmatpush.bf16.msra.mxu0 0
    %1926 = vmatpush.bf16.msra.mxu0 0
    %1927 = vmatpush.bf16.msra.mxu0 0
    %1928 = vmatpush.bf16.msra.mxu0 0
    %1929 = vmatpush.bf16.msra.mxu0 0
    %1930 = vmatpush.bf16.msra.mxu0 %v1739
    %1931 = vmatmul.bf16.gmra.mxu0 %v1694
    %v1932 = vpop.f32.mrf.mxu0
    %v1933 = vadd.f32 0.0, %v1932
    %v1934 = vpop.f32.mrf.mxu0
    %1935 = vdwg.mxu0
    %v1936 = vadd.f32 %v1590, %v1751
    %v1937 = vadd.f32 %v1591, %v1764
    %v1938 = vadd.f32 %v1592, %v1777
    %v1939 = vadd.f32 %v1593, %v1790
    %v1940 = vadd.f32 %v1594, %v1803
    %v1941 = vadd.f32 %v1595, %v1816
    %v1942 = vadd.f32 %v1596, %v1829
    %v1943 = vadd.f32 %v1597, %v1842
    %v1944 = vadd.f32 %v1598, %v1855
    %v1945 = vadd.f32 %v1599, %v1868
    %v1946 = vadd.f32 %v1600, %v1881
    %v1947 = vadd.f32 %v1601, %v1894
    %v1948 = vadd.f32 %v1602, %v1907
    %v1949 = vadd.f32 %v1603, %v1920
    %v1950 = vadd.f32 %v1604, %v1933
    %1951 = vrot.lane.b32.xlu0 %v65, 104
    %v1952 = vpop.permute.xlu0 %1951
    %1953 = vst [vmem:[#allocation1] ss:$4 sm:$0xff] %v58
    %s1954 = scalar_lea.vmem [#allocation1], 32
    %1955 = vst [vmem:[%s1954] ss:$4 sm:$0xff] %v59
    %v1956 = vld.sshfl [vmem:[#allocation1 + $0x8] sm:$0xff pattern:$0x73625140]
    %v1958 = vld.sshfl [vmem:[#allocation1 + $0x10] sm:$0xff pattern:$0x73625140]
    %v1960 = vld.sshfl [vmem:[#allocation1 + $0x18] sm:$0xff pattern:$0x73625140]
    %v1962 = vld.sshfl [vmem:[#allocation1 + $0x20] sm:$0xff pattern:$0x73625140]
    %v1964 = vld.sshfl [vmem:[#allocation1 + $0x28] sm:$0xff pattern:$0x73625140]
    %v1966 = vld.sshfl [vmem:[#allocation1 + $0x30] sm:$0xff pattern:$0x73625140]
    %v1968 = vld.sshfl [vmem:[#allocation1 + $0x38] sm:$0xff pattern:$0x73625140]
    %1970 = vst [vmem:[#allocation1] ss:$4 sm:$0xff] %v60
    %1971 = vst [vmem:[%s1954] ss:$4 sm:$0xff] %v61
    %v1972 = vld.sshfl [vmem:[#allocation1] sm:$0xff pattern:$0x73625140]
    %v1974 = vld.sshfl [vmem:[#allocation1 + $0x8] sm:$0xff pattern:$0x73625140]
    %v1976 = vld.sshfl [vmem:[#allocation1 + $0x10] sm:$0xff pattern:$0x73625140]
    %v1978 = vld.sshfl [vmem:[#allocation1 + $0x18] sm:$0xff pattern:$0x73625140]
    %v1980 = vld.sshfl [vmem:[#allocation1 + $0x20] sm:$0xff pattern:$0x73625140]
    %v1982 = vld.sshfl [vmem:[#allocation1 + $0x28] sm:$0xff pattern:$0x73625140]
    %v1984 = vld.sshfl [vmem:[#allocation1 + $0x30] sm:$0xff pattern:$0x73625140]
    %v1986 = vld.sshfl [vmem:[#allocation1 + $0x38] sm:$0xff pattern:$0x73625140]
    %1988 = vst [vmem:[#allocation1] ss:$4 sm:$0xff] %v62
    %v1989 = vld.sshfl [vmem:[#allocation1] sm:$0xff pattern:$0x73625140]
    %1991 = vrot.lane.b32.xlu0 %v1956, 126
    %v1992 = vpop.permute.xlu0 %1991
    %1993 = vrot.lane.b32.xlu0 %v1958, 126
    %v1994 = vpop.permute.xlu0 %1993
    %1995 = vrot.lane.b32.xlu0 %v1960, 126
    %v1996 = vpop.permute.xlu0 %1995
    %1997 = vrot.lane.b32.xlu0 %v1962, 126
    %v1998 = vpop.permute.xlu0 %1997
    %1999 = vrot.lane.b32.xlu0 %v1964, 126
    %v2000 = vpop.permute.xlu0 %1999
    %2001 = vrot.lane.b32.xlu0 %v1966, 126
    %v2002 = vpop.permute.xlu0 %2001
    %2003 = vrot.lane.b32.xlu0 %v1968, 126
    %v2004 = vpop.permute.xlu0 %2003
    %2005 = vrot.lane.b32.xlu0 %v1972, 126
    %v2006 = vpop.permute.xlu0 %2005
    %2007 = vrot.lane.b32.xlu0 %v1974, 126
    %v2008 = vpop.permute.xlu0 %2007
    %2009 = vrot.lane.b32.xlu0 %v1976, 126
    %v2010 = vpop.permute.xlu0 %2009
    %2011 = vrot.lane.b32.xlu0 %v1978, 126
    %v2012 = vpop.permute.xlu0 %2011
    %2013 = vrot.lane.b32.xlu0 %v1980, 126
    %v2014 = vpop.permute.xlu0 %2013
    %2015 = vrot.lane.b32.xlu0 %v1982, 126
    %v2016 = vpop.permute.xlu0 %2015
    %2017 = vrot.lane.b32.xlu0 %v1984, 126
    %v2018 = vpop.permute.xlu0 %2017
    %2019 = vrot.lane.b32.xlu0 %v1986, 126
    %v2020 = vpop.permute.xlu0 %2019
    %2021 = vrot.lane.b32.xlu0 %v1989, 126
    %v2022 = vpop.permute.xlu0 %2021
    %v2023 = vsel %vm721, %v1992, %v1994
    %v2024 = vsel %vm721, %v1994, %v1996
    %v2025 = vsel %vm721, %v1996, %v1998
    %v2026 = vsel %vm721, %v1998, %v2000
    %v2027 = vsel %vm721, %v2000, %v2002
    %v2028 = vsel %vm721, %v2002, %v2004
    %v2029 = vsel %vm721, %v2004, %v2006
    %v2030 = vsel %vm721, %v2006, %v2008
    %v2031 = vsel %vm721, %v2008, %v2010
    %v2032 = vsel %vm721, %v2010, %v2012
    %v2033 = vsel %vm721, %v2012, %v2014
    %v2034 = vsel %vm721, %v2014, %v2016
    %v2035 = vsel %vm721, %v2016, %v2018
    %v2036 = vsel %vm721, %v2018, %v2020
    %v2037 = vsel %vm721, %v2020, %v2022
    %v2039 = vsel %vm157, %v1952, 0
    %v2042 = vsel %vm161, %v2023, 0
    %v2045 = vsel %vm161, %v2024, 0
    %v2048 = vsel %vm161, %v2025, 0
    %v2051 = vsel %vm161, %v2026, 0
    %v2054 = vsel %vm161, %v2027, 0
    %v2057 = vsel %vm161, %v2028, 0
    %v2060 = vsel %vm161, %v2029, 0
    %v2063 = vsel %vm161, %v2030, 0
    %v2066 = vsel %vm161, %v2031, 0
    %v2069 = vsel %vm161, %v2032, 0
    %v2072 = vsel %vm161, %v2033, 0
    %v2075 = vsel %vm161, %v2034, 0
    %v2078 = vsel %vm161, %v2035, 0
    %v2081 = vsel %vm161, %v2036, 0
    %v2084 = vsel %vm161, %v2037, 0
    %2086 = vmatpush.bf16.msra.mxu0 0
    %2087 = vmatpush.bf16.msra.mxu0 0
    %2088 = vmatpush.bf16.msra.mxu0 0
    %2089 = vmatpush.bf16.msra.mxu0 0
    %2090 = vmatpush.bf16.msra.mxu0 0
    %2091 = vmatpush.bf16.msra.mxu0 0
    %2092 = vmatpush.bf16.msra.mxu0 0
    %2093 = vmatpush.bf16.msra.mxu0 %v2042
    %2094 = vmatmul.bf16.gmra.mxu0 %v2039
    %v2095 = vpop.f32.mrf.mxu0
    %v2096 = vadd.f32 0.0, %v2095
    %v2097 = vpop.f32.mrf.mxu0
    %2098 = vdwg.mxu0
    %2099 = vmatpush.bf16.msra.mxu0 0
    %2100 = vmatpush.bf16.msra.mxu0 0
    %2101 = vmatpush.bf16.msra.mxu0 0
    %2102 = vmatpush.bf16.msra.mxu0 0
    %2103 = vmatpush.bf16.msra.mxu0 0
    %2104 = vmatpush.bf16.msra.mxu0 0
    %2105 = vmatpush.bf16.msra.mxu0 0
    %2106 = vmatpush.bf16.msra.mxu0 %v2045
    %2107 = vmatmul.bf16.gmra.mxu0 %v2039
    %v2108 = vpop.f32.mrf.mxu0
    %v2109 = vadd.f32 0.0, %v2108
    %v2110 = vpop.f32.mrf.mxu0
    %2111 = vdwg.mxu0
    %2112 = vmatpush.bf16.msra.mxu0 0
    %2113 = vmatpush.bf16.msra.mxu0 0
    %2114 = vmatpush.bf16.msra.mxu0 0
    %2115 = vmatpush.bf16.msra.mxu0 0
    %2116 = vmatpush.bf16.msra.mxu0 0
    %2117 = vmatpush.bf16.msra.mxu0 0
    %2118 = vmatpush.bf16.msra.mxu0 0
    %2119 = vmatpush.bf16.msra.mxu0 %v2048
    %2120 = vmatmul.bf16.gmra.mxu0 %v2039
    %v2121 = vpop.f32.mrf.mxu0
    %v2122 = vadd.f32 0.0, %v2121
    %v2123 = vpop.f32.mrf.mxu0
    %2124 = vdwg.mxu0
    %2125 = vmatpush.bf16.msra.mxu0 0
    %2126 = vmatpush.bf16.msra.mxu0 0
    %2127 = vmatpush.bf16.msra.mxu0 0
    %2128 = vmatpush.bf16.msra.mxu0 0
    %2129 = vmatpush.bf16.msra.mxu0 0
    %2130 = vmatpush.bf16.msra.mxu0 0
    %2131 = vmatpush.bf16.msra.mxu0 0
    %2132 = vmatpush.bf16.msra.mxu0 %v2051
    %2133 = vmatmul.bf16.gmra.mxu0 %v2039
    %v2134 = vpop.f32.mrf.mxu0
    %v2135 = vadd.f32 0.0, %v2134
    %v2136 = vpop.f32.mrf.mxu0
    %2137 = vdwg.mxu0
    %2138 = vmatpush.bf16.msra.mxu0 0
    %2139 = vmatpush.bf16.msra.mxu0 0
    %2140 = vmatpush.bf16.msra.mxu0 0
    %2141 = vmatpush.bf16.msra.mxu0 0
    %2142 = vmatpush.bf16.msra.mxu0 0
    %2143 = vmatpush.bf16.msra.mxu0 0
    %2144 = vmatpush.bf16.msra.mxu0 0
    %2145 = vmatpush.bf16.msra.mxu0 %v2054
    %2146 = vmatmul.bf16.gmra.mxu0 %v2039
    %v2147 = vpop.f32.mrf.mxu0
    %v2148 = vadd.f32 0.0, %v2147
    %v2149 = vpop.f32.mrf.mxu0
    %2150 = vdwg.mxu0
    %2151 = vmatpush.bf16.msra.mxu0 0
    %2152 = vmatpush.bf16.msra.mxu0 0
    %2153 = vmatpush.bf16.msra.mxu0 0
    %2154 = vmatpush.bf16.msra.mxu0 0
    %2155 = vmatpush.bf16.msra.mxu0 0
    %2156 = vmatpush.bf16.msra.mxu0 0
    %2157 = vmatpush.bf16.msra.mxu0 0
    %2158 = vmatpush.bf16.msra.mxu0 %v2057
    %2159 = vmatmul.bf16.gmra.mxu0 %v2039
    %v2160 = vpop.f32.mrf.mxu0
    %v2161 = vadd.f32 0.0, %v2160
    %v2162 = vpop.f32.mrf.mxu0
    %2163 = vdwg.mxu0
    %2164 = vmatpush.bf16.msra.mxu0 0
    %2165 = vmatpush.bf16.msra.mxu0 0
    %2166 = vmatpush.bf16.msra.mxu0 0
    %2167 = vmatpush.bf16.msra.mxu0 0
    %2168 = vmatpush.bf16.msra.mxu0 0
    %2169 = vmatpush.bf16.msra.mxu0 0
    %2170 = vmatpush.bf16.msra.mxu0 0
    %2171 = vmatpush.bf16.msra.mxu0 %v2060
    %2172 = vmatmul.bf16.gmra.mxu0 %v2039
    %v2173 = vpop.f32.mrf.mxu0
    %v2174 = vadd.f32 0.0, %v2173
    %v2175 = vpop.f32.mrf.mxu0
    %2176 = vdwg.mxu0
    %2177 = vmatpush.bf16.msra.mxu0 0
    %2178 = vmatpush.bf16.msra.mxu0 0
    %2179 = vmatpush.bf16.msra.mxu0 0
    %2180 = vmatpush.bf16.msra.mxu0 0
    %2181 = vmatpush.bf16.msra.mxu0 0
    %2182 = vmatpush.bf16.msra.mxu0 0
    %2183 = vmatpush.bf16.msra.mxu0 0
    %2184 = vmatpush.bf16.msra.mxu0 %v2063
    %2185 = vmatmul.bf16.gmra.mxu0 %v2039
    %v2186 = vpop.f32.mrf.mxu0
    %v2187 = vadd.f32 0.0, %v2186
    %v2188 = vpop.f32.mrf.mxu0
    %2189 = vdwg.mxu0
    %2190 = vmatpush.bf16.msra.mxu0 0
    %2191 = vmatpush.bf16.msra.mxu0 0
    %2192 = vmatpush.bf16.msra.mxu0 0
    %2193 = vmatpush.bf16.msra.mxu0 0
    %2194 = vmatpush.bf16.msra.mxu0 0
    %2195 = vmatpush.bf16.msra.mxu0 0
    %2196 = vmatpush.bf16.msra.mxu0 0
    %2197 = vmatpush.bf16.msra.mxu0 %v2066
    %2198 = vmatmul.bf16.gmra.mxu0 %v2039
    %v2199 = vpop.f32.mrf.mxu0
    %v2200 = vadd.f32 0.0, %v2199
    %v2201 = vpop.f32.mrf.mxu0
    %2202 = vdwg.mxu0
    %2203 = vmatpush.bf16.msra.mxu0 0
    %2204 = vmatpush.bf16.msra.mxu0 0
    %2205 = vmatpush.bf16.msra.mxu0 0
    %2206 = vmatpush.bf16.msra.mxu0 0
    %2207 = vmatpush.bf16.msra.mxu0 0
    %2208 = vmatpush.bf16.msra.mxu0 0
    %2209 = vmatpush.bf16.msra.mxu0 0
    %2210 = vmatpush.bf16.msra.mxu0 %v2069
    %2211 = vmatmul.bf16.gmra.mxu0 %v2039
    %v2212 = vpop.f32.mrf.mxu0
    %v2213 = vadd.f32 0.0, %v2212
    %v2214 = vpop.f32.mrf.mxu0
    %2215 = vdwg.mxu0
    %2216 = vmatpush.bf16.msra.mxu0 0
    %2217 = vmatpush.bf16.msra.mxu0 0
    %2218 = vmatpush.bf16.msra.mxu0 0
    %2219 = vmatpush.bf16.msra.mxu0 0
    %2220 = vmatpush.bf16.msra.mxu0 0
    %2221 = vmatpush.bf16.msra.mxu0 0
    %2222 = vmatpush.bf16.msra.mxu0 0
    %2223 = vmatpush.bf16.msra.mxu0 %v2072
    %2224 = vmatmul.bf16.gmra.mxu0 %v2039
    %v2225 = vpop.f32.mrf.mxu0
    %v2226 = vadd.f32 0.0, %v2225
    %v2227 = vpop.f32.mrf.mxu0
    %2228 = vdwg.mxu0
    %2229 = vmatpush.bf16.msra.mxu0 0
    %2230 = vmatpush.bf16.msra.mxu0 0
    %2231 = vmatpush.bf16.msra.mxu0 0
    %2232 = vmatpush.bf16.msra.mxu0 0
    %2233 = vmatpush.bf16.msra.mxu0 0
    %2234 = vmatpush.bf16.msra.mxu0 0
    %2235 = vmatpush.bf16.msra.mxu0 0
    %2236 = vmatpush.bf16.msra.mxu0 %v2075
    %2237 = vmatmul.bf16.gmra.mxu0 %v2039
    %v2238 = vpop.f32.mrf.mxu0
    %v2239 = vadd.f32 0.0, %v2238
    %v2240 = vpop.f32.mrf.mxu0
    %2241 = vdwg.mxu0
    %2242 = vmatpush.bf16.msra.mxu0 0
    %2243 = vmatpush.bf16.msra.mxu0 0
    %2244 = vmatpush.bf16.msra.mxu0 0
    %2245 = vmatpush.bf16.msra.mxu0 0
    %2246 = vmatpush.bf16.msra.mxu0 0
    %2247 = vmatpush.bf16.msra.mxu0 0
    %2248 = vmatpush.bf16.msra.mxu0 0
    %2249 = vmatpush.bf16.msra.mxu0 %v2078
    %2250 = vmatmul.bf16.gmra.mxu0 %v2039
    %v2251 = vpop.f32.mrf.mxu0
    %v2252 = vadd.f32 0.0, %v2251
    %v2253 = vpop.f32.mrf.mxu0
    %2254 = vdwg.mxu0
    %2255 = vmatpush.bf16.msra.mxu0 0
    %2256 = vmatpush.bf16.msra.mxu0 0
    %2257 = vmatpush.bf16.msra.mxu0 0
    %2258 = vmatpush.bf16.msra.mxu0 0
    %2259 = vmatpush.bf16.msra.mxu0 0
    %2260 = vmatpush.bf16.msra.mxu0 0
    %2261 = vmatpush.bf16.msra.mxu0 0
    %2262 = vmatpush.bf16.msra.mxu0 %v2081
    %2263 = vmatmul.bf16.gmra.mxu0 %v2039
    %v2264 = vpop.f32.mrf.mxu0
    %v2265 = vadd.f32 0.0, %v2264
    %v2266 = vpop.f32.mrf.mxu0
    %2267 = vdwg.mxu0
    %2268 = vmatpush.bf16.msra.mxu0 0
    %2269 = vmatpush.bf16.msra.mxu0 0
    %2270 = vmatpush.bf16.msra.mxu0 0
    %2271 = vmatpush.bf16.msra.mxu0 0
    %2272 = vmatpush.bf16.msra.mxu0 0
    %2273 = vmatpush.bf16.msra.mxu0 0
    %2274 = vmatpush.bf16.msra.mxu0 0
    %2275 = vmatpush.bf16.msra.mxu0 %v2084
    %2276 = vmatmul.bf16.gmra.mxu0 %v2039
    %v2277 = vpop.f32.mrf.mxu0
    %v2278 = vadd.f32 0.0, %v2277
    %v2279 = vpop.f32.mrf.mxu0
    %2280 = vdwg.mxu0
    %v2281 = vadd.f32 %v1936, %v2096
    %v2282 = vadd.f32 %v1937, %v2109
    %v2283 = vadd.f32 %v1938, %v2122
    %v2284 = vadd.f32 %v1939, %v2135
    %v2285 = vadd.f32 %v1940, %v2148
    %v2286 = vadd.f32 %v1941, %v2161
    %v2287 = vadd.f32 %v1942, %v2174
    %v2288 = vadd.f32 %v1943, %v2187
    %v2289 = vadd.f32 %v1944, %v2200
    %v2290 = vadd.f32 %v1945, %v2213
    %v2291 = vadd.f32 %v1946, %v2226
    %v2292 = vadd.f32 %v1947, %v2239
    %v2293 = vadd.f32 %v1948, %v2252
    %v2294 = vadd.f32 %v1949, %v2265
    %v2295 = vadd.f32 %v1950, %v2278
    %2296 = vrot.lane.b32.xlu0 %v65, 100
    %v2297 = vpop.permute.xlu0 %2296
    %2298 = vst [vmem:[#allocation1] ss:$4 sm:$0xff] %v58
    %s2299 = scalar_lea.vmem [#allocation1], 32
    %2300 = vst [vmem:[%s2299] ss:$4 sm:$0xff] %v59
    %v2301 = vld.sshfl [vmem:[#allocation1 + $0x8] sm:$0xff pattern:$0x73625140]
    %v2303 = vld.sshfl [vmem:[#allocation1 + $0x10] sm:$0xff pattern:$0x73625140]
    %v2305 = vld.sshfl [vmem:[#allocation1 + $0x18] sm:$0xff pattern:$0x73625140]
    %v2307 = vld.sshfl [vmem:[#allocation1 + $0x20] sm:$0xff pattern:$0x73625140]
    %v2309 = vld.sshfl [vmem:[#allocation1 + $0x28] sm:$0xff pattern:$0x73625140]
    %v2311 = vld.sshfl [vmem:[#allocation1 + $0x30] sm:$0xff pattern:$0x73625140]
    %v2313 = vld.sshfl [vmem:[#allocation1 + $0x38] sm:$0xff pattern:$0x73625140]
    %2315 = vst [vmem:[#allocation1] ss:$4 sm:$0xff] %v60
    %2316 = vst [vmem:[%s2299] ss:$4 sm:$0xff] %v61
    %v2317 = vld.sshfl [vmem:[#allocation1] sm:$0xff pattern:$0x73625140]
    %v2319 = vld.sshfl [vmem:[#allocation1 + $0x8] sm:$0xff pattern:$0x73625140]
    %v2321 = vld.sshfl [vmem:[#allocation1 + $0x10] sm:$0xff pattern:$0x73625140]
    %v2323 = vld.sshfl [vmem:[#allocation1 + $0x18] sm:$0xff pattern:$0x73625140]
    %v2325 = vld.sshfl [vmem:[#allocation1 + $0x20] sm:$0xff pattern:$0x73625140]
    %v2327 = vld.sshfl [vmem:[#allocation1 + $0x28] sm:$0xff pattern:$0x73625140]
    %v2329 = vld.sshfl [vmem:[#allocation1 + $0x30] sm:$0xff pattern:$0x73625140]
    %v2331 = vld.sshfl [vmem:[#allocation1 + $0x38] sm:$0xff pattern:$0x73625140]
    %2333 = vst [vmem:[#allocation1] ss:$4 sm:$0xff] %v62
    %v2334 = vld.sshfl [vmem:[#allocation1] sm:$0xff pattern:$0x73625140]
    %2336 = vrot.lane.b32.xlu0 %v2301, 125
    %v2337 = vpop.permute.xlu0 %2336
    %2338 = vrot.lane.b32.xlu0 %v2303, 125
    %v2339 = vpop.permute.xlu0 %2338
    %2340 = vrot.lane.b32.xlu0 %v2305, 125
    %v2341 = vpop.permute.xlu0 %2340
    %2342 = vrot.lane.b32.xlu0 %v2307, 125
    %v2343 = vpop.permute.xlu0 %2342
    %2344 = vrot.lane.b32.xlu0 %v2309, 125
    %v2345 = vpop.permute.xlu0 %2344
    %2346 = vrot.lane.b32.xlu0 %v2311, 125
    %v2347 = vpop.permute.xlu0 %2346
    %2348 = vrot.lane.b32.xlu0 %v2313, 125
    %v2349 = vpop.permute.xlu0 %2348
    %2350 = vrot.lane.b32.xlu0 %v2317, 125
    %v2351 = vpop.permute.xlu0 %2350
    %2352 = vrot.lane.b32.xlu0 %v2319, 125
    %v2353 = vpop.permute.xlu0 %2352
    %2354 = vrot.lane.b32.xlu0 %v2321, 125
    %v2355 = vpop.permute.xlu0 %2354
    %2356 = vrot.lane.b32.xlu0 %v2323, 125
    %v2357 = vpop.permute.xlu0 %2356
    %2358 = vrot.lane.b32.xlu0 %v2325, 125
    %v2359 = vpop.permute.xlu0 %2358
    %2360 = vrot.lane.b32.xlu0 %v2327, 125
    %v2361 = vpop.permute.xlu0 %2360
    %2362 = vrot.lane.b32.xlu0 %v2329, 125
    %v2363 = vpop.permute.xlu0 %2362
    %2364 = vrot.lane.b32.xlu0 %v2331, 125
    %v2365 = vpop.permute.xlu0 %2364
    %2366 = vrot.lane.b32.xlu0 %v2334, 125
    %v2367 = vpop.permute.xlu0 %2366
    %v2368 = vsel %vm1066, %v2337, %v2339
    %v2369 = vsel %vm1066, %v2339, %v2341
    %v2370 = vsel %vm1066, %v2341, %v2343
    %v2371 = vsel %vm1066, %v2343, %v2345
    %v2372 = vsel %vm1066, %v2345, %v2347
    %v2373 = vsel %vm1066, %v2347, %v2349
    %v2374 = vsel %vm1066, %v2349, %v2351
    %v2375 = vsel %vm1066, %v2351, %v2353
    %v2376 = vsel %vm1066, %v2353, %v2355
    %v2377 = vsel %vm1066, %v2355, %v2357
    %v2378 = vsel %vm1066, %v2357, %v2359
    %v2379 = vsel %vm1066, %v2359, %v2361
    %v2380 = vsel %vm1066, %v2361, %v2363
    %v2381 = vsel %vm1066, %v2363, %v2365
    %v2382 = vsel %vm1066, %v2365, %v2367
    %v2384 = vsel %vm157, %v2297, 0
    %v2387 = vsel %vm161, %v2368, 0
    %v2390 = vsel %vm161, %v2369, 0
    %v2393 = vsel %vm161, %v2370, 0
    %v2396 = vsel %vm161, %v2371, 0
    %v2399 = vsel %vm161, %v2372, 0
    %v2402 = vsel %vm161, %v2373, 0
    %v2405 = vsel %vm161, %v2374, 0
    %v2408 = vsel %vm161, %v2375, 0
    %v2411 = vsel %vm161, %v2376, 0
    %v2414 = vsel %vm161, %v2377, 0
    %v2417 = vsel %vm161, %v2378, 0
    %v2420 = vsel %vm161, %v2379, 0
    %v2423 = vsel %vm161, %v2380, 0
    %v2426 = vsel %vm161, %v2381, 0
    %v2429 = vsel %vm161, %v2382, 0
    %2431 = vmatpush.bf16.msra.mxu0 0
    %2432 = vmatpush.bf16.msra.mxu0 0
    %2433 = vmatpush.bf16.msra.mxu0 0
    %2434 = vmatpush.bf16.msra.mxu0 0
    %2435 = vmatpush.bf16.msra.mxu0 0
    %2436 = vmatpush.bf16.msra.mxu0 0
    %2437 = vmatpush.bf16.msra.mxu0 0
    %2438 = vmatpush.bf16.msra.mxu0 %v2387
    %2439 = vmatmul.bf16.gmra.mxu0 %v2384
    %v2440 = vpop.f32.mrf.mxu0
    %v2441 = vadd.f32 0.0, %v2440
    %v2442 = vpop.f32.mrf.mxu0
    %2443 = vdwg.mxu0
    %2444 = vmatpush.bf16.msra.mxu0 0
    %2445 = vmatpush.bf16.msra.mxu0 0
    %2446 = vmatpush.bf16.msra.mxu0 0
    %2447 = vmatpush.bf16.msra.mxu0 0
    %2448 = vmatpush.bf16.msra.mxu0 0
    %2449 = vmatpush.bf16.msra.mxu0 0
    %2450 = vmatpush.bf16.msra.mxu0 0
    %2451 = vmatpush.bf16.msra.mxu0 %v2390
    %2452 = vmatmul.bf16.gmra.mxu0 %v2384
    %v2453 = vpop.f32.mrf.mxu0
    %v2454 = vadd.f32 0.0, %v2453
    %v2455 = vpop.f32.mrf.mxu0
    %2456 = vdwg.mxu0
    %2457 = vmatpush.bf16.msra.mxu0 0
    %2458 = vmatpush.bf16.msra.mxu0 0
    %2459 = vmatpush.bf16.msra.mxu0 0
    %2460 = vmatpush.bf16.msra.mxu0 0
    %2461 = vmatpush.bf16.msra.mxu0 0
    %2462 = vmatpush.bf16.msra.mxu0 0
    %2463 = vmatpush.bf16.msra.mxu0 0
    %2464 = vmatpush.bf16.msra.mxu0 %v2393
    %2465 = vmatmul.bf16.gmra.mxu0 %v2384
    %v2466 = vpop.f32.mrf.mxu0
    %v2467 = vadd.f32 0.0, %v2466
    %v2468 = vpop.f32.mrf.mxu0
    %2469 = vdwg.mxu0
    %2470 = vmatpush.bf16.msra.mxu0 0
    %2471 = vmatpush.bf16.msra.mxu0 0
    %2472 = vmatpush.bf16.msra.mxu0 0
    %2473 = vmatpush.bf16.msra.mxu0 0
    %2474 = vmatpush.bf16.msra.mxu0 0
    %2475 = vmatpush.bf16.msra.mxu0 0
    %2476 = vmatpush.bf16.msra.mxu0 0
    %2477 = vmatpush.bf16.msra.mxu0 %v2396
    %2478 = vmatmul.bf16.gmra.mxu0 %v2384
    %v2479 = vpop.f32.mrf.mxu0
    %v2480 = vadd.f32 0.0, %v2479
    %v2481 = vpop.f32.mrf.mxu0
    %2482 = vdwg.mxu0
    %2483 = vmatpush.bf16.msra.mxu0 0
    %2484 = vmatpush.bf16.msra.mxu0 0
    %2485 = vmatpush.bf16.msra.mxu0 0
    %2486 = vmatpush.bf16.msra.mxu0 0
    %2487 = vmatpush.bf16.msra.mxu0 0
    %2488 = vmatpush.bf16.msra.mxu0 0
    %2489 = vmatpush.bf16.msra.mxu0 0
    %2490 = vmatpush.bf16.msra.mxu0 %v2399
    %2491 = vmatmul.bf16.gmra.mxu0 %v2384
    %v2492 = vpop.f32.mrf.mxu0
    %v2493 = vadd.f32 0.0, %v2492
    %v2494 = vpop.f32.mrf.mxu0
    %2495 = vdwg.mxu0
    %2496 = vmatpush.bf16.msra.mxu0 0
    %2497 = vmatpush.bf16.msra.mxu0 0
    %2498 = vmatpush.bf16.msra.mxu0 0
    %2499 = vmatpush.bf16.msra.mxu0 0
    %2500 = vmatpush.bf16.msra.mxu0 0
    %2501 = vmatpush.bf16.msra.mxu0 0
    %2502 = vmatpush.bf16.msra.mxu0 0
    %2503 = vmatpush.bf16.msra.mxu0 %v2402
    %2504 = vmatmul.bf16.gmra.mxu0 %v2384
    %v2505 = vpop.f32.mrf.mxu0
    %v2506 = vadd.f32 0.0, %v2505
    %v2507 = vpop.f32.mrf.mxu0
    %2508 = vdwg.mxu0
    %2509 = vmatpush.bf16.msra.mxu0 0
    %2510 = vmatpush.bf16.msra.mxu0 0
    %2511 = vmatpush.bf16.msra.mxu0 0
    %2512 = vmatpush.bf16.msra.mxu0 0
    %2513 = vmatpush.bf16.msra.mxu0 0
    %2514 = vmatpush.bf16.msra.mxu0 0
    %2515 = vmatpush.bf16.msra.mxu0 0
    %2516 = vmatpush.bf16.msra.mxu0 %v2405
    %2517 = vmatmul.bf16.gmra.mxu0 %v2384
    %v2518 = vpop.f32.mrf.mxu0
    %v2519 = vadd.f32 0.0, %v2518
    %v2520 = vpop.f32.mrf.mxu0
    %2521 = vdwg.mxu0
    %2522 = vmatpush.bf16.msra.mxu0 0
    %2523 = vmatpush.bf16.msra.mxu0 0
    %2524 = vmatpush.bf16.msra.mxu0 0
    %2525 = vmatpush.bf16.msra.mxu0 0
    %2526 = vmatpush.bf16.msra.mxu0 0
    %2527 = vmatpush.bf16.msra.mxu0 0
    %2528 = vmatpush.bf16.msra.mxu0 0
    %2529 = vmatpush.bf16.msra.mxu0 %v2408
    %2530 = vmatmul.bf16.gmra.mxu0 %v2384
    %v2531 = vpop.f32.mrf.mxu0
    %v2532 = vadd.f32 0.0, %v2531
    %v2533 = vpop.f32.mrf.mxu0
    %2534 = vdwg.mxu0
    %2535 = vmatpush.bf16.msra.mxu0 0
    %2536 = vmatpush.bf16.msra.mxu0 0
    %2537 = vmatpush.bf16.msra.mxu0 0
    %2538 = vmatpush.bf16.msra.mxu0 0
    %2539 = vmatpush.bf16.msra.mxu0 0
    %2540 = vmatpush.bf16.msra.mxu0 0
    %2541 = vmatpush.bf16.msra.mxu0 0
    %2542 = vmatpush.bf16.msra.mxu0 %v2411
    %2543 = vmatmul.bf16.gmra.mxu0 %v2384
    %v2544 = vpop.f32.mrf.mxu0
    %v2545 = vadd.f32 0.0, %v2544
    %v2546 = vpop.f32.mrf.mxu0
    %2547 = vdwg.mxu0
    %2548 = vmatpush.bf16.msra.mxu0 0
    %2549 = vmatpush.bf16.msra.mxu0 0
    %2550 = vmatpush.bf16.msra.mxu0 0
    %2551 = vmatpush.bf16.msra.mxu0 0
    %2552 = vmatpush.bf16.msra.mxu0 0
    %2553 = vmatpush.bf16.msra.mxu0 0
    %2554 = vmatpush.bf16.msra.mxu0 0
    %2555 = vmatpush.bf16.msra.mxu0 %v2414
    %2556 = vmatmul.bf16.gmra.mxu0 %v2384
    %v2557 = vpop.f32.mrf.mxu0
    %v2558 = vadd.f32 0.0, %v2557
    %v2559 = vpop.f32.mrf.mxu0
    %2560 = vdwg.mxu0
    %2561 = vmatpush.bf16.msra.mxu0 0
    %2562 = vmatpush.bf16.msra.mxu0 0
    %2563 = vmatpush.bf16.msra.mxu0 0
    %2564 = vmatpush.bf16.msra.mxu0 0
    %2565 = vmatpush.bf16.msra.mxu0 0
    %2566 = vmatpush.bf16.msra.mxu0 0
    %2567 = vmatpush.bf16.msra.mxu0 0
    %2568 = vmatpush.bf16.msra.mxu0 %v2417
    %2569 = vmatmul.bf16.gmra.mxu0 %v2384
    %v2570 = vpop.f32.mrf.mxu0
    %v2571 = vadd.f32 0.0, %v2570
    %v2572 = vpop.f32.mrf.mxu0
    %2573 = vdwg.mxu0
    %2574 = vmatpush.bf16.msra.mxu0 0
    %2575 = vmatpush.bf16.msra.mxu0 0
    %2576 = vmatpush.bf16.msra.mxu0 0
    %2577 = vmatpush.bf16.msra.mxu0 0
    %2578 = vmatpush.bf16.msra.mxu0 0
    %2579 = vmatpush.bf16.msra.mxu0 0
    %2580 = vmatpush.bf16.msra.mxu0 0
    %2581 = vmatpush.bf16.msra.mxu0 %v2420
    %2582 = vmatmul.bf16.gmra.mxu0 %v2384
    %v2583 = vpop.f32.mrf.mxu0
    %v2584 = vadd.f32 0.0, %v2583
    %v2585 = vpop.f32.mrf.mxu0
    %2586 = vdwg.mxu0
    %2587 = vmatpush.bf16.msra.mxu0 0
    %2588 = vmatpush.bf16.msra.mxu0 0
    %2589 = vmatpush.bf16.msra.mxu0 0
    %2590 = vmatpush.bf16.msra.mxu0 0
    %2591 = vmatpush.bf16.msra.mxu0 0
    %2592 = vmatpush.bf16.msra.mxu0 0
    %2593 = vmatpush.bf16.msra.mxu0 0
    %2594 = vmatpush.bf16.msra.mxu0 %v2423
    %2595 = vmatmul.bf16.gmra.mxu0 %v2384
    %v2596 = vpop.f32.mrf.mxu0
    %v2597 = vadd.f32 0.0, %v2596
    %v2598 = vpop.f32.mrf.mxu0
    %2599 = vdwg.mxu0
    %2600 = vmatpush.bf16.msra.mxu0 0
    %2601 = vmatpush.bf16.msra.mxu0 0
    %2602 = vmatpush.bf16.msra.mxu0 0
    %2603 = vmatpush.bf16.msra.mxu0 0
    %2604 = vmatpush.bf16.msra.mxu0 0
    %2605 = vmatpush.bf16.msra.mxu0 0
    %2606 = vmatpush.bf16.msra.mxu0 0
    %2607 = vmatpush.bf16.msra.mxu0 %v2426
    %2608 = vmatmul.bf16.gmra.mxu0 %v2384
    %v2609 = vpop.f32.mrf.mxu0
    %v2610 = vadd.f32 0.0, %v2609
    %v2611 = vpop.f32.mrf.mxu0
    %2612 = vdwg.mxu0
    %2613 = vmatpush.bf16.msra.mxu0 0
    %2614 = vmatpush.bf16.msra.mxu0 0
    %2615 = vmatpush.bf16.msra.mxu0 0
    %2616 = vmatpush.bf16.msra.mxu0 0
    %2617 = vmatpush.bf16.msra.mxu0 0
    %2618 = vmatpush.bf16.msra.mxu0 0
    %2619 = vmatpush.bf16.msra.mxu0 0
    %2620 = vmatpush.bf16.msra.mxu0 %v2429
    %2621 = vmatmul.bf16.gmra.mxu0 %v2384
    %v2622 = vpop.f32.mrf.mxu0
    %v2623 = vadd.f32 0.0, %v2622
    %v2624 = vpop.f32.mrf.mxu0
    %2625 = vdwg.mxu0
    %v2626 = vadd.f32 %v2281, %v2441
    %v2627 = vadd.f32 %v2282, %v2454
    %v2628 = vadd.f32 %v2283, %v2467
    %v2629 = vadd.f32 %v2284, %v2480
    %v2630 = vadd.f32 %v2285, %v2493
    %v2631 = vadd.f32 %v2286, %v2506
    %v2632 = vadd.f32 %v2287, %v2519
    %v2633 = vadd.f32 %v2288, %v2532
    %v2634 = vadd.f32 %v2289, %v2545
    %v2635 = vadd.f32 %v2290, %v2558
    %v2636 = vadd.f32 %v2291, %v2571
    %v2637 = vadd.f32 %v2292, %v2584
    %v2638 = vadd.f32 %v2293, %v2597
    %v2639 = vadd.f32 %v2294, %v2610
    %v2640 = vadd.f32 %v2295, %v2623
    %2641 = vrot.lane.b32.xlu0 %v65, 96
    %v2642 = vpop.permute.xlu0 %2641
    %2643 = vst [vmem:[#allocation1] ss:$4 sm:$0xff] %v58
    %s2644 = scalar_lea.vmem [#allocation1], 32
    %2645 = vst [vmem:[%s2644] ss:$4 sm:$0xff] %v59
    %v2646 = vld.sshfl [vmem:[#allocation1 + $0x10] sm:$0xff pattern:$0x73625140]
    %v2647 = vld.sshfl [vmem:[#allocation1 + $0x18] sm:$0xff pattern:$0x73625140]
    %v2648 = vld.sshfl [vmem:[#allocation1 + $0x20] sm:$0xff pattern:$0x73625140]
    %v2649 = vld.sshfl [vmem:[#allocation1 + $0x28] sm:$0xff pattern:$0x73625140]
    %v2650 = vld.sshfl [vmem:[#allocation1 + $0x30] sm:$0xff pattern:$0x73625140]
    %v2651 = vld.sshfl [vmem:[#allocation1 + $0x38] sm:$0xff pattern:$0x73625140]
    %2652 = vst [vmem:[#allocation1] ss:$4 sm:$0xff] %v60
    %2653 = vst [vmem:[%s2644] ss:$4 sm:$0xff] %v61
    %v2654 = vld.sshfl [vmem:[#allocation1] sm:$0xff pattern:$0x73625140]
    %v2655 = vld.sshfl [vmem:[#allocation1 + $0x8] sm:$0xff pattern:$0x73625140]
    %v2656 = vld.sshfl [vmem:[#allocation1 + $0x10] sm:$0xff pattern:$0x73625140]
    %v2657 = vld.sshfl [vmem:[#allocation1 + $0x18] sm:$0xff pattern:$0x73625140]
    %v2658 = vld.sshfl [vmem:[#allocation1 + $0x20] sm:$0xff pattern:$0x73625140]
    %v2659 = vld.sshfl [vmem:[#allocation1 + $0x28] sm:$0xff pattern:$0x73625140]
    %v2660 = vld.sshfl [vmem:[#allocation1 + $0x30] sm:$0xff pattern:$0x73625140]
    %v2661 = vld.sshfl [vmem:[#allocation1 + $0x38] sm:$0xff pattern:$0x73625140]
    %2662 = vst [vmem:[#allocation1] ss:$4 sm:$0xff] %v62
    %v2663 = vld.sshfl [vmem:[#allocation1] sm:$0xff pattern:$0x73625140]
    %v2665 = vsel %vm157, %v2642, 0
    %v2667 = vsel %vm161, %v2646, 0
    %v2669 = vsel %vm161, %v2647, 0
    %v2671 = vsel %vm161, %v2648, 0
    %v2673 = vsel %vm161, %v2649, 0
    %v2675 = vsel %vm161, %v2650, 0
    %v2677 = vsel %vm161, %v2651, 0
    %v2679 = vsel %vm161, %v2654, 0
    %v2681 = vsel %vm161, %v2655, 0
    %v2683 = vsel %vm161, %v2656, 0
    %v2685 = vsel %vm161, %v2657, 0
    %v2687 = vsel %vm161, %v2658, 0
    %v2689 = vsel %vm161, %v2659, 0
    %v2691 = vsel %vm161, %v2660, 0
    %v2693 = vsel %vm161, %v2661, 0
    %v2695 = vsel %vm161, %v2663, 0
    %2697 = vmatpush.bf16.msra.mxu0 0
    %2698 = vmatpush.bf16.msra.mxu0 0
    %2699 = vmatpush.bf16.msra.mxu0 0
    %2700 = vmatpush.bf16.msra.mxu0 0
    %2701 = vmatpush.bf16.msra.mxu0 0
    %2702 = vmatpush.bf16.msra.mxu0 0
    %2703 = vmatpush.bf16.msra.mxu0 0
    %2704 = vmatpush.bf16.msra.mxu0 %v2667
    %2705 = vmatmul.bf16.gmra.mxu0 %v2665
    %v2706 = vpop.f32.mrf.mxu0
    %v2707 = vadd.f32 0.0, %v2706
    %v2708 = vpop.f32.mrf.mxu0
    %2709 = vdwg.mxu0
    %2710 = vmatpush.bf16.msra.mxu0 0
    %2711 = vmatpush.bf16.msra.mxu0 0
    %2712 = vmatpush.bf16.msra.mxu0 0
    %2713 = vmatpush.bf16.msra.mxu0 0
    %2714 = vmatpush.bf16.msra.mxu0 0
    %2715 = vmatpush.bf16.msra.mxu0 0
    %2716 = vmatpush.bf16.msra.mxu0 0
    %2717 = vmatpush.bf16.msra.mxu0 %v2669
    %2718 = vmatmul.bf16.gmra.mxu0 %v2665
    %v2719 = vpop.f32.mrf.mxu0
    %v2720 = vadd.f32 0.0, %v2719
    %v2721 = vpop.f32.mrf.mxu0
    %2722 = vdwg.mxu0
    %2723 = vmatpush.bf16.msra.mxu0 0
    %2724 = vmatpush.bf16.msra.mxu0 0
    %2725 = vmatpush.bf16.msra.mxu0 0
    %2726 = vmatpush.bf16.msra.mxu0 0
    %2727 = vmatpush.bf16.msra.mxu0 0
    %2728 = vmatpush.bf16.msra.mxu0 0
    %2729 = vmatpush.bf16.msra.mxu0 0
    %2730 = vmatpush.bf16.msra.mxu0 %v2671
    %2731 = vmatmul.bf16.gmra.mxu0 %v2665
    %v2732 = vpop.f32.mrf.mxu0
    %v2733 = vadd.f32 0.0, %v2732
    %v2734 = vpop.f32.mrf.mxu0
    %2735 = vdwg.mxu0
    %2736 = vmatpush.bf16.msra.mxu0 0
    %2737 = vmatpush.bf16.msra.mxu0 0
    %2738 = vmatpush.bf16.msra.mxu0 0
    %2739 = vmatpush.bf16.msra.mxu0 0
    %2740 = vmatpush.bf16.msra.mxu0 0
    %2741 = vmatpush.bf16.msra.mxu0 0
    %2742 = vmatpush.bf16.msra.mxu0 0
    %2743 = vmatpush.bf16.msra.mxu0 %v2673
    %2744 = vmatmul.bf16.gmra.mxu0 %v2665
    %v2745 = vpop.f32.mrf.mxu0
    %v2746 = vadd.f32 0.0, %v2745
    %v2747 = vpop.f32.mrf.mxu0
    %2748 = vdwg.mxu0
    %2749 = vmatpush.bf16.msra.mxu0 0
    %2750 = vmatpush.bf16.msra.mxu0 0
    %2751 = vmatpush.bf16.msra.mxu0 0
    %2752 = vmatpush.bf16.msra.mxu0 0
    %2753 = vmatpush.bf16.msra.mxu0 0
    %2754 = vmatpush.bf16.msra.mxu0 0
    %2755 = vmatpush.bf16.msra.mxu0 0
    %2756 = vmatpush.bf16.msra.mxu0 %v2675
    %2757 = vmatmul.bf16.gmra.mxu0 %v2665
    %v2758 = vpop.f32.mrf.mxu0
    %v2759 = vadd.f32 0.0, %v2758
    %v2760 = vpop.f32.mrf.mxu0
    %2761 = vdwg.mxu0
    %2762 = vmatpush.bf16.msra.mxu0 0
    %2763 = vmatpush.bf16.msra.mxu0 0
    %2764 = vmatpush.bf16.msra.mxu0 0
    %2765 = vmatpush.bf16.msra.mxu0 0
    %2766 = vmatpush.bf16.msra.mxu0 0
    %2767 = vmatpush.bf16.msra.mxu0 0
    %2768 = vmatpush.bf16.msra.mxu0 0
    %2769 = vmatpush.bf16.msra.mxu0 %v2677
    %2770 = vmatmul.bf16.gmra.mxu0 %v2665
    %v2771 = vpop.f32.mrf.mxu0
    %v2772 = vadd.f32 0.0, %v2771
    %v2773 = vpop.f32.mrf.mxu0
    %2774 = vdwg.mxu0
    %2775 = vmatpush.bf16.msra.mxu0 0
    %2776 = vmatpush.bf16.msra.mxu0 0
    %2777 = vmatpush.bf16.msra.mxu0 0
    %2778 = vmatpush.bf16.msra.mxu0 0
    %2779 = vmatpush.bf16.msra.mxu0 0
    %2780 = vmatpush.bf16.msra.mxu0 0
    %2781 = vmatpush.bf16.msra.mxu0 0
    %2782 = vmatpush.bf16.msra.mxu0 %v2679
    %2783 = vmatmul.bf16.gmra.mxu0 %v2665
    %v2784 = vpop.f32.mrf.mxu0
    %v2785 = vadd.f32 0.0, %v2784
    %v2786 = vpop.f32.mrf.mxu0
    %2787 = vdwg.mxu0
    %2788 = vmatpush.bf16.msra.mxu0 0
    %2789 = vmatpush.bf16.msra.mxu0 0
    %2790 = vmatpush.bf16.msra.mxu0 0
    %2791 = vmatpush.bf16.msra.mxu0 0
    %2792 = vmatpush.bf16.msra.mxu0 0
    %2793 = vmatpush.bf16.msra.mxu0 0
    %2794 = vmatpush.bf16.msra.mxu0 0
    %2795 = vmatpush.bf16.msra.mxu0 %v2681
    %2796 = vmatmul.bf16.gmra.mxu0 %v2665
    %v2797 = vpop.f32.mrf.mxu0
    %v2798 = vadd.f32 0.0, %v2797
    %v2799 = vpop.f32.mrf.mxu0
    %2800 = vdwg.mxu0
    %2801 = vmatpush.bf16.msra.mxu0 0
    %2802 = vmatpush.bf16.msra.mxu0 0
    %2803 = vmatpush.bf16.msra.mxu0 0
    %2804 = vmatpush.bf16.msra.mxu0 0
    %2805 = vmatpush.bf16.msra.mxu0 0
    %2806 = vmatpush.bf16.msra.mxu0 0
    %2807 = vmatpush.bf16.msra.mxu0 0
    %2808 = vmatpush.bf16.msra.mxu0 %v2683
    %2809 = vmatmul.bf16.gmra.mxu0 %v2665
    %v2810 = vpop.f32.mrf.mxu0
    %v2811 = vadd.f32 0.0, %v2810
    %v2812 = vpop.f32.mrf.mxu0
    %2813 = vdwg.mxu0
    %2814 = vmatpush.bf16.msra.mxu0 0
    %2815 = vmatpush.bf16.msra.mxu0 0
    %2816 = vmatpush.bf16.msra.mxu0 0
    %2817 = vmatpush.bf16.msra.mxu0 0
    %2818 = vmatpush.bf16.msra.mxu0 0
    %2819 = vmatpush.bf16.msra.mxu0 0
    %2820 = vmatpush.bf16.msra.mxu0 0
    %2821 = vmatpush.bf16.msra.mxu0 %v2685
    %2822 = vmatmul.bf16.gmra.mxu0 %v2665
    %v2823 = vpop.f32.mrf.mxu0
    %v2824 = vadd.f32 0.0, %v2823
    %v2825 = vpop.f32.mrf.mxu0
    %2826 = vdwg.mxu0
    %2827 = vmatpush.bf16.msra.mxu0 0
    %2828 = vmatpush.bf16.msra.mxu0 0
    %2829 = vmatpush.bf16.msra.mxu0 0
    %2830 = vmatpush.bf16.msra.mxu0 0
    %2831 = vmatpush.bf16.msra.mxu0 0
    %2832 = vmatpush.bf16.msra.mxu0 0
    %2833 = vmatpush.bf16.msra.mxu0 0
    %2834 = vmatpush.bf16.msra.mxu0 %v2687
    %2835 = vmatmul.bf16.gmra.mxu0 %v2665
    %v2836 = vpop.f32.mrf.mxu0
    %v2837 = vadd.f32 0.0, %v2836
    %v2838 = vpop.f32.mrf.mxu0
    %2839 = vdwg.mxu0
    %2840 = vmatpush.bf16.msra.mxu0 0
    %2841 = vmatpush.bf16.msra.mxu0 0
    %2842 = vmatpush.bf16.msra.mxu0 0
    %2843 = vmatpush.bf16.msra.mxu0 0
    %2844 = vmatpush.bf16.msra.mxu0 0
    %2845 = vmatpush.bf16.msra.mxu0 0
    %2846 = vmatpush.bf16.msra.mxu0 0
    %2847 = vmatpush.bf16.msra.mxu0 %v2689
    %2848 = vmatmul.bf16.gmra.mxu0 %v2665
    %v2849 = vpop.f32.mrf.mxu0
    %v2850 = vadd.f32 0.0, %v2849
    %v2851 = vpop.f32.mrf.mxu0
    %2852 = vdwg.mxu0
    %2853 = vmatpush.bf16.msra.mxu0 0
    %2854 = vmatpush.bf16.msra.mxu0 0
    %2855 = vmatpush.bf16.msra.mxu0 0
    %2856 = vmatpush.bf16.msra.mxu0 0
    %2857 = vmatpush.bf16.msra.mxu0 0
    %2858 = vmatpush.bf16.msra.mxu0 0
    %2859 = vmatpush.bf16.msra.mxu0 0
    %2860 = vmatpush.bf16.msra.mxu0 %v2691
    %2861 = vmatmul.bf16.gmra.mxu0 %v2665
    %v2862 = vpop.f32.mrf.mxu0
    %v2863 = vadd.f32 0.0, %v2862
    %v2864 = vpop.f32.mrf.mxu0
    %2865 = vdwg.mxu0
    %2866 = vmatpush.bf16.msra.mxu0 0
    %2867 = vmatpush.bf16.msra.mxu0 0
    %2868 = vmatpush.bf16.msra.mxu0 0
    %2869 = vmatpush.bf16.msra.mxu0 0
    %2870 = vmatpush.bf16.msra.mxu0 0
    %2871 = vmatpush.bf16.msra.mxu0 0
    %2872 = vmatpush.bf16.msra.mxu0 0
    %2873 = vmatpush.bf16.msra.mxu0 %v2693
    %2874 = vmatmul.bf16.gmra.mxu0 %v2665
    %v2875 = vpop.f32.mrf.mxu0
    %v2876 = vadd.f32 0.0, %v2875
    %v2877 = vpop.f32.mrf.mxu0
    %2878 = vdwg.mxu0
    %2879 = vmatpush.bf16.msra.mxu0 0
    %2880 = vmatpush.bf16.msra.mxu0 0
    %2881 = vmatpush.bf16.msra.mxu0 0
    %2882 = vmatpush.bf16.msra.mxu0 0
    %2883 = vmatpush.bf16.msra.mxu0 0
    %2884 = vmatpush.bf16.msra.mxu0 0
    %2885 = vmatpush.bf16.msra.mxu0 0
    %2886 = vmatpush.bf16.msra.mxu0 %v2695
    %2887 = vmatmul.bf16.gmra.mxu0 %v2665
    %v2888 = vpop.f32.mrf.mxu0
    %v2889 = vadd.f32 0.0, %v2888
    %v2890 = vpop.f32.mrf.mxu0
    %2891 = vdwg.mxu0
    %v2892 = vadd.f32 %v2626, %v2707
    %v2893 = vadd.f32 %v2627, %v2720
    %v2894 = vadd.f32 %v2628, %v2733
    %v2895 = vadd.f32 %v2629, %v2746
    %v2896 = vadd.f32 %v2630, %v2759
    %v2897 = vadd.f32 %v2631, %v2772
    %v2898 = vadd.f32 %v2632, %v2785
    %v2899 = vadd.f32 %v2633, %v2798
    %v2900 = vadd.f32 %v2634, %v2811
    %v2901 = vadd.f32 %v2635, %v2824
    %v2902 = vadd.f32 %v2636, %v2837
    %v2903 = vadd.f32 %v2637, %v2850
    %v2904 = vadd.f32 %v2638, %v2863
    %v2905 = vadd.f32 %v2639, %v2876
    %v2906 = vadd.f32 %v2640, %v2889
    %2907 = vrot.lane.b32.xlu0 %v65, 92
    %v2908 = vpop.permute.xlu0 %2907
    %2909 = vst [vmem:[#allocation1] ss:$4 sm:$0xff] %v58
    %s2910 = scalar_lea.vmem [#allocation1], 32
    %2911 = vst [vmem:[%s2910] ss:$4 sm:$0xff] %v59
    %v2912 = vld.sshfl [vmem:[#allocation1 + $0x10] sm:$0xff pattern:$0x73625140]
    %v2914 = vld.sshfl [vmem:[#allocation1 + $0x18] sm:$0xff pattern:$0x73625140]
    %v2916 = vld.sshfl [vmem:[#allocation1 + $0x20] sm:$0xff pattern:$0x73625140]
    %v2918 = vld.sshfl [vmem:[#allocation1 + $0x28] sm:$0xff pattern:$0x73625140]
    %v2920 = vld.sshfl [vmem:[#allocation1 + $0x30] sm:$0xff pattern:$0x73625140]
    %v2922 = vld.sshfl [vmem:[#allocation1 + $0x38] sm:$0xff pattern:$0x73625140]
    %2924 = vst [vmem:[#allocation1] ss:$4 sm:$0xff] %v60
    %2925 = vst [vmem:[%s2910] ss:$4 sm:$0xff] %v61
    %v2926 = vld.sshfl [vmem:[#allocation1] sm:$0xff pattern:$0x73625140]
    %v2928 = vld.sshfl [vmem:[#allocation1 + $0x8] sm:$0xff pattern:$0x73625140]
    %v2930 = vld.sshfl [vmem:[#allocation1 + $0x10] sm:$0xff pattern:$0x73625140]
    %v2932 = vld.sshfl [vmem:[#allocation1 + $0x18] sm:$0xff pattern:$0x73625140]
    %v2934 = vld.sshfl [vmem:[#allocation1 + $0x20] sm:$0xff pattern:$0x73625140]
    %v2936 = vld.sshfl [vmem:[#allocation1 + $0x28] sm:$0xff pattern:$0x73625140]
    %v2938 = vld.sshfl [vmem:[#allocation1 + $0x30] sm:$0xff pattern:$0x73625140]
    %v2940 = vld.sshfl [vmem:[#allocation1 + $0x38] sm:$0xff pattern:$0x73625140]
    %2942 = vst [vmem:[#allocation1] ss:$4 sm:$0xff] %v62
    %v2943 = vld.sshfl [vmem:[#allocation1] sm:$0xff pattern:$0x73625140]
    %v2945 = vld.sshfl [vmem:[#allocation1 + $0x8] sm:$0xff pattern:$0x73625140]
    %2947 = vrot.lane.b32.xlu0 %v2912, 127
    %v2948 = vpop.permute.xlu0 %2947
    %2949 = vrot.lane.b32.xlu0 %v2914, 127
    %v2950 = vpop.permute.xlu0 %2949
    %2951 = vrot.lane.b32.xlu0 %v2916, 127
    %v2952 = vpop.permute.xlu0 %2951
    %2953 = vrot.lane.b32.xlu0 %v2918, 127
    %v2954 = vpop.permute.xlu0 %2953
    %2955 = vrot.lane.b32.xlu0 %v2920, 127
    %v2956 = vpop.permute.xlu0 %2955
    %2957 = vrot.lane.b32.xlu0 %v2922, 127
    %v2958 = vpop.permute.xlu0 %2957
    %2959 = vrot.lane.b32.xlu0 %v2926, 127
    %v2960 = vpop.permute.xlu0 %2959
    %2961 = vrot.lane.b32.xlu0 %v2928, 127
    %v2962 = vpop.permute.xlu0 %2961
    %2963 = vrot.lane.b32.xlu0 %v2930, 127
    %v2964 = vpop.permute.xlu0 %2963
    %2965 = vrot.lane.b32.xlu0 %v2932, 127
    %v2966 = vpop.permute.xlu0 %2965
    %2967 = vrot.lane.b32.xlu0 %v2934, 127
    %v2968 = vpop.permute.xlu0 %2967
    %2969 = vrot.lane.b32.xlu0 %v2936, 127
    %v2970 = vpop.permute.xlu0 %2969
    %2971 = vrot.lane.b32.xlu0 %v2938, 127
    %v2972 = vpop.permute.xlu0 %2971
    %2973 = vrot.lane.b32.xlu0 %v2940, 127
    %v2974 = vpop.permute.xlu0 %2973
    %2975 = vrot.lane.b32.xlu0 %v2943, 127
    %v2976 = vpop.permute.xlu0 %2975
    %2977 = vrot.lane.b32.xlu0 %v2945, 127
    %v2978 = vpop.permute.xlu0 %2977
    %v2979 = vsel %vm141, %v2948, %v2950
    %v2980 = vsel %vm141, %v2950, %v2952
    %v2981 = vsel %vm141, %v2952, %v2954
    %v2982 = vsel %vm141, %v2954, %v2956
    %v2983 = vsel %vm141, %v2956, %v2958
    %v2984 = vsel %vm141, %v2958, %v2960
    %v2985 = vsel %vm141, %v2960, %v2962
    %v2986 = vsel %vm141, %v2962, %v2964
    %v2987 = vsel %vm141, %v2964, %v2966
    %v2988 = vsel %vm141, %v2966, %v2968
    %v2989 = vsel %vm141, %v2968, %v2970
    %v2990 = vsel %vm141, %v2970, %v2972
    %v2991 = vsel %vm141, %v2972, %v2974
    %v2992 = vsel %vm141, %v2974, %v2976
    %v2993 = vsel %vm141, %v2976, %v2978
    %v2995 = vsel %vm157, %v2908, 0
    %v2998 = vsel %vm161, %v2979, 0
    %v3001 = vsel %vm161, %v2980, 0
    %v3004 = vsel %vm161, %v2981, 0
    %v3007 = vsel %vm161, %v2982, 0
    %v3010 = vsel %vm161, %v2983, 0
    %v3013 = vsel %vm161, %v2984, 0
    %v3016 = vsel %vm161, %v2985, 0
    %v3019 = vsel %vm161, %v2986, 0
    %v3022 = vsel %vm161, %v2987, 0
    %v3025 = vsel %vm161, %v2988, 0
    %v3028 = vsel %vm161, %v2989, 0
    %v3031 = vsel %vm161, %v2990, 0
    %v3034 = vsel %vm161, %v2991, 0
    %v3037 = vsel %vm161, %v2992, 0
    %v3040 = vsel %vm161, %v2993, 0
    %3042 = vmatpush.bf16.msra.mxu0 0
    %3043 = vmatpush.bf16.msra.mxu0 0
    %3044 = vmatpush.bf16.msra.mxu0 0
    %3045 = vmatpush.bf16.msra.mxu0 0
    %3046 = vmatpush.bf16.msra.mxu0 0
    %3047 = vmatpush.bf16.msra.mxu0 0
    %3048 = vmatpush.bf16.msra.mxu0 0
    %3049 = vmatpush.bf16.msra.mxu0 %v2998
    %3050 = vmatmul.bf16.gmra.mxu0 %v2995
    %v3051 = vpop.f32.mrf.mxu0
    %v3052 = vadd.f32 0.0, %v3051
    %v3053 = vpop.f32.mrf.mxu0
    %3054 = vdwg.mxu0
    %3055 = vmatpush.bf16.msra.mxu0 0
    %3056 = vmatpush.bf16.msra.mxu0 0
    %3057 = vmatpush.bf16.msra.mxu0 0
    %3058 = vmatpush.bf16.msra.mxu0 0
    %3059 = vmatpush.bf16.msra.mxu0 0
    %3060 = vmatpush.bf16.msra.mxu0 0
    %3061 = vmatpush.bf16.msra.mxu0 0
    %3062 = vmatpush.bf16.msra.mxu0 %v3001
    %3063 = vmatmul.bf16.gmra.mxu0 %v2995
    %v3064 = vpop.f32.mrf.mxu0
    %v3065 = vadd.f32 0.0, %v3064
    %v3066 = vpop.f32.mrf.mxu0
    %3067 = vdwg.mxu0
    %3068 = vmatpush.bf16.msra.mxu0 0
    %3069 = vmatpush.bf16.msra.mxu0 0
    %3070 = vmatpush.bf16.msra.mxu0 0
    %3071 = vmatpush.bf16.msra.mxu0 0
    %3072 = vmatpush.bf16.msra.mxu0 0
    %3073 = vmatpush.bf16.msra.mxu0 0
    %3074 = vmatpush.bf16.msra.mxu0 0
    %3075 = vmatpush.bf16.msra.mxu0 %v3004
    %3076 = vmatmul.bf16.gmra.mxu0 %v2995
    %v3077 = vpop.f32.mrf.mxu0
    %v3078 = vadd.f32 0.0, %v3077
    %v3079 = vpop.f32.mrf.mxu0
    %3080 = vdwg.mxu0
    %3081 = vmatpush.bf16.msra.mxu0 0
    %3082 = vmatpush.bf16.msra.mxu0 0
    %3083 = vmatpush.bf16.msra.mxu0 0
    %3084 = vmatpush.bf16.msra.mxu0 0
    %3085 = vmatpush.bf16.msra.mxu0 0
    %3086 = vmatpush.bf16.msra.mxu0 0
    %3087 = vmatpush.bf16.msra.mxu0 0
    %3088 = vmatpush.bf16.msra.mxu0 %v3007
    %3089 = vmatmul.bf16.gmra.mxu0 %v2995
    %v3090 = vpop.f32.mrf.mxu0
    %v3091 = vadd.f32 0.0, %v3090
    %v3092 = vpop.f32.mrf.mxu0
    %3093 = vdwg.mxu0
    %3094 = vmatpush.bf16.msra.mxu0 0
    %3095 = vmatpush.bf16.msra.mxu0 0
    %3096 = vmatpush.bf16.msra.mxu0 0
    %3097 = vmatpush.bf16.msra.mxu0 0
    %3098 = vmatpush.bf16.msra.mxu0 0
    %3099 = vmatpush.bf16.msra.mxu0 0
    %3100 = vmatpush.bf16.msra.mxu0 0
    %3101 = vmatpush.bf16.msra.mxu0 %v3010
    %3102 = vmatmul.bf16.gmra.mxu0 %v2995
    %v3103 = vpop.f32.mrf.mxu0
    %v3104 = vadd.f32 0.0, %v3103
    %v3105 = vpop.f32.mrf.mxu0
    %3106 = vdwg.mxu0
    %3107 = vmatpush.bf16.msra.mxu0 0
    %3108 = vmatpush.bf16.msra.mxu0 0
    %3109 = vmatpush.bf16.msra.mxu0 0
    %3110 = vmatpush.bf16.msra.mxu0 0
    %3111 = vmatpush.bf16.msra.mxu0 0
    %3112 = vmatpush.bf16.msra.mxu0 0
    %3113 = vmatpush.bf16.msra.mxu0 0
    %3114 = vmatpush.bf16.msra.mxu0 %v3013
    %3115 = vmatmul.bf16.gmra.mxu0 %v2995
    %v3116 = vpop.f32.mrf.mxu0
    %v3117 = vadd.f32 0.0, %v3116
    %v3118 = vpop.f32.mrf.mxu0
    %3119 = vdwg.mxu0
    %3120 = vmatpush.bf16.msra.mxu0 0
    %3121 = vmatpush.bf16.msra.mxu0 0
    %3122 = vmatpush.bf16.msra.mxu0 0
    %3123 = vmatpush.bf16.msra.mxu0 0
    %3124 = vmatpush.bf16.msra.mxu0 0
    %3125 = vmatpush.bf16.msra.mxu0 0
    %3126 = vmatpush.bf16.msra.mxu0 0
    %3127 = vmatpush.bf16.msra.mxu0 %v3016
    %3128 = vmatmul.bf16.gmra.mxu0 %v2995
    %v3129 = vpop.f32.mrf.mxu0
    %v3130 = vadd.f32 0.0, %v3129
    %v3131 = vpop.f32.mrf.mxu0
    %3132 = vdwg.mxu0
    %3133 = vmatpush.bf16.msra.mxu0 0
    %3134 = vmatpush.bf16.msra.mxu0 0
    %3135 = vmatpush.bf16.msra.mxu0 0
    %3136 = vmatpush.bf16.msra.mxu0 0
    %3137 = vmatpush.bf16.msra.mxu0 0
    %3138 = vmatpush.bf16.msra.mxu0 0
    %3139 = vmatpush.bf16.msra.mxu0 0
    %3140 = vmatpush.bf16.msra.mxu0 %v3019
    %3141 = vmatmul.bf16.gmra.mxu0 %v2995
    %v3142 = vpop.f32.mrf.mxu0
    %v3143 = vadd.f32 0.0, %v3142
    %v3144 = vpop.f32.mrf.mxu0
    %3145 = vdwg.mxu0
    %3146 = vmatpush.bf16.msra.mxu0 0
    %3147 = vmatpush.bf16.msra.mxu0 0
    %3148 = vmatpush.bf16.msra.mxu0 0
    %3149 = vmatpush.bf16.msra.mxu0 0
    %3150 = vmatpush.bf16.msra.mxu0 0
    %3151 = vmatpush.bf16.msra.mxu0 0
    %3152 = vmatpush.bf16.msra.mxu0 0
    %3153 = vmatpush.bf16.msra.mxu0 %v3022
    %3154 = vmatmul.bf16.gmra.mxu0 %v2995
    %v3155 = vpop.f32.mrf.mxu0
    %v3156 = vadd.f32 0.0, %v3155
    %v3157 = vpop.f32.mrf.mxu0
    %3158 = vdwg.mxu0
    %3159 = vmatpush.bf16.msra.mxu0 0
    %3160 = vmatpush.bf16.msra.mxu0 0
    %3161 = vmatpush.bf16.msra.mxu0 0
    %3162 = vmatpush.bf16.msra.mxu0 0
    %3163 = vmatpush.bf16.msra.mxu0 0
    %3164 = vmatpush.bf16.msra.mxu0 0
    %3165 = vmatpush.bf16.msra.mxu0 0
    %3166 = vmatpush.bf16.msra.mxu0 %v3025
    %3167 = vmatmul.bf16.gmra.mxu0 %v2995
    %v3168 = vpop.f32.mrf.mxu0
    %v3169 = vadd.f32 0.0, %v3168
    %v3170 = vpop.f32.mrf.mxu0
    %3171 = vdwg.mxu0
    %3172 = vmatpush.bf16.msra.mxu0 0
    %3173 = vmatpush.bf16.msra.mxu0 0
    %3174 = vmatpush.bf16.msra.mxu0 0
    %3175 = vmatpush.bf16.msra.mxu0 0
    %3176 = vmatpush.bf16.msra.mxu0 0
    %3177 = vmatpush.bf16.msra.mxu0 0
    %3178 = vmatpush.bf16.msra.mxu0 0
    %3179 = vmatpush.bf16.msra.mxu0 %v3028
    %3180 = vmatmul.bf16.gmra.mxu0 %v2995
    %v3181 = vpop.f32.mrf.mxu0
    %v3182 = vadd.f32 0.0, %v3181
    %v3183 = vpop.f32.mrf.mxu0
    %3184 = vdwg.mxu0
    %3185 = vmatpush.bf16.msra.mxu0 0
    %3186 = vmatpush.bf16.msra.mxu0 0
    %3187 = vmatpush.bf16.msra.mxu0 0
    %3188 = vmatpush.bf16.msra.mxu0 0
    %3189 = vmatpush.bf16.msra.mxu0 0
    %3190 = vmatpush.bf16.msra.mxu0 0
    %3191 = vmatpush.bf16.msra.mxu0 0
    %3192 = vmatpush.bf16.msra.mxu0 %v3031
    %3193 = vmatmul.bf16.gmra.mxu0 %v2995
    %v3194 = vpop.f32.mrf.mxu0
    %v3195 = vadd.f32 0.0, %v3194
    %v3196 = vpop.f32.mrf.mxu0
    %3197 = vdwg.mxu0
    %3198 = vmatpush.bf16.msra.mxu0 0
    %3199 = vmatpush.bf16.msra.mxu0 0
    %3200 = vmatpush.bf16.msra.mxu0 0
    %3201 = vmatpush.bf16.msra.mxu0 0
    %3202 = vmatpush.bf16.msra.mxu0 0
    %3203 = vmatpush.bf16.msra.mxu0 0
    %3204 = vmatpush.bf16.msra.mxu0 0
    %3205 = vmatpush.bf16.msra.mxu0 %v3034
    %3206 = vmatmul.bf16.gmra.mxu0 %v2995
    %v3207 = vpop.f32.mrf.mxu0
    %v3208 = vadd.f32 0.0, %v3207
    %v3209 = vpop.f32.mrf.mxu0
    %3210 = vdwg.mxu0
    %3211 = vmatpush.bf16.msra.mxu0 0
    %3212 = vmatpush.bf16.msra.mxu0 0
    %3213 = vmatpush.bf16.msra.mxu0 0
    %3214 = vmatpush.bf16.msra.mxu0 0
    %3215 = vmatpush.bf16.msra.mxu0 0
    %3216 = vmatpush.bf16.msra.mxu0 0
    %3217 = vmatpush.bf16.msra.mxu0 0
    %3218 = vmatpush.bf16.msra.mxu0 %v3037
    %3219 = vmatmul.bf16.gmra.mxu0 %v2995
    %v3220 = vpop.f32.mrf.mxu0
    %v3221 = vadd.f32 0.0, %v3220
    %v3222 = vpop.f32.mrf.mxu0
    %3223 = vdwg.mxu0
    %3224 = vmatpush.bf16.msra.mxu0 0
    %3225 = vmatpush.bf16.msra.mxu0 0
    %3226 = vmatpush.bf16.msra.mxu0 0
    %3227 = vmatpush.bf16.msra.mxu0 0
    %3228 = vmatpush.bf16.msra.mxu0 0
    %3229 = vmatpush.bf16.msra.mxu0 0
    %3230 = vmatpush.bf16.msra.mxu0 0
    %3231 = vmatpush.bf16.msra.mxu0 %v3040
    %3232 = vmatmul.bf16.gmra.mxu0 %v2995
    %v3233 = vpop.f32.mrf.mxu0
    %v3234 = vadd.f32 0.0, %v3233
    %v3235 = vpop.f32.mrf.mxu0
    %3236 = vdwg.mxu0
    %v3237 = vadd.f32 %v2892, %v3052
    %v3238 = vadd.f32 %v2893, %v3065
    %v3239 = vadd.f32 %v2894, %v3078
    %v3240 = vadd.f32 %v2895, %v3091
    %v3241 = vadd.f32 %v2896, %v3104
    %v3242 = vadd.f32 %v2897, %v3117
    %v3243 = vadd.f32 %v2898, %v3130
    %v3244 = vadd.f32 %v2899, %v3143
    %v3245 = vadd.f32 %v2900, %v3156
    %v3246 = vadd.f32 %v2901, %v3169
    %v3247 = vadd.f32 %v2902, %v3182
    %v3248 = vadd.f32 %v2903, %v3195
    %v3249 = vadd.f32 %v2904, %v3208
    %v3250 = vadd.f32 %v2905, %v3221
    %v3251 = vadd.f32 %v2906, %v3234
    %3252 = vrot.lane.b32.xlu0 %v65, 88
    %v3253 = vpop.permute.xlu0 %3252
    %3254 = vst [vmem:[#allocation1] ss:$4 sm:$0xff] %v58
    %s3255 = scalar_lea.vmem [#allocation1], 32
    %3256 = vst [vmem:[%s3255] ss:$4 sm:$0xff] %v59
    %v3257 = vld.sshfl [vmem:[#allocation1 + $0x10] sm:$0xff pattern:$0x73625140]
    %v3259 = vld.sshfl [vmem:[#allocation1 + $0x18] sm:$0xff pattern:$0x73625140]
    %v3261 = vld.sshfl [vmem:[#allocation1 + $0x20] sm:$0xff pattern:$0x73625140]
    %v3263 = vld.sshfl [vmem:[#allocation1 + $0x28] sm:$0xff pattern:$0x73625140]
    %v3265 = vld.sshfl [vmem:[#allocation1 + $0x30] sm:$0xff pattern:$0x73625140]
    %v3267 = vld.sshfl [vmem:[#allocation1 + $0x38] sm:$0xff pattern:$0x73625140]
    %3269 = vst [vmem:[#allocation1] ss:$4 sm:$0xff] %v60
    %3270 = vst [vmem:[%s3255] ss:$4 sm:$0xff] %v61
    %v3271 = vld.sshfl [vmem:[#allocation1] sm:$0xff pattern:$0x73625140]
    %v3273 = vld.sshfl [vmem:[#allocation1 + $0x8] sm:$0xff pattern:$0x73625140]
    %v3275 = vld.sshfl [vmem:[#allocation1 + $0x10] sm:$0xff pattern:$0x73625140]
    %v3277 = vld.sshfl [vmem:[#allocation1 + $0x18] sm:$0xff pattern:$0x73625140]
    %v3279 = vld.sshfl [vmem:[#allocation1 + $0x20] sm:$0xff pattern:$0x73625140]
    %v3281 = vld.sshfl [vmem:[#allocation1 + $0x28] sm:$0xff pattern:$0x73625140]
    %v3283 = vld.sshfl [vmem:[#allocation1 + $0x30] sm:$0xff pattern:$0x73625140]
    %v3285 = vld.sshfl [vmem:[#allocation1 + $0x38] sm:$0xff pattern:$0x73625140]
    %3287 = vst [vmem:[#allocation1] ss:$4 sm:$0xff] %v62
    %v3288 = vld.sshfl [vmem:[#allocation1] sm:$0xff pattern:$0x73625140]
    %v3290 = vld.sshfl [vmem:[#allocation1 + $0x8] sm:$0xff pattern:$0x73625140]
    %3292 = vrot.lane.b32.xlu0 %v3257, 126
    %v3293 = vpop.permute.xlu0 %3292
    %3294 = vrot.lane.b32.xlu0 %v3259, 126
    %v3295 = vpop.permute.xlu0 %3294
    %3296 = vrot.lane.b32.xlu0 %v3261, 126
    %v3297 = vpop.permute.xlu0 %3296
    %3298 = vrot.lane.b32.xlu0 %v3263, 126
    %v3299 = vpop.permute.xlu0 %3298
    %3300 = vrot.lane.b32.xlu0 %v3265, 126
    %v3301 = vpop.permute.xlu0 %3300
    %3302 = vrot.lane.b32.xlu0 %v3267, 126
    %v3303 = vpop.permute.xlu0 %3302
    %3304 = vrot.lane.b32.xlu0 %v3271, 126
    %v3305 = vpop.permute.xlu0 %3304
    %3306 = vrot.lane.b32.xlu0 %v3273, 126
    %v3307 = vpop.permute.xlu0 %3306
    %3308 = vrot.lane.b32.xlu0 %v3275, 126
    %v3309 = vpop.permute.xlu0 %3308
    %3310 = vrot.lane.b32.xlu0 %v3277, 126
    %v3311 = vpop.permute.xlu0 %3310
    %3312 = vrot.lane.b32.xlu0 %v3279, 126
    %v3313 = vpop.permute.xlu0 %3312
    %3314 = vrot.lane.b32.xlu0 %v3281, 126
    %v3315 = vpop.permute.xlu0 %3314
    %3316 = vrot.lane.b32.xlu0 %v3283, 126
    %v3317 = vpop.permute.xlu0 %3316
    %3318 = vrot.lane.b32.xlu0 %v3285, 126
    %v3319 = vpop.permute.xlu0 %3318
    %3320 = vrot.lane.b32.xlu0 %v3288, 126
    %v3321 = vpop.permute.xlu0 %3320
    %3322 = vrot.lane.b32.xlu0 %v3290, 126
    %v3323 = vpop.permute.xlu0 %3322
    %v3324 = vsel %vm721, %v3293, %v3295
    %v3325 = vsel %vm721, %v3295, %v3297
    %v3326 = vsel %vm721, %v3297, %v3299
    %v3327 = vsel %vm721, %v3299, %v3301
    %v3328 = vsel %vm721, %v3301, %v3303
    %v3329 = vsel %vm721, %v3303, %v3305
    %v3330 = vsel %vm721, %v3305, %v3307
    %v3331 = vsel %vm721, %v3307, %v3309
    %v3332 = vsel %vm721, %v3309, %v3311
    %v3333 = vsel %vm721, %v3311, %v3313
    %v3334 = vsel %vm721, %v3313, %v3315
    %v3335 = vsel %vm721, %v3315, %v3317
    %v3336 = vsel %vm721, %v3317, %v3319
    %v3337 = vsel %vm721, %v3319, %v3321
    %v3338 = vsel %vm721, %v3321, %v3323
    %v3340 = vsel %vm157, %v3253, 0
    %v3343 = vsel %vm161, %v3324, 0
    %v3346 = vsel %vm161, %v3325, 0
    %v3349 = vsel %vm161, %v3326, 0
    %v3352 = vsel %vm161, %v3327, 0
    %v3355 = vsel %vm161, %v3328, 0
    %v3358 = vsel %vm161, %v3329, 0
    %v3361 = vsel %vm161, %v3330, 0
    %v3364 = vsel %vm161, %v3331, 0
    %v3367 = vsel %vm161, %v3332, 0
    %v3370 = vsel %vm161, %v3333, 0
    %v3373 = vsel %vm161, %v3334, 0
    %v3376 = vsel %vm161, %v3335, 0
    %v3379 = vsel %vm161, %v3336, 0
    %v3382 = vsel %vm161, %v3337, 0
    %v3385 = vsel %vm161, %v3338, 0
    %3387 = vmatpush.bf16.msra.mxu0 0
    %3388 = vmatpush.bf16.msra.mxu0 0
    %3389 = vmatpush.bf16.msra.mxu0 0
    %3390 = vmatpush.bf16.msra.mxu0 0
    %3391 = vmatpush.bf16.msra.mxu0 0
    %3392 = vmatpush.bf16.msra.mxu0 0
    %3393 = vmatpush.bf16.msra.mxu0 0
    %3394 = vmatpush.bf16.msra.mxu0 %v3343
    %3395 = vmatmul.bf16.gmra.mxu0 %v3340
    %v3396 = vpop.f32.mrf.mxu0
    %v3397 = vadd.f32 0.0, %v3396
    %v3398 = vpop.f32.mrf.mxu0
    %3399 = vdwg.mxu0
    %3400 = vmatpush.bf16.msra.mxu0 0
    %3401 = vmatpush.bf16.msra.mxu0 0
    %3402 = vmatpush.bf16.msra.mxu0 0
    %3403 = vmatpush.bf16.msra.mxu0 0
    %3404 = vmatpush.bf16.msra.mxu0 0
    %3405 = vmatpush.bf16.msra.mxu0 0
    %3406 = vmatpush.bf16.msra.mxu0 0
    %3407 = vmatpush.bf16.msra.mxu0 %v3346
    %3408 = vmatmul.bf16.gmra.mxu0 %v3340
    %v3409 = vpop.f32.mrf.mxu0
    %v3410 = vadd.f32 0.0, %v3409
    %v3411 = vpop.f32.mrf.mxu0
    %3412 = vdwg.mxu0
    %3413 = vmatpush.bf16.msra.mxu0 0
    %3414 = vmatpush.bf16.msra.mxu0 0
    %3415 = vmatpush.bf16.msra.mxu0 0
    %3416 = vmatpush.bf16.msra.mxu0 0
    %3417 = vmatpush.bf16.msra.mxu0 0
    %3418 = vmatpush.bf16.msra.mxu0 0
    %3419 = vmatpush.bf16.msra.mxu0 0
    %3420 = vmatpush.bf16.msra.mxu0 %v3349
    %3421 = vmatmul.bf16.gmra.mxu0 %v3340
    %v3422 = vpop.f32.mrf.mxu0
    %v3423 = vadd.f32 0.0, %v3422
    %v3424 = vpop.f32.mrf.mxu0
    %3425 = vdwg.mxu0
    %3426 = vmatpush.bf16.msra.mxu0 0
    %3427 = vmatpush.bf16.msra.mxu0 0
    %3428 = vmatpush.bf16.msra.mxu0 0
    %3429 = vmatpush.bf16.msra.mxu0 0
    %3430 = vmatpush.bf16.msra.mxu0 0
    %3431 = vmatpush.bf16.msra.mxu0 0
    %3432 = vmatpush.bf16.msra.mxu0 0
    %3433 = vmatpush.bf16.msra.mxu0 %v3352
    %3434 = vmatmul.bf16.gmra.mxu0 %v3340
    %v3435 = vpop.f32.mrf.mxu0
    %v3436 = vadd.f32 0.0, %v3435
    %v3437 = vpop.f32.mrf.mxu0
    %3438 = vdwg.mxu0
    %3439 = vmatpush.bf16.msra.mxu0 0
    %3440 = vmatpush.bf16.msra.mxu0 0
    %3441 = vmatpush.bf16.msra.mxu0 0
    %3442 = vmatpush.bf16.msra.mxu0 0
    %3443 = vmatpush.bf16.msra.mxu0 0
    %3444 = vmatpush.bf16.msra.mxu0 0
    %3445 = vmatpush.bf16.msra.mxu0 0
    %3446 = vmatpush.bf16.msra.mxu0 %v3355
    %3447 = vmatmul.bf16.gmra.mxu0 %v3340
    %v3448 = vpop.f32.mrf.mxu0
    %v3449 = vadd.f32 0.0, %v3448
    %v3450 = vpop.f32.mrf.mxu0
    %3451 = vdwg.mxu0
    %3452 = vmatpush.bf16.msra.mxu0 0
    %3453 = vmatpush.bf16.msra.mxu0 0
    %3454 = vmatpush.bf16.msra.mxu0 0
    %3455 = vmatpush.bf16.msra.mxu0 0
    %3456 = vmatpush.bf16.msra.mxu0 0
    %3457 = vmatpush.bf16.msra.mxu0 0
    %3458 = vmatpush.bf16.msra.mxu0 0
    %3459 = vmatpush.bf16.msra.mxu0 %v3358
    %3460 = vmatmul.bf16.gmra.mxu0 %v3340
    %v3461 = vpop.f32.mrf.mxu0
    %v3462 = vadd.f32 0.0, %v3461
    %v3463 = vpop.f32.mrf.mxu0
    %3464 = vdwg.mxu0
    %3465 = vmatpush.bf16.msra.mxu0 0
    %3466 = vmatpush.bf16.msra.mxu0 0
    %3467 = vmatpush.bf16.msra.mxu0 0
    %3468 = vmatpush.bf16.msra.mxu0 0
    %3469 = vmatpush.bf16.msra.mxu0 0
    %3470 = vmatpush.bf16.msra.mxu0 0
    %3471 = vmatpush.bf16.msra.mxu0 0
    %3472 = vmatpush.bf16.msra.mxu0 %v3361
    %3473 = vmatmul.bf16.gmra.mxu0 %v3340
    %v3474 = vpop.f32.mrf.mxu0
    %v3475 = vadd.f32 0.0, %v3474
    %v3476 = vpop.f32.mrf.mxu0
    %3477 = vdwg.mxu0
    %3478 = vmatpush.bf16.msra.mxu0 0
    %3479 = vmatpush.bf16.msra.mxu0 0
    %3480 = vmatpush.bf16.msra.mxu0 0
    %3481 = vmatpush.bf16.msra.mxu0 0
    %3482 = vmatpush.bf16.msra.mxu0 0
    %3483 = vmatpush.bf16.msra.mxu0 0
    %3484 = vmatpush.bf16.msra.mxu0 0
    %3485 = vmatpush.bf16.msra.mxu0 %v3364
    %3486 = vmatmul.bf16.gmra.mxu0 %v3340
    %v3487 = vpop.f32.mrf.mxu0
    %v3488 = vadd.f32 0.0, %v3487
    %v3489 = vpop.f32.mrf.mxu0
    %3490 = vdwg.mxu0
    %3491 = vmatpush.bf16.msra.mxu0 0
    %3492 = vmatpush.bf16.msra.mxu0 0
    %3493 = vmatpush.bf16.msra.mxu0 0
    %3494 = vmatpush.bf16.msra.mxu0 0
    %3495 = vmatpush.bf16.msra.mxu0 0
    %3496 = vmatpush.bf16.msra.mxu0 0
    %3497 = vmatpush.bf16.msra.mxu0 0
    %3498 = vmatpush.bf16.msra.mxu0 %v3367
    %3499 = vmatmul.bf16.gmra.mxu0 %v3340
    %v3500 = vpop.f32.mrf.mxu0
    %v3501 = vadd.f32 0.0, %v3500
    %v3502 = vpop.f32.mrf.mxu0
    %3503 = vdwg.mxu0
    %3504 = vmatpush.bf16.msra.mxu0 0
    %3505 = vmatpush.bf16.msra.mxu0 0
    %3506 = vmatpush.bf16.msra.mxu0 0
    %3507 = vmatpush.bf16.msra.mxu0 0
    %3508 = vmatpush.bf16.msra.mxu0 0
    %3509 = vmatpush.bf16.msra.mxu0 0
    %3510 = vmatpush.bf16.msra.mxu0 0
    %3511 = vmatpush.bf16.msra.mxu0 %v3370
    %3512 = vmatmul.bf16.gmra.mxu0 %v3340
    %v3513 = vpop.f32.mrf.mxu0
    %v3514 = vadd.f32 0.0, %v3513
    %v3515 = vpop.f32.mrf.mxu0
    %3516 = vdwg.mxu0
    %3517 = vmatpush.bf16.msra.mxu0 0
    %3518 = vmatpush.bf16.msra.mxu0 0
    %3519 = vmatpush.bf16.msra.mxu0 0
    %3520 = vmatpush.bf16.msra.mxu0 0
    %3521 = vmatpush.bf16.msra.mxu0 0
    %3522 = vmatpush.bf16.msra.mxu0 0
    %3523 = vmatpush.bf16.msra.mxu0 0
    %3524 = vmatpush.bf16.msra.mxu0 %v3373
    %3525 = vmatmul.bf16.gmra.mxu0 %v3340
    %v3526 = vpop.f32.mrf.mxu0
    %v3527 = vadd.f32 0.0, %v3526
    %v3528 = vpop.f32.mrf.mxu0
    %3529 = vdwg.mxu0
    %3530 = vmatpush.bf16.msra.mxu0 0
    %3531 = vmatpush.bf16.msra.mxu0 0
    %3532 = vmatpush.bf16.msra.mxu0 0
    %3533 = vmatpush.bf16.msra.mxu0 0
    %3534 = vmatpush.bf16.msra.mxu0 0
    %3535 = vmatpush.bf16.msra.mxu0 0
    %3536 = vmatpush.bf16.msra.mxu0 0
    %3537 = vmatpush.bf16.msra.mxu0 %v3376
    %3538 = vmatmul.bf16.gmra.mxu0 %v3340
    %v3539 = vpop.f32.mrf.mxu0
    %v3540 = vadd.f32 0.0, %v3539
    %v3541 = vpop.f32.mrf.mxu0
    %3542 = vdwg.mxu0
    %3543 = vmatpush.bf16.msra.mxu0 0
    %3544 = vmatpush.bf16.msra.mxu0 0
    %3545 = vmatpush.bf16.msra.mxu0 0
    %3546 = vmatpush.bf16.msra.mxu0 0
    %3547 = vmatpush.bf16.msra.mxu0 0
    %3548 = vmatpush.bf16.msra.mxu0 0
    %3549 = vmatpush.bf16.msra.mxu0 0
    %3550 = vmatpush.bf16.msra.mxu0 %v3379
    %3551 = vmatmul.bf16.gmra.mxu0 %v3340
    %v3552 = vpop.f32.mrf.mxu0
    %v3553 = vadd.f32 0.0, %v3552
    %v3554 = vpop.f32.mrf.mxu0
    %3555 = vdwg.mxu0
    %3556 = vmatpush.bf16.msra.mxu0 0
    %3557 = vmatpush.bf16.msra.mxu0 0
    %3558 = vmatpush.bf16.msra.mxu0 0
    %3559 = vmatpush.bf16.msra.mxu0 0
    %3560 = vmatpush.bf16.msra.mxu0 0
    %3561 = vmatpush.bf16.msra.mxu0 0
    %3562 = vmatpush.bf16.msra.mxu0 0
    %3563 = vmatpush.bf16.msra.mxu0 %v3382
    %3564 = vmatmul.bf16.gmra.mxu0 %v3340
    %v3565 = vpop.f32.mrf.mxu0
    %v3566 = vadd.f32 0.0, %v3565
    %v3567 = vpop.f32.mrf.mxu0
    %3568 = vdwg.mxu0
    %3569 = vmatpush.bf16.msra.mxu0 0
    %3570 = vmatpush.bf16.msra.mxu0 0
    %3571 = vmatpush.bf16.msra.mxu0 0
    %3572 = vmatpush.bf16.msra.mxu0 0
    %3573 = vmatpush.bf16.msra.mxu0 0
    %3574 = vmatpush.bf16.msra.mxu0 0
    %3575 = vmatpush.bf16.msra.mxu0 0
    %3576 = vmatpush.bf16.msra.mxu0 %v3385
    %3577 = vmatmul.bf16.gmra.mxu0 %v3340
    %v3578 = vpop.f32.mrf.mxu0
    %v3579 = vadd.f32 0.0, %v3578
    %v3580 = vpop.f32.mrf.mxu0
    %3581 = vdwg.mxu0
    %v3582 = vadd.f32 %v3237, %v3397
    %v3583 = vadd.f32 %v3238, %v3410
    %v3584 = vadd.f32 %v3239, %v3423
    %v3585 = vadd.f32 %v3240, %v3436
    %v3586 = vadd.f32 %v3241, %v3449
    %v3587 = vadd.f32 %v3242, %v3462
    %v3588 = vadd.f32 %v3243, %v3475
    %v3589 = vadd.f32 %v3244, %v3488
    %v3590 = vadd.f32 %v3245, %v3501
    %v3591 = vadd.f32 %v3246, %v3514
    %v3592 = vadd.f32 %v3247, %v3527
    %v3593 = vadd.f32 %v3248, %v3540
    %v3594 = vadd.f32 %v3249, %v3553
    %v3595 = vadd.f32 %v3250, %v3566
    %v3596 = vadd.f32 %v3251, %v3579
    %3597 = vrot.lane.b32.xlu0 %v65, 84
    %v3598 = vpop.permute.xlu0 %3597
    %3599 = vst [vmem:[#allocation1] ss:$4 sm:$0xff] %v58
    %s3600 = scalar_lea.vmem [#allocation1], 32
    %3601 = vst [vmem:[%s3600] ss:$4 sm:$0xff] %v59
    %v3602 = vld.sshfl [vmem:[#allocation1 + $0x10] sm:$0xff pattern:$0x73625140]
    %v3604 = vld.sshfl [vmem:[#allocation1 + $0x18] sm:$0xff pattern:$0x73625140]
    %v3606 = vld.sshfl [vmem:[#allocation1 + $0x20] sm:$0xff pattern:$0x73625140]
    %v3608 = vld.sshfl [vmem:[#allocation1 + $0x28] sm:$0xff pattern:$0x73625140]
    %v3610 = vld.sshfl [vmem:[#allocation1 + $0x30] sm:$0xff pattern:$0x73625140]
    %v3612 = vld.sshfl [vmem:[#allocation1 + $0x38] sm:$0xff pattern:$0x73625140]
    %3614 = vst [vmem:[#allocation1] ss:$4 sm:$0xff] %v60
    %3615 = vst [vmem:[%s3600] ss:$4 sm:$0xff] %v61
    %v3616 = vld.sshfl [vmem:[#allocation1] sm:$0xff pattern:$0x73625140]
    %v3618 = vld.sshfl [vmem:[#allocation1 + $0x8] sm:$0xff pattern:$0x73625140]
    %v3620 = vld.sshfl [vmem:[#allocation1 + $0x10] sm:$0xff pattern:$0x73625140]
    %v3622 = vld.sshfl [vmem:[#allocation1 + $0x18] sm:$0xff pattern:$0x73625140]
    %v3624 = vld.sshfl [vmem:[#allocation1 + $0x20] sm:$0xff pattern:$0x73625140]
    %v3626 = vld.sshfl [vmem:[#allocation1 + $0x28] sm:$0xff pattern:$0x73625140]
    %v3628 = vld.sshfl [vmem:[#allocation1 + $0x30] sm:$0xff pattern:$0x73625140]
    %v3630 = vld.sshfl [vmem:[#allocation1 + $0x38] sm:$0xff pattern:$0x73625140]
    %3632 = vst [vmem:[#allocation1] ss:$4 sm:$0xff] %v62
    %v3633 = vld.sshfl [vmem:[#allocation1] sm:$0xff pattern:$0x73625140]
    %v3635 = vld.sshfl [vmem:[#allocation1 + $0x8] sm:$0xff pattern:$0x73625140]
    %3637 = vrot.lane.b32.xlu0 %v3602, 125
    %v3638 = vpop.permute.xlu0 %3637
    %3639 = vrot.lane.b32.xlu0 %v3604, 125
    %v3640 = vpop.permute.xlu0 %3639
    %3641 = vrot.lane.b32.xlu0 %v3606, 125
    %v3642 = vpop.permute.xlu0 %3641
    %3643 = vrot.lane.b32.xlu0 %v3608, 125
    %v3644 = vpop.permute.xlu0 %3643
    %3645 = vrot.lane.b32.xlu0 %v3610, 125
    %v3646 = vpop.permute.xlu0 %3645
    %3647 = vrot.lane.b32.xlu0 %v3612, 125
    %v3648 = vpop.permute.xlu0 %3647
    %3649 = vrot.lane.b32.xlu0 %v3616, 125
    %v3650 = vpop.permute.xlu0 %3649
    %3651 = vrot.lane.b32.xlu0 %v3618, 125
    %v3652 = vpop.permute.xlu0 %3651
    %3653 = vrot.lane.b32.xlu0 %v3620, 125
    %v3654 = vpop.permute.xlu0 %3653
    %3655 = vrot.lane.b32.xlu0 %v3622, 125
    %v3656 = vpop.permute.xlu0 %3655
    %3657 = vrot.lane.b32.xlu0 %v3624, 125
    %v3658 = vpop.permute.xlu0 %3657
    %3659 = vrot.lane.b32.xlu0 %v3626, 125
    %v3660 = vpop.permute.xlu0 %3659
    %3661 = vrot.lane.b32.xlu0 %v3628, 125
    %v3662 = vpop.permute.xlu0 %3661
    %3663 = vrot.lane.b32.xlu0 %v3630, 125
    %v3664 = vpop.permute.xlu0 %3663
    %3665 = vrot.lane.b32.xlu0 %v3633, 125
    %v3666 = vpop.permute.xlu0 %3665
    %3667 = vrot.lane.b32.xlu0 %v3635, 125
    %v3668 = vpop.permute.xlu0 %3667
    %v3669 = vsel %vm1066, %v3638, %v3640
    %v3670 = vsel %vm1066, %v3640, %v3642
    %v3671 = vsel %vm1066, %v3642, %v3644
    %v3672 = vsel %vm1066, %v3644, %v3646
    %v3673 = vsel %vm1066, %v3646, %v3648
    %v3674 = vsel %vm1066, %v3648, %v3650
    %v3675 = vsel %vm1066, %v3650, %v3652
    %v3676 = vsel %vm1066, %v3652, %v3654
    %v3677 = vsel %vm1066, %v3654, %v3656
    %v3678 = vsel %vm1066, %v3656, %v3658
    %v3679 = vsel %vm1066, %v3658, %v3660
    %v3680 = vsel %vm1066, %v3660, %v3662
    %v3681 = vsel %vm1066, %v3662, %v3664
    %v3682 = vsel %vm1066, %v3664, %v3666
    %v3683 = vsel %vm1066, %v3666, %v3668
    %v3685 = vsel %vm157, %v3598, 0
    %v3688 = vsel %vm161, %v3669, 0
    %v3691 = vsel %vm161, %v3670, 0
    %v3694 = vsel %vm161, %v3671, 0
    %v3697 = vsel %vm161, %v3672, 0
    %v3700 = vsel %vm161, %v3673, 0
    %v3703 = vsel %vm161, %v3674, 0
    %v3706 = vsel %vm161, %v3675, 0
    %v3709 = vsel %vm161, %v3676, 0
    %v3712 = vsel %vm161, %v3677, 0
    %v3715 = vsel %vm161, %v3678, 0
    %v3718 = vsel %vm161, %v3679, 0
    %v3721 = vsel %vm161, %v3680, 0
    %v3724 = vsel %vm161, %v3681, 0
    %v3727 = vsel %vm161, %v3682, 0
    %v3730 = vsel %vm161, %v3683, 0
    %3732 = vmatpush.bf16.msra.mxu0 0
    %3733 = vmatpush.bf16.msra.mxu0 0
    %3734 = vmatpush.bf16.msra.mxu0 0
    %3735 = vmatpush.bf16.msra.mxu0 0
    %3736 = vmatpush.bf16.msra.mxu0 0
    %3737 = vmatpush.bf16.msra.mxu0 0
    %3738 = vmatpush.bf16.msra.mxu0 0
    %3739 = vmatpush.bf16.msra.mxu0 %v3688
    %3740 = vmatmul.bf16.gmra.mxu0 %v3685
    %v3741 = vpop.f32.mrf.mxu0
    %v3742 = vadd.f32 0.0, %v3741
    %v3743 = vpop.f32.mrf.mxu0
    %3744 = vdwg.mxu0
    %3745 = vmatpush.bf16.msra.mxu0 0
    %3746 = vmatpush.bf16.msra.mxu0 0
    %3747 = vmatpush.bf16.msra.mxu0 0
    %3748 = vmatpush.bf16.msra.mxu0 0
    %3749 = vmatpush.bf16.msra.mxu0 0
    %3750 = vmatpush.bf16.msra.mxu0 0
    %3751 = vmatpush.bf16.msra.mxu0 0
    %3752 = vmatpush.bf16.msra.mxu0 %v3691
    %3753 = vmatmul.bf16.gmra.mxu0 %v3685
    %v3754 = vpop.f32.mrf.mxu0
    %v3755 = vadd.f32 0.0, %v3754
    %v3756 = vpop.f32.mrf.mxu0
    %3757 = vdwg.mxu0
    %3758 = vmatpush.bf16.msra.mxu0 0
    %3759 = vmatpush.bf16.msra.mxu0 0
    %3760 = vmatpush.bf16.msra.mxu0 0
    %3761 = vmatpush.bf16.msra.mxu0 0
    %3762 = vmatpush.bf16.msra.mxu0 0
    %3763 = vmatpush.bf16.msra.mxu0 0
    %3764 = vmatpush.bf16.msra.mxu0 0
    %3765 = vmatpush.bf16.msra.mxu0 %v3694
    %3766 = vmatmul.bf16.gmra.mxu0 %v3685
    %v3767 = vpop.f32.mrf.mxu0
    %v3768 = vadd.f32 0.0, %v3767
    %v3769 = vpop.f32.mrf.mxu0
    %3770 = vdwg.mxu0
    %3771 = vmatpush.bf16.msra.mxu0 0
    %3772 = vmatpush.bf16.msra.mxu0 0
    %3773 = vmatpush.bf16.msra.mxu0 0
    %3774 = vmatpush.bf16.msra.mxu0 0
    %3775 = vmatpush.bf16.msra.mxu0 0
    %3776 = vmatpush.bf16.msra.mxu0 0
    %3777 = vmatpush.bf16.msra.mxu0 0
    %3778 = vmatpush.bf16.msra.mxu0 %v3697
    %3779 = vmatmul.bf16.gmra.mxu0 %v3685
    %v3780 = vpop.f32.mrf.mxu0
    %v3781 = vadd.f32 0.0, %v3780
    %v3782 = vpop.f32.mrf.mxu0
    %3783 = vdwg.mxu0
    %3784 = vmatpush.bf16.msra.mxu0 0
    %3785 = vmatpush.bf16.msra.mxu0 0
    %3786 = vmatpush.bf16.msra.mxu0 0
    %3787 = vmatpush.bf16.msra.mxu0 0
    %3788 = vmatpush.bf16.msra.mxu0 0
    %3789 = vmatpush.bf16.msra.mxu0 0
    %3790 = vmatpush.bf16.msra.mxu0 0
    %3791 = vmatpush.bf16.msra.mxu0 %v3700
    %3792 = vmatmul.bf16.gmra.mxu0 %v3685
    %v3793 = vpop.f32.mrf.mxu0
    %v3794 = vadd.f32 0.0, %v3793
    %v3795 = vpop.f32.mrf.mxu0
    %3796 = vdwg.mxu0
    %3797 = vmatpush.bf16.msra.mxu0 0
    %3798 = vmatpush.bf16.msra.mxu0 0
    %3799 = vmatpush.bf16.msra.mxu0 0
    %3800 = vmatpush.bf16.msra.mxu0 0
    %3801 = vmatpush.bf16.msra.mxu0 0
    %3802 = vmatpush.bf16.msra.mxu0 0
    %3803 = vmatpush.bf16.msra.mxu0 0
    %3804 = vmatpush.bf16.msra.mxu0 %v3703
    %3805 = vmatmul.bf16.gmra.mxu0 %v3685
    %v3806 = vpop.f32.mrf.mxu0
    %v3807 = vadd.f32 0.0, %v3806
    %v3808 = vpop.f32.mrf.mxu0
    %3809 = vdwg.mxu0
    %3810 = vmatpush.bf16.msra.mxu0 0
    %3811 = vmatpush.bf16.msra.mxu0 0
    %3812 = vmatpush.bf16.msra.mxu0 0
    %3813 = vmatpush.bf16.msra.mxu0 0
    %3814 = vmatpush.bf16.msra.mxu0 0
    %3815 = vmatpush.bf16.msra.mxu0 0
    %3816 = vmatpush.bf16.msra.mxu0 0
    %3817 = vmatpush.bf16.msra.mxu0 %v3706
    %3818 = vmatmul.bf16.gmra.mxu0 %v3685
    %v3819 = vpop.f32.mrf.mxu0
    %v3820 = vadd.f32 0.0, %v3819
    %v3821 = vpop.f32.mrf.mxu0
    %3822 = vdwg.mxu0
    %3823 = vmatpush.bf16.msra.mxu0 0
    %3824 = vmatpush.bf16.msra.mxu0 0
    %3825 = vmatpush.bf16.msra.mxu0 0
    %3826 = vmatpush.bf16.msra.mxu0 0
    %3827 = vmatpush.bf16.msra.mxu0 0
    %3828 = vmatpush.bf16.msra.mxu0 0
    %3829 = vmatpush.bf16.msra.mxu0 0
    %3830 = vmatpush.bf16.msra.mxu0 %v3709
    %3831 = vmatmul.bf16.gmra.mxu0 %v3685
    %v3832 = vpop.f32.mrf.mxu0
    %v3833 = vadd.f32 0.0, %v3832
    %v3834 = vpop.f32.mrf.mxu0
    %3835 = vdwg.mxu0
    %3836 = vmatpush.bf16.msra.mxu0 0
    %3837 = vmatpush.bf16.msra.mxu0 0
    %3838 = vmatpush.bf16.msra.mxu0 0
    %3839 = vmatpush.bf16.msra.mxu0 0
    %3840 = vmatpush.bf16.msra.mxu0 0
    %3841 = vmatpush.bf16.msra.mxu0 0
    %3842 = vmatpush.bf16.msra.mxu0 0
    %3843 = vmatpush.bf16.msra.mxu0 %v3712
    %3844 = vmatmul.bf16.gmra.mxu0 %v3685
    %v3845 = vpop.f32.mrf.mxu0
    %v3846 = vadd.f32 0.0, %v3845
    %v3847 = vpop.f32.mrf.mxu0
    %3848 = vdwg.mxu0
    %3849 = vmatpush.bf16.msra.mxu0 0
    %3850 = vmatpush.bf16.msra.mxu0 0
    %3851 = vmatpush.bf16.msra.mxu0 0
    %3852 = vmatpush.bf16.msra.mxu0 0
    %3853 = vmatpush.bf16.msra.mxu0 0
    %3854 = vmatpush.bf16.msra.mxu0 0
    %3855 = vmatpush.bf16.msra.mxu0 0
    %3856 = vmatpush.bf16.msra.mxu0 %v3715
    %3857 = vmatmul.bf16.gmra.mxu0 %v3685
    %v3858 = vpop.f32.mrf.mxu0
    %v3859 = vadd.f32 0.0, %v3858
    %v3860 = vpop.f32.mrf.mxu0
    %3861 = vdwg.mxu0
    %3862 = vmatpush.bf16.msra.mxu0 0
    %3863 = vmatpush.bf16.msra.mxu0 0
    %3864 = vmatpush.bf16.msra.mxu0 0
    %3865 = vmatpush.bf16.msra.mxu0 0
    %3866 = vmatpush.bf16.msra.mxu0 0
    %3867 = vmatpush.bf16.msra.mxu0 0
    %3868 = vmatpush.bf16.msra.mxu0 0
    %3869 = vmatpush.bf16.msra.mxu0 %v3718
    %3870 = vmatmul.bf16.gmra.mxu0 %v3685
    %v3871 = vpop.f32.mrf.mxu0
    %v3872 = vadd.f32 0.0, %v3871
    %v3873 = vpop.f32.mrf.mxu0
    %3874 = vdwg.mxu0
    %3875 = vmatpush.bf16.msra.mxu0 0
    %3876 = vmatpush.bf16.msra.mxu0 0
    %3877 = vmatpush.bf16.msra.mxu0 0
    %3878 = vmatpush.bf16.msra.mxu0 0
    %3879 = vmatpush.bf16.msra.mxu0 0
    %3880 = vmatpush.bf16.msra.mxu0 0
    %3881 = vmatpush.bf16.msra.mxu0 0
    %3882 = vmatpush.bf16.msra.mxu0 %v3721
    %3883 = vmatmul.bf16.gmra.mxu0 %v3685
    %v3884 = vpop.f32.mrf.mxu0
    %v3885 = vadd.f32 0.0, %v3884
    %v3886 = vpop.f32.mrf.mxu0
    %3887 = vdwg.mxu0
    %3888 = vmatpush.bf16.msra.mxu0 0
    %3889 = vmatpush.bf16.msra.mxu0 0
    %3890 = vmatpush.bf16.msra.mxu0 0
    %3891 = vmatpush.bf16.msra.mxu0 0
    %3892 = vmatpush.bf16.msra.mxu0 0
    %3893 = vmatpush.bf16.msra.mxu0 0
    %3894 = vmatpush.bf16.msra.mxu0 0
    %3895 = vmatpush.bf16.msra.mxu0 %v3724
    %3896 = vmatmul.bf16.gmra.mxu0 %v3685
    %v3897 = vpop.f32.mrf.mxu0
    %v3898 = vadd.f32 0.0, %v3897
    %v3899 = vpop.f32.mrf.mxu0
    %3900 = vdwg.mxu0
    %3901 = vmatpush.bf16.msra.mxu0 0
    %3902 = vmatpush.bf16.msra.mxu0 0
    %3903 = vmatpush.bf16.msra.mxu0 0
    %3904 = vmatpush.bf16.msra.mxu0 0
    %3905 = vmatpush.bf16.msra.mxu0 0
    %3906 = vmatpush.bf16.msra.mxu0 0
    %3907 = vmatpush.bf16.msra.mxu0 0
    %3908 = vmatpush.bf16.msra.mxu0 %v3727
    %3909 = vmatmul.bf16.gmra.mxu0 %v3685
    %v3910 = vpop.f32.mrf.mxu0
    %v3911 = vadd.f32 0.0, %v3910
    %v3912 = vpop.f32.mrf.mxu0
    %3913 = vdwg.mxu0
    %3914 = vmatpush.bf16.msra.mxu0 0
    %3915 = vmatpush.bf16.msra.mxu0 0
    %3916 = vmatpush.bf16.msra.mxu0 0
    %3917 = vmatpush.bf16.msra.mxu0 0
    %3918 = vmatpush.bf16.msra.mxu0 0
    %3919 = vmatpush.bf16.msra.mxu0 0
    %3920 = vmatpush.bf16.msra.mxu0 0
    %3921 = vmatpush.bf16.msra.mxu0 %v3730
    %3922 = vmatmul.bf16.gmra.mxu0 %v3685
    %v3923 = vpop.f32.mrf.mxu0
    %v3924 = vadd.f32 0.0, %v3923
    %v3925 = vpop.f32.mrf.mxu0
    %3926 = vdwg.mxu0
    %v3927 = vadd.f32 %v3582, %v3742
    %v3928 = vadd.f32 %v3583, %v3755
    %v3929 = vadd.f32 %v3584, %v3768
    %v3930 = vadd.f32 %v3585, %v3781
    %v3931 = vadd.f32 %v3586, %v3794
    %v3932 = vadd.f32 %v3587, %v3807
    %v3933 = vadd.f32 %v3588, %v3820
    %v3934 = vadd.f32 %v3589, %v3833
    %v3935 = vadd.f32 %v3590, %v3846
    %v3936 = vadd.f32 %v3591, %v3859
    %v3937 = vadd.f32 %v3592, %v3872
    %v3938 = vadd.f32 %v3593, %v3885
    %v3939 = vadd.f32 %v3594, %v3898
    %v3940 = vadd.f32 %v3595, %v3911
    %v3941 = vadd.f32 %v3596, %v3924
    %3942 = vrot.lane.b32.xlu0 %v65, 80
    %v3943 = vpop.permute.xlu0 %3942
    %3944 = vst [vmem:[#allocation1] ss:$4 sm:$0xff] %v58
    %s3945 = scalar_lea.vmem [#allocation1], 32
    %3946 = vst [vmem:[%s3945] ss:$4 sm:$0xff] %v59
    %v3947 = vld.sshfl [vmem:[#allocation1 + $0x18] sm:$0xff pattern:$0x73625140]
    %v3948 = vld.sshfl [vmem:[#allocation1 + $0x20] sm:$0xff pattern:$0x73625140]
    %v3949 = vld.sshfl [vmem:[#allocation1 + $0x28] sm:$0xff pattern:$0x73625140]
    %v3950 = vld.sshfl [vmem:[#allocation1 + $0x30] sm:$0xff pattern:$0x73625140]
    %v3951 = vld.sshfl [vmem:[#allocation1 + $0x38] sm:$0xff pattern:$0x73625140]
    %3952 = vst [vmem:[#allocation1] ss:$4 sm:$0xff] %v60
    %3953 = vst [vmem:[%s3945] ss:$4 sm:$0xff] %v61
    %v3954 = vld.sshfl [vmem:[#allocation1] sm:$0xff pattern:$0x73625140]
    %v3955 = vld.sshfl [vmem:[#allocation1 + $0x8] sm:$0xff pattern:$0x73625140]
    %v3956 = vld.sshfl [vmem:[#allocation1 + $0x10] sm:$0xff pattern:$0x73625140]
    %v3957 = vld.sshfl [vmem:[#allocation1 + $0x18] sm:$0xff pattern:$0x73625140]
    %v3958 = vld.sshfl [vmem:[#allocation1 + $0x20] sm:$0xff pattern:$0x73625140]
    %v3959 = vld.sshfl [vmem:[#allocation1 + $0x28] sm:$0xff pattern:$0x73625140]
    %v3960 = vld.sshfl [vmem:[#allocation1 + $0x30] sm:$0xff pattern:$0x73625140]
    %v3961 = vld.sshfl [vmem:[#allocation1 + $0x38] sm:$0xff pattern:$0x73625140]
    %3962 = vst [vmem:[#allocation1] ss:$4 sm:$0xff] %v62
    %v3963 = vld.sshfl [vmem:[#allocation1] sm:$0xff pattern:$0x73625140]
    %v3964 = vld.sshfl [vmem:[#allocation1 + $0x8] sm:$0xff pattern:$0x73625140]
    %v3966 = vsel %vm157, %v3943, 0
    %v3968 = vsel %vm161, %v3947, 0
    %v3970 = vsel %vm161, %v3948, 0
    %v3972 = vsel %vm161, %v3949, 0
    %v3974 = vsel %vm161, %v3950, 0
    %v3976 = vsel %vm161, %v3951, 0
    %v3978 = vsel %vm161, %v3954, 0
    %v3980 = vsel %vm161, %v3955, 0
    %v3982 = vsel %vm161, %v3956, 0
    %v3984 = vsel %vm161, %v3957, 0
    %v3986 = vsel %vm161, %v3958, 0
    %v3988 = vsel %vm161, %v3959, 0
    %v3990 = vsel %vm161, %v3960, 0
    %v3992 = vsel %vm161, %v3961, 0
    %v3994 = vsel %vm161, %v3963, 0
    %v3996 = vsel %vm161, %v3964, 0
    %3998 = vmatpush.bf16.msra.mxu0 0
    %3999 = vmatpush.bf16.msra.mxu0 0
    %4000 = vmatpush.bf16.msra.mxu0 0
    %4001 = vmatpush.bf16.msra.mxu0 0
    %4002 = vmatpush.bf16.msra.mxu0 0
    %4003 = vmatpush.bf16.msra.mxu0 0
    %4004 = vmatpush.bf16.msra.mxu0 0
    %4005 = vmatpush.bf16.msra.mxu0 %v3968
    %4006 = vmatmul.bf16.gmra.mxu0 %v3966
    %v4007 = vpop.f32.mrf.mxu0
    %v4008 = vadd.f32 0.0, %v4007
    %v4009 = vpop.f32.mrf.mxu0
    %4010 = vdwg.mxu0
    %4011 = vmatpush.bf16.msra.mxu0 0
    %4012 = vmatpush.bf16.msra.mxu0 0
    %4013 = vmatpush.bf16.msra.mxu0 0
    %4014 = vmatpush.bf16.msra.mxu0 0
    %4015 = vmatpush.bf16.msra.mxu0 0
    %4016 = vmatpush.bf16.msra.mxu0 0
    %4017 = vmatpush.bf16.msra.mxu0 0
    %4018 = vmatpush.bf16.msra.mxu0 %v3970
    %4019 = vmatmul.bf16.gmra.mxu0 %v3966
    %v4020 = vpop.f32.mrf.mxu0
    %v4021 = vadd.f32 0.0, %v4020
    %v4022 = vpop.f32.mrf.mxu0
    %4023 = vdwg.mxu0
    %4024 = vmatpush.bf16.msra.mxu0 0
    %4025 = vmatpush.bf16.msra.mxu0 0
    %4026 = vmatpush.bf16.msra.mxu0 0
    %4027 = vmatpush.bf16.msra.mxu0 0
    %4028 = vmatpush.bf16.msra.mxu0 0
    %4029 = vmatpush.bf16.msra.mxu0 0
    %4030 = vmatpush.bf16.msra.mxu0 0
    %4031 = vmatpush.bf16.msra.mxu0 %v3972
    %4032 = vmatmul.bf16.gmra.mxu0 %v3966
    %v4033 = vpop.f32.mrf.mxu0
    %v4034 = vadd.f32 0.0, %v4033
    %v4035 = vpop.f32.mrf.mxu0
    %4036 = vdwg.mxu0
    %4037 = vmatpush.bf16.msra.mxu0 0
    %4038 = vmatpush.bf16.msra.mxu0 0
    %4039 = vmatpush.bf16.msra.mxu0 0
    %4040 = vmatpush.bf16.msra.mxu0 0
    %4041 = vmatpush.bf16.msra.mxu0 0
    %4042 = vmatpush.bf16.msra.mxu0 0
    %4043 = vmatpush.bf16.msra.mxu0 0
    %4044 = vmatpush.bf16.msra.mxu0 %v3974
    %4045 = vmatmul.bf16.gmra.mxu0 %v3966
    %v4046 = vpop.f32.mrf.mxu0
    %v4047 = vadd.f32 0.0, %v4046
    %v4048 = vpop.f32.mrf.mxu0
    %4049 = vdwg.mxu0
    %4050 = vmatpush.bf16.msra.mxu0 0
    %4051 = vmatpush.bf16.msra.mxu0 0
    %4052 = vmatpush.bf16.msra.mxu0 0
    %4053 = vmatpush.bf16.msra.mxu0 0
    %4054 = vmatpush.bf16.msra.mxu0 0
    %4055 = vmatpush.bf16.msra.mxu0 0
    %4056 = vmatpush.bf16.msra.mxu0 0
    %4057 = vmatpush.bf16.msra.mxu0 %v3976
    %4058 = vmatmul.bf16.gmra.mxu0 %v3966
    %v4059 = vpop.f32.mrf.mxu0
    %v4060 = vadd.f32 0.0, %v4059
    %v4061 = vpop.f32.mrf.mxu0
    %4062 = vdwg.mxu0
    %4063 = vmatpush.bf16.msra.mxu0 0
    %4064 = vmatpush.bf16.msra.mxu0 0
    %4065 = vmatpush.bf16.msra.mxu0 0
    %4066 = vmatpush.bf16.msra.mxu0 0
    %4067 = vmatpush.bf16.msra.mxu0 0
    %4068 = vmatpush.bf16.msra.mxu0 0
    %4069 = vmatpush.bf16.msra.mxu0 0
    %4070 = vmatpush.bf16.msra.mxu0 %v3978
    %4071 = vmatmul.bf16.gmra.mxu0 %v3966
    %v4072 = vpop.f32.mrf.mxu0
    %v4073 = vadd.f32 0.0, %v4072
    %v4074 = vpop.f32.mrf.mxu0
    %4075 = vdwg.mxu0
    %4076 = vmatpush.bf16.msra.mxu0 0
    %4077 = vmatpush.bf16.msra.mxu0 0
    %4078 = vmatpush.bf16.msra.mxu0 0
    %4079 = vmatpush.bf16.msra.mxu0 0
    %4080 = vmatpush.bf16.msra.mxu0 0
    %4081 = vmatpush.bf16.msra.mxu0 0
    %4082 = vmatpush.bf16.msra.mxu0 0
    %4083 = vmatpush.bf16.msra.mxu0 %v3980
    %4084 = vmatmul.bf16.gmra.mxu0 %v3966
    %v4085 = vpop.f32.mrf.mxu0
    %v4086 = vadd.f32 0.0, %v4085
    %v4087 = vpop.f32.mrf.mxu0
    %4088 = vdwg.mxu0
    %4089 = vmatpush.bf16.msra.mxu0 0
    %4090 = vmatpush.bf16.msra.mxu0 0
    %4091 = vmatpush.bf16.msra.mxu0 0
    %4092 = vmatpush.bf16.msra.mxu0 0
    %4093 = vmatpush.bf16.msra.mxu0 0
    %4094 = vmatpush.bf16.msra.mxu0 0
    %4095 = vmatpush.bf16.msra.mxu0 0
    %4096 = vmatpush.bf16.msra.mxu0 %v3982
    %4097 = vmatmul.bf16.gmra.mxu0 %v3966
    %v4098 = vpop.f32.mrf.mxu0
    %v4099 = vadd.f32 0.0, %v4098
    %v4100 = vpop.f32.mrf.mxu0
    %4101 = vdwg.mxu0
    %4102 = vmatpush.bf16.msra.mxu0 0
    %4103 = vmatpush.bf16.msra.mxu0 0
    %4104 = vmatpush.bf16.msra.mxu0 0
    %4105 = vmatpush.bf16.msra.mxu0 0
    %4106 = vmatpush.bf16.msra.mxu0 0
    %4107 = vmatpush.bf16.msra.mxu0 0
    %4108 = vmatpush.bf16.msra.mxu0 0
    %4109 = vmatpush.bf16.msra.mxu0 %v3984
    %4110 = vmatmul.bf16.gmra.mxu0 %v3966
    %v4111 = vpop.f32.mrf.mxu0
    %v4112 = vadd.f32 0.0, %v4111
    %v4113 = vpop.f32.mrf.mxu0
    %4114 = vdwg.mxu0
    %4115 = vmatpush.bf16.msra.mxu0 0
    %4116 = vmatpush.bf16.msra.mxu0 0
    %4117 = vmatpush.bf16.msra.mxu0 0
    %4118 = vmatpush.bf16.msra.mxu0 0
    %4119 = vmatpush.bf16.msra.mxu0 0
    %4120 = vmatpush.bf16.msra.mxu0 0
    %4121 = vmatpush.bf16.msra.mxu0 0
    %4122 = vmatpush.bf16.msra.mxu0 %v3986
    %4123 = vmatmul.bf16.gmra.mxu0 %v3966
    %v4124 = vpop.f32.mrf.mxu0
    %v4125 = vadd.f32 0.0, %v4124
    %v4126 = vpop.f32.mrf.mxu0
    %4127 = vdwg.mxu0
    %4128 = vmatpush.bf16.msra.mxu0 0
    %4129 = vmatpush.bf16.msra.mxu0 0
    %4130 = vmatpush.bf16.msra.mxu0 0
    %4131 = vmatpush.bf16.msra.mxu0 0
    %4132 = vmatpush.bf16.msra.mxu0 0
    %4133 = vmatpush.bf16.msra.mxu0 0
    %4134 = vmatpush.bf16.msra.mxu0 0
    %4135 = vmatpush.bf16.msra.mxu0 %v3988
    %4136 = vmatmul.bf16.gmra.mxu0 %v3966
    %v4137 = vpop.f32.mrf.mxu0
    %v4138 = vadd.f32 0.0, %v4137
    %v4139 = vpop.f32.mrf.mxu0
    %4140 = vdwg.mxu0
    %4141 = vmatpush.bf16.msra.mxu0 0
    %4142 = vmatpush.bf16.msra.mxu0 0
    %4143 = vmatpush.bf16.msra.mxu0 0
    %4144 = vmatpush.bf16.msra.mxu0 0
    %4145 = vmatpush.bf16.msra.mxu0 0
    %4146 = vmatpush.bf16.msra.mxu0 0
    %4147 = vmatpush.bf16.msra.mxu0 0
    %4148 = vmatpush.bf16.msra.mxu0 %v3990
    %4149 = vmatmul.bf16.gmra.mxu0 %v3966
    %v4150 = vpop.f32.mrf.mxu0
    %v4151 = vadd.f32 0.0, %v4150
    %v4152 = vpop.f32.mrf.mxu0
    %4153 = vdwg.mxu0
    %4154 = vmatpush.bf16.msra.mxu0 0
    %4155 = vmatpush.bf16.msra.mxu0 0
    %4156 = vmatpush.bf16.msra.mxu0 0
    %4157 = vmatpush.bf16.msra.mxu0 0
    %4158 = vmatpush.bf16.msra.mxu0 0
    %4159 = vmatpush.bf16.msra.mxu0 0
    %4160 = vmatpush.bf16.msra.mxu0 0
    %4161 = vmatpush.bf16.msra.mxu0 %v3992
    %4162 = vmatmul.bf16.gmra.mxu0 %v3966
    %v4163 = vpop.f32.mrf.mxu0
    %v4164 = vadd.f32 0.0, %v4163
    %v4165 = vpop.f32.mrf.mxu0
    %4166 = vdwg.mxu0
    %4167 = vmatpush.bf16.msra.mxu0 0
    %4168 = vmatpush.bf16.msra.mxu0 0
    %4169 = vmatpush.bf16.msra.mxu0 0
    %4170 = vmatpush.bf16.msra.mxu0 0
    %4171 = vmatpush.bf16.msra.mxu0 0
    %4172 = vmatpush.bf16.msra.mxu0 0
    %4173 = vmatpush.bf16.msra.mxu0 0
    %4174 = vmatpush.bf16.msra.mxu0 %v3994
    %4175 = vmatmul.bf16.gmra.mxu0 %v3966
    %v4176 = vpop.f32.mrf.mxu0
    %v4177 = vadd.f32 0.0, %v4176
    %v4178 = vpop.f32.mrf.mxu0
    %4179 = vdwg.mxu0
    %4180 = vmatpush.bf16.msra.mxu0 0
    %4181 = vmatpush.bf16.msra.mxu0 0
    %4182 = vmatpush.bf16.msra.mxu0 0
    %4183 = vmatpush.bf16.msra.mxu0 0
    %4184 = vmatpush.bf16.msra.mxu0 0
    %4185 = vmatpush.bf16.msra.mxu0 0
    %4186 = vmatpush.bf16.msra.mxu0 0
    %4187 = vmatpush.bf16.msra.mxu0 %v3996
    %4188 = vmatmul.bf16.gmra.mxu0 %v3966
    %v4189 = vpop.f32.mrf.mxu0
    %v4190 = vadd.f32 0.0, %v4189
    %v4191 = vpop.f32.mrf.mxu0
    %4192 = vdwg.mxu0
    %v4193 = vadd.f32 %v3927, %v4008
    %v4194 = vadd.f32 %v3928, %v4021
    %v4195 = vadd.f32 %v3929, %v4034
    %v4196 = vadd.f32 %v3930, %v4047
    %v4197 = vadd.f32 %v3931, %v4060
    %v4198 = vadd.f32 %v3932, %v4073
    %v4199 = vadd.f32 %v3933, %v4086
    %v4200 = vadd.f32 %v3934, %v4099
    %v4201 = vadd.f32 %v3935, %v4112
    %v4202 = vadd.f32 %v3936, %v4125
    %v4203 = vadd.f32 %v3937, %v4138
    %v4204 = vadd.f32 %v3938, %v4151
    %v4205 = vadd.f32 %v3939, %v4164
    %v4206 = vadd.f32 %v3940, %v4177
    %v4207 = vadd.f32 %v3941, %v4190
    %4208 = vrot.lane.b32.xlu0 %v65, 76
    %v4209 = vpop.permute.xlu0 %4208
    %4210 = vst [vmem:[#allocation1] ss:$4 sm:$0xff] %v58
    %s4211 = scalar_lea.vmem [#allocation1], 32
    %4212 = vst [vmem:[%s4211] ss:$4 sm:$0xff] %v59
    %v4213 = vld.sshfl [vmem:[#allocation1 + $0x18] sm:$0xff pattern:$0x73625140]
    %v4215 = vld.sshfl [vmem:[#allocation1 + $0x20] sm:$0xff pattern:$0x73625140]
    %v4217 = vld.sshfl [vmem:[#allocation1 + $0x28] sm:$0xff pattern:$0x73625140]
    %v4219 = vld.sshfl [vmem:[#allocation1 + $0x30] sm:$0xff pattern:$0x73625140]
    %v4221 = vld.sshfl [vmem:[#allocation1 + $0x38] sm:$0xff pattern:$0x73625140]
    %4223 = vst [vmem:[#allocation1] ss:$4 sm:$0xff] %v60
    %4224 = vst [vmem:[%s4211] ss:$4 sm:$0xff] %v61
    %v4225 = vld.sshfl [vmem:[#allocation1] sm:$0xff pattern:$0x73625140]
    %v4227 = vld.sshfl [vmem:[#allocation1 + $0x8] sm:$0xff pattern:$0x73625140]
    %v4229 = vld.sshfl [vmem:[#allocation1 + $0x10] sm:$0xff pattern:$0x73625140]
    %v4231 = vld.sshfl [vmem:[#allocation1 + $0x18] sm:$0xff pattern:$0x73625140]
    %v4233 = vld.sshfl [vmem:[#allocation1 + $0x20] sm:$0xff pattern:$0x73625140]
    %v4235 = vld.sshfl [vmem:[#allocation1 + $0x28] sm:$0xff pattern:$0x73625140]
    %v4237 = vld.sshfl [vmem:[#allocation1 + $0x30] sm:$0xff pattern:$0x73625140]
    %v4239 = vld.sshfl [vmem:[#allocation1 + $0x38] sm:$0xff pattern:$0x73625140]
    %4241 = vst [vmem:[#allocation1] ss:$4 sm:$0xff] %v62
    %v4242 = vld.sshfl [vmem:[#allocation1] sm:$0xff pattern:$0x73625140]
    %v4244 = vld.sshfl [vmem:[#allocation1 + $0x8] sm:$0xff pattern:$0x73625140]
    %v4246 = vld.sshfl [vmem:[#allocation1 + $0x10] sm:$0xff pattern:$0x73625140]
    %4248 = vrot.lane.b32.xlu0 %v4213, 127
    %v4249 = vpop.permute.xlu0 %4248
    %4250 = vrot.lane.b32.xlu0 %v4215, 127
    %v4251 = vpop.permute.xlu0 %4250
    %4252 = vrot.lane.b32.xlu0 %v4217, 127
    %v4253 = vpop.permute.xlu0 %4252
    %4254 = vrot.lane.b32.xlu0 %v4219, 127
    %v4255 = vpop.permute.xlu0 %4254
    %4256 = vrot.lane.b32.xlu0 %v4221, 127
    %v4257 = vpop.permute.xlu0 %4256
    %4258 = vrot.lane.b32.xlu0 %v4225, 127
    %v4259 = vpop.permute.xlu0 %4258
    %4260 = vrot.lane.b32.xlu0 %v4227, 127
    %v4261 = vpop.permute.xlu0 %4260
    %4262 = vrot.lane.b32.xlu0 %v4229, 127
    %v4263 = vpop.permute.xlu0 %4262
    %4264 = vrot.lane.b32.xlu0 %v4231, 127
    %v4265 = vpop.permute.xlu0 %4264
    %4266 = vrot.lane.b32.xlu0 %v4233, 127
    %v4267 = vpop.permute.xlu0 %4266
    %4268 = vrot.lane.b32.xlu0 %v4235, 127
    %v4269 = vpop.permute.xlu0 %4268
    %4270 = vrot.lane.b32.xlu0 %v4237, 127
    %v4271 = vpop.permute.xlu0 %4270
    %4272 = vrot.lane.b32.xlu0 %v4239, 127
    %v4273 = vpop.permute.xlu0 %4272
    %4274 = vrot.lane.b32.xlu0 %v4242, 127
    %v4275 = vpop.permute.xlu0 %4274
    %4276 = vrot.lane.b32.xlu0 %v4244, 127
    %v4277 = vpop.permute.xlu0 %4276
    %4278 = vrot.lane.b32.xlu0 %v4246, 127
    %v4279 = vpop.permute.xlu0 %4278
    %v4280 = vsel %vm141, %v4249, %v4251
    %v4281 = vsel %vm141, %v4251, %v4253
    %v4282 = vsel %vm141, %v4253, %v4255
    %v4283 = vsel %vm141, %v4255, %v4257
    %v4284 = vsel %vm141, %v4257, %v4259
    %v4285 = vsel %vm141, %v4259, %v4261
    %v4286 = vsel %vm141, %v4261, %v4263
    %v4287 = vsel %vm141, %v4263, %v4265
    %v4288 = vsel %vm141, %v4265, %v4267
    %v4289 = vsel %vm141, %v4267, %v4269
    %v4290 = vsel %vm141, %v4269, %v4271
    %v4291 = vsel %vm141, %v4271, %v4273
    %v4292 = vsel %vm141, %v4273, %v4275
    %v4293 = vsel %vm141, %v4275, %v4277
    %v4294 = vsel %vm141, %v4277, %v4279
    %v4296 = vsel %vm157, %v4209, 0
    %v4299 = vsel %vm161, %v4280, 0
    %v4302 = vsel %vm161, %v4281, 0
    %v4305 = vsel %vm161, %v4282, 0
    %v4308 = vsel %vm161, %v4283, 0
    %v4311 = vsel %vm161, %v4284, 0
    %v4314 = vsel %vm161, %v4285, 0
    %v4317 = vsel %vm161, %v4286, 0
    %v4320 = vsel %vm161, %v4287, 0
    %v4323 = vsel %vm161, %v4288, 0
    %v4326 = vsel %vm161, %v4289, 0
    %v4329 = vsel %vm161, %v4290, 0
    %v4332 = vsel %vm161, %v4291, 0
    %v4335 = vsel %vm161, %v4292, 0
    %v4338 = vsel %vm161, %v4293, 0
    %v4341 = vsel %vm161, %v4294, 0
    %4343 = vmatpush.bf16.msra.mxu0 0
    %4344 = vmatpush.bf16.msra.mxu0 0
    %4345 = vmatpush.bf16.msra.mxu0 0
    %4346 = vmatpush.bf16.msra.mxu0 0
    %4347 = vmatpush.bf16.msra.mxu0 0
    %4348 = vmatpush.bf16.msra.mxu0 0
    %4349 = vmatpush.bf16.msra.mxu0 0
    %4350 = vmatpush.bf16.msra.mxu0 %v4299
    %4351 = vmatmul.bf16.gmra.mxu0 %v4296
    %v4352 = vpop.f32.mrf.mxu0
    %v4353 = vadd.f32 0.0, %v4352
    %v4354 = vpop.f32.mrf.mxu0
    %4355 = vdwg.mxu0
    %4356 = vmatpush.bf16.msra.mxu0 0
    %4357 = vmatpush.bf16.msra.mxu0 0
    %4358 = vmatpush.bf16.msra.mxu0 0
    %4359 = vmatpush.bf16.msra.mxu0 0
    %4360 = vmatpush.bf16.msra.mxu0 0
    %4361 = vmatpush.bf16.msra.mxu0 0
    %4362 = vmatpush.bf16.msra.mxu0 0
    %4363 = vmatpush.bf16.msra.mxu0 %v4302
    %4364 = vmatmul.bf16.gmra.mxu0 %v4296
    %v4365 = vpop.f32.mrf.mxu0
    %v4366 = vadd.f32 0.0, %v4365
    %v4367 = vpop.f32.mrf.mxu0
    %4368 = vdwg.mxu0
    %4369 = vmatpush.bf16.msra.mxu0 0
    %4370 = vmatpush.bf16.msra.mxu0 0
    %4371 = vmatpush.bf16.msra.mxu0 0
    %4372 = vmatpush.bf16.msra.mxu0 0
    %4373 = vmatpush.bf16.msra.mxu0 0
    %4374 = vmatpush.bf16.msra.mxu0 0
    %4375 = vmatpush.bf16.msra.mxu0 0
    %4376 = vmatpush.bf16.msra.mxu0 %v4305
    %4377 = vmatmul.bf16.gmra.mxu0 %v4296
    %v4378 = vpop.f32.mrf.mxu0
    %v4379 = vadd.f32 0.0, %v4378
    %v4380 = vpop.f32.mrf.mxu0
    %4381 = vdwg.mxu0
    %4382 = vmatpush.bf16.msra.mxu0 0
    %4383 = vmatpush.bf16.msra.mxu0 0
    %4384 = vmatpush.bf16.msra.mxu0 0
    %4385 = vmatpush.bf16.msra.mxu0 0
    %4386 = vmatpush.bf16.msra.mxu0 0
    %4387 = vmatpush.bf16.msra.mxu0 0
    %4388 = vmatpush.bf16.msra.mxu0 0
    %4389 = vmatpush.bf16.msra.mxu0 %v4308
    %4390 = vmatmul.bf16.gmra.mxu0 %v4296
    %v4391 = vpop.f32.mrf.mxu0
    %v4392 = vadd.f32 0.0, %v4391
    %v4393 = vpop.f32.mrf.mxu0
    %4394 = vdwg.mxu0
    %4395 = vmatpush.bf16.msra.mxu0 0
    %4396 = vmatpush.bf16.msra.mxu0 0
    %4397 = vmatpush.bf16.msra.mxu0 0
    %4398 = vmatpush.bf16.msra.mxu0 0
    %4399 = vmatpush.bf16.msra.mxu0 0
    %4400 = vmatpush.bf16.msra.mxu0 0
    %4401 = vmatpush.bf16.msra.mxu0 0
    %4402 = vmatpush.bf16.msra.mxu0 %v4311
    %4403 = vmatmul.bf16.gmra.mxu0 %v4296
    %v4404 = vpop.f32.mrf.mxu0
    %v4405 = vadd.f32 0.0, %v4404
    %v4406 = vpop.f32.mrf.mxu0
    %4407 = vdwg.mxu0
    %4408 = vmatpush.bf16.msra.mxu0 0
    %4409 = vmatpush.bf16.msra.mxu0 0
    %4410 = vmatpush.bf16.msra.mxu0 0
    %4411 = vmatpush.bf16.msra.mxu0 0
    %4412 = vmatpush.bf16.msra.mxu0 0
    %4413 = vmatpush.bf16.msra.mxu0 0
    %4414 = vmatpush.bf16.msra.mxu0 0
    %4415 = vmatpush.bf16.msra.mxu0 %v4314
    %4416 = vmatmul.bf16.gmra.mxu0 %v4296
    %v4417 = vpop.f32.mrf.mxu0
    %v4418 = vadd.f32 0.0, %v4417
    %v4419 = vpop.f32.mrf.mxu0
    %4420 = vdwg.mxu0
    %4421 = vmatpush.bf16.msra.mxu0 0
    %4422 = vmatpush.bf16.msra.mxu0 0
    %4423 = vmatpush.bf16.msra.mxu0 0
    %4424 = vmatpush.bf16.msra.mxu0 0
    %4425 = vmatpush.bf16.msra.mxu0 0
    %4426 = vmatpush.bf16.msra.mxu0 0
    %4427 = vmatpush.bf16.msra.mxu0 0
    %4428 = vmatpush.bf16.msra.mxu0 %v4317
    %4429 = vmatmul.bf16.gmra.mxu0 %v4296
    %v4430 = vpop.f32.mrf.mxu0
    %v4431 = vadd.f32 0.0, %v4430
    %v4432 = vpop.f32.mrf.mxu0
    %4433 = vdwg.mxu0
    %4434 = vmatpush.bf16.msra.mxu0 0
    %4435 = vmatpush.bf16.msra.mxu0 0
    %4436 = vmatpush.bf16.msra.mxu0 0
    %4437 = vmatpush.bf16.msra.mxu0 0
    %4438 = vmatpush.bf16.msra.mxu0 0
    %4439 = vmatpush.bf16.msra.mxu0 0
    %4440 = vmatpush.bf16.msra.mxu0 0
    %4441 = vmatpush.bf16.msra.mxu0 %v4320
    %4442 = vmatmul.bf16.gmra.mxu0 %v4296
    %v4443 = vpop.f32.mrf.mxu0
    %v4444 = vadd.f32 0.0, %v4443
    %v4445 = vpop.f32.mrf.mxu0
    %4446 = vdwg.mxu0
    %4447 = vmatpush.bf16.msra.mxu0 0
    %4448 = vmatpush.bf16.msra.mxu0 0
    %4449 = vmatpush.bf16.msra.mxu0 0
    %4450 = vmatpush.bf16.msra.mxu0 0
    %4451 = vmatpush.bf16.msra.mxu0 0
    %4452 = vmatpush.bf16.msra.mxu0 0
    %4453 = vmatpush.bf16.msra.mxu0 0
    %4454 = vmatpush.bf16.msra.mxu0 %v4323
    %4455 = vmatmul.bf16.gmra.mxu0 %v4296
    %v4456 = vpop.f32.mrf.mxu0
    %v4457 = vadd.f32 0.0, %v4456
    %v4458 = vpop.f32.mrf.mxu0
    %4459 = vdwg.mxu0
    %4460 = vmatpush.bf16.msra.mxu0 0
    %4461 = vmatpush.bf16.msra.mxu0 0
    %4462 = vmatpush.bf16.msra.mxu0 0
    %4463 = vmatpush.bf16.msra.mxu0 0
    %4464 = vmatpush.bf16.msra.mxu0 0
    %4465 = vmatpush.bf16.msra.mxu0 0
    %4466 = vmatpush.bf16.msra.mxu0 0
    %4467 = vmatpush.bf16.msra.mxu0 %v4326
    %4468 = vmatmul.bf16.gmra.mxu0 %v4296
    %v4469 = vpop.f32.mrf.mxu0
    %v4470 = vadd.f32 0.0, %v4469
    %v4471 = vpop.f32.mrf.mxu0
    %4472 = vdwg.mxu0
    %4473 = vmatpush.bf16.msra.mxu0 0
    %4474 = vmatpush.bf16.msra.mxu0 0
    %4475 = vmatpush.bf16.msra.mxu0 0
    %4476 = vmatpush.bf16.msra.mxu0 0
    %4477 = vmatpush.bf16.msra.mxu0 0
    %4478 = vmatpush.bf16.msra.mxu0 0
    %4479 = vmatpush.bf16.msra.mxu0 0
    %4480 = vmatpush.bf16.msra.mxu0 %v4329
    %4481 = vmatmul.bf16.gmra.mxu0 %v4296
    %v4482 = vpop.f32.mrf.mxu0
    %v4483 = vadd.f32 0.0, %v4482
    %v4484 = vpop.f32.mrf.mxu0
    %4485 = vdwg.mxu0
    %4486 = vmatpush.bf16.msra.mxu0 0
    %4487 = vmatpush.bf16.msra.mxu0 0
    %4488 = vmatpush.bf16.msra.mxu0 0
    %4489 = vmatpush.bf16.msra.mxu0 0
    %4490 = vmatpush.bf16.msra.mxu0 0
    %4491 = vmatpush.bf16.msra.mxu0 0
    %4492 = vmatpush.bf16.msra.mxu0 0
    %4493 = vmatpush.bf16.msra.mxu0 %v4332
    %4494 = vmatmul.bf16.gmra.mxu0 %v4296
    %v4495 = vpop.f32.mrf.mxu0
    %v4496 = vadd.f32 0.0, %v4495
    %v4497 = vpop.f32.mrf.mxu0
    %4498 = vdwg.mxu0
    %4499 = vmatpush.bf16.msra.mxu0 0
    %4500 = vmatpush.bf16.msra.mxu0 0
    %4501 = vmatpush.bf16.msra.mxu0 0
    %4502 = vmatpush.bf16.msra.mxu0 0
    %4503 = vmatpush.bf16.msra.mxu0 0
    %4504 = vmatpush.bf16.msra.mxu0 0
    %4505 = vmatpush.bf16.msra.mxu0 0
    %4506 = vmatpush.bf16.msra.mxu0 %v4335
    %4507 = vmatmul.bf16.gmra.mxu0 %v4296
    %v4508 = vpop.f32.mrf.mxu0
    %v4509 = vadd.f32 0.0, %v4508
    %v4510 = vpop.f32.mrf.mxu0
    %4511 = vdwg.mxu0
    %4512 = vmatpush.bf16.msra.mxu0 0
    %4513 = vmatpush.bf16.msra.mxu0 0
    %4514 = vmatpush.bf16.msra.mxu0 0
    %4515 = vmatpush.bf16.msra.mxu0 0
    %4516 = vmatpush.bf16.msra.mxu0 0
    %4517 = vmatpush.bf16.msra.mxu0 0
    %4518 = vmatpush.bf16.msra.mxu0 0
    %4519 = vmatpush.bf16.msra.mxu0 %v4338
    %4520 = vmatmul.bf16.gmra.mxu0 %v4296
    %v4521 = vpop.f32.mrf.mxu0
    %v4522 = vadd.f32 0.0, %v4521
    %v4523 = vpop.f32.mrf.mxu0
    %4524 = vdwg.mxu0
    %4525 = vmatpush.bf16.msra.mxu0 0
    %4526 = vmatpush.bf16.msra.mxu0 0
    %4527 = vmatpush.bf16.msra.mxu0 0
    %4528 = vmatpush.bf16.msra.mxu0 0
    %4529 = vmatpush.bf16.msra.mxu0 0
    %4530 = vmatpush.bf16.msra.mxu0 0
    %4531 = vmatpush.bf16.msra.mxu0 0
    %4532 = vmatpush.bf16.msra.mxu0 %v4341
    %4533 = vmatmul.bf16.gmra.mxu0 %v4296
    %v4534 = vpop.f32.mrf.mxu0
    %v4535 = vadd.f32 0.0, %v4534
    %v4536 = vpop.f32.mrf.mxu0
    %4537 = vdwg.mxu0
    %v4538 = vadd.f32 %v4193, %v4353
    %v4539 = vadd.f32 %v4194, %v4366
    %v4540 = vadd.f32 %v4195, %v4379
    %v4541 = vadd.f32 %v4196, %v4392
    %v4542 = vadd.f32 %v4197, %v4405
    %v4543 = vadd.f32 %v4198, %v4418
    %v4544 = vadd.f32 %v4199, %v4431
    %v4545 = vadd.f32 %v4200, %v4444
    %v4546 = vadd.f32 %v4201, %v4457
    %v4547 = vadd.f32 %v4202, %v4470
    %v4548 = vadd.f32 %v4203, %v4483
    %v4549 = vadd.f32 %v4204, %v4496
    %v4550 = vadd.f32 %v4205, %v4509
    %v4551 = vadd.f32 %v4206, %v4522
    %v4552 = vadd.f32 %v4207, %v4535
    %4553 = vrot.lane.b32.xlu0 %v65, 72
    %v4554 = vpop.permute.xlu0 %4553
    %4555 = vst [vmem:[#allocation1] ss:$4 sm:$0xff] %v58
    %s4556 = scalar_lea.vmem [#allocation1], 32
    %4557 = vst [vmem:[%s4556] ss:$4 sm:$0xff] %v59
    %v4558 = vld.sshfl [vmem:[#allocation1 + $0x18] sm:$0xff pattern:$0x73625140]
    %v4560 = vld.sshfl [vmem:[#allocation1 + $0x20] sm:$0xff pattern:$0x73625140]
    %v4562 = vld.sshfl [vmem:[#allocation1 + $0x28] sm:$0xff pattern:$0x73625140]
    %v4564 = vld.sshfl [vmem:[#allocation1 + $0x30] sm:$0xff pattern:$0x73625140]
    %v4566 = vld.sshfl [vmem:[#allocation1 + $0x38] sm:$0xff pattern:$0x73625140]
    %4568 = vst [vmem:[#allocation1] ss:$4 sm:$0xff] %v60
    %4569 = vst [vmem:[%s4556] ss:$4 sm:$0xff] %v61
    %v4570 = vld.sshfl [vmem:[#allocation1] sm:$0xff pattern:$0x73625140]
    %v4572 = vld.sshfl [vmem:[#allocation1 + $0x8] sm:$0xff pattern:$0x73625140]
    %v4574 = vld.sshfl [vmem:[#allocation1 + $0x10] sm:$0xff pattern:$0x73625140]
    %v4576 = vld.sshfl [vmem:[#allocation1 + $0x18] sm:$0xff pattern:$0x73625140]
    %v4578 = vld.sshfl [vmem:[#allocation1 + $0x20] sm:$0xff pattern:$0x73625140]
    %v4580 = vld.sshfl [vmem:[#allocation1 + $0x28] sm:$0xff pattern:$0x73625140]
    %v4582 = vld.sshfl [vmem:[#allocation1 + $0x30] sm:$0xff pattern:$0x73625140]
    %v4584 = vld.sshfl [vmem:[#allocation1 + $0x38] sm:$0xff pattern:$0x73625140]
    %4586 = vst [vmem:[#allocation1] ss:$4 sm:$0xff] %v62
    %v4587 = vld.sshfl [vmem:[#allocation1] sm:$0xff pattern:$0x73625140]
    %v4589 = vld.sshfl [vmem:[#allocation1 + $0x8] sm:$0xff pattern:$0x73625140]
    %v4591 = vld.sshfl [vmem:[#allocation1 + $0x10] sm:$0xff pattern:$0x73625140]
    %4593 = vrot.lane.b32.xlu0 %v4558, 126
    %v4594 = vpop.permute.xlu0 %4593
    %4595 = vrot.lane.b32.xlu0 %v4560, 126
    %v4596 = vpop.permute.xlu0 %4595
    %4597 = vrot.lane.b32.xlu0 %v4562, 126
    %v4598 = vpop.permute.xlu0 %4597
    %4599 = vrot.lane.b32.xlu0 %v4564, 126
    %v4600 = vpop.permute.xlu0 %4599
    %4601 = vrot.lane.b32.xlu0 %v4566, 126
    %v4602 = vpop.permute.xlu0 %4601
    %4603 = vrot.lane.b32.xlu0 %v4570, 126
    %v4604 = vpop.permute.xlu0 %4603
    %4605 = vrot.lane.b32.xlu0 %v4572, 126
    %v4606 = vpop.permute.xlu0 %4605
    %4607 = vrot.lane.b32.xlu0 %v4574, 126
    %v4608 = vpop.permute.xlu0 %4607
    %4609 = vrot.lane.b32.xlu0 %v4576, 126
    %v4610 = vpop.permute.xlu0 %4609
    %4611 = vrot.lane.b32.xlu0 %v4578, 126
    %v4612 = vpop.permute.xlu0 %4611
    %4613 = vrot.lane.b32.xlu0 %v4580, 126
    %v4614 = vpop.permute.xlu0 %4613
    %4615 = vrot.lane.b32.xlu0 %v4582, 126
    %v4616 = vpop.permute.xlu0 %4615
    %4617 = vrot.lane.b32.xlu0 %v4584, 126
    %v4618 = vpop.permute.xlu0 %4617
    %4619 = vrot.lane.b32.xlu0 %v4587, 126
    %v4620 = vpop.permute.xlu0 %4619
    %4621 = vrot.lane.b32.xlu0 %v4589, 126
    %v4622 = vpop.permute.xlu0 %4621
    %4623 = vrot.lane.b32.xlu0 %v4591, 126
    %v4624 = vpop.permute.xlu0 %4623
    %v4625 = vsel %vm721, %v4594, %v4596
    %v4626 = vsel %vm721, %v4596, %v4598
    %v4627 = vsel %vm721, %v4598, %v4600
    %v4628 = vsel %vm721, %v4600, %v4602
    %v4629 = vsel %vm721, %v4602, %v4604
    %v4630 = vsel %vm721, %v4604, %v4606
    %v4631 = vsel %vm721, %v4606, %v4608
    %v4632 = vsel %vm721, %v4608, %v4610
    %v4633 = vsel %vm721, %v4610, %v4612
    %v4634 = vsel %vm721, %v4612, %v4614
    %v4635 = vsel %vm721, %v4614, %v4616
    %v4636 = vsel %vm721, %v4616, %v4618
    %v4637 = vsel %vm721, %v4618, %v4620
    %v4638 = vsel %vm721, %v4620, %v4622
    %v4639 = vsel %vm721, %v4622, %v4624
    %v4641 = vsel %vm157, %v4554, 0
    %v4644 = vsel %vm161, %v4625, 0
    %v4647 = vsel %vm161, %v4626, 0
    %v4650 = vsel %vm161, %v4627, 0
    %v4653 = vsel %vm161, %v4628, 0
    %v4656 = vsel %vm161, %v4629, 0
    %v4659 = vsel %vm161, %v4630, 0
    %v4662 = vsel %vm161, %v4631, 0
    %v4665 = vsel %vm161, %v4632, 0
    %v4668 = vsel %vm161, %v4633, 0
    %v4671 = vsel %vm161, %v4634, 0
    %v4674 = vsel %vm161, %v4635, 0
    %v4677 = vsel %vm161, %v4636, 0
    %v4680 = vsel %vm161, %v4637, 0
    %v4683 = vsel %vm161, %v4638, 0
    %v4686 = vsel %vm161, %v4639, 0
    %4688 = vmatpush.bf16.msra.mxu0 0
    %4689 = vmatpush.bf16.msra.mxu0 0
    %4690 = vmatpush.bf16.msra.mxu0 0
    %4691 = vmatpush.bf16.msra.mxu0 0
    %4692 = vmatpush.bf16.msra.mxu0 0
    %4693 = vmatpush.bf16.msra.mxu0 0
    %4694 = vmatpush.bf16.msra.mxu0 0
    %4695 = vmatpush.bf16.msra.mxu0 %v4644
    %4696 = vmatmul.bf16.gmra.mxu0 %v4641
    %v4697 = vpop.f32.mrf.mxu0
    %v4698 = vadd.f32 0.0, %v4697
    %v4699 = vpop.f32.mrf.mxu0
    %4700 = vdwg.mxu0
    %4701 = vmatpush.bf16.msra.mxu0 0
    %4702 = vmatpush.bf16.msra.mxu0 0
    %4703 = vmatpush.bf16.msra.mxu0 0
    %4704 = vmatpush.bf16.msra.mxu0 0
    %4705 = vmatpush.bf16.msra.mxu0 0
    %4706 = vmatpush.bf16.msra.mxu0 0
    %4707 = vmatpush.bf16.msra.mxu0 0
    %4708 = vmatpush.bf16.msra.mxu0 %v4647
    %4709 = vmatmul.bf16.gmra.mxu0 %v4641
    %v4710 = vpop.f32.mrf.mxu0
    %v4711 = vadd.f32 0.0, %v4710
    %v4712 = vpop.f32.mrf.mxu0
    %4713 = vdwg.mxu0
    %4714 = vmatpush.bf16.msra.mxu0 0
    %4715 = vmatpush.bf16.msra.mxu0 0
    %4716 = vmatpush.bf16.msra.mxu0 0
    %4717 = vmatpush.bf16.msra.mxu0 0
    %4718 = vmatpush.bf16.msra.mxu0 0
    %4719 = vmatpush.bf16.msra.mxu0 0
    %4720 = vmatpush.bf16.msra.mxu0 0
    %4721 = vmatpush.bf16.msra.mxu0 %v4650
    %4722 = vmatmul.bf16.gmra.mxu0 %v4641
    %v4723 = vpop.f32.mrf.mxu0
    %v4724 = vadd.f32 0.0, %v4723
    %v4725 = vpop.f32.mrf.mxu0
    %4726 = vdwg.mxu0
    %4727 = vmatpush.bf16.msra.mxu0 0
    %4728 = vmatpush.bf16.msra.mxu0 0
    %4729 = vmatpush.bf16.msra.mxu0 0
    %4730 = vmatpush.bf16.msra.mxu0 0
    %4731 = vmatpush.bf16.msra.mxu0 0
    %4732 = vmatpush.bf16.msra.mxu0 0
    %4733 = vmatpush.bf16.msra.mxu0 0
    %4734 = vmatpush.bf16.msra.mxu0 %v4653
    %4735 = vmatmul.bf16.gmra.mxu0 %v4641
    %v4736 = vpop.f32.mrf.mxu0
    %v4737 = vadd.f32 0.0, %v4736
    %v4738 = vpop.f32.mrf.mxu0
    %4739 = vdwg.mxu0
    %4740 = vmatpush.bf16.msra.mxu0 0
    %4741 = vmatpush.bf16.msra.mxu0 0
    %4742 = vmatpush.bf16.msra.mxu0 0
    %4743 = vmatpush.bf16.msra.mxu0 0
    %4744 = vmatpush.bf16.msra.mxu0 0
    %4745 = vmatpush.bf16.msra.mxu0 0
    %4746 = vmatpush.bf16.msra.mxu0 0
    %4747 = vmatpush.bf16.msra.mxu0 %v4656
    %4748 = vmatmul.bf16.gmra.mxu0 %v4641
    %v4749 = vpop.f32.mrf.mxu0
    %v4750 = vadd.f32 0.0, %v4749
    %v4751 = vpop.f32.mrf.mxu0
    %4752 = vdwg.mxu0
    %4753 = vmatpush.bf16.msra.mxu0 0
    %4754 = vmatpush.bf16.msra.mxu0 0
    %4755 = vmatpush.bf16.msra.mxu0 0
    %4756 = vmatpush.bf16.msra.mxu0 0
    %4757 = vmatpush.bf16.msra.mxu0 0
    %4758 = vmatpush.bf16.msra.mxu0 0
    %4759 = vmatpush.bf16.msra.mxu0 0
    %4760 = vmatpush.bf16.msra.mxu0 %v4659
    %4761 = vmatmul.bf16.gmra.mxu0 %v4641
    %v4762 = vpop.f32.mrf.mxu0
    %v4763 = vadd.f32 0.0, %v4762
    %v4764 = vpop.f32.mrf.mxu0
    %4765 = vdwg.mxu0
    %4766 = vmatpush.bf16.msra.mxu0 0
    %4767 = vmatpush.bf16.msra.mxu0 0
    %4768 = vmatpush.bf16.msra.mxu0 0
    %4769 = vmatpush.bf16.msra.mxu0 0
    %4770 = vmatpush.bf16.msra.mxu0 0
    %4771 = vmatpush.bf16.msra.mxu0 0
    %4772 = vmatpush.bf16.msra.mxu0 0
    %4773 = vmatpush.bf16.msra.mxu0 %v4662
    %4774 = vmatmul.bf16.gmra.mxu0 %v4641
    %v4775 = vpop.f32.mrf.mxu0
    %v4776 = vadd.f32 0.0, %v4775
    %v4777 = vpop.f32.mrf.mxu0
    %4778 = vdwg.mxu0
    %4779 = vmatpush.bf16.msra.mxu0 0
    %4780 = vmatpush.bf16.msra.mxu0 0
    %4781 = vmatpush.bf16.msra.mxu0 0
    %4782 = vmatpush.bf16.msra.mxu0 0
    %4783 = vmatpush.bf16.msra.mxu0 0
    %4784 = vmatpush.bf16.msra.mxu0 0
    %4785 = vmatpush.bf16.msra.mxu0 0
    %4786 = vmatpush.bf16.msra.mxu0 %v4665
    %4787 = vmatmul.bf16.gmra.mxu0 %v4641
    %v4788 = vpop.f32.mrf.mxu0
    %v4789 = vadd.f32 0.0, %v4788
    %v4790 = vpop.f32.mrf.mxu0
    %4791 = vdwg.mxu0
    %4792 = vmatpush.bf16.msra.mxu0 0
    %4793 = vmatpush.bf16.msra.mxu0 0
    %4794 = vmatpush.bf16.msra.mxu0 0
    %4795 = vmatpush.bf16.msra.mxu0 0
    %4796 = vmatpush.bf16.msra.mxu0 0
    %4797 = vmatpush.bf16.msra.mxu0 0
    %4798 = vmatpush.bf16.msra.mxu0 0
    %4799 = vmatpush.bf16.msra.mxu0 %v4668
    %4800 = vmatmul.bf16.gmra.mxu0 %v4641
    %v4801 = vpop.f32.mrf.mxu0
    %v4802 = vadd.f32 0.0, %v4801
    %v4803 = vpop.f32.mrf.mxu0
    %4804 = vdwg.mxu0
    %4805 = vmatpush.bf16.msra.mxu0 0
    %4806 = vmatpush.bf16.msra.mxu0 0
    %4807 = vmatpush.bf16.msra.mxu0 0
    %4808 = vmatpush.bf16.msra.mxu0 0
    %4809 = vmatpush.bf16.msra.mxu0 0
    %4810 = vmatpush.bf16.msra.mxu0 0
    %4811 = vmatpush.bf16.msra.mxu0 0
    %4812 = vmatpush.bf16.msra.mxu0 %v4671
    %4813 = vmatmul.bf16.gmra.mxu0 %v4641
    %v4814 = vpop.f32.mrf.mxu0
    %v4815 = vadd.f32 0.0, %v4814
    %v4816 = vpop.f32.mrf.mxu0
    %4817 = vdwg.mxu0
    %4818 = vmatpush.bf16.msra.mxu0 0
    %4819 = vmatpush.bf16.msra.mxu0 0
    %4820 = vmatpush.bf16.msra.mxu0 0
    %4821 = vmatpush.bf16.msra.mxu0 0
    %4822 = vmatpush.bf16.msra.mxu0 0
    %4823 = vmatpush.bf16.msra.mxu0 0
    %4824 = vmatpush.bf16.msra.mxu0 0
    %4825 = vmatpush.bf16.msra.mxu0 %v4674
    %4826 = vmatmul.bf16.gmra.mxu0 %v4641
    %v4827 = vpop.f32.mrf.mxu0
    %v4828 = vadd.f32 0.0, %v4827
    %v4829 = vpop.f32.mrf.mxu0
    %4830 = vdwg.mxu0
    %4831 = vmatpush.bf16.msra.mxu0 0
    %4832 = vmatpush.bf16.msra.mxu0 0
    %4833 = vmatpush.bf16.msra.mxu0 0
    %4834 = vmatpush.bf16.msra.mxu0 0
    %4835 = vmatpush.bf16.msra.mxu0 0
    %4836 = vmatpush.bf16.msra.mxu0 0
    %4837 = vmatpush.bf16.msra.mxu0 0
    %4838 = vmatpush.bf16.msra.mxu0 %v4677
    %4839 = vmatmul.bf16.gmra.mxu0 %v4641
    %v4840 = vpop.f32.mrf.mxu0
    %v4841 = vadd.f32 0.0, %v4840
    %v4842 = vpop.f32.mrf.mxu0
    %4843 = vdwg.mxu0
    %4844 = vmatpush.bf16.msra.mxu0 0
    %4845 = vmatpush.bf16.msra.mxu0 0
    %4846 = vmatpush.bf16.msra.mxu0 0
    %4847 = vmatpush.bf16.msra.mxu0 0
    %4848 = vmatpush.bf16.msra.mxu0 0
    %4849 = vmatpush.bf16.msra.mxu0 0
    %4850 = vmatpush.bf16.msra.mxu0 0
    %4851 = vmatpush.bf16.msra.mxu0 %v4680
    %4852 = vmatmul.bf16.gmra.mxu0 %v4641
    %v4853 = vpop.f32.mrf.mxu0
    %v4854 = vadd.f32 0.0, %v4853
    %v4855 = vpop.f32.mrf.mxu0
    %4856 = vdwg.mxu0
    %4857 = vmatpush.bf16.msra.mxu0 0
    %4858 = vmatpush.bf16.msra.mxu0 0
    %4859 = vmatpush.bf16.msra.mxu0 0
    %4860 = vmatpush.bf16.msra.mxu0 0
    %4861 = vmatpush.bf16.msra.mxu0 0
    %4862 = vmatpush.bf16.msra.mxu0 0
    %4863 = vmatpush.bf16.msra.mxu0 0
    %4864 = vmatpush.bf16.msra.mxu0 %v4683
    %4865 = vmatmul.bf16.gmra.mxu0 %v4641
    %v4866 = vpop.f32.mrf.mxu0
    %v4867 = vadd.f32 0.0, %v4866
    %v4868 = vpop.f32.mrf.mxu0
    %4869 = vdwg.mxu0
    %4870 = vmatpush.bf16.msra.mxu0 0
    %4871 = vmatpush.bf16.msra.mxu0 0
    %4872 = vmatpush.bf16.msra.mxu0 0
    %4873 = vmatpush.bf16.msra.mxu0 0
    %4874 = vmatpush.bf16.msra.mxu0 0
    %4875 = vmatpush.bf16.msra.mxu0 0
    %4876 = vmatpush.bf16.msra.mxu0 0
    %4877 = vmatpush.bf16.msra.mxu0 %v4686
    %4878 = vmatmul.bf16.gmra.mxu0 %v4641
    %v4879 = vpop.f32.mrf.mxu0
    %v4880 = vadd.f32 0.0, %v4879
    %v4881 = vpop.f32.mrf.mxu0
    %4882 = vdwg.mxu0
    %v4883 = vadd.f32 %v4538, %v4698
    %v4884 = vadd.f32 %v4539, %v4711
    %v4885 = vadd.f32 %v4540, %v4724
    %v4886 = vadd.f32 %v4541, %v4737
    %v4887 = vadd.f32 %v4542, %v4750
    %v4888 = vadd.f32 %v4543, %v4763
    %v4889 = vadd.f32 %v4544, %v4776
    %v4890 = vadd.f32 %v4545, %v4789
    %v4891 = vadd.f32 %v4546, %v4802
    %v4892 = vadd.f32 %v4547, %v4815
    %v4893 = vadd.f32 %v4548, %v4828
    %v4894 = vadd.f32 %v4549, %v4841
    %v4895 = vadd.f32 %v4550, %v4854
    %v4896 = vadd.f32 %v4551, %v4867
    %v4897 = vadd.f32 %v4552, %v4880
    %4898 = vrot.lane.b32.xlu0 %v65, 68
    %v4899 = vpop.permute.xlu0 %4898
    %4900 = vst [vmem:[#allocation1] ss:$4 sm:$0xff] %v58
    %s4901 = scalar_lea.vmem [#allocation1], 32
    %4902 = vst [vmem:[%s4901] ss:$4 sm:$0xff] %v59
    %v4903 = vld.sshfl [vmem:[#allocation1 + $0x18] sm:$0xff pattern:$0x73625140]
    %v4905 = vld.sshfl [vmem:[#allocation1 + $0x20] sm:$0xff pattern:$0x73625140]
    %v4907 = vld.sshfl [vmem:[#allocation1 + $0x28] sm:$0xff pattern:$0x73625140]
    %v4909 = vld.sshfl [vmem:[#allocation1 + $0x30] sm:$0xff pattern:$0x73625140]
    %v4911 = vld.sshfl [vmem:[#allocation1 + $0x38] sm:$0xff pattern:$0x73625140]
    %4913 = vst [vmem:[#allocation1] ss:$4 sm:$0xff] %v60
    %4914 = vst [vmem:[%s4901] ss:$4 sm:$0xff] %v61
    %v4915 = vld.sshfl [vmem:[#allocation1] sm:$0xff pattern:$0x73625140]
    %v4917 = vld.sshfl [vmem:[#allocation1 + $0x8] sm:$0xff pattern:$0x73625140]
    %v4919 = vld.sshfl [vmem:[#allocation1 + $0x10] sm:$0xff pattern:$0x73625140]
    %v4921 = vld.sshfl [vmem:[#allocation1 + $0x18] sm:$0xff pattern:$0x73625140]
    %v4923 = vld.sshfl [vmem:[#allocation1 + $0x20] sm:$0xff pattern:$0x73625140]
    %v4925 = vld.sshfl [vmem:[#allocation1 + $0x28] sm:$0xff pattern:$0x73625140]
    %v4927 = vld.sshfl [vmem:[#allocation1 + $0x30] sm:$0xff pattern:$0x73625140]
    %v4929 = vld.sshfl [vmem:[#allocation1 + $0x38] sm:$0xff pattern:$0x73625140]
    %4931 = vst [vmem:[#allocation1] ss:$4 sm:$0xff] %v62
    %v4932 = vld.sshfl [vmem:[#allocation1] sm:$0xff pattern:$0x73625140]
    %v4934 = vld.sshfl [vmem:[#allocation1 + $0x8] sm:$0xff pattern:$0x73625140]
    %v4936 = vld.sshfl [vmem:[#allocation1 + $0x10] sm:$0xff pattern:$0x73625140]
    %4938 = vrot.lane.b32.xlu0 %v4903, 125
    %v4939 = vpop.permute.xlu0 %4938
    %4940 = vrot.lane.b32.xlu0 %v4905, 125
    %v4941 = vpop.permute.xlu0 %4940
    %4942 = vrot.lane.b32.xlu0 %v4907, 125
    %v4943 = vpop.permute.xlu0 %4942
    %4944 = vrot.lane.b32.xlu0 %v4909, 125
    %v4945 = vpop.permute.xlu0 %4944
    %4946 = vrot.lane.b32.xlu0 %v4911, 125
    %v4947 = vpop.permute.xlu0 %4946
    %4948 = vrot.lane.b32.xlu0 %v4915, 125
    %v4949 = vpop.permute.xlu0 %4948
    %4950 = vrot.lane.b32.xlu0 %v4917, 125
    %v4951 = vpop.permute.xlu0 %4950
    %4952 = vrot.lane.b32.xlu0 %v4919, 125
    %v4953 = vpop.permute.xlu0 %4952
    %4954 = vrot.lane.b32.xlu0 %v4921, 125
    %v4955 = vpop.permute.xlu0 %4954
    %4956 = vrot.lane.b32.xlu0 %v4923, 125
    %v4957 = vpop.permute.xlu0 %4956
    %4958 = vrot.lane.b32.xlu0 %v4925, 125
    %v4959 = vpop.permute.xlu0 %4958
    %4960 = vrot.lane.b32.xlu0 %v4927, 125
    %v4961 = vpop.permute.xlu0 %4960
    %4962 = vrot.lane.b32.xlu0 %v4929, 125
    %v4963 = vpop.permute.xlu0 %4962
    %4964 = vrot.lane.b32.xlu0 %v4932, 125
    %v4965 = vpop.permute.xlu0 %4964
    %4966 = vrot.lane.b32.xlu0 %v4934, 125
    %v4967 = vpop.permute.xlu0 %4966
    %4968 = vrot.lane.b32.xlu0 %v4936, 125
    %v4969 = vpop.permute.xlu0 %4968
    %v4970 = vsel %vm1066, %v4939, %v4941
    %v4971 = vsel %vm1066, %v4941, %v4943
    %v4972 = vsel %vm1066, %v4943, %v4945
    %v4973 = vsel %vm1066, %v4945, %v4947
    %v4974 = vsel %vm1066, %v4947, %v4949
    %v4975 = vsel %vm1066, %v4949, %v4951
    %v4976 = vsel %vm1066, %v4951, %v4953
    %v4977 = vsel %vm1066, %v4953, %v4955
    %v4978 = vsel %vm1066, %v4955, %v4957
    %v4979 = vsel %vm1066, %v4957, %v4959
    %v4980 = vsel %vm1066, %v4959, %v4961
    %v4981 = vsel %vm1066, %v4961, %v4963
    %v4982 = vsel %vm1066, %v4963, %v4965
    %v4983 = vsel %vm1066, %v4965, %v4967
    %v4984 = vsel %vm1066, %v4967, %v4969
    %v4986 = vsel %vm157, %v4899, 0
    %v4989 = vsel %vm161, %v4970, 0
    %v4992 = vsel %vm161, %v4971, 0
    %v4995 = vsel %vm161, %v4972, 0
    %v4998 = vsel %vm161, %v4973, 0
    %v5001 = vsel %vm161, %v4974, 0
    %v5004 = vsel %vm161, %v4975, 0
    %v5007 = vsel %vm161, %v4976, 0
    %v5010 = vsel %vm161, %v4977, 0
    %v5013 = vsel %vm161, %v4978, 0
    %v5016 = vsel %vm161, %v4979, 0
    %v5019 = vsel %vm161, %v4980, 0
    %v5022 = vsel %vm161, %v4981, 0
    %v5025 = vsel %vm161, %v4982, 0
    %v5028 = vsel %vm161, %v4983, 0
    %v5031 = vsel %vm161, %v4984, 0
    %5033 = vmatpush.bf16.msra.mxu0 0
    %5034 = vmatpush.bf16.msra.mxu0 0
    %5035 = vmatpush.bf16.msra.mxu0 0
    %5036 = vmatpush.bf16.msra.mxu0 0
    %5037 = vmatpush.bf16.msra.mxu0 0
    %5038 = vmatpush.bf16.msra.mxu0 0
    %5039 = vmatpush.bf16.msra.mxu0 0
    %5040 = vmatpush.bf16.msra.mxu0 %v4989
    %5041 = vmatmul.bf16.gmra.mxu0 %v4986
    %v5042 = vpop.f32.mrf.mxu0
    %v5043 = vadd.f32 0.0, %v5042
    %v5044 = vpop.f32.mrf.mxu0
    %5045 = vdwg.mxu0
    %5046 = vmatpush.bf16.msra.mxu0 0
    %5047 = vmatpush.bf16.msra.mxu0 0
    %5048 = vmatpush.bf16.msra.mxu0 0
    %5049 = vmatpush.bf16.msra.mxu0 0
    %5050 = vmatpush.bf16.msra.mxu0 0
    %5051 = vmatpush.bf16.msra.mxu0 0
    %5052 = vmatpush.bf16.msra.mxu0 0
    %5053 = vmatpush.bf16.msra.mxu0 %v4992
    %5054 = vmatmul.bf16.gmra.mxu0 %v4986
    %v5055 = vpop.f32.mrf.mxu0
    %v5056 = vadd.f32 0.0, %v5055
    %v5057 = vpop.f32.mrf.mxu0
    %5058 = vdwg.mxu0
    %5059 = vmatpush.bf16.msra.mxu0 0
    %5060 = vmatpush.bf16.msra.mxu0 0
    %5061 = vmatpush.bf16.msra.mxu0 0
    %5062 = vmatpush.bf16.msra.mxu0 0
    %5063 = vmatpush.bf16.msra.mxu0 0
    %5064 = vmatpush.bf16.msra.mxu0 0
    %5065 = vmatpush.bf16.msra.mxu0 0
    %5066 = vmatpush.bf16.msra.mxu0 %v4995
    %5067 = vmatmul.bf16.gmra.mxu0 %v4986
    %v5068 = vpop.f32.mrf.mxu0
    %v5069 = vadd.f32 0.0, %v5068
    %v5070 = vpop.f32.mrf.mxu0
    %5071 = vdwg.mxu0
    %5072 = vmatpush.bf16.msra.mxu0 0
    %5073 = vmatpush.bf16.msra.mxu0 0
    %5074 = vmatpush.bf16.msra.mxu0 0
    %5075 = vmatpush.bf16.msra.mxu0 0
    %5076 = vmatpush.bf16.msra.mxu0 0
    %5077 = vmatpush.bf16.msra.mxu0 0
    %5078 = vmatpush.bf16.msra.mxu0 0
    %5079 = vmatpush.bf16.msra.mxu0 %v4998
    %5080 = vmatmul.bf16.gmra.mxu0 %v4986
    %v5081 = vpop.f32.mrf.mxu0
    %v5082 = vadd.f32 0.0, %v5081
    %v5083 = vpop.f32.mrf.mxu0
    %5084 = vdwg.mxu0
    %5085 = vmatpush.bf16.msra.mxu0 0
    %5086 = vmatpush.bf16.msra.mxu0 0
    %5087 = vmatpush.bf16.msra.mxu0 0
    %5088 = vmatpush.bf16.msra.mxu0 0
    %5089 = vmatpush.bf16.msra.mxu0 0
    %5090 = vmatpush.bf16.msra.mxu0 0
    %5091 = vmatpush.bf16.msra.mxu0 0
    %5092 = vmatpush.bf16.msra.mxu0 %v5001
    %5093 = vmatmul.bf16.gmra.mxu0 %v4986
    %v5094 = vpop.f32.mrf.mxu0
    %v5095 = vadd.f32 0.0, %v5094
    %v5096 = vpop.f32.mrf.mxu0
    %5097 = vdwg.mxu0
    %5098 = vmatpush.bf16.msra.mxu0 0
    %5099 = vmatpush.bf16.msra.mxu0 0
    %5100 = vmatpush.bf16.msra.mxu0 0
    %5101 = vmatpush.bf16.msra.mxu0 0
    %5102 = vmatpush.bf16.msra.mxu0 0
    %5103 = vmatpush.bf16.msra.mxu0 0
    %5104 = vmatpush.bf16.msra.mxu0 0
    %5105 = vmatpush.bf16.msra.mxu0 %v5004
    %5106 = vmatmul.bf16.gmra.mxu0 %v4986
    %v5107 = vpop.f32.mrf.mxu0
    %v5108 = vadd.f32 0.0, %v5107
    %v5109 = vpop.f32.mrf.mxu0
    %5110 = vdwg.mxu0
    %5111 = vmatpush.bf16.msra.mxu0 0
    %5112 = vmatpush.bf16.msra.mxu0 0
    %5113 = vmatpush.bf16.msra.mxu0 0
    %5114 = vmatpush.bf16.msra.mxu0 0
    %5115 = vmatpush.bf16.msra.mxu0 0
    %5116 = vmatpush.bf16.msra.mxu0 0
    %5117 = vmatpush.bf16.msra.mxu0 0
    %5118 = vmatpush.bf16.msra.mxu0 %v5007
    %5119 = vmatmul.bf16.gmra.mxu0 %v4986
    %v5120 = vpop.f32.mrf.mxu0
    %v5121 = vadd.f32 0.0, %v5120
    %v5122 = vpop.f32.mrf.mxu0
    %5123 = vdwg.mxu0
    %5124 = vmatpush.bf16.msra.mxu0 0
    %5125 = vmatpush.bf16.msra.mxu0 0
    %5126 = vmatpush.bf16.msra.mxu0 0
    %5127 = vmatpush.bf16.msra.mxu0 0
    %5128 = vmatpush.bf16.msra.mxu0 0
    %5129 = vmatpush.bf16.msra.mxu0 0
    %5130 = vmatpush.bf16.msra.mxu0 0
    %5131 = vmatpush.bf16.msra.mxu0 %v5010
    %5132 = vmatmul.bf16.gmra.mxu0 %v4986
    %v5133 = vpop.f32.mrf.mxu0
    %v5134 = vadd.f32 0.0, %v5133
    %v5135 = vpop.f32.mrf.mxu0
    %5136 = vdwg.mxu0
    %5137 = vmatpush.bf16.msra.mxu0 0
    %5138 = vmatpush.bf16.msra.mxu0 0
    %5139 = vmatpush.bf16.msra.mxu0 0
    %5140 = vmatpush.bf16.msra.mxu0 0
    %5141 = vmatpush.bf16.msra.mxu0 0
    %5142 = vmatpush.bf16.msra.mxu0 0
    %5143 = vmatpush.bf16.msra.mxu0 0
    %5144 = vmatpush.bf16.msra.mxu0 %v5013
    %5145 = vmatmul.bf16.gmra.mxu0 %v4986
    %v5146 = vpop.f32.mrf.mxu0
    %v5147 = vadd.f32 0.0, %v5146
    %v5148 = vpop.f32.mrf.mxu0
    %5149 = vdwg.mxu0
    %5150 = vmatpush.bf16.msra.mxu0 0
    %5151 = vmatpush.bf16.msra.mxu0 0
    %5152 = vmatpush.bf16.msra.mxu0 0
    %5153 = vmatpush.bf16.msra.mxu0 0
    %5154 = vmatpush.bf16.msra.mxu0 0
    %5155 = vmatpush.bf16.msra.mxu0 0
    %5156 = vmatpush.bf16.msra.mxu0 0
    %5157 = vmatpush.bf16.msra.mxu0 %v5016
    %5158 = vmatmul.bf16.gmra.mxu0 %v4986
    %v5159 = vpop.f32.mrf.mxu0
    %v5160 = vadd.f32 0.0, %v5159
    %v5161 = vpop.f32.mrf.mxu0
    %5162 = vdwg.mxu0
    %5163 = vmatpush.bf16.msra.mxu0 0
    %5164 = vmatpush.bf16.msra.mxu0 0
    %5165 = vmatpush.bf16.msra.mxu0 0
    %5166 = vmatpush.bf16.msra.mxu0 0
    %5167 = vmatpush.bf16.msra.mxu0 0
    %5168 = vmatpush.bf16.msra.mxu0 0
    %5169 = vmatpush.bf16.msra.mxu0 0
    %5170 = vmatpush.bf16.msra.mxu0 %v5019
    %5171 = vmatmul.bf16.gmra.mxu0 %v4986
    %v5172 = vpop.f32.mrf.mxu0
    %v5173 = vadd.f32 0.0, %v5172
    %v5174 = vpop.f32.mrf.mxu0
    %5175 = vdwg.mxu0
    %5176 = vmatpush.bf16.msra.mxu0 0
    %5177 = vmatpush.bf16.msra.mxu0 0
    %5178 = vmatpush.bf16.msra.mxu0 0
    %5179 = vmatpush.bf16.msra.mxu0 0
    %5180 = vmatpush.bf16.msra.mxu0 0
    %5181 = vmatpush.bf16.msra.mxu0 0
    %5182 = vmatpush.bf16.msra.mxu0 0
    %5183 = vmatpush.bf16.msra.mxu0 %v5022
    %5184 = vmatmul.bf16.gmra.mxu0 %v4986
    %v5185 = vpop.f32.mrf.mxu0
    %v5186 = vadd.f32 0.0, %v5185
    %v5187 = vpop.f32.mrf.mxu0
    %5188 = vdwg.mxu0
    %5189 = vmatpush.bf16.msra.mxu0 0
    %5190 = vmatpush.bf16.msra.mxu0 0
    %5191 = vmatpush.bf16.msra.mxu0 0
    %5192 = vmatpush.bf16.msra.mxu0 0
    %5193 = vmatpush.bf16.msra.mxu0 0
    %5194 = vmatpush.bf16.msra.mxu0 0
    %5195 = vmatpush.bf16.msra.mxu0 0
    %5196 = vmatpush.bf16.msra.mxu0 %v5025
    %5197 = vmatmul.bf16.gmra.mxu0 %v4986
    %v5198 = vpop.f32.mrf.mxu0
    %v5199 = vadd.f32 0.0, %v5198
    %v5200 = vpop.f32.mrf.mxu0
    %5201 = vdwg.mxu0
    %5202 = vmatpush.bf16.msra.mxu0 0
    %5203 = vmatpush.bf16.msra.mxu0 0
    %5204 = vmatpush.bf16.msra.mxu0 0
    %5205 = vmatpush.bf16.msra.mxu0 0
    %5206 = vmatpush.bf16.msra.mxu0 0
    %5207 = vmatpush.bf16.msra.mxu0 0
    %5208 = vmatpush.bf16.msra.mxu0 0
    %5209 = vmatpush.bf16.msra.mxu0 %v5028
    %5210 = vmatmul.bf16.gmra.mxu0 %v4986
    %v5211 = vpop.f32.mrf.mxu0
    %v5212 = vadd.f32 0.0, %v5211
    %v5213 = vpop.f32.mrf.mxu0
    %5214 = vdwg.mxu0
    %5215 = vmatpush.bf16.msra.mxu0 0
    %5216 = vmatpush.bf16.msra.mxu0 0
    %5217 = vmatpush.bf16.msra.mxu0 0
    %5218 = vmatpush.bf16.msra.mxu0 0
    %5219 = vmatpush.bf16.msra.mxu0 0
    %5220 = vmatpush.bf16.msra.mxu0 0
    %5221 = vmatpush.bf16.msra.mxu0 0
    %5222 = vmatpush.bf16.msra.mxu0 %v5031
    %5223 = vmatmul.bf16.gmra.mxu0 %v4986
    %v5224 = vpop.f32.mrf.mxu0
    %v5225 = vadd.f32 0.0, %v5224
    %v5226 = vpop.f32.mrf.mxu0
    %5227 = vdwg.mxu0
    %v5228 = vadd.f32 %v4883, %v5043
    %v5229 = vadd.f32 %v4884, %v5056
    %v5230 = vadd.f32 %v4885, %v5069
    %v5231 = vadd.f32 %v4886, %v5082
    %v5232 = vadd.f32 %v4887, %v5095
    %v5233 = vadd.f32 %v4888, %v5108
    %v5234 = vadd.f32 %v4889, %v5121
    %v5235 = vadd.f32 %v4890, %v5134
    %v5236 = vadd.f32 %v4891, %v5147
    %v5237 = vadd.f32 %v4892, %v5160
    %v5238 = vadd.f32 %v4893, %v5173
    %v5239 = vadd.f32 %v4894, %v5186
    %v5240 = vadd.f32 %v4895, %v5199
    %v5241 = vadd.f32 %v4896, %v5212
    %v5242 = vadd.f32 %v4897, %v5225
    %v5245 = vperm.slane %v56, 0
    %v5246 = vperm.slane %v56, 1
    %v5247 = vperm.slane %v56, 2
    %v5248 = vperm.slane %v56, 3
    %v5249 = vperm.slane %v56, 4
    %v5250 = vperm.slane %v56, 5
    %v5251 = vperm.slane %v56, 6
    %v5252 = vperm.slane %v56, 7
    %v5253 = vperm.slane %v57, 0
    %v5254 = vperm.slane %v57, 1
    %v5255 = vperm.slane %v57, 2
    %v5256 = vperm.slane %v57, 3
    %v5257 = vperm.slane %v57, 4
    %v5258 = vperm.slane %v57, 5
    %v5259 = vperm.slane %v57, 6
    %v5275 = vmul.f32 %v5228, %v5245
    %v5276 = vmul.f32 %v5229, %v5246
    %v5277 = vmul.f32 %v5230, %v5247
    %v5278 = vmul.f32 %v5231, %v5248
    %v5279 = vmul.f32 %v5232, %v5249
    %v5280 = vmul.f32 %v5233, %v5250
    %v5281 = vmul.f32 %v5234, %v5251
    %v5282 = vmul.f32 %v5235, %v5252
    %v5283 = vmul.f32 %v5236, %v5253
    %v5284 = vmul.f32 %v5237, %v5254
    %v5285 = vmul.f32 %v5238, %v5255
    %v5286 = vmul.f32 %v5239, %v5256
    %v5287 = vmul.f32 %v5240, %v5257
    %v5288 = vmul.f32 %v5241, %v5258
    %v5289 = vmul.f32 %v5242, %v5259
    %v5290 = vadd.f32 %v5275, %v5276
    %v5291 = vadd.f32 %v5290, %v5277
    %v5292 = vadd.f32 %v5291, %v5278
    %v5293 = vadd.f32 %v5292, %v5279
    %v5294 = vadd.f32 %v5293, %v5280
    %v5295 = vadd.f32 %v5294, %v5281
    %v5296 = vadd.f32 %v5295, %v5282
    %v5297 = vadd.f32 %v5296, %v5283
    %v5298 = vadd.f32 %v5297, %v5284
    %v5299 = vadd.f32 %v5298, %v5285
    %v5300 = vadd.f32 %v5299, %v5286
    %v5301 = vadd.f32 %v5300, %v5287
    %v5302 = vadd.f32 %v5301, %v5288
    %v5303 = vadd.f32 %v5302, %v5289
    %5304 = vadd.xlane.f32.xlu0 %v5303
    %v5305 = vpop.xlane.xlu0 %5304
    %v5306 = vmul.f32 %v5305, 0.0044444446
    %v5307 = vsub.f32 %v5228, %v5306
    %v5308 = vsub.f32 %v5229, %v5306
    %v5309 = vsub.f32 %v5230, %v5306
    %v5310 = vsub.f32 %v5231, %v5306
    %v5311 = vsub.f32 %v5232, %v5306
    %v5312 = vsub.f32 %v5233, %v5306
    %v5313 = vsub.f32 %v5234, %v5306
    %v5314 = vsub.f32 %v5235, %v5306
    %v5315 = vsub.f32 %v5236, %v5306
    %v5316 = vsub.f32 %v5237, %v5306
    %v5317 = vsub.f32 %v5238, %v5306
    %v5318 = vsub.f32 %v5239, %v5306
    %v5319 = vsub.f32 %v5240, %v5306
    %v5320 = vsub.f32 %v5241, %v5306
    %v5321 = vsub.f32 %v5242, %v5306
    %v5322 = vmul.f32 %v5307, %v5245
    %v5323 = vmul.f32 %v5308, %v5246
    %v5324 = vmul.f32 %v5309, %v5247
    %v5325 = vmul.f32 %v5310, %v5248
    %v5326 = vmul.f32 %v5311, %v5249
    %v5327 = vmul.f32 %v5312, %v5250
    %v5328 = vmul.f32 %v5313, %v5251
    %v5329 = vmul.f32 %v5314, %v5252
    %v5330 = vmul.f32 %v5315, %v5253
    %v5331 = vmul.f32 %v5316, %v5254
    %v5332 = vmul.f32 %v5317, %v5255
    %v5333 = vmul.f32 %v5318, %v5256
    %v5334 = vmul.f32 %v5319, %v5257
    %v5335 = vmul.f32 %v5320, %v5258
    %v5336 = vmul.f32 %v5321, %v5259
    %v5337 = vmul.f32 %v5322, %v5322
    %v5338 = vmul.f32 %v5323, %v5323
    %v5339 = vmul.f32 %v5324, %v5324
    %v5340 = vmul.f32 %v5325, %v5325
    %v5341 = vmul.f32 %v5326, %v5326
    %v5342 = vmul.f32 %v5327, %v5327
    %v5343 = vmul.f32 %v5328, %v5328
    %v5344 = vmul.f32 %v5329, %v5329
    %v5345 = vmul.f32 %v5330, %v5330
    %v5346 = vmul.f32 %v5331, %v5331
    %v5347 = vmul.f32 %v5332, %v5332
    %v5348 = vmul.f32 %v5333, %v5333
    %v5349 = vmul.f32 %v5334, %v5334
    %v5350 = vmul.f32 %v5335, %v5335
    %v5351 = vmul.f32 %v5336, %v5336
    %v5352 = vadd.f32 %v5337, %v5338
    %v5353 = vadd.f32 %v5352, %v5339
    %v5354 = vadd.f32 %v5353, %v5340
    %v5355 = vadd.f32 %v5354, %v5341
    %v5356 = vadd.f32 %v5355, %v5342
    %v5357 = vadd.f32 %v5356, %v5343
    %v5358 = vadd.f32 %v5357, %v5344
    %v5359 = vadd.f32 %v5358, %v5345
    %v5360 = vadd.f32 %v5359, %v5346
    %v5361 = vadd.f32 %v5360, %v5347
    %v5362 = vadd.f32 %v5361, %v5348
    %v5363 = vadd.f32 %v5362, %v5349
    %v5364 = vadd.f32 %v5363, %v5350
    %v5365 = vadd.f32 %v5364, %v5351
    %5366 = vadd.xlane.f32.xlu0 %v5365
    %v5367 = vpop.xlane.xlu0 %5366
    %v5368 = vmul.f32 %v5367, 0.0044444446
    %v5369 = vadd.f32 %v5368, 1e-05
    %v5370 = vrsqrt.pop %v5369
    %v5371 = vmul.f32 %v5370, %v5369
    %v5372 = vmul.f32 %v5371, %v5370
    %v5373 = vmul.f32 0.5, %v5372
    %v5374 = vsub.f32 1.5, %v5373
    %v5375 = vmul.f32 %v5370, %v5374
    %vm5376 = vweird.f32 %v5369
    %vm5377 = vweird.f32 %v5370
    %vm5378 = vmor %vm5376, %vm5377
    %v5379 = vsel %vm5378, %v5370, %v5375
    %v5380 = vmul.f32 %v5322, %v5379
    %v5381 = vmul.f32 %v5323, %v5379
    %v5382 = vmul.f32 %v5324, %v5379
    %v5383 = vmul.f32 %v5325, %v5379
    %v5384 = vmul.f32 %v5326, %v5379
    %v5385 = vmul.f32 %v5327, %v5379
    %v5386 = vmul.f32 %v5328, %v5379
    %v5387 = vmul.f32 %v5329, %v5379
    %v5388 = vmul.f32 %v5330, %v5379
    %v5389 = vmul.f32 %v5331, %v5379
    %v5390 = vmul.f32 %v5332, %v5379
    %v5391 = vmul.f32 %v5333, %v5379
    %v5392 = vmul.f32 %v5334, %v5379
    %v5393 = vmul.f32 %v5335, %v5379
    %v5394 = vmul.f32 %v5336, %v5379
    %vm5395 = vcmp.gt.f32.partialorder %v5380, 0.0
    %vm5396 = vcmp.gt.f32.partialorder %v5381, 0.0
    %vm5397 = vcmp.gt.f32.partialorder %v5382, 0.0
    %vm5398 = vcmp.gt.f32.partialorder %v5383, 0.0
    %vm5399 = vcmp.gt.f32.partialorder %v5384, 0.0
    %vm5400 = vcmp.gt.f32.partialorder %v5385, 0.0
    %vm5401 = vcmp.gt.f32.partialorder %v5386, 0.0
    %vm5402 = vcmp.gt.f32.partialorder %v5387, 0.0
    %vm5403 = vcmp.gt.f32.partialorder %v5388, 0.0
    %vm5404 = vcmp.gt.f32.partialorder %v5389, 0.0
    %vm5405 = vcmp.gt.f32.partialorder %v5390, 0.0
    %vm5406 = vcmp.gt.f32.partialorder %v5391, 0.0
    %vm5407 = vcmp.gt.f32.partialorder %v5392, 0.0
    %vm5408 = vcmp.gt.f32.partialorder %v5393, 0.0
    %vm5409 = vcmp.gt.f32.partialorder %v5394, 0.0
    %v5410 = vmul.f32 %v5380, 0.2
    %v5411 = vmul.f32 %v5381, 0.2
    %v5412 = vmul.f32 %v5382, 0.2
    %v5413 = vmul.f32 %v5383, 0.2
    %v5414 = vmul.f32 %v5384, 0.2
    %v5415 = vmul.f32 %v5385, 0.2
    %v5416 = vmul.f32 %v5386, 0.2
    %v5417 = vmul.f32 %v5387, 0.2
    %v5418 = vmul.f32 %v5388, 0.2
    %v5419 = vmul.f32 %v5389, 0.2
    %v5420 = vmul.f32 %v5390, 0.2
    %v5421 = vmul.f32 %v5391, 0.2
    %v5422 = vmul.f32 %v5392, 0.2
    %v5423 = vmul.f32 %v5393, 0.2
    %v5424 = vmul.f32 %v5394, 0.2
    %v5425 = vsel %vm5395, %v5380, %v5410
    %v5426 = vsel %vm5396, %v5381, %v5411
    %v5427 = vsel %vm5397, %v5382, %v5412
    %v5428 = vsel %vm5398, %v5383, %v5413
    %v5429 = vsel %vm5399, %v5384, %v5414
    %v5430 = vsel %vm5400, %v5385, %v5415
    %v5431 = vsel %vm5401, %v5386, %v5416
    %v5432 = vsel %vm5402, %v5387, %v5417
    %v5433 = vsel %vm5403, %v5388, %v5418
    %v5434 = vsel %vm5404, %v5389, %v5419
    %v5435 = vsel %vm5405, %v5390, %v5420
    %v5436 = vsel %vm5406, %v5391, %v5421
    %v5437 = vsel %vm5407, %v5392, %v5422
    %v5438 = vsel %vm5408, %v5393, %v5423
    %v5439 = vsel %vm5409, %v5394, %v5424
    %v5440 = vpack.c.bf16 %v5426, %v5425
    %v5441 = vpack.c.bf16 %v5428, %v5427
    %v5442 = vpack.c.bf16 %v5430, %v5429
    %v5443 = vpack.c.bf16 %v5432, %v5431
    %v5444 = vpack.c.bf16 %v5434, %v5433
    %v5445 = vpack.c.bf16 %v5436, %v5435
    %v5446 = vpack.c.bf16 %v5438, %v5437
    %v5447 = vpack.c.bf16 %v5439, %v5439
    %v5456 = vunpack.c.l.b16 %v5440
    %v5457 = vunpack.c.h.b16 %v5440
    %v5458 = vunpack.c.l.b16 %v5441
    %v5459 = vunpack.c.h.b16 %v5441
    %v5460 = vunpack.c.l.b16 %v5442
    %v5461 = vunpack.c.h.b16 %v5442
    %v5462 = vunpack.c.l.b16 %v5443
    %v5463 = vunpack.c.h.b16 %v5443
    %v5464 = vunpack.c.l.b16 %v5444
    %v5465 = vunpack.c.h.b16 %v5444
    %v5466 = vunpack.c.l.b16 %v5445
    %v5467 = vunpack.c.h.b16 %v5445
    %v5468 = vunpack.c.l.b16 %v5446
    %v5469 = vunpack.c.h.b16 %v5446
    %v5470 = vunpack.c.l.b16 %v5447
    %v5471 = vpack.c.b16 %v5456, %v5456
    %v5472 = vpack.c.b16 %v5457, %v5457
    %v5473 = vpack.c.b16 %v5458, %v5458
    %v5474 = vpack.c.b16 %v5459, %v5459
    %v5475 = vpack.c.b16 %v5460, %v5460
    %v5476 = vpack.c.b16 %v5461, %v5461
    %v5477 = vpack.c.b16 %v5462, %v5462
    %v5478 = vpack.c.b16 %v5463, %v5463
    %v5479 = vpack.c.b16 %v5464, %v5464
    %v5480 = vpack.c.b16 %v5465, %v5465
    %v5481 = vpack.c.b16 %v5466, %v5466
    %v5482 = vpack.c.b16 %v5467, %v5467
    %v5483 = vpack.c.b16 %v5468, %v5468
    %v5484 = vpack.c.b16 %v5469, %v5469
    %v5485 = vpack.c.b16 %v5470, %v5470
    %vm5501 = vsmask.f32 256
    %v5502 = vsel %vm5501, %v5471, 0
    %v5504 = vshll.u32 %v5472, 16
    %vm5506 = vsmask.f32 770
    %v5507 = vsel %vm5506, %v5504, %v5502
    %v5508 = vrot.slane %v5473, 7
    %vm5509 = vsmask.f32 1284
    %v5510 = vsel %vm5509, %v5508, %v5507
    %v5511 = vrot.slane %v5474, 7
    %v5513 = vshll.u32 %v5511, 16
    %vm5515 = vsmask.f32 1798
    %v5516 = vsel %vm5515, %v5513, %v5510
    %v5517 = vrot.slane %v5475, 6
    %vm5518 = vsmask.f32 2312
    %v5519 = vsel %vm5518, %v5517, %v5516
    %v5520 = vrot.slane %v5476, 6
    %v5522 = vshll.u32 %v5520, 16
    %vm5524 = vsmask.f32 2826
    %v5525 = vsel %vm5524, %v5522, %v5519
    %v5526 = vrot.slane %v5477, 5
    %vm5527 = vsmask.f32 3340
    %v5528 = vsel %vm5527, %v5526, %v5525
    %v5529 = vrot.slane %v5478, 5
    %v5531 = vshll.u32 %v5529, 16
    %vm5533 = vsmask.f32 3854
    %v5534 = vsel %vm5533, %v5531, %v5528
    %v5535 = vrot.slane %v5479, 4
    %vm5536 = vsmask.f32 4368
    %v5537 = vsel %vm5536, %v5535, %v5534
    %v5538 = vrot.slane %v5480, 4
    %v5540 = vshll.u32 %v5538, 16
    %vm5542 = vsmask.f32 4882
    %v5543 = vsel %vm5542, %v5540, %v5537
    %v5544 = vrot.slane %v5481, 3
    %vm5545 = vsmask.f32 5396
    %v5546 = vsel %vm5545, %v5544, %v5543
    %v5547 = vrot.slane %v5482, 3
    %v5549 = vshll.u32 %v5547, 16
    %vm5551 = vsmask.f32 5910
    %v5552 = vsel %vm5551, %v5549, %v5546
    %v5553 = vrot.slane %v5483, 2
    %vm5554 = vsmask.f32 6424
    %v5555 = vsel %vm5554, %v5553, %v5552
    %v5556 = vrot.slane %v5484, 2
    %v5558 = vshll.u32 %v5556, 16
    %vm5560 = vsmask.f32 6938
    %v5561 = vsel %vm5560, %v5558, %v5555
    %v5562 = vrot.slane %v5485, 1
    %vm5563 = vsmask.f32 7452
    %v5564 = vsel %vm5563, %v5562, %v5561
    %v5565 = vrot.slane %v5471, 1
    %vm5566 = vsmask.f32 7966
    %v5567 = vsel %vm5566, %v5565, %v5564
    %v5568 = vshrl.u32 %v5472, 16
    %v5570 = vsel %vm5501, %v5568, 0
    %v5571 = vsel %vm5506, %v5473, %v5570
    %v5572 = vshrl.u32 %v5511, 16
    %v5574 = vsel %vm5509, %v5572, %v5571
    %v5575 = vrot.slane %v5475, 7
    %v5576 = vsel %vm5515, %v5575, %v5574
    %v5577 = vshrl.u32 %v5520, 16
    %v5579 = vsel %vm5518, %v5577, %v5576
    %v5580 = vrot.slane %v5477, 6
    %v5581 = vsel %vm5524, %v5580, %v5579
    %v5582 = vshrl.u32 %v5529, 16
    %v5584 = vsel %vm5527, %v5582, %v5581
    %v5585 = vrot.slane %v5479, 5
    %v5586 = vsel %vm5533, %v5585, %v5584
    %v5587 = vshrl.u32 %v5538, 16
    %v5589 = vsel %vm5536, %v5587, %v5586
    %v5590 = vrot.slane %v5481, 4
    %v5591 = vsel %vm5542, %v5590, %v5589
    %v5592 = vshrl.u32 %v5547, 16
    %v5594 = vsel %vm5545, %v5592, %v5591
    %v5595 = vrot.slane %v5483, 3
    %v5596 = vsel %vm5551, %v5595, %v5594
    %v5597 = vshrl.u32 %v5556, 16
    %v5599 = vsel %vm5554, %v5597, %v5596
    %v5600 = vrot.slane %v5485, 2
    %v5601 = vsel %vm5560, %v5600, %v5599
    %v5602 = vrot.slane %v5471, 2
    %v5603 = vsel %vm5563, %v5602, %v5601
    %v5604 = vrot.slane %v5472, 2
    %v5606 = vshll.u32 %v5604, 16
    %v5608 = vsel %vm5566, %v5606, %v5603
    %v5609 = vrot.slane %v5473, 1
    %v5610 = vsel %vm5501, %v5609, 0
    %v5611 = vrot.slane %v5474, 1
    %v5613 = vshll.u32 %v5611, 16
    %v5615 = vsel %vm5506, %v5613, %v5610
    %v5616 = vsel %vm5509, %v5475, %v5615
    %v5618 = vshll.u32 %v5476, 16
    %v5620 = vsel %vm5515, %v5618, %v5616
    %v5621 = vrot.slane %v5477, 7
    %v5622 = vsel %vm5518, %v5621, %v5620
    %v5623 = vrot.slane %v5478, 7
    %v5625 = vshll.u32 %v5623, 16
    %v5627 = vsel %vm5524, %v5625, %v5622
    %v5628 = vrot.slane %v5479, 6
    %v5629 = vsel %vm5527, %v5628, %v5627
    %v5630 = vrot.slane %v5480, 6
    %v5632 = vshll.u32 %v5630, 16
    %v5634 = vsel %vm5533, %v5632, %v5629
    %v5635 = vrot.slane %v5481, 5
    %v5636 = vsel %vm5536, %v5635, %v5634
    %v5637 = vrot.slane %v5482, 5
    %v5639 = vshll.u32 %v5637, 16
    %v5641 = vsel %vm5542, %v5639, %v5636
    %v5642 = vrot.slane %v5483, 4
    %v5643 = vsel %vm5545, %v5642, %v5641
    %v5644 = vrot.slane %v5484, 4
    %v5646 = vshll.u32 %v5644, 16
    %v5648 = vsel %vm5551, %v5646, %v5643
    %v5649 = vrot.slane %v5485, 3
    %v5650 = vsel %vm5554, %v5649, %v5648
    %v5651 = vrot.slane %v5471, 3
    %v5652 = vsel %vm5560, %v5651, %v5650
    %v5653 = vshrl.u32 %v5604, 16
    %v5655 = vsel %vm5563, %v5653, %v5652
    %v5656 = vrot.slane %v5473, 2
    %v5657 = vsel %vm5566, %v5656, %v5655
    %v5658 = vshrl.u32 %v5611, 16
    %v5660 = vsel %vm5501, %v5658, 0
    %v5661 = vrot.slane %v5475, 1
    %v5662 = vsel %vm5506, %v5661, %v5660
    %v5663 = vshrl.u32 %v5476, 16
    %v5665 = vsel %vm5509, %v5663, %v5662
    %v5666 = vsel %vm5515, %v5477, %v5665
    %v5667 = vshrl.u32 %v5623, 16
    %v5669 = vsel %vm5518, %v5667, %v5666
    %v5670 = vrot.slane %v5479, 7
    %v5671 = vsel %vm5524, %v5670, %v5669
    %v5672 = vshrl.u32 %v5630, 16
    %v5674 = vsel %vm5527, %v5672, %v5671
    %v5675 = vrot.slane %v5481, 6
    %v5676 = vsel %vm5533, %v5675, %v5674
    %v5677 = vshrl.u32 %v5637, 16
    %v5679 = vsel %vm5536, %v5677, %v5676
    %v5680 = vrot.slane %v5483, 5
    %v5681 = vsel %vm5542, %v5680, %v5679
    %v5682 = vshrl.u32 %v5644, 16
    %v5684 = vsel %vm5545, %v5682, %v5681
    %v5685 = vrot.slane %v5485, 4
    %v5686 = vsel %vm5551, %v5685, %v5684
    %v5687 = vrot.slane %v5471, 4
    %v5688 = vsel %vm5554, %v5687, %v5686
    %v5689 = vrot.slane %v5472, 4
    %v5691 = vshll.u32 %v5689, 16
    %v5693 = vsel %vm5560, %v5691, %v5688
    %v5694 = vrot.slane %v5473, 3
    %v5695 = vsel %vm5563, %v5694, %v5693
    %v5696 = vrot.slane %v5474, 3
    %v5698 = vshll.u32 %v5696, 16
    %v5700 = vsel %vm5566, %v5698, %v5695
    %v5701 = vrot.slane %v5475, 2
    %v5702 = vsel %vm5501, %v5701, 0
    %v5703 = vrot.slane %v5476, 2
    %v5705 = vshll.u32 %v5703, 16
    %v5707 = vsel %vm5506, %v5705, %v5702
    %v5708 = vrot.slane %v5477, 1
    %v5709 = vsel %vm5509, %v5708, %v5707
    %v5710 = vrot.slane %v5478, 1
    %v5712 = vshll.u32 %v5710, 16
    %v5714 = vsel %vm5515, %v5712, %v5709
    %v5715 = vsel %vm5518, %v5479, %v5714
    %v5717 = vshll.u32 %v5480, 16
    %v5719 = vsel %vm5524, %v5717, %v5715
    %v5720 = vrot.slane %v5481, 7
    %v5721 = vsel %vm5527, %v5720, %v5719
    %v5722 = vrot.slane %v5482, 7
    %v5724 = vshll.u32 %v5722, 16
    %v5726 = vsel %vm5533, %v5724, %v5721
    %v5727 = vrot.slane %v5483, 6
    %v5728 = vsel %vm5536, %v5727, %v5726
    %v5729 = vrot.slane %v5484, 6
    %v5731 = vshll.u32 %v5729, 16
    %v5733 = vsel %vm5542, %v5731, %v5728
    %v5734 = vrot.slane %v5485, 5
    %v5735 = vsel %vm5545, %v5734, %v5733
    %v5736 = vrot.slane %v5471, 5
    %v5737 = vsel %vm5551, %v5736, %v5735
    %v5738 = vshrl.u32 %v5689, 16
    %v5740 = vsel %vm5554, %v5738, %v5737
    %v5741 = vrot.slane %v5473, 4
    %v5742 = vsel %vm5560, %v5741, %v5740
    %v5743 = vshrl.u32 %v5696, 16
    %v5745 = vsel %vm5563, %v5743, %v5742
    %v5746 = vrot.slane %v5475, 3
    %v5747 = vsel %vm5566, %v5746, %v5745
    %v5748 = vshrl.u32 %v5703, 16
    %v5750 = vsel %vm5501, %v5748, 0
    %v5751 = vrot.slane %v5477, 2
    %v5752 = vsel %vm5506, %v5751, %v5750
    %v5753 = vshrl.u32 %v5710, 16
    %v5755 = vsel %vm5509, %v5753, %v5752
    %v5756 = vrot.slane %v5479, 1
    %v5757 = vsel %vm5515, %v5756, %v5755
    %v5758 = vshrl.u32 %v5480, 16
    %v5760 = vsel %vm5518, %v5758, %v5757
    %v5761 = vsel %vm5524, %v5481, %v5760
    %v5762 = vshrl.u32 %v5722, 16
    %v5764 = vsel %vm5527, %v5762, %v5761
    %v5765 = vrot.slane %v5483, 7
    %v5766 = vsel %vm5533, %v5765, %v5764
    %v5767 = vshrl.u32 %v5729, 16
    %v5769 = vsel %vm5536, %v5767, %v5766
    %v5770 = vrot.slane %v5485, 6
    %v5771 = vsel %vm5542, %v5770, %v5769
    %v5772 = vrot.slane %v5471, 6
    %v5773 = vsel %vm5545, %v5772, %v5771
    %v5774 = vrot.slane %v5472, 6
    %v5776 = vshll.u32 %v5774, 16
    %v5778 = vsel %vm5551, %v5776, %v5773
    %v5779 = vrot.slane %v5473, 5
    %v5780 = vsel %vm5554, %v5779, %v5778
    %v5781 = vrot.slane %v5474, 5
    %v5783 = vshll.u32 %v5781, 16
    %v5785 = vsel %vm5560, %v5783, %v5780
    %v5786 = vrot.slane %v5475, 4
    %v5787 = vsel %vm5563, %v5786, %v5785
    %v5788 = vrot.slane %v5476, 4
    %v5790 = vshll.u32 %v5788, 16
    %v5792 = vsel %vm5566, %v5790, %v5787
    %v5793 = vrot.slane %v5477, 3
    %v5794 = vsel %vm5501, %v5793, 0
    %v5795 = vrot.slane %v5478, 3
    %v5797 = vshll.u32 %v5795, 16
    %v5799 = vsel %vm5506, %v5797, %v5794
    %v5800 = vrot.slane %v5479, 2
    %v5801 = vsel %vm5509, %v5800, %v5799
    %v5802 = vrot.slane %v5480, 2
    %v5804 = vshll.u32 %v5802, 16
    %v5806 = vsel %vm5515, %v5804, %v5801
    %v5807 = vrot.slane %v5481, 1
    %v5808 = vsel %vm5518, %v5807, %v5806
    %v5809 = vrot.slane %v5482, 1
    %v5811 = vshll.u32 %v5809, 16
    %v5813 = vsel %vm5524, %v5811, %v5808
    %v5814 = vsel %vm5527, %v5483, %v5813
    %v5816 = vshll.u32 %v5484, 16
    %v5818 = vsel %vm5533, %v5816, %v5814
    %v5819 = vrot.slane %v5485, 7
    %v5820 = vsel %vm5536, %v5819, %v5818
    %v5821 = vrot.slane %v5471, 7
    %v5822 = vsel %vm5542, %v5821, %v5820
    %v5823 = vshrl.u32 %v5774, 16
    %v5825 = vsel %vm5545, %v5823, %v5822
    %v5826 = vrot.slane %v5473, 6
    %v5827 = vsel %vm5551, %v5826, %v5825
    %v5828 = vshrl.u32 %v5781, 16
    %v5830 = vsel %vm5554, %v5828, %v5827
    %v5831 = vrot.slane %v5475, 5
    %v5832 = vsel %vm5560, %v5831, %v5830
    %v5833 = vshrl.u32 %v5788, 16
    %v5835 = vsel %vm5563, %v5833, %v5832
    %v5836 = vrot.slane %v5477, 4
    %v5837 = vsel %vm5566, %v5836, %v5835
    %v5838 = vshrl.u32 %v5795, 16
    %v5840 = vsel %vm5501, %v5838, 0
    %v5841 = vrot.slane %v5479, 3
    %v5842 = vsel %vm5506, %v5841, %v5840
    %v5843 = vshrl.u32 %v5802, 16
    %v5845 = vsel %vm5509, %v5843, %v5842
    %v5846 = vrot.slane %v5481, 2
    %v5847 = vsel %vm5515, %v5846, %v5845
    %v5848 = vshrl.u32 %v5809, 16
    %v5850 = vsel %vm5518, %v5848, %v5847
    %v5851 = vrot.slane %v5483, 1
    %v5852 = vsel %vm5524, %v5851, %v5850
    %v5853 = vshrl.u32 %v5484, 16
    %v5855 = vsel %vm5527, %v5853, %v5852
    %v5856 = vsel %vm5533, %v5485, %v5855
    %v5873 = vunpack.c.l.b16 %v40
    %v5874 = vunpack.c.l.b16 %v41
    %v5875 = vunpack.c.l.b16 %v42
    %v5876 = vunpack.c.l.b16 %v43
    %v5877 = vunpack.c.l.b16 %v44
    %v5878 = vunpack.c.l.b16 %v45
    %v5879 = vunpack.c.l.b16 %v46
    %v5880 = vunpack.c.l.b16 %v47
    %v5881 = vunpack.c.l.b16 %v48
    %v5882 = vunpack.c.l.b16 %v49
    %v5883 = vunpack.c.l.b16 %v50
    %v5884 = vunpack.c.l.b16 %v51
    %v5885 = vunpack.c.l.b16 %v52
    %v5886 = vunpack.c.l.b16 %v53
    %v5887 = vunpack.c.l.b16 %v54
    %v5888 = vunpack.c.l.b16 %v55
    %v5889 = vpack.c.b16 %v5874, %v5873
    %v5890 = vpack.c.b16 %v5876, %v5875
    %v5891 = vpack.c.b16 %v5878, %v5877
    %v5892 = vpack.c.b16 %v5880, %v5879
    %v5893 = vpack.c.b16 %v5882, %v5881
    %v5894 = vpack.c.b16 %v5884, %v5883
    %v5895 = vpack.c.b16 %v5886, %v5885
    %v5896 = vpack.c.b16 %v5888, %v5887
    %5905 = vmatpush.bf16.msra.mxu0 %v5896
    %5906 = vmatpush.bf16.msra.mxu0 %v5895
    %5907 = vmatpush.bf16.msra.mxu0 %v5894
    %5908 = vmatpush.bf16.msra.mxu0 %v5893
    %5909 = vmatpush.bf16.msra.mxu0 %v5892
    %5910 = vmatpush.bf16.msra.mxu0 %v5891
    %5911 = vmatpush.bf16.msra.mxu0 %v5890
    %5912 = vmatpush.bf16.msra.mxu0 %v5889
    %5913 = vmatmul.bf16.gmra.mxu0 %v5567
    %v5914 = vpop.f32.mrf.mxu0
    %v5915 = vadd.f32 0.0, %v5914
    %v5916 = vpop.f32.mrf.mxu0
    %v5917 = vadd.f32 0.0, %v5916
    %5918 = vmatmul.bf16.gmra.mxu0 %v5608
    %v5919 = vpop.f32.mrf.mxu0
    %v5920 = vadd.f32 0.0, %v5919
    %v5921 = vpop.f32.mrf.mxu0
    %v5922 = vadd.f32 0.0, %v5921
    %5923 = vmatmul.bf16.gmra.mxu0 %v5657
    %v5924 = vpop.f32.mrf.mxu0
    %v5925 = vadd.f32 0.0, %v5924
    %v5926 = vpop.f32.mrf.mxu0
    %v5927 = vadd.f32 0.0, %v5926
    %5928 = vmatmul.bf16.gmra.mxu0 %v5700
    %v5929 = vpop.f32.mrf.mxu0
    %v5930 = vadd.f32 0.0, %v5929
    %v5931 = vpop.f32.mrf.mxu0
    %v5932 = vadd.f32 0.0, %v5931
    %5933 = vmatmul.bf16.gmra.mxu0 %v5747
    %v5934 = vpop.f32.mrf.mxu0
    %v5935 = vadd.f32 0.0, %v5934
    %v5936 = vpop.f32.mrf.mxu0
    %v5937 = vadd.f32 0.0, %v5936
    %5938 = vmatmul.bf16.gmra.mxu0 %v5792
    %v5939 = vpop.f32.mrf.mxu0
    %v5940 = vadd.f32 0.0, %v5939
    %v5941 = vpop.f32.mrf.mxu0
    %v5942 = vadd.f32 0.0, %v5941
    %5943 = vmatmul.bf16.gmra.mxu0 %v5837
    %v5944 = vpop.f32.mrf.mxu0
    %v5945 = vadd.f32 0.0, %v5944
    %v5946 = vpop.f32.mrf.mxu0
    %v5947 = vadd.f32 0.0, %v5946
    %5948 = vmatmul.bf16.gmra.mxu0 %v5856
    %v5949 = vpop.f32.mrf.mxu0
    %v5950 = vadd.f32 0.0, %v5949
    %v5951 = vpop.f32.mrf.mxu0
    %5952 = vdwg.mxu0
    %v5953 = vpack.c.bf16 %v5915, %v5915
    %v5954 = vpack.c.bf16 %v5917, %v5917
    %v5955 = vpack.c.bf16 %v5920, %v5920
    %v5956 = vpack.c.bf16 %v5922, %v5922
    %v5957 = vpack.c.bf16 %v5925, %v5925
    %v5958 = vpack.c.bf16 %v5927, %v5927
    %v5959 = vpack.c.bf16 %v5930, %v5930
    %v5960 = vpack.c.bf16 %v5932, %v5932
    %v5961 = vpack.c.bf16 %v5935, %v5935
    %v5962 = vpack.c.bf16 %v5937, %v5937
    %v5963 = vpack.c.bf16 %v5940, %v5940
    %v5964 = vpack.c.bf16 %v5942, %v5942
    %v5965 = vpack.c.bf16 %v5945, %v5945
    %v5966 = vpack.c.bf16 %v5947, %v5947
    %v5967 = vpack.c.bf16 %v5950, %v5950
    %v5983 = vrot.slane %v5953, 3
    %v5984 = vrot.slane %v5954, 3
    %v5985 = vrot.slane %v5955, 3
    %v5986 = vrot.slane %v5956, 3
    %v5987 = vrot.slane %v5957, 3
    %v5988 = vrot.slane %v5958, 3
    %v5989 = vrot.slane %v5959, 3
    %v5990 = vrot.slane %v5960, 3
    %v5991 = vrot.slane %v5961, 3
    %v5992 = vrot.slane %v5962, 3
    %v5993 = vrot.slane %v5963, 3
    %v5994 = vrot.slane %v5964, 3
    %v5995 = vrot.slane %v5965, 3
    %v5996 = vrot.slane %v5966, 3
    %v5997 = vrot.slane %v5967, 3
    %vm5998 = vcmask 1040384
    %v6001 = vsel %vm5998, %v5953, %v5983
    %vm6003 = vcmask 1041409
    %v6004 = vsel %vm6003, %v5953, %v5983
    %v6006 = vrot.slane %v6004, 1
    %vm6007 = vcmask 1042434
    %v6008 = vsel %vm6007, %v5953, %v5983
    %v6010 = vrot.slane %v6008, 2
    %vm6011 = vcmask 1043459
    %v6012 = vsel %vm6011, %v5953, %v5983
    %v6014 = vrot.slane %v6012, 3
    %v6017 = vsel %vm5998, %v5954, %v5984
    %v6019 = vsel %vm6003, %v5954, %v5984
    %v6021 = vrot.slane %v6019, 1
    %v6022 = vsel %vm6007, %v5954, %v5984
    %v6024 = vrot.slane %v6022, 2
    %v6025 = vsel %vm6011, %v5954, %v5984
    %v6027 = vrot.slane %v6025, 3
    %v6030 = vsel %vm5998, %v5955, %v5985
    %v6032 = vsel %vm6003, %v5955, %v5985
    %v6034 = vrot.slane %v6032, 1
    %v6035 = vsel %vm6007, %v5955, %v5985
    %v6037 = vrot.slane %v6035, 2
    %v6038 = vsel %vm6011, %v5955, %v5985
    %v6040 = vrot.slane %v6038, 3
    %v6043 = vsel %vm5998, %v5956, %v5986
    %v6045 = vsel %vm6003, %v5956, %v5986
    %v6047 = vrot.slane %v6045, 1
    %v6048 = vsel %vm6007, %v5956, %v5986
    %v6050 = vrot.slane %v6048, 2
    %v6051 = vsel %vm6011, %v5956, %v5986
    %v6053 = vrot.slane %v6051, 3
    %v6056 = vsel %vm5998, %v5957, %v5987
    %v6058 = vsel %vm6003, %v5957, %v5987
    %v6060 = vrot.slane %v6058, 1
    %v6061 = vsel %vm6007, %v5957, %v5987
    %v6063 = vrot.slane %v6061, 2
    %v6064 = vsel %vm6011, %v5957, %v5987
    %v6066 = vrot.slane %v6064, 3
    %v6069 = vsel %vm5998, %v5958, %v5988
    %v6071 = vsel %vm6003, %v5958, %v5988
    %v6073 = vrot.slane %v6071, 1
    %v6074 = vsel %vm6007, %v5958, %v5988
    %v6076 = vrot.slane %v6074, 2
    %v6077 = vsel %vm6011, %v5958, %v5988
    %v6079 = vrot.slane %v6077, 3
    %v6082 = vsel %vm5998, %v5959, %v5989
    %v6084 = vsel %vm6003, %v5959, %v5989
    %v6086 = vrot.slane %v6084, 1
    %v6087 = vsel %vm6007, %v5959, %v5989
    %v6089 = vrot.slane %v6087, 2
    %v6090 = vsel %vm6011, %v5959, %v5989
    %v6092 = vrot.slane %v6090, 3
    %v6095 = vsel %vm5998, %v5960, %v5990
    %v6097 = vsel %vm6003, %v5960, %v5990
    %v6099 = vrot.slane %v6097, 1
    %v6100 = vsel %vm6007, %v5960, %v5990
    %v6102 = vrot.slane %v6100, 2
    %v6103 = vsel %vm6011, %v5960, %v5990
    %v6105 = vrot.slane %v6103, 3
    %v6108 = vsel %vm5998, %v5961, %v5991
    %v6110 = vsel %vm6003, %v5961, %v5991
    %v6112 = vrot.slane %v6110, 1
    %v6113 = vsel %vm6007, %v5961, %v5991
    %v6115 = vrot.slane %v6113, 2
    %v6116 = vsel %vm6011, %v5961, %v5991
    %v6118 = vrot.slane %v6116, 3
    %v6121 = vsel %vm5998, %v5962, %v5992
    %v6123 = vsel %vm6003, %v5962, %v5992
    %v6125 = vrot.slane %v6123, 1
    %v6126 = vsel %vm6007, %v5962, %v5992
    %v6128 = vrot.slane %v6126, 2
    %v6129 = vsel %vm6011, %v5962, %v5992
    %v6131 = vrot.slane %v6129, 3
    %v6134 = vsel %vm5998, %v5963, %v5993
    %v6136 = vsel %vm6003, %v5963, %v5993
    %v6138 = vrot.slane %v6136, 1
    %v6139 = vsel %vm6007, %v5963, %v5993
    %v6141 = vrot.slane %v6139, 2
    %v6142 = vsel %vm6011, %v5963, %v5993
    %v6144 = vrot.slane %v6142, 3
    %v6147 = vsel %vm5998, %v5964, %v5994
    %v6149 = vsel %vm6003, %v5964, %v5994
    %v6151 = vrot.slane %v6149, 1
    %v6152 = vsel %vm6007, %v5964, %v5994
    %v6154 = vrot.slane %v6152, 2
    %v6155 = vsel %vm6011, %v5964, %v5994
    %v6157 = vrot.slane %v6155, 3
    %v6160 = vsel %vm5998, %v5965, %v5995
    %v6162 = vsel %vm6003, %v5965, %v5995
    %v6164 = vrot.slane %v6162, 1
    %v6165 = vsel %vm6007, %v5965, %v5995
    %v6167 = vrot.slane %v6165, 2
    %v6168 = vsel %vm6011, %v5965, %v5995
    %v6170 = vrot.slane %v6168, 3
    %v6173 = vsel %vm5998, %v5966, %v5996
    %v6175 = vsel %vm6003, %v5966, %v5996
    %v6177 = vrot.slane %v6175, 1
    %v6178 = vsel %vm6007, %v5966, %v5996
    %v6180 = vrot.slane %v6178, 2
    %v6181 = vsel %vm6011, %v5966, %v5996
    %v6183 = vrot.slane %v6181, 3
    %v6186 = vsel %vm5998, %v5967, %v5997
    %v6188 = vsel %vm6003, %v5967, %v5997
    %v6190 = vrot.slane %v6188, 1
    %v6191 = vsel %vm6007, %v5967, %v5997
    %v6193 = vrot.slane %v6191, 2
    %v6194 = vsel %vm6011, %v5967, %v5997
    %v6196 = vrot.slane %v6194, 3
    %v6197 = vunpack.i.l.s16 %v6001
    %v6198 = vunpack.i.h.s16 %v6001
    %v6199 = vunpack.i.l.s16 %v6006
    %v6200 = vunpack.i.h.s16 %v6006
    %v6201 = vunpack.i.l.s16 %v6010
    %v6202 = vunpack.i.h.s16 %v6010
    %v6203 = vunpack.i.l.s16 %v6014
    %v6204 = vunpack.i.h.s16 %v6014
    %v6205 = vunpack.i.l.s16 %v6017
    %v6206 = vunpack.i.h.s16 %v6017
    %v6207 = vunpack.i.l.s16 %v6021
    %v6208 = vunpack.i.h.s16 %v6021
    %v6209 = vunpack.i.l.s16 %v6024
    %v6210 = vunpack.i.h.s16 %v6024
    %v6211 = vunpack.i.l.s16 %v6027
    %v6212 = vunpack.i.h.s16 %v6027
    %v6213 = vunpack.i.l.s16 %v6030
    %v6214 = vunpack.i.h.s16 %v6030
    %v6215 = vunpack.i.l.s16 %v6034
    %v6216 = vunpack.i.h.s16 %v6034
    %v6217 = vunpack.i.l.s16 %v6037
    %v6218 = vunpack.i.h.s16 %v6037
    %v6219 = vunpack.i.l.s16 %v6040
    %v6220 = vunpack.i.h.s16 %v6040
    %v6221 = vunpack.i.l.s16 %v6043
    %v6222 = vunpack.i.h.s16 %v6043
    %v6223 = vunpack.i.l.s16 %v6047
    %v6224 = vunpack.i.h.s16 %v6047
    %v6225 = vunpack.i.l.s16 %v6050
    %v6226 = vunpack.i.h.s16 %v6050
    %v6227 = vunpack.i.l.s16 %v6053
    %v6228 = vunpack.i.h.s16 %v6053
    %v6229 = vunpack.i.l.s16 %v6056
    %v6230 = vunpack.i.h.s16 %v6056
    %v6231 = vunpack.i.l.s16 %v6060
    %v6232 = vunpack.i.h.s16 %v6060
    %v6233 = vunpack.i.l.s16 %v6063
    %v6234 = vunpack.i.h.s16 %v6063
    %v6235 = vunpack.i.l.s16 %v6066
    %v6236 = vunpack.i.h.s16 %v6066
    %v6237 = vunpack.i.l.s16 %v6069
    %v6238 = vunpack.i.h.s16 %v6069
    %v6239 = vunpack.i.l.s16 %v6073
    %v6240 = vunpack.i.h.s16 %v6073
    %v6241 = vunpack.i.l.s16 %v6076
    %v6242 = vunpack.i.h.s16 %v6076
    %v6243 = vunpack.i.l.s16 %v6079
    %v6244 = vunpack.i.h.s16 %v6079
    %v6245 = vunpack.i.l.s16 %v6082
    %v6246 = vunpack.i.h.s16 %v6082
    %v6247 = vunpack.i.l.s16 %v6086
    %v6248 = vunpack.i.h.s16 %v6086
    %v6249 = vunpack.i.l.s16 %v6089
    %v6250 = vunpack.i.h.s16 %v6089
    %v6251 = vunpack.i.l.s16 %v6092
    %v6252 = vunpack.i.h.s16 %v6092
    %v6253 = vunpack.i.l.s16 %v6095
    %v6254 = vunpack.i.h.s16 %v6095
    %v6255 = vunpack.i.l.s16 %v6099
    %v6256 = vunpack.i.h.s16 %v6099
    %v6257 = vunpack.i.l.s16 %v6102
    %v6258 = vunpack.i.h.s16 %v6102
    %v6259 = vunpack.i.l.s16 %v6105
    %v6260 = vunpack.i.h.s16 %v6105
    %v6261 = vunpack.i.l.s16 %v6108
    %v6262 = vunpack.i.h.s16 %v6108
    %v6263 = vunpack.i.l.s16 %v6112
    %v6264 = vunpack.i.h.s16 %v6112
    %v6265 = vunpack.i.l.s16 %v6115
    %v6266 = vunpack.i.h.s16 %v6115
    %v6267 = vunpack.i.l.s16 %v6118
    %v6268 = vunpack.i.h.s16 %v6118
    %v6269 = vunpack.i.l.s16 %v6121
    %v6270 = vunpack.i.h.s16 %v6121
    %v6271 = vunpack.i.l.s16 %v6125
    %v6272 = vunpack.i.h.s16 %v6125
    %v6273 = vunpack.i.l.s16 %v6128
    %v6274 = vunpack.i.h.s16 %v6128
    %v6275 = vunpack.i.l.s16 %v6131
    %v6276 = vunpack.i.h.s16 %v6131
    %v6277 = vunpack.i.l.s16 %v6134
    %v6278 = vunpack.i.h.s16 %v6134
    %v6279 = vunpack.i.l.s16 %v6138
    %v6280 = vunpack.i.h.s16 %v6138
    %v6281 = vunpack.i.l.s16 %v6141
    %v6282 = vunpack.i.h.s16 %v6141
    %v6283 = vunpack.i.l.s16 %v6144
    %v6284 = vunpack.i.h.s16 %v6144
    %v6285 = vunpack.i.l.s16 %v6147
    %v6286 = vunpack.i.h.s16 %v6147
    %v6287 = vunpack.i.l.s16 %v6151
    %v6288 = vunpack.i.h.s16 %v6151
    %v6289 = vunpack.i.l.s16 %v6154
    %v6290 = vunpack.i.h.s16 %v6154
    %v6291 = vunpack.i.l.s16 %v6157
    %v6292 = vunpack.i.h.s16 %v6157
    %v6293 = vunpack.i.l.s16 %v6160
    %v6294 = vunpack.i.h.s16 %v6160
    %v6295 = vunpack.i.l.s16 %v6164
    %v6296 = vunpack.i.h.s16 %v6164
    %v6297 = vunpack.i.l.s16 %v6167
    %v6298 = vunpack.i.h.s16 %v6167
    %v6299 = vunpack.i.l.s16 %v6170
    %v6300 = vunpack.i.h.s16 %v6170
    %v6301 = vunpack.i.l.s16 %v6173
    %v6302 = vunpack.i.h.s16 %v6173
    %v6303 = vunpack.i.l.s16 %v6177
    %v6304 = vunpack.i.h.s16 %v6177
    %v6305 = vunpack.i.l.s16 %v6180
    %v6306 = vunpack.i.h.s16 %v6180
    %v6307 = vunpack.i.l.s16 %v6183
    %v6308 = vunpack.i.h.s16 %v6183
    %v6309 = vunpack.i.l.s16 %v6186
    %v6310 = vunpack.i.h.s16 %v6186
    %v6311 = vunpack.i.l.s16 %v6190
    %v6312 = vunpack.i.h.s16 %v6190
    %v6313 = vunpack.i.l.s16 %v6193
    %v6314 = vunpack.i.h.s16 %v6193
    %v6315 = vunpack.i.l.s16 %v6196
    %v6316 = vunpack.i.h.s16 %v6196
    %v6317 = vpack.i.b16 %v6198, %v6197
    %v6318 = vpack.i.b16 %v6200, %v6199
    %v6319 = vpack.i.b16 %v6202, %v6201
    %v6320 = vpack.i.b16 %v6204, %v6203
    %v6321 = vpack.i.b16 %v6206, %v6205
    %v6322 = vpack.i.b16 %v6208, %v6207
    %v6323 = vpack.i.b16 %v6210, %v6209
    %6326 = vst [vmem:[#allocation1] ss:$9 sm:$0xff] %v6317
    %s6328 = scalar_lea.vmem [#allocation1], 1
    %6329 = vst [vmem:[%s6328] ss:$9 sm:$0xff] %v6318
    %s6331 = scalar_lea.vmem [#allocation1], 2
    %6332 = vst [vmem:[%s6331] ss:$9 sm:$0xff] %v6319
    %s6334 = scalar_lea.vmem [#allocation1], 3
    %6335 = vst [vmem:[%s6334] ss:$9 sm:$0xff] %v6320
    %s6337 = scalar_lea.vmem [#allocation1], 4
    %6338 = vst [vmem:[%s6337] ss:$9 sm:$0xff] %v6321
    %s6340 = scalar_lea.vmem [#allocation1], 5
    %6341 = vst [vmem:[%s6340] ss:$9 sm:$0xff] %v6322
    %s6343 = scalar_lea.vmem [#allocation1], 6
    %6344 = vst [vmem:[%s6343] ss:$9 sm:$0xff] %v6323
    %s6346 = scalar_lea.vmem [#allocation1], 7
    %6347 = vst [vmem:[%s6346] ss:$9 sm:$0xff] %v6211
    %v6348 = vld [vmem:[#allocation1] sm:$0xff]
    %v6349 = vpack.i.b16 %v6213, %v6212
    %v6350 = vpack.i.b16 %v6215, %v6214
    %v6351 = vpack.i.b16 %v6217, %v6216
    %v6352 = vpack.i.b16 %v6219, %v6218
    %v6353 = vpack.i.b16 %v6221, %v6220
    %v6354 = vpack.i.b16 %v6223, %v6222
    %v6355 = vpack.i.b16 %v6225, %v6224
    %6358 = vst [vmem:[#allocation1] ss:$9 sm:$0xff] %v6349
    %s6360 = scalar_lea.vmem [#allocation1], 1
    %6361 = vst [vmem:[%s6360] ss:$9 sm:$0xff] %v6350
    %s6363 = scalar_lea.vmem [#allocation1], 2
    %6364 = vst [vmem:[%s6363] ss:$9 sm:$0xff] %v6351
    %s6366 = scalar_lea.vmem [#allocation1], 3
    %6367 = vst [vmem:[%s6366] ss:$9 sm:$0xff] %v6352
    %s6369 = scalar_lea.vmem [#allocation1], 4
    %6370 = vst [vmem:[%s6369] ss:$9 sm:$0xff] %v6353
    %s6372 = scalar_lea.vmem [#allocation1], 5
    %6373 = vst [vmem:[%s6372] ss:$9 sm:$0xff] %v6354
    %s6375 = scalar_lea.vmem [#allocation1], 6
    %6376 = vst [vmem:[%s6375] ss:$9 sm:$0xff] %v6355
    %s6378 = scalar_lea.vmem [#allocation1], 7
    %6379 = vst [vmem:[%s6378] ss:$9 sm:$0xff] %v6226
    %v6380 = vld [vmem:[#allocation1] sm:$0xff]
    %6382 = vrot.lane.b32.xlu0 %v6380, 8
    %v6383 = vpop.permute.xlu0 %6382
    %v6384 = vpack.i.b16 %v6228, %v6227
    %v6385 = vpack.i.b16 %v6230, %v6229
    %v6386 = vpack.i.b16 %v6232, %v6231
    %v6387 = vpack.i.b16 %v6234, %v6233
    %v6388 = vpack.i.b16 %v6236, %v6235
    %v6389 = vpack.i.b16 %v6238, %v6237
    %v6390 = vpack.i.b16 %v6240, %v6239
    %6393 = vst [vmem:[#allocation1] ss:$9 sm:$0xff] %v6384
    %s6395 = scalar_lea.vmem [#allocation1], 1
    %6396 = vst [vmem:[%s6395] ss:$9 sm:$0xff] %v6385
    %s6398 = scalar_lea.vmem [#allocation1], 2
    %6399 = vst [vmem:[%s6398] ss:$9 sm:$0xff] %v6386
    %s6401 = scalar_lea.vmem [#allocation1], 3
    %6402 = vst [vmem:[%s6401] ss:$9 sm:$0xff] %v6387
    %s6404 = scalar_lea.vmem [#allocation1], 4
    %6405 = vst [vmem:[%s6404] ss:$9 sm:$0xff] %v6388
    %s6407 = scalar_lea.vmem [#allocation1], 5
    %6408 = vst [vmem:[%s6407] ss:$9 sm:$0xff] %v6389
    %s6410 = scalar_lea.vmem [#allocation1], 6
    %6411 = vst [vmem:[%s6410] ss:$9 sm:$0xff] %v6390
    %s6413 = scalar_lea.vmem [#allocation1], 7
    %6414 = vst [vmem:[%s6413] ss:$9 sm:$0xff] %v6241
    %v6415 = vld [vmem:[#allocation1] sm:$0xff]
    %6417 = vrot.lane.b32.xlu0 %v6415, 16
    %v6418 = vpop.permute.xlu0 %6417
    %v6419 = vpack.i.b16 %v6243, %v6242
    %v6420 = vpack.i.b16 %v6245, %v6244
    %v6421 = vpack.i.b16 %v6247, %v6246
    %v6422 = vpack.i.b16 %v6249, %v6248
    %v6423 = vpack.i.b16 %v6251, %v6250
    %v6424 = vpack.i.b16 %v6253, %v6252
    %v6425 = vpack.i.b16 %v6255, %v6254
    %6428 = vst [vmem:[#allocation1] ss:$9 sm:$0xff] %v6419
    %s6430 = scalar_lea.vmem [#allocation1], 1
    %6431 = vst [vmem:[%s6430] ss:$9 sm:$0xff] %v6420
    %s6433 = scalar_lea.vmem [#allocation1], 2
    %6434 = vst [vmem:[%s6433] ss:$9 sm:$0xff] %v6421
    %s6436 = scalar_lea.vmem [#allocation1], 3
    %6437 = vst [vmem:[%s6436] ss:$9 sm:$0xff] %v6422
    %s6439 = scalar_lea.vmem [#allocation1], 4
    %6440 = vst [vmem:[%s6439] ss:$9 sm:$0xff] %v6423
    %s6442 = scalar_lea.vmem [#allocation1], 5
    %6443 = vst [vmem:[%s6442] ss:$9 sm:$0xff] %v6424
    %s6445 = scalar_lea.vmem [#allocation1], 6
    %6446 = vst [vmem:[%s6445] ss:$9 sm:$0xff] %v6425
    %s6448 = scalar_lea.vmem [#allocation1], 7
    %6449 = vst [vmem:[%s6448] ss:$9 sm:$0xff] %v6256
    %v6450 = vld [vmem:[#allocation1] sm:$0xff]
    %6452 = vrot.lane.b32.xlu0 %v6450, 24
    %v6453 = vpop.permute.xlu0 %6452
    %v6454 = vpack.i.b16 %v6258, %v6257
    %v6455 = vpack.i.b16 %v6260, %v6259
    %v6456 = vpack.i.b16 %v6262, %v6261
    %v6457 = vpack.i.b16 %v6264, %v6263
    %v6458 = vpack.i.b16 %v6266, %v6265
    %v6459 = vpack.i.b16 %v6268, %v6267
    %v6460 = vpack.i.b16 %v6270, %v6269
    %6463 = vst [vmem:[#allocation1] ss:$9 sm:$0xff] %v6454
    %s6465 = scalar_lea.vmem [#allocation1], 1
    %6466 = vst [vmem:[%s6465] ss:$9 sm:$0xff] %v6455
    %s6468 = scalar_lea.vmem [#allocation1], 2
    %6469 = vst [vmem:[%s6468] ss:$9 sm:$0xff] %v6456
    %s6471 = scalar_lea.vmem [#allocation1], 3
    %6472 = vst [vmem:[%s6471] ss:$9 sm:$0xff] %v6457
    %s6474 = scalar_lea.vmem [#allocation1], 4
    %6475 = vst [vmem:[%s6474] ss:$9 sm:$0xff] %v6458
    %s6477 = scalar_lea.vmem [#allocation1], 5
    %6478 = vst [vmem:[%s6477] ss:$9 sm:$0xff] %v6459
    %s6480 = scalar_lea.vmem [#allocation1], 6
    %6481 = vst [vmem:[%s6480] ss:$9 sm:$0xff] %v6460
    %s6483 = scalar_lea.vmem [#allocation1], 7
    %6484 = vst [vmem:[%s6483] ss:$9 sm:$0xff] %v6271
    %v6485 = vld [vmem:[#allocation1] sm:$0xff]
    %6487 = vrot.lane.b32.xlu0 %v6485, 32
    %v6488 = vpop.permute.xlu0 %6487
    %v6489 = vpack.i.b16 %v6273, %v6272
    %v6490 = vpack.i.b16 %v6275, %v6274
    %v6491 = vpack.i.b16 %v6277, %v6276
    %v6492 = vpack.i.b16 %v6279, %v6278
    %v6493 = vpack.i.b16 %v6281, %v6280
    %v6494 = vpack.i.b16 %v6283, %v6282
    %v6495 = vpack.i.b16 %v6285, %v6284
    %6498 = vst [vmem:[#allocation1] ss:$9 sm:$0xff] %v6489
    %s6500 = scalar_lea.vmem [#allocation1], 1
    %6501 = vst [vmem:[%s6500] ss:$9 sm:$0xff] %v6490
    %s6503 = scalar_lea.vmem [#allocation1], 2
    %6504 = vst [vmem:[%s6503] ss:$9 sm:$0xff] %v6491
    %s6506 = scalar_lea.vmem [#allocation1], 3
    %6507 = vst [vmem:[%s6506] ss:$9 sm:$0xff] %v6492
    %s6509 = scalar_lea.vmem [#allocation1], 4
    %6510 = vst [vmem:[%s6509] ss:$9 sm:$0xff] %v6493
    %s6512 = scalar_lea.vmem [#allocation1], 5
    %6513 = vst [vmem:[%s6512] ss:$9 sm:$0xff] %v6494
    %s6515 = scalar_lea.vmem [#allocation1], 6
    %6516 = vst [vmem:[%s6515] ss:$9 sm:$0xff] %v6495
    %s6518 = scalar_lea.vmem [#allocation1], 7
    %6519 = vst [vmem:[%s6518] ss:$9 sm:$0xff] %v6286
    %v6520 = vld [vmem:[#allocation1] sm:$0xff]
    %6522 = vrot.lane.b32.xlu0 %v6520, 40
    %v6523 = vpop.permute.xlu0 %6522
    %v6524 = vpack.i.b16 %v6288, %v6287
    %v6525 = vpack.i.b16 %v6290, %v6289
    %v6526 = vpack.i.b16 %v6292, %v6291
    %v6527 = vpack.i.b16 %v6294, %v6293
    %v6528 = vpack.i.b16 %v6296, %v6295
    %v6529 = vpack.i.b16 %v6298, %v6297
    %v6530 = vpack.i.b16 %v6300, %v6299
    %6533 = vst [vmem:[#allocation1] ss:$9 sm:$0xff] %v6524
    %s6535 = scalar_lea.vmem [#allocation1], 1
    %6536 = vst [vmem:[%s6535] ss:$9 sm:$0xff] %v6525
    %s6538 = scalar_lea.vmem [#allocation1], 2
    %6539 = vst [vmem:[%s6538] ss:$9 sm:$0xff] %v6526
    %s6541 = scalar_lea.vmem [#allocation1], 3
    %6542 = vst [vmem:[%s6541] ss:$9 sm:$0xff] %v6527
    %s6544 = scalar_lea.vmem [#allocation1], 4
    %6545 = vst [vmem:[%s6544] ss:$9 sm:$0xff] %v6528
    %s6547 = scalar_lea.vmem [#allocation1], 5
    %6548 = vst [vmem:[%s6547] ss:$9 sm:$0xff] %v6529
    %s6550 = scalar_lea.vmem [#allocation1], 6
    %6551 = vst [vmem:[%s6550] ss:$9 sm:$0xff] %v6530
    %s6553 = scalar_lea.vmem [#allocation1], 7
    %6554 = vst [vmem:[%s6553] ss:$9 sm:$0xff] %v6301
    %v6555 = vld [vmem:[#allocation1] sm:$0xff]
    %6557 = vrot.lane.b32.xlu0 %v6555, 48
    %v6558 = vpop.permute.xlu0 %6557
    %v6559 = vpack.i.b16 %v6303, %v6302
    %v6560 = vpack.i.b16 %v6305, %v6304
    %v6561 = vpack.i.b16 %v6307, %v6306
    %v6562 = vpack.i.b16 %v6309, %v6308
    %v6563 = vpack.i.b16 %v6311, %v6310
    %v6564 = vpack.i.b16 %v6313, %v6312
    %v6565 = vpack.i.b16 %v6315, %v6314
    %6568 = vst [vmem:[#allocation1] ss:$9 sm:$0xff] %v6559
    %s6570 = scalar_lea.vmem [#allocation1], 1
    %6571 = vst [vmem:[%s6570] ss:$9 sm:$0xff] %v6560
    %s6573 = scalar_lea.vmem [#allocation1], 2
    %6574 = vst [vmem:[%s6573] ss:$9 sm:$0xff] %v6561
    %s6576 = scalar_lea.vmem [#allocation1], 3
    %6577 = vst [vmem:[%s6576] ss:$9 sm:$0xff] %v6562
    %s6579 = scalar_lea.vmem [#allocation1], 4
    %6580 = vst [vmem:[%s6579] ss:$9 sm:$0xff] %v6563
    %s6582 = scalar_lea.vmem [#allocation1], 5
    %6583 = vst [vmem:[%s6582] ss:$9 sm:$0xff] %v6564
    %s6585 = scalar_lea.vmem [#allocation1], 6
    %6586 = vst [vmem:[%s6585] ss:$9 sm:$0xff] %v6565
    %s6588 = scalar_lea.vmem [#allocation1], 7
    %6589 = vst [vmem:[%s6588] ss:$9 sm:$0xff] %v6316
    %v6590 = vld [vmem:[#allocation1] sm:$0xff]
    %6592 = vrot.lane.b32.xlu0 %v6590, 56
    %v6593 = vpop.permute.xlu0 %6592
    %vm6594 = vcmask 64512
    %v6596 = vsel %vm6594, %v6348, %v6383
    %vm6597 = vcmask 130048
    %v6599 = vsel %vm6597, %v6596, %v6418
    %vm6600 = vcmask 195584
    %v6602 = vsel %vm6600, %v6599, %v6453
    %vm6603 = vcmask 261120
    %v6605 = vsel %vm6603, %v6602, %v6488
    %vm6606 = vcmask 326656
    %v6608 = vsel %vm6606, %v6605, %v6523
    %vm6609 = vcmask 392192
    %v6611 = vsel %vm6609, %v6608, %v6558
    %vm6612 = vcmask 457728
    %v6614 = vsel %vm6612, %v6611, %v6593
    %vm6615 = vcmask 121856
    %v6617 = vsel %vm6615, %v39, 0
    %vm6619 = vcmask 1046528
    %vm6620 = vcmask 1047552
    %v6621 = vsel %vm6619, 4294967295, 65535
    %v6622 = vsel %vm6620, %v6621, 0
    %v6623 = vand.u32 %v6614, %v6622
    %6625 = vmatpush.bf16.msra.mxu0 0
    %6626 = vmatpush.bf16.msra.mxu0 0
    %6627 = vmatpush.bf16.msra.mxu0 0
    %6628 = vmatpush.bf16.msra.mxu0 0
    %6629 = vmatpush.bf16.msra.mxu0 0
    %6630 = vmatpush.bf16.msra.mxu0 0
    %6631 = vmatpush.bf16.msra.mxu0 0
    %6632 = vmatpush.bf16.msra.mxu0 %v6623
    %6633 = vmatmul.bf16.gmra.mxu0 %v6617
    %v6634 = vpop.f32.mrf.mxu0
    %v6635 = vadd.f32 0.0, %v6634
    %v6636 = vpop.f32.mrf.mxu0
    %6637 = vdwg.mxu0
    %vm6638 = vcmask 523264
    %6639 = vst.msk [vmem:[#allocation5] sm:$0xff] %vm6638, %v6635
    %s6640 = scalar_lea.vmem [#allocation2], 38
    %v6641 = vld [vmem:[%s6640] sm:$0xff]
    %v6642 = vld [vmem:[%s6640 + $0x8] sm:$0xff]
    %v6643 = vld [vmem:[%s6640 + $0x10] sm:$0xff]
    %v6644 = vld [vmem:[%s6640 + $0x18] sm:$0xff]
    %v6645 = vld [vmem:[%s6640 + $0x20] sm:$0x3f]
    %6647 = vst [vmem:[#allocation1] ss:$4 sm:$0xff] %v6641
    %s6649 = scalar_lea.vmem [#allocation1], 32
    %6650 = vst [vmem:[%s6649] ss:$4 sm:$0xff] %v6642
    %v6651 = vld.sshfl [vmem:[#allocation1] sm:$0xff pattern:$0x73625140]
    %v6653 = vld.sshfl [vmem:[#allocation1 + $0x8] sm:$0xff pattern:$0x73625140]
    %v6655 = vld.sshfl [vmem:[#allocation1 + $0x10] sm:$0xff pattern:$0x73625140]
    %v6657 = vld.sshfl [vmem:[#allocation1 + $0x18] sm:$0xff pattern:$0x73625140]
    %v6659 = vld.sshfl [vmem:[#allocation1 + $0x20] sm:$0xff pattern:$0x73625140]
    %v6661 = vld.sshfl [vmem:[#allocation1 + $0x28] sm:$0xff pattern:$0x73625140]
    %v6663 = vld.sshfl [vmem:[#allocation1 + $0x30] sm:$0xff pattern:$0x73625140]
    %v6665 = vld.sshfl [vmem:[#allocation1 + $0x38] sm:$0xff pattern:$0x73625140]
    %6668 = vst [vmem:[#allocation1] ss:$4 sm:$0xff] %v6643
    %6670 = vst [vmem:[%s6649] ss:$4 sm:$0xff] %v6644
    %v6671 = vld.sshfl [vmem:[#allocation1] sm:$0xff pattern:$0x73625140]
    %v6673 = vld.sshfl [vmem:[#allocation1 + $0x8] sm:$0xff pattern:$0x73625140]
    %v6675 = vld.sshfl [vmem:[#allocation1 + $0x10] sm:$0xff pattern:$0x73625140]
    %v6677 = vld.sshfl [vmem:[#allocation1 + $0x18] sm:$0xff pattern:$0x73625140]
    %v6679 = vld.sshfl [vmem:[#allocation1 + $0x20] sm:$0xff pattern:$0x73625140]
    %v6681 = vld.sshfl [vmem:[#allocation1 + $0x28] sm:$0xff pattern:$0x73625140]
    %v6683 = vld.sshfl [vmem:[#allocation1 + $0x30] sm:$0xff pattern:$0x73625140]
    %v6685 = vld.sshfl [vmem:[#allocation1 + $0x38] sm:$0xff pattern:$0x73625140]
    %6687 = vrot.lane.b32.xlu0 %v6651, 127
    %v6688 = vpop.permute.xlu0 %6687
    %6689 = vrot.lane.b32.xlu0 %v6653, 127
    %v6690 = vpop.permute.xlu0 %6689
    %6691 = vrot.lane.b32.xlu0 %v6655, 127
    %v6692 = vpop.permute.xlu0 %6691
    %6693 = vrot.lane.b32.xlu0 %v6657, 127
    %v6694 = vpop.permute.xlu0 %6693
    %6695 = vrot.lane.b32.xlu0 %v6659, 127
    %v6696 = vpop.permute.xlu0 %6695
    %6697 = vrot.lane.b32.xlu0 %v6661, 127
    %v6698 = vpop.permute.xlu0 %6697
    %6699 = vrot.lane.b32.xlu0 %v6663, 127
    %v6700 = vpop.permute.xlu0 %6699
    %6701 = vrot.lane.b32.xlu0 %v6665, 127
    %v6702 = vpop.permute.xlu0 %6701
    %6703 = vrot.lane.b32.xlu0 %v6671, 127
    %v6704 = vpop.permute.xlu0 %6703
    %6705 = vrot.lane.b32.xlu0 %v6673, 127
    %v6706 = vpop.permute.xlu0 %6705
    %6707 = vrot.lane.b32.xlu0 %v6675, 127
    %v6708 = vpop.permute.xlu0 %6707
    %6709 = vrot.lane.b32.xlu0 %v6677, 127
    %v6710 = vpop.permute.xlu0 %6709
    %6711 = vrot.lane.b32.xlu0 %v6679, 127
    %v6712 = vpop.permute.xlu0 %6711
    %6713 = vrot.lane.b32.xlu0 %v6681, 127
    %v6714 = vpop.permute.xlu0 %6713
    %6715 = vrot.lane.b32.xlu0 %v6683, 127
    %v6716 = vpop.permute.xlu0 %6715
    %6717 = vrot.lane.b32.xlu0 %v6685, 127
    %v6718 = vpop.permute.xlu0 %6717
    %v6719 = vsel %vm141, %v6688, %v6690
    %v6720 = vsel %vm141, %v6690, %v6692
    %v6721 = vsel %vm141, %v6692, %v6694
    %v6722 = vsel %vm141, %v6694, %v6696
    %v6723 = vsel %vm141, %v6696, %v6698
    %v6724 = vsel %vm141, %v6698, %v6700
    %v6725 = vsel %vm141, %v6700, %v6702
    %v6726 = vsel %vm141, %v6702, %v6704
    %v6727 = vsel %vm141, %v6704, %v6706
    %v6728 = vsel %vm141, %v6706, %v6708
    %v6729 = vsel %vm141, %v6708, %v6710
    %v6730 = vsel %vm141, %v6710, %v6712
    %v6731 = vsel %vm141, %v6712, %v6714
    %v6732 = vsel %vm141, %v6714, %v6716
    %v6733 = vsel %vm141, %v6716, %v6718
    %v6735 = vsel %vm161, %v6719, 0
    %v6738 = vsel %vm161, %v6720, 0
    %v6741 = vsel %vm161, %v6721, 0
    %v6744 = vsel %vm161, %v6722, 0
    %v6747 = vsel %vm161, %v6723, 0
    %v6750 = vsel %vm161, %v6724, 0
    %v6753 = vsel %vm161, %v6725, 0
    %v6756 = vsel %vm161, %v6726, 0
    %v6759 = vsel %vm161, %v6727, 0
    %v6762 = vsel %vm161, %v6728, 0
    %v6765 = vsel %vm161, %v6729, 0
    %v6768 = vsel %vm161, %v6730, 0
    %v6771 = vsel %vm161, %v6731, 0
    %v6774 = vsel %vm161, %v6732, 0
    %v6777 = vsel %vm161, %v6733, 0
    %6779 = vmatpush.bf16.msra.mxu0 0
    %6780 = vmatpush.bf16.msra.mxu0 0
    %6781 = vmatpush.bf16.msra.mxu0 0
    %6782 = vmatpush.bf16.msra.mxu0 0
    %6783 = vmatpush.bf16.msra.mxu0 0
    %6784 = vmatpush.bf16.msra.mxu0 0
    %6785 = vmatpush.bf16.msra.mxu0 0
    %6786 = vmatpush.bf16.msra.mxu0 %v6735
    %6787 = vmatmul.bf16.gmra.mxu0 %v159
    %v6788 = vpop.f32.mrf.mxu0
    %v6789 = vadd.f32 0.0, %v6788
    %v6790 = vpop.f32.mrf.mxu0
    %6791 = vdwg.mxu0
    %6792 = vmatpush.bf16.msra.mxu0 0
    %6793 = vmatpush.bf16.msra.mxu0 0
    %6794 = vmatpush.bf16.msra.mxu0 0
    %6795 = vmatpush.bf16.msra.mxu0 0
    %6796 = vmatpush.bf16.msra.mxu0 0
    %6797 = vmatpush.bf16.msra.mxu0 0
    %6798 = vmatpush.bf16.msra.mxu0 0
    %6799 = vmatpush.bf16.msra.mxu0 %v6738
    %6800 = vmatmul.bf16.gmra.mxu0 %v159
    %v6801 = vpop.f32.mrf.mxu0
    %v6802 = vadd.f32 0.0, %v6801
    %v6803 = vpop.f32.mrf.mxu0
    %6804 = vdwg.mxu0
    %6805 = vmatpush.bf16.msra.mxu0 0
    %6806 = vmatpush.bf16.msra.mxu0 0
    %6807 = vmatpush.bf16.msra.mxu0 0
    %6808 = vmatpush.bf16.msra.mxu0 0
    %6809 = vmatpush.bf16.msra.mxu0 0
    %6810 = vmatpush.bf16.msra.mxu0 0
    %6811 = vmatpush.bf16.msra.mxu0 0
    %6812 = vmatpush.bf16.msra.mxu0 %v6741
    %6813 = vmatmul.bf16.gmra.mxu0 %v159
    %v6814 = vpop.f32.mrf.mxu0
    %v6815 = vadd.f32 0.0, %v6814
    %v6816 = vpop.f32.mrf.mxu0
    %6817 = vdwg.mxu0
    %6818 = vmatpush.bf16.msra.mxu0 0
    %6819 = vmatpush.bf16.msra.mxu0 0
    %6820 = vmatpush.bf16.msra.mxu0 0
    %6821 = vmatpush.bf16.msra.mxu0 0
    %6822 = vmatpush.bf16.msra.mxu0 0
    %6823 = vmatpush.bf16.msra.mxu0 0
    %6824 = vmatpush.bf16.msra.mxu0 0
    %6825 = vmatpush.bf16.msra.mxu0 %v6744
    %6826 = vmatmul.bf16.gmra.mxu0 %v159
    %v6827 = vpop.f32.mrf.mxu0
    %v6828 = vadd.f32 0.0, %v6827
    %v6829 = vpop.f32.mrf.mxu0
    %6830 = vdwg.mxu0
    %6831 = vmatpush.bf16.msra.mxu0 0
    %6832 = vmatpush.bf16.msra.mxu0 0
    %6833 = vmatpush.bf16.msra.mxu0 0
    %6834 = vmatpush.bf16.msra.mxu0 0
    %6835 = vmatpush.bf16.msra.mxu0 0
    %6836 = vmatpush.bf16.msra.mxu0 0
    %6837 = vmatpush.bf16.msra.mxu0 0
    %6838 = vmatpush.bf16.msra.mxu0 %v6747
    %6839 = vmatmul.bf16.gmra.mxu0 %v159
    %v6840 = vpop.f32.mrf.mxu0
    %v6841 = vadd.f32 0.0, %v6840
    %v6842 = vpop.f32.mrf.mxu0
    %6843 = vdwg.mxu0
    %6844 = vmatpush.bf16.msra.mxu0 0
    %6845 = vmatpush.bf16.msra.mxu0 0
    %6846 = vmatpush.bf16.msra.mxu0 0
    %6847 = vmatpush.bf16.msra.mxu0 0
    %6848 = vmatpush.bf16.msra.mxu0 0
    %6849 = vmatpush.bf16.msra.mxu0 0
    %6850 = vmatpush.bf16.msra.mxu0 0
    %6851 = vmatpush.bf16.msra.mxu0 %v6750
    %6852 = vmatmul.bf16.gmra.mxu0 %v159
    %v6853 = vpop.f32.mrf.mxu0
    %v6854 = vadd.f32 0.0, %v6853
    %v6855 = vpop.f32.mrf.mxu0
    %6856 = vdwg.mxu0
    %6857 = vmatpush.bf16.msra.mxu0 0
    %6858 = vmatpush.bf16.msra.mxu0 0
    %6859 = vmatpush.bf16.msra.mxu0 0
    %6860 = vmatpush.bf16.msra.mxu0 0
    %6861 = vmatpush.bf16.msra.mxu0 0
    %6862 = vmatpush.bf16.msra.mxu0 0
    %6863 = vmatpush.bf16.msra.mxu0 0
    %6864 = vmatpush.bf16.msra.mxu0 %v6753
    %6865 = vmatmul.bf16.gmra.mxu0 %v159
    %v6866 = vpop.f32.mrf.mxu0
    %v6867 = vadd.f32 0.0, %v6866
    %v6868 = vpop.f32.mrf.mxu0
    %6869 = vdwg.mxu0
    %6870 = vmatpush.bf16.msra.mxu0 0
    %6871 = vmatpush.bf16.msra.mxu0 0
    %6872 = vmatpush.bf16.msra.mxu0 0
    %6873 = vmatpush.bf16.msra.mxu0 0
    %6874 = vmatpush.bf16.msra.mxu0 0
    %6875 = vmatpush.bf16.msra.mxu0 0
    %6876 = vmatpush.bf16.msra.mxu0 0
    %6877 = vmatpush.bf16.msra.mxu0 %v6756
    %6878 = vmatmul.bf16.gmra.mxu0 %v159
    %v6879 = vpop.f32.mrf.mxu0
    %v6880 = vadd.f32 0.0, %v6879
    %v6881 = vpop.f32.mrf.mxu0
    %6882 = vdwg.mxu0
    %6883 = vmatpush.bf16.msra.mxu0 0
    %6884 = vmatpush.bf16.msra.mxu0 0
    %6885 = vmatpush.bf16.msra.mxu0 0
    %6886 = vmatpush.bf16.msra.mxu0 0
    %6887 = vmatpush.bf16.msra.mxu0 0
    %6888 = vmatpush.bf16.msra.mxu0 0
    %6889 = vmatpush.bf16.msra.mxu0 0
    %6890 = vmatpush.bf16.msra.mxu0 %v6759
    %6891 = vmatmul.bf16.gmra.mxu0 %v159
    %v6892 = vpop.f32.mrf.mxu0
    %v6893 = vadd.f32 0.0, %v6892
    %v6894 = vpop.f32.mrf.mxu0
    %6895 = vdwg.mxu0
    %6896 = vmatpush.bf16.msra.mxu0 0
    %6897 = vmatpush.bf16.msra.mxu0 0
    %6898 = vmatpush.bf16.msra.mxu0 0
    %6899 = vmatpush.bf16.msra.mxu0 0
    %6900 = vmatpush.bf16.msra.mxu0 0
    %6901 = vmatpush.bf16.msra.mxu0 0
    %6902 = vmatpush.bf16.msra.mxu0 0
    %6903 = vmatpush.bf16.msra.mxu0 %v6762
    %6904 = vmatmul.bf16.gmra.mxu0 %v159
    %v6905 = vpop.f32.mrf.mxu0
    %v6906 = vadd.f32 0.0, %v6905
    %v6907 = vpop.f32.mrf.mxu0
    %6908 = vdwg.mxu0
    %6909 = vmatpush.bf16.msra.mxu0 0
    %6910 = vmatpush.bf16.msra.mxu0 0
    %6911 = vmatpush.bf16.msra.mxu0 0
    %6912 = vmatpush.bf16.msra.mxu0 0
    %6913 = vmatpush.bf16.msra.mxu0 0
    %6914 = vmatpush.bf16.msra.mxu0 0
    %6915 = vmatpush.bf16.msra.mxu0 0
    %6916 = vmatpush.bf16.msra.mxu0 %v6765
    %6917 = vmatmul.bf16.gmra.mxu0 %v159
    %v6918 = vpop.f32.mrf.mxu0
    %v6919 = vadd.f32 0.0, %v6918
    %v6920 = vpop.f32.mrf.mxu0
    %6921 = vdwg.mxu0
    %6922 = vmatpush.bf16.msra.mxu0 0
    %6923 = vmatpush.bf16.msra.mxu0 0
    %6924 = vmatpush.bf16.msra.mxu0 0
    %6925 = vmatpush.bf16.msra.mxu0 0
    %6926 = vmatpush.bf16.msra.mxu0 0
    %6927 = vmatpush.bf16.msra.mxu0 0
    %6928 = vmatpush.bf16.msra.mxu0 0
    %6929 = vmatpush.bf16.msra.mxu0 %v6768
    %6930 = vmatmul.bf16.gmra.mxu0 %v159
    %v6931 = vpop.f32.mrf.mxu0
    %v6932 = vadd.f32 0.0, %v6931
    %v6933 = vpop.f32.mrf.mxu0
    %6934 = vdwg.mxu0
    %6935 = vmatpush.bf16.msra.mxu0 0
    %6936 = vmatpush.bf16.msra.mxu0 0
    %6937 = vmatpush.bf16.msra.mxu0 0
    %6938 = vmatpush.bf16.msra.mxu0 0
    %6939 = vmatpush.bf16.msra.mxu0 0
    %6940 = vmatpush.bf16.msra.mxu0 0
    %6941 = vmatpush.bf16.msra.mxu0 0
    %6942 = vmatpush.bf16.msra.mxu0 %v6771
    %6943 = vmatmul.bf16.gmra.mxu0 %v159
    %v6944 = vpop.f32.mrf.mxu0
    %v6945 = vadd.f32 0.0, %v6944
    %v6946 = vpop.f32.mrf.mxu0
    %6947 = vdwg.mxu0
    %6948 = vmatpush.bf16.msra.mxu0 0
    %6949 = vmatpush.bf16.msra.mxu0 0
    %6950 = vmatpush.bf16.msra.mxu0 0
    %6951 = vmatpush.bf16.msra.mxu0 0
    %6952 = vmatpush.bf16.msra.mxu0 0
    %6953 = vmatpush.bf16.msra.mxu0 0
    %6954 = vmatpush.bf16.msra.mxu0 0
    %6955 = vmatpush.bf16.msra.mxu0 %v6774
    %6956 = vmatmul.bf16.gmra.mxu0 %v159
    %v6957 = vpop.f32.mrf.mxu0
    %v6958 = vadd.f32 0.0, %v6957
    %v6959 = vpop.f32.mrf.mxu0
    %6960 = vdwg.mxu0
    %6961 = vmatpush.bf16.msra.mxu0 0
    %6962 = vmatpush.bf16.msra.mxu0 0
    %6963 = vmatpush.bf16.msra.mxu0 0
    %6964 = vmatpush.bf16.msra.mxu0 0
    %6965 = vmatpush.bf16.msra.mxu0 0
    %6966 = vmatpush.bf16.msra.mxu0 0
    %6967 = vmatpush.bf16.msra.mxu0 0
    %6968 = vmatpush.bf16.msra.mxu0 %v6777
    %6969 = vmatmul.bf16.gmra.mxu0 %v159
    %v6970 = vpop.f32.mrf.mxu0
    %v6971 = vadd.f32 0.0, %v6970
    %v6972 = vpop.f32.mrf.mxu0
    %6973 = vdwg.mxu0
    %6974 = vst [vmem:[#allocation1] ss:$4 sm:$0xff] %v6641
    %s6975 = scalar_lea.vmem [#allocation1], 32
    %6976 = vst [vmem:[%s6975] ss:$4 sm:$0xff] %v6642
    %v6977 = vld.sshfl [vmem:[#allocation1] sm:$0xff pattern:$0x73625140]
    %v6978 = vld.sshfl [vmem:[#allocation1 + $0x8] sm:$0xff pattern:$0x73625140]
    %v6979 = vld.sshfl [vmem:[#allocation1 + $0x10] sm:$0xff pattern:$0x73625140]
    %v6980 = vld.sshfl [vmem:[#allocation1 + $0x18] sm:$0xff pattern:$0x73625140]
    %v6981 = vld.sshfl [vmem:[#allocation1 + $0x20] sm:$0xff pattern:$0x73625140]
    %v6982 = vld.sshfl [vmem:[#allocation1 + $0x28] sm:$0xff pattern:$0x73625140]
    %v6983 = vld.sshfl [vmem:[#allocation1 + $0x30] sm:$0xff pattern:$0x73625140]
    %v6984 = vld.sshfl [vmem:[#allocation1 + $0x38] sm:$0xff pattern:$0x73625140]
    %6985 = vst [vmem:[#allocation1] ss:$4 sm:$0xff] %v6643
    %6986 = vst [vmem:[%s6975] ss:$4 sm:$0xff] %v6644
    %v6987 = vld.sshfl [vmem:[#allocation1] sm:$0xff pattern:$0x73625140]
    %v6988 = vld.sshfl [vmem:[#allocation1 + $0x8] sm:$0xff pattern:$0x73625140]
    %v6989 = vld.sshfl [vmem:[#allocation1 + $0x10] sm:$0xff pattern:$0x73625140]
    %v6990 = vld.sshfl [vmem:[#allocation1 + $0x18] sm:$0xff pattern:$0x73625140]
    %v6991 = vld.sshfl [vmem:[#allocation1 + $0x20] sm:$0xff pattern:$0x73625140]
    %v6992 = vld.sshfl [vmem:[#allocation1 + $0x28] sm:$0xff pattern:$0x73625140]
    %v6993 = vld.sshfl [vmem:[#allocation1 + $0x30] sm:$0xff pattern:$0x73625140]
    %v6994 = vsel %vm161, %v6977, 0
    %v6996 = vsel %vm161, %v6978, 0
    %v6998 = vsel %vm161, %v6979, 0
    %v7000 = vsel %vm161, %v6980, 0
    %v7002 = vsel %vm161, %v6981, 0
    %v7004 = vsel %vm161, %v6982, 0
    %v7006 = vsel %vm161, %v6983, 0
    %v7008 = vsel %vm161, %v6984, 0
    %v7010 = vsel %vm161, %v6987, 0
    %v7012 = vsel %vm161, %v6988, 0
    %v7014 = vsel %vm161, %v6989, 0
    %v7016 = vsel %vm161, %v6990, 0
    %v7018 = vsel %vm161, %v6991, 0
    %v7020 = vsel %vm161, %v6992, 0
    %v7022 = vsel %vm161, %v6993, 0
    %7024 = vmatpush.bf16.msra.mxu0 0
    %7025 = vmatpush.bf16.msra.mxu0 0
    %7026 = vmatpush.bf16.msra.mxu0 0
    %7027 = vmatpush.bf16.msra.mxu0 0
    %7028 = vmatpush.bf16.msra.mxu0 0
    %7029 = vmatpush.bf16.msra.mxu0 0
    %7030 = vmatpush.bf16.msra.mxu0 0
    %7031 = vmatpush.bf16.msra.mxu0 %v6994
    %7032 = vmatmul.bf16.gmra.mxu0 %v423
    %v7033 = vpop.f32.mrf.mxu0
    %v7034 = vadd.f32 %v6789, %v7033
    %v7035 = vpop.f32.mrf.mxu0
    %7036 = vdwg.mxu0
    %7037 = vmatpush.bf16.msra.mxu0 0
    %7038 = vmatpush.bf16.msra.mxu0 0
    %7039 = vmatpush.bf16.msra.mxu0 0
    %7040 = vmatpush.bf16.msra.mxu0 0
    %7041 = vmatpush.bf16.msra.mxu0 0
    %7042 = vmatpush.bf16.msra.mxu0 0
    %7043 = vmatpush.bf16.msra.mxu0 0
    %7044 = vmatpush.bf16.msra.mxu0 %v6996
    %7045 = vmatmul.bf16.gmra.mxu0 %v423
    %v7046 = vpop.f32.mrf.mxu0
    %v7047 = vadd.f32 %v6802, %v7046
    %v7048 = vpop.f32.mrf.mxu0
    %7049 = vdwg.mxu0
    %7050 = vmatpush.bf16.msra.mxu0 0
    %7051 = vmatpush.bf16.msra.mxu0 0
    %7052 = vmatpush.bf16.msra.mxu0 0
    %7053 = vmatpush.bf16.msra.mxu0 0
    %7054 = vmatpush.bf16.msra.mxu0 0
    %7055 = vmatpush.bf16.msra.mxu0 0
    %7056 = vmatpush.bf16.msra.mxu0 0
    %7057 = vmatpush.bf16.msra.mxu0 %v6998
    %7058 = vmatmul.bf16.gmra.mxu0 %v423
    %v7059 = vpop.f32.mrf.mxu0
    %v7060 = vadd.f32 %v6815, %v7059
    %v7061 = vpop.f32.mrf.mxu0
    %7062 = vdwg.mxu0
    %7063 = vmatpush.bf16.msra.mxu0 0
    %7064 = vmatpush.bf16.msra.mxu0 0
    %7065 = vmatpush.bf16.msra.mxu0 0
    %7066 = vmatpush.bf16.msra.mxu0 0
    %7067 = vmatpush.bf16.msra.mxu0 0
    %7068 = vmatpush.bf16.msra.mxu0 0
    %7069 = vmatpush.bf16.msra.mxu0 0
    %7070 = vmatpush.bf16.msra.mxu0 %v7000
    %7071 = vmatmul.bf16.gmra.mxu0 %v423
    %v7072 = vpop.f32.mrf.mxu0
    %v7073 = vadd.f32 %v6828, %v7072
    %v7074 = vpop.f32.mrf.mxu0
    %7075 = vdwg.mxu0
    %7076 = vmatpush.bf16.msra.mxu0 0
    %7077 = vmatpush.bf16.msra.mxu0 0
    %7078 = vmatpush.bf16.msra.mxu0 0
    %7079 = vmatpush.bf16.msra.mxu0 0
    %7080 = vmatpush.bf16.msra.mxu0 0
    %7081 = vmatpush.bf16.msra.mxu0 0
    %7082 = vmatpush.bf16.msra.mxu0 0
    %7083 = vmatpush.bf16.msra.mxu0 %v7002
    %7084 = vmatmul.bf16.gmra.mxu0 %v423
    %v7085 = vpop.f32.mrf.mxu0
    %v7086 = vadd.f32 %v6841, %v7085
    %v7087 = vpop.f32.mrf.mxu0
    %7088 = vdwg.mxu0
    %7089 = vmatpush.bf16.msra.mxu0 0
    %7090 = vmatpush.bf16.msra.mxu0 0
    %7091 = vmatpush.bf16.msra.mxu0 0
    %7092 = vmatpush.bf16.msra.mxu0 0
    %7093 = vmatpush.bf16.msra.mxu0 0
    %7094 = vmatpush.bf16.msra.mxu0 0
    %7095 = vmatpush.bf16.msra.mxu0 0
    %7096 = vmatpush.bf16.msra.mxu0 %v7004
    %7097 = vmatmul.bf16.gmra.mxu0 %v423
    %v7098 = vpop.f32.mrf.mxu0
    %v7099 = vadd.f32 %v6854, %v7098
    %v7100 = vpop.f32.mrf.mxu0
    %7101 = vdwg.mxu0
    %7102 = vmatpush.bf16.msra.mxu0 0
    %7103 = vmatpush.bf16.msra.mxu0 0
    %7104 = vmatpush.bf16.msra.mxu0 0
    %7105 = vmatpush.bf16.msra.mxu0 0
    %7106 = vmatpush.bf16.msra.mxu0 0
    %7107 = vmatpush.bf16.msra.mxu0 0
    %7108 = vmatpush.bf16.msra.mxu0 0
    %7109 = vmatpush.bf16.msra.mxu0 %v7006
    %7110 = vmatmul.bf16.gmra.mxu0 %v423
    %v7111 = vpop.f32.mrf.mxu0
    %v7112 = vadd.f32 %v6867, %v7111
    %v7113 = vpop.f32.mrf.mxu0
    %7114 = vdwg.mxu0
    %7115 = vmatpush.bf16.msra.mxu0 0
    %7116 = vmatpush.bf16.msra.mxu0 0
    %7117 = vmatpush.bf16.msra.mxu0 0
    %7118 = vmatpush.bf16.msra.mxu0 0
    %7119 = vmatpush.bf16.msra.mxu0 0
    %7120 = vmatpush.bf16.msra.mxu0 0
    %7121 = vmatpush.bf16.msra.mxu0 0
    %7122 = vmatpush.bf16.msra.mxu0 %v7008
    %7123 = vmatmul.bf16.gmra.mxu0 %v423
    %v7124 = vpop.f32.mrf.mxu0
    %v7125 = vadd.f32 %v6880, %v7124
    %v7126 = vpop.f32.mrf.mxu0
    %7127 = vdwg.mxu0
    %7128 = vmatpush.bf16.msra.mxu0 0
    %7129 = vmatpush.bf16.msra.mxu0 0
    %7130 = vmatpush.bf16.msra.mxu0 0
    %7131 = vmatpush.bf16.msra.mxu0 0
    %7132 = vmatpush.bf16.msra.mxu0 0
    %7133 = vmatpush.bf16.msra.mxu0 0
    %7134 = vmatpush.bf16.msra.mxu0 0
    %7135 = vmatpush.bf16.msra.mxu0 %v7010
    %7136 = vmatmul.bf16.gmra.mxu0 %v423
    %v7137 = vpop.f32.mrf.mxu0
    %v7138 = vadd.f32 %v6893, %v7137
    %v7139 = vpop.f32.mrf.mxu0
    %7140 = vdwg.mxu0
    %7141 = vmatpush.bf16.msra.mxu0 0
    %7142 = vmatpush.bf16.msra.mxu0 0
    %7143 = vmatpush.bf16.msra.mxu0 0
    %7144 = vmatpush.bf16.msra.mxu0 0
    %7145 = vmatpush.bf16.msra.mxu0 0
    %7146 = vmatpush.bf16.msra.mxu0 0
    %7147 = vmatpush.bf16.msra.mxu0 0
    %7148 = vmatpush.bf16.msra.mxu0 %v7012
    %7149 = vmatmul.bf16.gmra.mxu0 %v423
    %v7150 = vpop.f32.mrf.mxu0
    %v7151 = vadd.f32 %v6906, %v7150
    %v7152 = vpop.f32.mrf.mxu0
    %7153 = vdwg.mxu0
    %7154 = vmatpush.bf16.msra.mxu0 0
    %7155 = vmatpush.bf16.msra.mxu0 0
    %7156 = vmatpush.bf16.msra.mxu0 0
    %7157 = vmatpush.bf16.msra.mxu0 0
    %7158 = vmatpush.bf16.msra.mxu0 0
    %7159 = vmatpush.bf16.msra.mxu0 0
    %7160 = vmatpush.bf16.msra.mxu0 0
    %7161 = vmatpush.bf16.msra.mxu0 %v7014
    %7162 = vmatmul.bf16.gmra.mxu0 %v423
    %v7163 = vpop.f32.mrf.mxu0
    %v7164 = vadd.f32 %v6919, %v7163
    %v7165 = vpop.f32.mrf.mxu0
    %7166 = vdwg.mxu0
    %7167 = vmatpush.bf16.msra.mxu0 0
    %7168 = vmatpush.bf16.msra.mxu0 0
    %7169 = vmatpush.bf16.msra.mxu0 0
    %7170 = vmatpush.bf16.msra.mxu0 0
    %7171 = vmatpush.bf16.msra.mxu0 0
    %7172 = vmatpush.bf16.msra.mxu0 0
    %7173 = vmatpush.bf16.msra.mxu0 0
    %7174 = vmatpush.bf16.msra.mxu0 %v7016
    %7175 = vmatmul.bf16.gmra.mxu0 %v423
    %v7176 = vpop.f32.mrf.mxu0
    %v7177 = vadd.f32 %v6932, %v7176
    %v7178 = vpop.f32.mrf.mxu0
    %7179 = vdwg.mxu0
    %7180 = vmatpush.bf16.msra.mxu0 0
    %7181 = vmatpush.bf16.msra.mxu0 0
    %7182 = vmatpush.bf16.msra.mxu0 0
    %7183 = vmatpush.bf16.msra.mxu0 0
    %7184 = vmatpush.bf16.msra.mxu0 0
    %7185 = vmatpush.bf16.msra.mxu0 0
    %7186 = vmatpush.bf16.msra.mxu0 0
    %7187 = vmatpush.bf16.msra.mxu0 %v7018
    %7188 = vmatmul.bf16.gmra.mxu0 %v423
    %v7189 = vpop.f32.mrf.mxu0
    %v7190 = vadd.f32 %v6945, %v7189
    %v7191 = vpop.f32.mrf.mxu0
    %7192 = vdwg.mxu0
    %7193 = vmatpush.bf16.msra.mxu0 0
    %7194 = vmatpush.bf16.msra.mxu0 0
    %7195 = vmatpush.bf16.msra.mxu0 0
    %7196 = vmatpush.bf16.msra.mxu0 0
    %7197 = vmatpush.bf16.msra.mxu0 0
    %7198 = vmatpush.bf16.msra.mxu0 0
    %7199 = vmatpush.bf16.msra.mxu0 0
    %7200 = vmatpush.bf16.msra.mxu0 %v7020
    %7201 = vmatmul.bf16.gmra.mxu0 %v423
    %v7202 = vpop.f32.mrf.mxu0
    %v7203 = vadd.f32 %v6958, %v7202
    %v7204 = vpop.f32.mrf.mxu0
    %7205 = vdwg.mxu0
    %7206 = vmatpush.bf16.msra.mxu0 0
    %7207 = vmatpush.bf16.msra.mxu0 0
    %7208 = vmatpush.bf16.msra.mxu0 0
    %7209 = vmatpush.bf16.msra.mxu0 0
    %7210 = vmatpush.bf16.msra.mxu0 0
    %7211 = vmatpush.bf16.msra.mxu0 0
    %7212 = vmatpush.bf16.msra.mxu0 0
    %7213 = vmatpush.bf16.msra.mxu0 %v7022
    %7214 = vmatmul.bf16.gmra.mxu0 %v423
    %v7215 = vpop.f32.mrf.mxu0
    %v7216 = vadd.f32 %v6971, %v7215
    %v7217 = vpop.f32.mrf.mxu0
    %7218 = vdwg.mxu0
    %7219 = vst [vmem:[#allocation1] ss:$4 sm:$0xff] %v6641
    %s7220 = scalar_lea.vmem [#allocation1], 32
    %7221 = vst [vmem:[%s7220] ss:$4 sm:$0xff] %v6642
    %v7222 = vld.sshfl [vmem:[#allocation1] sm:$0xff pattern:$0x73625140]
    %v7224 = vld.sshfl [vmem:[#allocation1 + $0x8] sm:$0xff pattern:$0x73625140]
    %v7226 = vld.sshfl [vmem:[#allocation1 + $0x10] sm:$0xff pattern:$0x73625140]
    %v7228 = vld.sshfl [vmem:[#allocation1 + $0x18] sm:$0xff pattern:$0x73625140]
    %v7230 = vld.sshfl [vmem:[#allocation1 + $0x20] sm:$0xff pattern:$0x73625140]
    %v7232 = vld.sshfl [vmem:[#allocation1 + $0x28] sm:$0xff pattern:$0x73625140]
    %v7234 = vld.sshfl [vmem:[#allocation1 + $0x30] sm:$0xff pattern:$0x73625140]
    %v7236 = vld.sshfl [vmem:[#allocation1 + $0x38] sm:$0xff pattern:$0x73625140]
    %7238 = vst [vmem:[#allocation1] ss:$4 sm:$0xff] %v6643
    %7239 = vst [vmem:[%s7220] ss:$4 sm:$0xff] %v6644
    %v7240 = vld.sshfl [vmem:[#allocation1] sm:$0xff pattern:$0x73625140]
    %v7242 = vld.sshfl [vmem:[#allocation1 + $0x8] sm:$0xff pattern:$0x73625140]
    %v7244 = vld.sshfl [vmem:[#allocation1 + $0x10] sm:$0xff pattern:$0x73625140]
    %v7246 = vld.sshfl [vmem:[#allocation1 + $0x18] sm:$0xff pattern:$0x73625140]
    %v7248 = vld.sshfl [vmem:[#allocation1 + $0x20] sm:$0xff pattern:$0x73625140]
    %v7250 = vld.sshfl [vmem:[#allocation1 + $0x28] sm:$0xff pattern:$0x73625140]
    %v7252 = vld.sshfl [vmem:[#allocation1 + $0x30] sm:$0xff pattern:$0x73625140]
    %v7254 = vld.sshfl [vmem:[#allocation1 + $0x38] sm:$0xff pattern:$0x73625140]
    %7256 = vrot.lane.b32.xlu0 %v7222, 126
    %v7257 = vpop.permute.xlu0 %7256
    %7258 = vrot.lane.b32.xlu0 %v7224, 126
    %v7259 = vpop.permute.xlu0 %7258
    %7260 = vrot.lane.b32.xlu0 %v7226, 126
    %v7261 = vpop.permute.xlu0 %7260
    %7262 = vrot.lane.b32.xlu0 %v7228, 126
    %v7263 = vpop.permute.xlu0 %7262
    %7264 = vrot.lane.b32.xlu0 %v7230, 126
    %v7265 = vpop.permute.xlu0 %7264
    %7266 = vrot.lane.b32.xlu0 %v7232, 126
    %v7267 = vpop.permute.xlu0 %7266
    %7268 = vrot.lane.b32.xlu0 %v7234, 126
    %v7269 = vpop.permute.xlu0 %7268
    %7270 = vrot.lane.b32.xlu0 %v7236, 126
    %v7271 = vpop.permute.xlu0 %7270
    %7272 = vrot.lane.b32.xlu0 %v7240, 126
    %v7273 = vpop.permute.xlu0 %7272
    %7274 = vrot.lane.b32.xlu0 %v7242, 126
    %v7275 = vpop.permute.xlu0 %7274
    %7276 = vrot.lane.b32.xlu0 %v7244, 126
    %v7277 = vpop.permute.xlu0 %7276
    %7278 = vrot.lane.b32.xlu0 %v7246, 126
    %v7279 = vpop.permute.xlu0 %7278
    %7280 = vrot.lane.b32.xlu0 %v7248, 126
    %v7281 = vpop.permute.xlu0 %7280
    %7282 = vrot.lane.b32.xlu0 %v7250, 126
    %v7283 = vpop.permute.xlu0 %7282
    %7284 = vrot.lane.b32.xlu0 %v7252, 126
    %v7285 = vpop.permute.xlu0 %7284
    %7286 = vrot.lane.b32.xlu0 %v7254, 126
    %v7287 = vpop.permute.xlu0 %7286
    %v7288 = vsel %vm721, %v7257, %v7259
    %v7289 = vsel %vm721, %v7259, %v7261
    %v7290 = vsel %vm721, %v7261, %v7263
    %v7291 = vsel %vm721, %v7263, %v7265
    %v7292 = vsel %vm721, %v7265, %v7267
    %v7293 = vsel %vm721, %v7267, %v7269
    %v7294 = vsel %vm721, %v7269, %v7271
    %v7295 = vsel %vm721, %v7271, %v7273
    %v7296 = vsel %vm721, %v7273, %v7275
    %v7297 = vsel %vm721, %v7275, %v7277
    %v7298 = vsel %vm721, %v7277, %v7279
    %v7299 = vsel %vm721, %v7279, %v7281
    %v7300 = vsel %vm721, %v7281, %v7283
    %v7301 = vsel %vm721, %v7283, %v7285
    %v7302 = vsel %vm721, %v7285, %v7287
    %v7304 = vsel %vm161, %v7288, 0
    %v7307 = vsel %vm161, %v7289, 0
    %v7310 = vsel %vm161, %v7290, 0
    %v7313 = vsel %vm161, %v7291, 0
    %v7316 = vsel %vm161, %v7292, 0
    %v7319 = vsel %vm161, %v7293, 0
    %v7322 = vsel %vm161, %v7294, 0
    %v7325 = vsel %vm161, %v7295, 0
    %v7328 = vsel %vm161, %v7296, 0
    %v7331 = vsel %vm161, %v7297, 0
    %v7334 = vsel %vm161, %v7298, 0
    %v7337 = vsel %vm161, %v7299, 0
    %v7340 = vsel %vm161, %v7300, 0
    %v7343 = vsel %vm161, %v7301, 0
    %v7346 = vsel %vm161, %v7302, 0
    %7348 = vmatpush.bf16.msra.mxu0 0
    %7349 = vmatpush.bf16.msra.mxu0 0
    %7350 = vmatpush.bf16.msra.mxu0 0
    %7351 = vmatpush.bf16.msra.mxu0 0
    %7352 = vmatpush.bf16.msra.mxu0 0
    %7353 = vmatpush.bf16.msra.mxu0 0
    %7354 = vmatpush.bf16.msra.mxu0 0
    %7355 = vmatpush.bf16.msra.mxu0 %v7304
    %7356 = vmatmul.bf16.gmra.mxu0 %v738
    %v7357 = vpop.f32.mrf.mxu0
    %v7358 = vadd.f32 0.0, %v7357
    %v7359 = vpop.f32.mrf.mxu0
    %7360 = vdwg.mxu0
    %7361 = vmatpush.bf16.msra.mxu0 0
    %7362 = vmatpush.bf16.msra.mxu0 0
    %7363 = vmatpush.bf16.msra.mxu0 0
    %7364 = vmatpush.bf16.msra.mxu0 0
    %7365 = vmatpush.bf16.msra.mxu0 0
    %7366 = vmatpush.bf16.msra.mxu0 0
    %7367 = vmatpush.bf16.msra.mxu0 0
    %7368 = vmatpush.bf16.msra.mxu0 %v7307
    %7369 = vmatmul.bf16.gmra.mxu0 %v738
    %v7370 = vpop.f32.mrf.mxu0
    %v7371 = vadd.f32 0.0, %v7370
    %v7372 = vpop.f32.mrf.mxu0
    %7373 = vdwg.mxu0
    %7374 = vmatpush.bf16.msra.mxu0 0
    %7375 = vmatpush.bf16.msra.mxu0 0
    %7376 = vmatpush.bf16.msra.mxu0 0
    %7377 = vmatpush.bf16.msra.mxu0 0
    %7378 = vmatpush.bf16.msra.mxu0 0
    %7379 = vmatpush.bf16.msra.mxu0 0
    %7380 = vmatpush.bf16.msra.mxu0 0
    %7381 = vmatpush.bf16.msra.mxu0 %v7310
    %7382 = vmatmul.bf16.gmra.mxu0 %v738
    %v7383 = vpop.f32.mrf.mxu0
    %v7384 = vadd.f32 0.0, %v7383
    %v7385 = vpop.f32.mrf.mxu0
    %7386 = vdwg.mxu0
    %7387 = vmatpush.bf16.msra.mxu0 0
    %7388 = vmatpush.bf16.msra.mxu0 0
    %7389 = vmatpush.bf16.msra.mxu0 0
    %7390 = vmatpush.bf16.msra.mxu0 0
    %7391 = vmatpush.bf16.msra.mxu0 0
    %7392 = vmatpush.bf16.msra.mxu0 0
    %7393 = vmatpush.bf16.msra.mxu0 0
    %7394 = vmatpush.bf16.msra.mxu0 %v7313
    %7395 = vmatmul.bf16.gmra.mxu0 %v738
    %v7396 = vpop.f32.mrf.mxu0
    %v7397 = vadd.f32 0.0, %v7396
    %v7398 = vpop.f32.mrf.mxu0
    %7399 = vdwg.mxu0
    %7400 = vmatpush.bf16.msra.mxu0 0
    %7401 = vmatpush.bf16.msra.mxu0 0
    %7402 = vmatpush.bf16.msra.mxu0 0
    %7403 = vmatpush.bf16.msra.mxu0 0
    %7404 = vmatpush.bf16.msra.mxu0 0
    %7405 = vmatpush.bf16.msra.mxu0 0
    %7406 = vmatpush.bf16.msra.mxu0 0
    %7407 = vmatpush.bf16.msra.mxu0 %v7316
    %7408 = vmatmul.bf16.gmra.mxu0 %v738
    %v7409 = vpop.f32.mrf.mxu0
    %v7410 = vadd.f32 0.0, %v7409
    %v7411 = vpop.f32.mrf.mxu0
    %7412 = vdwg.mxu0
    %7413 = vmatpush.bf16.msra.mxu0 0
    %7414 = vmatpush.bf16.msra.mxu0 0
    %7415 = vmatpush.bf16.msra.mxu0 0
    %7416 = vmatpush.bf16.msra.mxu0 0
    %7417 = vmatpush.bf16.msra.mxu0 0
    %7418 = vmatpush.bf16.msra.mxu0 0
    %7419 = vmatpush.bf16.msra.mxu0 0
    %7420 = vmatpush.bf16.msra.mxu0 %v7319
    %7421 = vmatmul.bf16.gmra.mxu0 %v738
    %v7422 = vpop.f32.mrf.mxu0
    %v7423 = vadd.f32 0.0, %v7422
    %v7424 = vpop.f32.mrf.mxu0
    %7425 = vdwg.mxu0
    %7426 = vmatpush.bf16.msra.mxu0 0
    %7427 = vmatpush.bf16.msra.mxu0 0
    %7428 = vmatpush.bf16.msra.mxu0 0
    %7429 = vmatpush.bf16.msra.mxu0 0
    %7430 = vmatpush.bf16.msra.mxu0 0
    %7431 = vmatpush.bf16.msra.mxu0 0
    %7432 = vmatpush.bf16.msra.mxu0 0
    %7433 = vmatpush.bf16.msra.mxu0 %v7322
    %7434 = vmatmul.bf16.gmra.mxu0 %v738
    %v7435 = vpop.f32.mrf.mxu0
    %v7436 = vadd.f32 0.0, %v7435
    %v7437 = vpop.f32.mrf.mxu0
    %7438 = vdwg.mxu0
    %7439 = vmatpush.bf16.msra.mxu0 0
    %7440 = vmatpush.bf16.msra.mxu0 0
    %7441 = vmatpush.bf16.msra.mxu0 0
    %7442 = vmatpush.bf16.msra.mxu0 0
    %7443 = vmatpush.bf16.msra.mxu0 0
    %7444 = vmatpush.bf16.msra.mxu0 0
    %7445 = vmatpush.bf16.msra.mxu0 0
    %7446 = vmatpush.bf16.msra.mxu0 %v7325
    %7447 = vmatmul.bf16.gmra.mxu0 %v738
    %v7448 = vpop.f32.mrf.mxu0
    %v7449 = vadd.f32 0.0, %v7448
    %v7450 = vpop.f32.mrf.mxu0
    %7451 = vdwg.mxu0
    %7452 = vmatpush.bf16.msra.mxu0 0
    %7453 = vmatpush.bf16.msra.mxu0 0
    %7454 = vmatpush.bf16.msra.mxu0 0
    %7455 = vmatpush.bf16.msra.mxu0 0
    %7456 = vmatpush.bf16.msra.mxu0 0
    %7457 = vmatpush.bf16.msra.mxu0 0
    %7458 = vmatpush.bf16.msra.mxu0 0
    %7459 = vmatpush.bf16.msra.mxu0 %v7328
    %7460 = vmatmul.bf16.gmra.mxu0 %v738
    %v7461 = vpop.f32.mrf.mxu0
    %v7462 = vadd.f32 0.0, %v7461
    %v7463 = vpop.f32.mrf.mxu0
    %7464 = vdwg.mxu0
    %7465 = vmatpush.bf16.msra.mxu0 0
    %7466 = vmatpush.bf16.msra.mxu0 0
    %7467 = vmatpush.bf16.msra.mxu0 0
    %7468 = vmatpush.bf16.msra.mxu0 0
    %7469 = vmatpush.bf16.msra.mxu0 0
    %7470 = vmatpush.bf16.msra.mxu0 0
    %7471 = vmatpush.bf16.msra.mxu0 0
    %7472 = vmatpush.bf16.msra.mxu0 %v7331
    %7473 = vmatmul.bf16.gmra.mxu0 %v738
    %v7474 = vpop.f32.mrf.mxu0
    %v7475 = vadd.f32 0.0, %v7474
    %v7476 = vpop.f32.mrf.mxu0
    %7477 = vdwg.mxu0
    %7478 = vmatpush.bf16.msra.mxu0 0
    %7479 = vmatpush.bf16.msra.mxu0 0
    %7480 = vmatpush.bf16.msra.mxu0 0
    %7481 = vmatpush.bf16.msra.mxu0 0
    %7482 = vmatpush.bf16.msra.mxu0 0
    %7483 = vmatpush.bf16.msra.mxu0 0
    %7484 = vmatpush.bf16.msra.mxu0 0
    %7485 = vmatpush.bf16.msra.mxu0 %v7334
    %7486 = vmatmul.bf16.gmra.mxu0 %v738
    %v7487 = vpop.f32.mrf.mxu0
    %v7488 = vadd.f32 0.0, %v7487
    %v7489 = vpop.f32.mrf.mxu0
    %7490 = vdwg.mxu0
    %7491 = vmatpush.bf16.msra.mxu0 0
    %7492 = vmatpush.bf16.msra.mxu0 0
    %7493 = vmatpush.bf16.msra.mxu0 0
    %7494 = vmatpush.bf16.msra.mxu0 0
    %7495 = vmatpush.bf16.msra.mxu0 0
    %7496 = vmatpush.bf16.msra.mxu0 0
    %7497 = vmatpush.bf16.msra.mxu0 0
    %7498 = vmatpush.bf16.msra.mxu0 %v7337
    %7499 = vmatmul.bf16.gmra.mxu0 %v738
    %v7500 = vpop.f32.mrf.mxu0
    %v7501 = vadd.f32 0.0, %v7500
    %v7502 = vpop.f32.mrf.mxu0
    %7503 = vdwg.mxu0
    %7504 = vmatpush.bf16.msra.mxu0 0
    %7505 = vmatpush.bf16.msra.mxu0 0
    %7506 = vmatpush.bf16.msra.mxu0 0
    %7507 = vmatpush.bf16.msra.mxu0 0
    %7508 = vmatpush.bf16.msra.mxu0 0
    %7509 = vmatpush.bf16.msra.mxu0 0
    %7510 = vmatpush.bf16.msra.mxu0 0
    %7511 = vmatpush.bf16.msra.mxu0 %v7340
    %7512 = vmatmul.bf16.gmra.mxu0 %v738
    %v7513 = vpop.f32.mrf.mxu0
    %v7514 = vadd.f32 0.0, %v7513
    %v7515 = vpop.f32.mrf.mxu0
    %7516 = vdwg.mxu0
    %7517 = vmatpush.bf16.msra.mxu0 0
    %7518 = vmatpush.bf16.msra.mxu0 0
    %7519 = vmatpush.bf16.msra.mxu0 0
    %7520 = vmatpush.bf16.msra.mxu0 0
    %7521 = vmatpush.bf16.msra.mxu0 0
    %7522 = vmatpush.bf16.msra.mxu0 0
    %7523 = vmatpush.bf16.msra.mxu0 0
    %7524 = vmatpush.bf16.msra.mxu0 %v7343
    %7525 = vmatmul.bf16.gmra.mxu0 %v738
    %v7526 = vpop.f32.mrf.mxu0
    %v7527 = vadd.f32 0.0, %v7526
    %v7528 = vpop.f32.mrf.mxu0
    %7529 = vdwg.mxu0
    %7530 = vmatpush.bf16.msra.mxu0 0
    %7531 = vmatpush.bf16.msra.mxu0 0
    %7532 = vmatpush.bf16.msra.mxu0 0
    %7533 = vmatpush.bf16.msra.mxu0 0
    %7534 = vmatpush.bf16.msra.mxu0 0
    %7535 = vmatpush.bf16.msra.mxu0 0
    %7536 = vmatpush.bf16.msra.mxu0 0
    %7537 = vmatpush.bf16.msra.mxu0 %v7346
    %7538 = vmatmul.bf16.gmra.mxu0 %v738
    %v7539 = vpop.f32.mrf.mxu0
    %v7540 = vadd.f32 0.0, %v7539
    %v7541 = vpop.f32.mrf.mxu0
    %7542 = vdwg.mxu0
    %v7543 = vadd.f32 %v7034, %v7358
    %v7544 = vadd.f32 %v7047, %v7371
    %v7545 = vadd.f32 %v7060, %v7384
    %v7546 = vadd.f32 %v7073, %v7397
    %v7547 = vadd.f32 %v7086, %v7410
    %v7548 = vadd.f32 %v7099, %v7423
    %v7549 = vadd.f32 %v7112, %v7436
    %v7550 = vadd.f32 %v7125, %v7449
    %v7551 = vadd.f32 %v7138, %v7462
    %v7552 = vadd.f32 %v7151, %v7475
    %v7553 = vadd.f32 %v7164, %v7488
    %v7554 = vadd.f32 %v7177, %v7501
    %v7555 = vadd.f32 %v7190, %v7514
    %v7556 = vadd.f32 %v7203, %v7527
    %v7557 = vadd.f32 %v7216, %v7540
    %7558 = vst [vmem:[#allocation1] ss:$4 sm:$0xff] %v6641
    %s7559 = scalar_lea.vmem [#allocation1], 32
    %7560 = vst [vmem:[%s7559] ss:$4 sm:$0xff] %v6642
    %v7561 = vld.sshfl [vmem:[#allocation1] sm:$0xff pattern:$0x73625140]
    %v7563 = vld.sshfl [vmem:[#allocation1 + $0x8] sm:$0xff pattern:$0x73625140]
    %v7565 = vld.sshfl [vmem:[#allocation1 + $0x10] sm:$0xff pattern:$0x73625140]
    %v7567 = vld.sshfl [vmem:[#allocation1 + $0x18] sm:$0xff pattern:$0x73625140]
    %v7569 = vld.sshfl [vmem:[#allocation1 + $0x20] sm:$0xff pattern:$0x73625140]
    %v7571 = vld.sshfl [vmem:[#allocation1 + $0x28] sm:$0xff pattern:$0x73625140]
    %v7573 = vld.sshfl [vmem:[#allocation1 + $0x30] sm:$0xff pattern:$0x73625140]
    %v7575 = vld.sshfl [vmem:[#allocation1 + $0x38] sm:$0xff pattern:$0x73625140]
    %7577 = vst [vmem:[#allocation1] ss:$4 sm:$0xff] %v6643
    %7578 = vst [vmem:[%s7559] ss:$4 sm:$0xff] %v6644
    %v7579 = vld.sshfl [vmem:[#allocation1] sm:$0xff pattern:$0x73625140]
    %v7581 = vld.sshfl [vmem:[#allocation1 + $0x8] sm:$0xff pattern:$0x73625140]
    %v7583 = vld.sshfl [vmem:[#allocation1 + $0x10] sm:$0xff pattern:$0x73625140]
    %v7585 = vld.sshfl [vmem:[#allocation1 + $0x18] sm:$0xff pattern:$0x73625140]
    %v7587 = vld.sshfl [vmem:[#allocation1 + $0x20] sm:$0xff pattern:$0x73625140]
    %v7589 = vld.sshfl [vmem:[#allocation1 + $0x28] sm:$0xff pattern:$0x73625140]
    %v7591 = vld.sshfl [vmem:[#allocation1 + $0x30] sm:$0xff pattern:$0x73625140]
    %v7593 = vld.sshfl [vmem:[#allocation1 + $0x38] sm:$0xff pattern:$0x73625140]
    %7595 = vrot.lane.b32.xlu0 %v7561, 125
    %v7596 = vpop.permute.xlu0 %7595
    %7597 = vrot.lane.b32.xlu0 %v7563, 125
    %v7598 = vpop.permute.xlu0 %7597
    %7599 = vrot.lane.b32.xlu0 %v7565, 125
    %v7600 = vpop.permute.xlu0 %7599
    %7601 = vrot.lane.b32.xlu0 %v7567, 125
    %v7602 = vpop.permute.xlu0 %7601
    %7603 = vrot.lane.b32.xlu0 %v7569, 125
    %v7604 = vpop.permute.xlu0 %7603
    %7605 = vrot.lane.b32.xlu0 %v7571, 125
    %v7606 = vpop.permute.xlu0 %7605
    %7607 = vrot.lane.b32.xlu0 %v7573, 125
    %v7608 = vpop.permute.xlu0 %7607
    %7609 = vrot.lane.b32.xlu0 %v7575, 125
    %v7610 = vpop.permute.xlu0 %7609
    %7611 = vrot.lane.b32.xlu0 %v7579, 125
    %v7612 = vpop.permute.xlu0 %7611
    %7613 = vrot.lane.b32.xlu0 %v7581, 125
    %v7614 = vpop.permute.xlu0 %7613
    %7615 = vrot.lane.b32.xlu0 %v7583, 125
    %v7616 = vpop.permute.xlu0 %7615
    %7617 = vrot.lane.b32.xlu0 %v7585, 125
    %v7618 = vpop.permute.xlu0 %7617
    %7619 = vrot.lane.b32.xlu0 %v7587, 125
    %v7620 = vpop.permute.xlu0 %7619
    %7621 = vrot.lane.b32.xlu0 %v7589, 125
    %v7622 = vpop.permute.xlu0 %7621
    %7623 = vrot.lane.b32.xlu0 %v7591, 125
    %v7624 = vpop.permute.xlu0 %7623
    %7625 = vrot.lane.b32.xlu0 %v7593, 125
    %v7626 = vpop.permute.xlu0 %7625
    %v7627 = vsel %vm1066, %v7596, %v7598
    %v7628 = vsel %vm1066, %v7598, %v7600
    %v7629 = vsel %vm1066, %v7600, %v7602
    %v7630 = vsel %vm1066, %v7602, %v7604
    %v7631 = vsel %vm1066, %v7604, %v7606
    %v7632 = vsel %vm1066, %v7606, %v7608
    %v7633 = vsel %vm1066, %v7608, %v7610
    %v7634 = vsel %vm1066, %v7610, %v7612
    %v7635 = vsel %vm1066, %v7612, %v7614
    %v7636 = vsel %vm1066, %v7614, %v7616
    %v7637 = vsel %vm1066, %v7616, %v7618
    %v7638 = vsel %vm1066, %v7618, %v7620
    %v7639 = vsel %vm1066, %v7620, %v7622
    %v7640 = vsel %vm1066, %v7622, %v7624
    %v7641 = vsel %vm1066, %v7624, %v7626
    %v7643 = vsel %vm161, %v7627, 0
    %v7646 = vsel %vm161, %v7628, 0
    %v7649 = vsel %vm161, %v7629, 0
    %v7652 = vsel %vm161, %v7630, 0
    %v7655 = vsel %vm161, %v7631, 0
    %v7658 = vsel %vm161, %v7632, 0
    %v7661 = vsel %vm161, %v7633, 0
    %v7664 = vsel %vm161, %v7634, 0
    %v7667 = vsel %vm161, %v7635, 0
    %v7670 = vsel %vm161, %v7636, 0
    %v7673 = vsel %vm161, %v7637, 0
    %v7676 = vsel %vm161, %v7638, 0
    %v7679 = vsel %vm161, %v7639, 0
    %v7682 = vsel %vm161, %v7640, 0
    %v7685 = vsel %vm161, %v7641, 0
    %7687 = vmatpush.bf16.msra.mxu0 0
    %7688 = vmatpush.bf16.msra.mxu0 0
    %7689 = vmatpush.bf16.msra.mxu0 0
    %7690 = vmatpush.bf16.msra.mxu0 0
    %7691 = vmatpush.bf16.msra.mxu0 0
    %7692 = vmatpush.bf16.msra.mxu0 0
    %7693 = vmatpush.bf16.msra.mxu0 0
    %7694 = vmatpush.bf16.msra.mxu0 %v7643
    %7695 = vmatmul.bf16.gmra.mxu0 %v1083
    %v7696 = vpop.f32.mrf.mxu0
    %v7697 = vadd.f32 0.0, %v7696
    %v7698 = vpop.f32.mrf.mxu0
    %7699 = vdwg.mxu0
    %7700 = vmatpush.bf16.msra.mxu0 0
    %7701 = vmatpush.bf16.msra.mxu0 0
    %7702 = vmatpush.bf16.msra.mxu0 0
    %7703 = vmatpush.bf16.msra.mxu0 0
    %7704 = vmatpush.bf16.msra.mxu0 0
    %7705 = vmatpush.bf16.msra.mxu0 0
    %7706 = vmatpush.bf16.msra.mxu0 0
    %7707 = vmatpush.bf16.msra.mxu0 %v7646
    %7708 = vmatmul.bf16.gmra.mxu0 %v1083
    %v7709 = vpop.f32.mrf.mxu0
    %v7710 = vadd.f32 0.0, %v7709
    %v7711 = vpop.f32.mrf.mxu0
    %7712 = vdwg.mxu0
    %7713 = vmatpush.bf16.msra.mxu0 0
    %7714 = vmatpush.bf16.msra.mxu0 0
    %7715 = vmatpush.bf16.msra.mxu0 0
    %7716 = vmatpush.bf16.msra.mxu0 0
    %7717 = vmatpush.bf16.msra.mxu0 0
    %7718 = vmatpush.bf16.msra.mxu0 0
    %7719 = vmatpush.bf16.msra.mxu0 0
    %7720 = vmatpush.bf16.msra.mxu0 %v7649
    %7721 = vmatmul.bf16.gmra.mxu0 %v1083
    %v7722 = vpop.f32.mrf.mxu0
    %v7723 = vadd.f32 0.0, %v7722
    %v7724 = vpop.f32.mrf.mxu0
    %7725 = vdwg.mxu0
    %7726 = vmatpush.bf16.msra.mxu0 0
    %7727 = vmatpush.bf16.msra.mxu0 0
    %7728 = vmatpush.bf16.msra.mxu0 0
    %7729 = vmatpush.bf16.msra.mxu0 0
    %7730 = vmatpush.bf16.msra.mxu0 0
    %7731 = vmatpush.bf16.msra.mxu0 0
    %7732 = vmatpush.bf16.msra.mxu0 0
    %7733 = vmatpush.bf16.msra.mxu0 %v7652
    %7734 = vmatmul.bf16.gmra.mxu0 %v1083
    %v7735 = vpop.f32.mrf.mxu0
    %v7736 = vadd.f32 0.0, %v7735
    %v7737 = vpop.f32.mrf.mxu0
    %7738 = vdwg.mxu0
    %7739 = vmatpush.bf16.msra.mxu0 0
    %7740 = vmatpush.bf16.msra.mxu0 0
    %7741 = vmatpush.bf16.msra.mxu0 0
    %7742 = vmatpush.bf16.msra.mxu0 0
    %7743 = vmatpush.bf16.msra.mxu0 0
    %7744 = vmatpush.bf16.msra.mxu0 0
    %7745 = vmatpush.bf16.msra.mxu0 0
    %7746 = vmatpush.bf16.msra.mxu0 %v7655
    %7747 = vmatmul.bf16.gmra.mxu0 %v1083
    %v7748 = vpop.f32.mrf.mxu0
    %v7749 = vadd.f32 0.0, %v7748
    %v7750 = vpop.f32.mrf.mxu0
    %7751 = vdwg.mxu0
    %7752 = vmatpush.bf16.msra.mxu0 0
    %7753 = vmatpush.bf16.msra.mxu0 0
    %7754 = vmatpush.bf16.msra.mxu0 0
    %7755 = vmatpush.bf16.msra.mxu0 0
    %7756 = vmatpush.bf16.msra.mxu0 0
    %7757 = vmatpush.bf16.msra.mxu0 0
    %7758 = vmatpush.bf16.msra.mxu0 0
    %7759 = vmatpush.bf16.msra.mxu0 %v7658
    %7760 = vmatmul.bf16.gmra.mxu0 %v1083
    %v7761 = vpop.f32.mrf.mxu0
    %v7762 = vadd.f32 0.0, %v7761
    %v7763 = vpop.f32.mrf.mxu0
    %7764 = vdwg.mxu0
    %7765 = vmatpush.bf16.msra.mxu0 0
    %7766 = vmatpush.bf16.msra.mxu0 0
    %7767 = vmatpush.bf16.msra.mxu0 0
    %7768 = vmatpush.bf16.msra.mxu0 0
    %7769 = vmatpush.bf16.msra.mxu0 0
    %7770 = vmatpush.bf16.msra.mxu0 0
    %7771 = vmatpush.bf16.msra.mxu0 0
    %7772 = vmatpush.bf16.msra.mxu0 %v7661
    %7773 = vmatmul.bf16.gmra.mxu0 %v1083
    %v7774 = vpop.f32.mrf.mxu0
    %v7775 = vadd.f32 0.0, %v7774
    %v7776 = vpop.f32.mrf.mxu0
    %7777 = vdwg.mxu0
    %7778 = vmatpush.bf16.msra.mxu0 0
    %7779 = vmatpush.bf16.msra.mxu0 0
    %7780 = vmatpush.bf16.msra.mxu0 0
    %7781 = vmatpush.bf16.msra.mxu0 0
    %7782 = vmatpush.bf16.msra.mxu0 0
    %7783 = vmatpush.bf16.msra.mxu0 0
    %7784 = vmatpush.bf16.msra.mxu0 0
    %7785 = vmatpush.bf16.msra.mxu0 %v7664
    %7786 = vmatmul.bf16.gmra.mxu0 %v1083
    %v7787 = vpop.f32.mrf.mxu0
    %v7788 = vadd.f32 0.0, %v7787
    %v7789 = vpop.f32.mrf.mxu0
    %7790 = vdwg.mxu0
    %7791 = vmatpush.bf16.msra.mxu0 0
    %7792 = vmatpush.bf16.msra.mxu0 0
    %7793 = vmatpush.bf16.msra.mxu0 0
    %7794 = vmatpush.bf16.msra.mxu0 0
    %7795 = vmatpush.bf16.msra.mxu0 0
    %7796 = vmatpush.bf16.msra.mxu0 0
    %7797 = vmatpush.bf16.msra.mxu0 0
    %7798 = vmatpush.bf16.msra.mxu0 %v7667
    %7799 = vmatmul.bf16.gmra.mxu0 %v1083
    %v7800 = vpop.f32.mrf.mxu0
    %v7801 = vadd.f32 0.0, %v7800
    %v7802 = vpop.f32.mrf.mxu0
    %7803 = vdwg.mxu0
    %7804 = vmatpush.bf16.msra.mxu0 0
    %7805 = vmatpush.bf16.msra.mxu0 0
    %7806 = vmatpush.bf16.msra.mxu0 0
    %7807 = vmatpush.bf16.msra.mxu0 0
    %7808 = vmatpush.bf16.msra.mxu0 0
    %7809 = vmatpush.bf16.msra.mxu0 0
    %7810 = vmatpush.bf16.msra.mxu0 0
    %7811 = vmatpush.bf16.msra.mxu0 %v7670
    %7812 = vmatmul.bf16.gmra.mxu0 %v1083
    %v7813 = vpop.f32.mrf.mxu0
    %v7814 = vadd.f32 0.0, %v7813
    %v7815 = vpop.f32.mrf.mxu0
    %7816 = vdwg.mxu0
    %7817 = vmatpush.bf16.msra.mxu0 0
    %7818 = vmatpush.bf16.msra.mxu0 0
    %7819 = vmatpush.bf16.msra.mxu0 0
    %7820 = vmatpush.bf16.msra.mxu0 0
    %7821 = vmatpush.bf16.msra.mxu0 0
    %7822 = vmatpush.bf16.msra.mxu0 0
    %7823 = vmatpush.bf16.msra.mxu0 0
    %7824 = vmatpush.bf16.msra.mxu0 %v7673
    %7825 = vmatmul.bf16.gmra.mxu0 %v1083
    %v7826 = vpop.f32.mrf.mxu0
    %v7827 = vadd.f32 0.0, %v7826
    %v7828 = vpop.f32.mrf.mxu0
    %7829 = vdwg.mxu0
    %7830 = vmatpush.bf16.msra.mxu0 0
    %7831 = vmatpush.bf16.msra.mxu0 0
    %7832 = vmatpush.bf16.msra.mxu0 0
    %7833 = vmatpush.bf16.msra.mxu0 0
    %7834 = vmatpush.bf16.msra.mxu0 0
    %7835 = vmatpush.bf16.msra.mxu0 0
    %7836 = vmatpush.bf16.msra.mxu0 0
    %7837 = vmatpush.bf16.msra.mxu0 %v7676
    %7838 = vmatmul.bf16.gmra.mxu0 %v1083
    %v7839 = vpop.f32.mrf.mxu0
    %v7840 = vadd.f32 0.0, %v7839
    %v7841 = vpop.f32.mrf.mxu0
    %7842 = vdwg.mxu0
    %7843 = vmatpush.bf16.msra.mxu0 0
    %7844 = vmatpush.bf16.msra.mxu0 0
    %7845 = vmatpush.bf16.msra.mxu0 0
    %7846 = vmatpush.bf16.msra.mxu0 0
    %7847 = vmatpush.bf16.msra.mxu0 0
    %7848 = vmatpush.bf16.msra.mxu0 0
    %7849 = vmatpush.bf16.msra.mxu0 0
    %7850 = vmatpush.bf16.msra.mxu0 %v7679
    %7851 = vmatmul.bf16.gmra.mxu0 %v1083
    %v7852 = vpop.f32.mrf.mxu0
    %v7853 = vadd.f32 0.0, %v7852
    %v7854 = vpop.f32.mrf.mxu0
    %7855 = vdwg.mxu0
    %7856 = vmatpush.bf16.msra.mxu0 0
    %7857 = vmatpush.bf16.msra.mxu0 0
    %7858 = vmatpush.bf16.msra.mxu0 0
    %7859 = vmatpush.bf16.msra.mxu0 0
    %7860 = vmatpush.bf16.msra.mxu0 0
    %7861 = vmatpush.bf16.msra.mxu0 0
    %7862 = vmatpush.bf16.msra.mxu0 0
    %7863 = vmatpush.bf16.msra.mxu0 %v7682
    %7864 = vmatmul.bf16.gmra.mxu0 %v1083
    %v7865 = vpop.f32.mrf.mxu0
    %v7866 = vadd.f32 0.0, %v7865
    %v7867 = vpop.f32.mrf.mxu0
    %7868 = vdwg.mxu0
    %7869 = vmatpush.bf16.msra.mxu0 0
    %7870 = vmatpush.bf16.msra.mxu0 0
    %7871 = vmatpush.bf16.msra.mxu0 0
    %7872 = vmatpush.bf16.msra.mxu0 0
    %7873 = vmatpush.bf16.msra.mxu0 0
    %7874 = vmatpush.bf16.msra.mxu0 0
    %7875 = vmatpush.bf16.msra.mxu0 0
    %7876 = vmatpush.bf16.msra.mxu0 %v7685
    %7877 = vmatmul.bf16.gmra.mxu0 %v1083
    %v7878 = vpop.f32.mrf.mxu0
    %v7879 = vadd.f32 0.0, %v7878
    %v7880 = vpop.f32.mrf.mxu0
    %7881 = vdwg.mxu0
    %v7882 = vadd.f32 %v7543, %v7697
    %v7883 = vadd.f32 %v7544, %v7710
    %v7884 = vadd.f32 %v7545, %v7723
    %v7885 = vadd.f32 %v7546, %v7736
    %v7886 = vadd.f32 %v7547, %v7749
    %v7887 = vadd.f32 %v7548, %v7762
    %v7888 = vadd.f32 %v7549, %v7775
    %v7889 = vadd.f32 %v7550, %v7788
    %v7890 = vadd.f32 %v7551, %v7801
    %v7891 = vadd.f32 %v7552, %v7814
    %v7892 = vadd.f32 %v7553, %v7827
    %v7893 = vadd.f32 %v7554, %v7840
    %v7894 = vadd.f32 %v7555, %v7853
    %v7895 = vadd.f32 %v7556, %v7866
    %v7896 = vadd.f32 %v7557, %v7879
    %7897 = vst [vmem:[#allocation1] ss:$4 sm:$0xff] %v6641
    %s7898 = scalar_lea.vmem [#allocation1], 32
    %7899 = vst [vmem:[%s7898] ss:$4 sm:$0xff] %v6642
    %v7900 = vld.sshfl [vmem:[#allocation1 + $0x8] sm:$0xff pattern:$0x73625140]
    %v7901 = vld.sshfl [vmem:[#allocation1 + $0x10] sm:$0xff pattern:$0x73625140]
    %v7902 = vld.sshfl [vmem:[#allocation1 + $0x18] sm:$0xff pattern:$0x73625140]
    %v7903 = vld.sshfl [vmem:[#allocation1 + $0x20] sm:$0xff pattern:$0x73625140]
    %v7904 = vld.sshfl [vmem:[#allocation1 + $0x28] sm:$0xff pattern:$0x73625140]
    %v7905 = vld.sshfl [vmem:[#allocation1 + $0x30] sm:$0xff pattern:$0x73625140]
    %v7906 = vld.sshfl [vmem:[#allocation1 + $0x38] sm:$0xff pattern:$0x73625140]
    %7907 = vst [vmem:[#allocation1] ss:$4 sm:$0xff] %v6643
    %7908 = vst [vmem:[%s7898] ss:$4 sm:$0xff] %v6644
    %v7909 = vld.sshfl [vmem:[#allocation1] sm:$0xff pattern:$0x73625140]
    %v7910 = vld.sshfl [vmem:[#allocation1 + $0x8] sm:$0xff pattern:$0x73625140]
    %v7911 = vld.sshfl [vmem:[#allocation1 + $0x10] sm:$0xff pattern:$0x73625140]
    %v7912 = vld.sshfl [vmem:[#allocation1 + $0x18] sm:$0xff pattern:$0x73625140]
    %v7913 = vld.sshfl [vmem:[#allocation1 + $0x20] sm:$0xff pattern:$0x73625140]
    %v7914 = vld.sshfl [vmem:[#allocation1 + $0x28] sm:$0xff pattern:$0x73625140]
    %v7915 = vld.sshfl [vmem:[#allocation1 + $0x30] sm:$0xff pattern:$0x73625140]
    %v7916 = vld.sshfl [vmem:[#allocation1 + $0x38] sm:$0xff pattern:$0x73625140]
    %v7917 = vsel %vm161, %v7900, 0
    %v7919 = vsel %vm161, %v7901, 0
    %v7921 = vsel %vm161, %v7902, 0
    %v7923 = vsel %vm161, %v7903, 0
    %v7925 = vsel %vm161, %v7904, 0
    %v7927 = vsel %vm161, %v7905, 0
    %v7929 = vsel %vm161, %v7906, 0
    %v7931 = vsel %vm161, %v7909, 0
    %v7933 = vsel %vm161, %v7910, 0
    %v7935 = vsel %vm161, %v7911, 0
    %v7937 = vsel %vm161, %v7912, 0
    %v7939 = vsel %vm161, %v7913, 0
    %v7941 = vsel %vm161, %v7914, 0
    %v7943 = vsel %vm161, %v7915, 0
    %v7945 = vsel %vm161, %v7916, 0
    %7947 = vmatpush.bf16.msra.mxu0 0
    %7948 = vmatpush.bf16.msra.mxu0 0
    %7949 = vmatpush.bf16.msra.mxu0 0
    %7950 = vmatpush.bf16.msra.mxu0 0
    %7951 = vmatpush.bf16.msra.mxu0 0
    %7952 = vmatpush.bf16.msra.mxu0 0
    %7953 = vmatpush.bf16.msra.mxu0 0
    %7954 = vmatpush.bf16.msra.mxu0 %v7917
    %7955 = vmatmul.bf16.gmra.mxu0 %v1363
    %v7956 = vpop.f32.mrf.mxu0
    %v7957 = vadd.f32 0.0, %v7956
    %v7958 = vpop.f32.mrf.mxu0
    %7959 = vdwg.mxu0
    %7960 = vmatpush.bf16.msra.mxu0 0
    %7961 = vmatpush.bf16.msra.mxu0 0
    %7962 = vmatpush.bf16.msra.mxu0 0
    %7963 = vmatpush.bf16.msra.mxu0 0
    %7964 = vmatpush.bf16.msra.mxu0 0
    %7965 = vmatpush.bf16.msra.mxu0 0
    %7966 = vmatpush.bf16.msra.mxu0 0
    %7967 = vmatpush.bf16.msra.mxu0 %v7919
    %7968 = vmatmul.bf16.gmra.mxu0 %v1363
    %v7969 = vpop.f32.mrf.mxu0
    %v7970 = vadd.f32 0.0, %v7969
    %v7971 = vpop.f32.mrf.mxu0
    %7972 = vdwg.mxu0
    %7973 = vmatpush.bf16.msra.mxu0 0
    %7974 = vmatpush.bf16.msra.mxu0 0
    %7975 = vmatpush.bf16.msra.mxu0 0
    %7976 = vmatpush.bf16.msra.mxu0 0
    %7977 = vmatpush.bf16.msra.mxu0 0
    %7978 = vmatpush.bf16.msra.mxu0 0
    %7979 = vmatpush.bf16.msra.mxu0 0
    %7980 = vmatpush.bf16.msra.mxu0 %v7921
    %7981 = vmatmul.bf16.gmra.mxu0 %v1363
    %v7982 = vpop.f32.mrf.mxu0
    %v7983 = vadd.f32 0.0, %v7982
    %v7984 = vpop.f32.mrf.mxu0
    %7985 = vdwg.mxu0
    %7986 = vmatpush.bf16.msra.mxu0 0
    %7987 = vmatpush.bf16.msra.mxu0 0
    %7988 = vmatpush.bf16.msra.mxu0 0
    %7989 = vmatpush.bf16.msra.mxu0 0
    %7990 = vmatpush.bf16.msra.mxu0 0
    %7991 = vmatpush.bf16.msra.mxu0 0
    %7992 = vmatpush.bf16.msra.mxu0 0
    %7993 = vmatpush.bf16.msra.mxu0 %v7923
    %7994 = vmatmul.bf16.gmra.mxu0 %v1363
    %v7995 = vpop.f32.mrf.mxu0
    %v7996 = vadd.f32 0.0, %v7995
    %v7997 = vpop.f32.mrf.mxu0
    %7998 = vdwg.mxu0
    %7999 = vmatpush.bf16.msra.mxu0 0
    %8000 = vmatpush.bf16.msra.mxu0 0
    %8001 = vmatpush.bf16.msra.mxu0 0
    %8002 = vmatpush.bf16.msra.mxu0 0
    %8003 = vmatpush.bf16.msra.mxu0 0
    %8004 = vmatpush.bf16.msra.mxu0 0
    %8005 = vmatpush.bf16.msra.mxu0 0
    %8006 = vmatpush.bf16.msra.mxu0 %v7925
    %8007 = vmatmul.bf16.gmra.mxu0 %v1363
    %v8008 = vpop.f32.mrf.mxu0
    %v8009 = vadd.f32 0.0, %v8008
    %v8010 = vpop.f32.mrf.mxu0
    %8011 = vdwg.mxu0
    %8012 = vmatpush.bf16.msra.mxu0 0
    %8013 = vmatpush.bf16.msra.mxu0 0
    %8014 = vmatpush.bf16.msra.mxu0 0
    %8015 = vmatpush.bf16.msra.mxu0 0
    %8016 = vmatpush.bf16.msra.mxu0 0
    %8017 = vmatpush.bf16.msra.mxu0 0
    %8018 = vmatpush.bf16.msra.mxu0 0
    %8019 = vmatpush.bf16.msra.mxu0 %v7927
    %8020 = vmatmul.bf16.gmra.mxu0 %v1363
    %v8021 = vpop.f32.mrf.mxu0
    %v8022 = vadd.f32 0.0, %v8021
    %v8023 = vpop.f32.mrf.mxu0
    %8024 = vdwg.mxu0
    %8025 = vmatpush.bf16.msra.mxu0 0
    %8026 = vmatpush.bf16.msra.mxu0 0
    %8027 = vmatpush.bf16.msra.mxu0 0
    %8028 = vmatpush.bf16.msra.mxu0 0
    %8029 = vmatpush.bf16.msra.mxu0 0
    %8030 = vmatpush.bf16.msra.mxu0 0
    %8031 = vmatpush.bf16.msra.mxu0 0
    %8032 = vmatpush.bf16.msra.mxu0 %v7929
    %8033 = vmatmul.bf16.gmra.mxu0 %v1363
    %v8034 = vpop.f32.mrf.mxu0
    %v8035 = vadd.f32 0.0, %v8034
    %v8036 = vpop.f32.mrf.mxu0
    %8037 = vdwg.mxu0
    %8038 = vmatpush.bf16.msra.mxu0 0
    %8039 = vmatpush.bf16.msra.mxu0 0
    %8040 = vmatpush.bf16.msra.mxu0 0
    %8041 = vmatpush.bf16.msra.mxu0 0
    %8042 = vmatpush.bf16.msra.mxu0 0
    %8043 = vmatpush.bf16.msra.mxu0 0
    %8044 = vmatpush.bf16.msra.mxu0 0
    %8045 = vmatpush.bf16.msra.mxu0 %v7931
    %8046 = vmatmul.bf16.gmra.mxu0 %v1363
    %v8047 = vpop.f32.mrf.mxu0
    %v8048 = vadd.f32 0.0, %v8047
    %v8049 = vpop.f32.mrf.mxu0
    %8050 = vdwg.mxu0
    %8051 = vmatpush.bf16.msra.mxu0 0
    %8052 = vmatpush.bf16.msra.mxu0 0
    %8053 = vmatpush.bf16.msra.mxu0 0
    %8054 = vmatpush.bf16.msra.mxu0 0
    %8055 = vmatpush.bf16.msra.mxu0 0
    %8056 = vmatpush.bf16.msra.mxu0 0
    %8057 = vmatpush.bf16.msra.mxu0 0
    %8058 = vmatpush.bf16.msra.mxu0 %v7933
    %8059 = vmatmul.bf16.gmra.mxu0 %v1363
    %v8060 = vpop.f32.mrf.mxu0
    %v8061 = vadd.f32 0.0, %v8060
    %v8062 = vpop.f32.mrf.mxu0
    %8063 = vdwg.mxu0
    %8064 = vmatpush.bf16.msra.mxu0 0
    %8065 = vmatpush.bf16.msra.mxu0 0
    %8066 = vmatpush.bf16.msra.mxu0 0
    %8067 = vmatpush.bf16.msra.mxu0 0
    %8068 = vmatpush.bf16.msra.mxu0 0
    %8069 = vmatpush.bf16.msra.mxu0 0
    %8070 = vmatpush.bf16.msra.mxu0 0
    %8071 = vmatpush.bf16.msra.mxu0 %v7935
    %8072 = vmatmul.bf16.gmra.mxu0 %v1363
    %v8073 = vpop.f32.mrf.mxu0
    %v8074 = vadd.f32 0.0, %v8073
    %v8075 = vpop.f32.mrf.mxu0
    %8076 = vdwg.mxu0
    %8077 = vmatpush.bf16.msra.mxu0 0
    %8078 = vmatpush.bf16.msra.mxu0 0
    %8079 = vmatpush.bf16.msra.mxu0 0
    %8080 = vmatpush.bf16.msra.mxu0 0
    %8081 = vmatpush.bf16.msra.mxu0 0
    %8082 = vmatpush.bf16.msra.mxu0 0
    %8083 = vmatpush.bf16.msra.mxu0 0
    %8084 = vmatpush.bf16.msra.mxu0 %v7937
    %8085 = vmatmul.bf16.gmra.mxu0 %v1363
    %v8086 = vpop.f32.mrf.mxu0
    %v8087 = vadd.f32 0.0, %v8086
    %v8088 = vpop.f32.mrf.mxu0
    %8089 = vdwg.mxu0
    %8090 = vmatpush.bf16.msra.mxu0 0
    %8091 = vmatpush.bf16.msra.mxu0 0
    %8092 = vmatpush.bf16.msra.mxu0 0
    %8093 = vmatpush.bf16.msra.mxu0 0
    %8094 = vmatpush.bf16.msra.mxu0 0
    %8095 = vmatpush.bf16.msra.mxu0 0
    %8096 = vmatpush.bf16.msra.mxu0 0
    %8097 = vmatpush.bf16.msra.mxu0 %v7939
    %8098 = vmatmul.bf16.gmra.mxu0 %v1363
    %v8099 = vpop.f32.mrf.mxu0
    %v8100 = vadd.f32 0.0, %v8099
    %v8101 = vpop.f32.mrf.mxu0
    %8102 = vdwg.mxu0
    %8103 = vmatpush.bf16.msra.mxu0 0
    %8104 = vmatpush.bf16.msra.mxu0 0
    %8105 = vmatpush.bf16.msra.mxu0 0
    %8106 = vmatpush.bf16.msra.mxu0 0
    %8107 = vmatpush.bf16.msra.mxu0 0
    %8108 = vmatpush.bf16.msra.mxu0 0
    %8109 = vmatpush.bf16.msra.mxu0 0
    %8110 = vmatpush.bf16.msra.mxu0 %v7941
    %8111 = vmatmul.bf16.gmra.mxu0 %v1363
    %v8112 = vpop.f32.mrf.mxu0
    %v8113 = vadd.f32 0.0, %v8112
    %v8114 = vpop.f32.mrf.mxu0
    %8115 = vdwg.mxu0
    %8116 = vmatpush.bf16.msra.mxu0 0
    %8117 = vmatpush.bf16.msra.mxu0 0
    %8118 = vmatpush.bf16.msra.mxu0 0
    %8119 = vmatpush.bf16.msra.mxu0 0
    %8120 = vmatpush.bf16.msra.mxu0 0
    %8121 = vmatpush.bf16.msra.mxu0 0
    %8122 = vmatpush.bf16.msra.mxu0 0
    %8123 = vmatpush.bf16.msra.mxu0 %v7943
    %8124 = vmatmul.bf16.gmra.mxu0 %v1363
    %v8125 = vpop.f32.mrf.mxu0
    %v8126 = vadd.f32 0.0, %v8125
    %v8127 = vpop.f32.mrf.mxu0
    %8128 = vdwg.mxu0
    %8129 = vmatpush.bf16.msra.mxu0 0
    %8130 = vmatpush.bf16.msra.mxu0 0
    %8131 = vmatpush.bf16.msra.mxu0 0
    %8132 = vmatpush.bf16.msra.mxu0 0
    %8133 = vmatpush.bf16.msra.mxu0 0
    %8134 = vmatpush.bf16.msra.mxu0 0
    %8135 = vmatpush.bf16.msra.mxu0 0
    %8136 = vmatpush.bf16.msra.mxu0 %v7945
    %8137 = vmatmul.bf16.gmra.mxu0 %v1363
    %v8138 = vpop.f32.mrf.mxu0
    %v8139 = vadd.f32 0.0, %v8138
    %v8140 = vpop.f32.mrf.mxu0
    %8141 = vdwg.mxu0
    %v8142 = vadd.f32 %v7882, %v7957
    %v8143 = vadd.f32 %v7883, %v7970
    %v8144 = vadd.f32 %v7884, %v7983
    %v8145 = vadd.f32 %v7885, %v7996
    %v8146 = vadd.f32 %v7886, %v8009
    %v8147 = vadd.f32 %v7887, %v8022
    %v8148 = vadd.f32 %v7888, %v8035
    %v8149 = vadd.f32 %v7889, %v8048
    %v8150 = vadd.f32 %v7890, %v8061
    %v8151 = vadd.f32 %v7891, %v8074
    %v8152 = vadd.f32 %v7892, %v8087
    %v8153 = vadd.f32 %v7893, %v8100
    %v8154 = vadd.f32 %v7894, %v8113
    %v8155 = vadd.f32 %v7895, %v8126
    %v8156 = vadd.f32 %v7896, %v8139
    %8157 = vst [vmem:[#allocation1] ss:$4 sm:$0xff] %v6641
    %s8158 = scalar_lea.vmem [#allocation1], 32
    %8159 = vst [vmem:[%s8158] ss:$4 sm:$0xff] %v6642
    %v8160 = vld.sshfl [vmem:[#allocation1 + $0x8] sm:$0xff pattern:$0x73625140]
    %v8162 = vld.sshfl [vmem:[#allocation1 + $0x10] sm:$0xff pattern:$0x73625140]
    %v8164 = vld.sshfl [vmem:[#allocation1 + $0x18] sm:$0xff pattern:$0x73625140]
    %v8166 = vld.sshfl [vmem:[#allocation1 + $0x20] sm:$0xff pattern:$0x73625140]
    %v8168 = vld.sshfl [vmem:[#allocation1 + $0x28] sm:$0xff pattern:$0x73625140]
    %v8170 = vld.sshfl [vmem:[#allocation1 + $0x30] sm:$0xff pattern:$0x73625140]
    %v8172 = vld.sshfl [vmem:[#allocation1 + $0x38] sm:$0xff pattern:$0x73625140]
    %8174 = vst [vmem:[#allocation1] ss:$4 sm:$0xff] %v6643
    %8175 = vst [vmem:[%s8158] ss:$4 sm:$0xff] %v6644
    %v8176 = vld.sshfl [vmem:[#allocation1] sm:$0xff pattern:$0x73625140]
    %v8178 = vld.sshfl [vmem:[#allocation1 + $0x8] sm:$0xff pattern:$0x73625140]
    %v8180 = vld.sshfl [vmem:[#allocation1 + $0x10] sm:$0xff pattern:$0x73625140]
    %v8182 = vld.sshfl [vmem:[#allocation1 + $0x18] sm:$0xff pattern:$0x73625140]
    %v8184 = vld.sshfl [vmem:[#allocation1 + $0x20] sm:$0xff pattern:$0x73625140]
    %v8186 = vld.sshfl [vmem:[#allocation1 + $0x28] sm:$0xff pattern:$0x73625140]
    %v8188 = vld.sshfl [vmem:[#allocation1 + $0x30] sm:$0xff pattern:$0x73625140]
    %v8190 = vld.sshfl [vmem:[#allocation1 + $0x38] sm:$0xff pattern:$0x73625140]
    %8193 = vst [vmem:[#allocation1] ss:$4 sm:$0xff] %v6645
    %v8194 = vld.sshfl [vmem:[#allocation1] sm:$0xff pattern:$0x73625140]
    %8196 = vrot.lane.b32.xlu0 %v8160, 127
    %v8197 = vpop.permute.xlu0 %8196
    %8198 = vrot.lane.b32.xlu0 %v8162, 127
    %v8199 = vpop.permute.xlu0 %8198
    %8200 = vrot.lane.b32.xlu0 %v8164, 127
    %v8201 = vpop.permute.xlu0 %8200
    %8202 = vrot.lane.b32.xlu0 %v8166, 127
    %v8203 = vpop.permute.xlu0 %8202
    %8204 = vrot.lane.b32.xlu0 %v8168, 127
    %v8205 = vpop.permute.xlu0 %8204
    %8206 = vrot.lane.b32.xlu0 %v8170, 127
    %v8207 = vpop.permute.xlu0 %8206
    %8208 = vrot.lane.b32.xlu0 %v8172, 127
    %v8209 = vpop.permute.xlu0 %8208
    %8210 = vrot.lane.b32.xlu0 %v8176, 127
    %v8211 = vpop.permute.xlu0 %8210
    %8212 = vrot.lane.b32.xlu0 %v8178, 127
    %v8213 = vpop.permute.xlu0 %8212
    %8214 = vrot.lane.b32.xlu0 %v8180, 127
    %v8215 = vpop.permute.xlu0 %8214
    %8216 = vrot.lane.b32.xlu0 %v8182, 127
    %v8217 = vpop.permute.xlu0 %8216
    %8218 = vrot.lane.b32.xlu0 %v8184, 127
    %v8219 = vpop.permute.xlu0 %8218
    %8220 = vrot.lane.b32.xlu0 %v8186, 127
    %v8221 = vpop.permute.xlu0 %8220
    %8222 = vrot.lane.b32.xlu0 %v8188, 127
    %v8223 = vpop.permute.xlu0 %8222
    %8224 = vrot.lane.b32.xlu0 %v8190, 127
    %v8225 = vpop.permute.xlu0 %8224
    %8226 = vrot.lane.b32.xlu0 %v8194, 127
    %v8227 = vpop.permute.xlu0 %8226
    %v8228 = vsel %vm141, %v8197, %v8199
    %v8229 = vsel %vm141, %v8199, %v8201
    %v8230 = vsel %vm141, %v8201, %v8203
    %v8231 = vsel %vm141, %v8203, %v8205
    %v8232 = vsel %vm141, %v8205, %v8207
    %v8233 = vsel %vm141, %v8207, %v8209
    %v8234 = vsel %vm141, %v8209, %v8211
    %v8235 = vsel %vm141, %v8211, %v8213
    %v8236 = vsel %vm141, %v8213, %v8215
    %v8237 = vsel %vm141, %v8215, %v8217
    %v8238 = vsel %vm141, %v8217, %v8219
    %v8239 = vsel %vm141, %v8219, %v8221
    %v8240 = vsel %vm141, %v8221, %v8223
    %v8241 = vsel %vm141, %v8223, %v8225
    %v8242 = vsel %vm141, %v8225, %v8227
    %v8244 = vsel %vm161, %v8228, 0
    %v8247 = vsel %vm161, %v8229, 0
    %v8250 = vsel %vm161, %v8230, 0
    %v8253 = vsel %vm161, %v8231, 0
    %v8256 = vsel %vm161, %v8232, 0
    %v8259 = vsel %vm161, %v8233, 0
    %v8262 = vsel %vm161, %v8234, 0
    %v8265 = vsel %vm161, %v8235, 0
    %v8268 = vsel %vm161, %v8236, 0
    %v8271 = vsel %vm161, %v8237, 0
    %v8274 = vsel %vm161, %v8238, 0
    %v8277 = vsel %vm161, %v8239, 0
    %v8280 = vsel %vm161, %v8240, 0
    %v8283 = vsel %vm161, %v8241, 0
    %v8286 = vsel %vm161, %v8242, 0
    %8288 = vmatpush.bf16.msra.mxu0 0
    %8289 = vmatpush.bf16.msra.mxu0 0
    %8290 = vmatpush.bf16.msra.mxu0 0
    %8291 = vmatpush.bf16.msra.mxu0 0
    %8292 = vmatpush.bf16.msra.mxu0 0
    %8293 = vmatpush.bf16.msra.mxu0 0
    %8294 = vmatpush.bf16.msra.mxu0 0
    %8295 = vmatpush.bf16.msra.mxu0 %v8244
    %8296 = vmatmul.bf16.gmra.mxu0 %v1694
    %v8297 = vpop.f32.mrf.mxu0
    %v8298 = vadd.f32 0.0, %v8297
    %v8299 = vpop.f32.mrf.mxu0
    %8300 = vdwg.mxu0
    %8301 = vmatpush.bf16.msra.mxu0 0
    %8302 = vmatpush.bf16.msra.mxu0 0
    %8303 = vmatpush.bf16.msra.mxu0 0
    %8304 = vmatpush.bf16.msra.mxu0 0
    %8305 = vmatpush.bf16.msra.mxu0 0
    %8306 = vmatpush.bf16.msra.mxu0 0
    %8307 = vmatpush.bf16.msra.mxu0 0
    %8308 = vmatpush.bf16.msra.mxu0 %v8247
    %8309 = vmatmul.bf16.gmra.mxu0 %v1694
    %v8310 = vpop.f32.mrf.mxu0
    %v8311 = vadd.f32 0.0, %v8310
    %v8312 = vpop.f32.mrf.mxu0
    %8313 = vdwg.mxu0
    %8314 = vmatpush.bf16.msra.mxu0 0
    %8315 = vmatpush.bf16.msra.mxu0 0
    %8316 = vmatpush.bf16.msra.mxu0 0
    %8317 = vmatpush.bf16.msra.mxu0 0
    %8318 = vmatpush.bf16.msra.mxu0 0
    %8319 = vmatpush.bf16.msra.mxu0 0
    %8320 = vmatpush.bf16.msra.mxu0 0
    %8321 = vmatpush.bf16.msra.mxu0 %v8250
    %8322 = vmatmul.bf16.gmra.mxu0 %v1694
    %v8323 = vpop.f32.mrf.mxu0
    %v8324 = vadd.f32 0.0, %v8323
    %v8325 = vpop.f32.mrf.mxu0
    %8326 = vdwg.mxu0
    %8327 = vmatpush.bf16.msra.mxu0 0
    %8328 = vmatpush.bf16.msra.mxu0 0
    %8329 = vmatpush.bf16.msra.mxu0 0
    %8330 = vmatpush.bf16.msra.mxu0 0
    %8331 = vmatpush.bf16.msra.mxu0 0
    %8332 = vmatpush.bf16.msra.mxu0 0
    %8333 = vmatpush.bf16.msra.mxu0 0
    %8334 = vmatpush.bf16.msra.mxu0 %v8253
    %8335 = vmatmul.bf16.gmra.mxu0 %v1694
    %v8336 = vpop.f32.mrf.mxu0
    %v8337 = vadd.f32 0.0, %v8336
    %v8338 = vpop.f32.mrf.mxu0
    %8339 = vdwg.mxu0
    %8340 = vmatpush.bf16.msra.mxu0 0
    %8341 = vmatpush.bf16.msra.mxu0 0
    %8342 = vmatpush.bf16.msra.mxu0 0
    %8343 = vmatpush.bf16.msra.mxu0 0
    %8344 = vmatpush.bf16.msra.mxu0 0
    %8345 = vmatpush.bf16.msra.mxu0 0
    %8346 = vmatpush.bf16.msra.mxu0 0
    %8347 = vmatpush.bf16.msra.mxu0 %v8256
    %8348 = vmatmul.bf16.gmra.mxu0 %v1694
    %v8349 = vpop.f32.mrf.mxu0
    %v8350 = vadd.f32 0.0, %v8349
    %v8351 = vpop.f32.mrf.mxu0
    %8352 = vdwg.mxu0
    %8353 = vmatpush.bf16.msra.mxu0 0
    %8354 = vmatpush.bf16.msra.mxu0 0
    %8355 = vmatpush.bf16.msra.mxu0 0
    %8356 = vmatpush.bf16.msra.mxu0 0
    %8357 = vmatpush.bf16.msra.mxu0 0
    %8358 = vmatpush.bf16.msra.mxu0 0
    %8359 = vmatpush.bf16.msra.mxu0 0
    %8360 = vmatpush.bf16.msra.mxu0 %v8259
    %8361 = vmatmul.bf16.gmra.mxu0 %v1694
    %v8362 = vpop.f32.mrf.mxu0
    %v8363 = vadd.f32 0.0, %v8362
    %v8364 = vpop.f32.mrf.mxu0
    %8365 = vdwg.mxu0
    %8366 = vmatpush.bf16.msra.mxu0 0
    %8367 = vmatpush.bf16.msra.mxu0 0
    %8368 = vmatpush.bf16.msra.mxu0 0
    %8369 = vmatpush.bf16.msra.mxu0 0
    %8370 = vmatpush.bf16.msra.mxu0 0
    %8371 = vmatpush.bf16.msra.mxu0 0
    %8372 = vmatpush.bf16.msra.mxu0 0
    %8373 = vmatpush.bf16.msra.mxu0 %v8262
    %8374 = vmatmul.bf16.gmra.mxu0 %v1694
    %v8375 = vpop.f32.mrf.mxu0
    %v8376 = vadd.f32 0.0, %v8375
    %v8377 = vpop.f32.mrf.mxu0
    %8378 = vdwg.mxu0
    %8379 = vmatpush.bf16.msra.mxu0 0
    %8380 = vmatpush.bf16.msra.mxu0 0
    %8381 = vmatpush.bf16.msra.mxu0 0
    %8382 = vmatpush.bf16.msra.mxu0 0
    %8383 = vmatpush.bf16.msra.mxu0 0
    %8384 = vmatpush.bf16.msra.mxu0 0
    %8385 = vmatpush.bf16.msra.mxu0 0
    %8386 = vmatpush.bf16.msra.mxu0 %v8265
    %8387 = vmatmul.bf16.gmra.mxu0 %v1694
    %v8388 = vpop.f32.mrf.mxu0
    %v8389 = vadd.f32 0.0, %v8388
    %v8390 = vpop.f32.mrf.mxu0
    %8391 = vdwg.mxu0
    %8392 = vmatpush.bf16.msra.mxu0 0
    %8393 = vmatpush.bf16.msra.mxu0 0
    %8394 = vmatpush.bf16.msra.mxu0 0
    %8395 = vmatpush.bf16.msra.mxu0 0
    %8396 = vmatpush.bf16.msra.mxu0 0
    %8397 = vmatpush.bf16.msra.mxu0 0
    %8398 = vmatpush.bf16.msra.mxu0 0
    %8399 = vmatpush.bf16.msra.mxu0 %v8268
    %8400 = vmatmul.bf16.gmra.mxu0 %v1694
    %v8401 = vpop.f32.mrf.mxu0
    %v8402 = vadd.f32 0.0, %v8401
    %v8403 = vpop.f32.mrf.mxu0
    %8404 = vdwg.mxu0
    %8405 = vmatpush.bf16.msra.mxu0 0
    %8406 = vmatpush.bf16.msra.mxu0 0
    %8407 = vmatpush.bf16.msra.mxu0 0
    %8408 = vmatpush.bf16.msra.mxu0 0
    %8409 = vmatpush.bf16.msra.mxu0 0
    %8410 = vmatpush.bf16.msra.mxu0 0
    %8411 = vmatpush.bf16.msra.mxu0 0
    %8412 = vmatpush.bf16.msra.mxu0 %v8271
    %8413 = vmatmul.bf16.gmra.mxu0 %v1694
    %v8414 = vpop.f32.mrf.mxu0
    %v8415 = vadd.f32 0.0, %v8414
    %v8416 = vpop.f32.mrf.mxu0
    %8417 = vdwg.mxu0
    %8418 = vmatpush.bf16.msra.mxu0 0
    %8419 = vmatpush.bf16.msra.mxu0 0
    %8420 = vmatpush.bf16.msra.mxu0 0
    %8421 = vmatpush.bf16.msra.mxu0 0
    %8422 = vmatpush.bf16.msra.mxu0 0
    %8423 = vmatpush.bf16.msra.mxu0 0
    %8424 = vmatpush.bf16.msra.mxu0 0
    %8425 = vmatpush.bf16.msra.mxu0 %v8274
    %8426 = vmatmul.bf16.gmra.mxu0 %v1694
    %v8427 = vpop.f32.mrf.mxu0
    %v8428 = vadd.f32 0.0, %v8427
    %v8429 = vpop.f32.mrf.mxu0
    %8430 = vdwg.mxu0
    %8431 = vmatpush.bf16.msra.mxu0 0
    %8432 = vmatpush.bf16.msra.mxu0 0
    %8433 = vmatpush.bf16.msra.mxu0 0
    %8434 = vmatpush.bf16.msra.mxu0 0
    %8435 = vmatpush.bf16.msra.mxu0 0
    %8436 = vmatpush.bf16.msra.mxu0 0
    %8437 = vmatpush.bf16.msra.mxu0 0
    %8438 = vmatpush.bf16.msra.mxu0 %v8277
    %8439 = vmatmul.bf16.gmra.mxu0 %v1694
    %v8440 = vpop.f32.mrf.mxu0
    %v8441 = vadd.f32 0.0, %v8440
    %v8442 = vpop.f32.mrf.mxu0
    %8443 = vdwg.mxu0
    %8444 = vmatpush.bf16.msra.mxu0 0
    %8445 = vmatpush.bf16.msra.mxu0 0
    %8446 = vmatpush.bf16.msra.mxu0 0
    %8447 = vmatpush.bf16.msra.mxu0 0
    %8448 = vmatpush.bf16.msra.mxu0 0
    %8449 = vmatpush.bf16.msra.mxu0 0
    %8450 = vmatpush.bf16.msra.mxu0 0
    %8451 = vmatpush.bf16.msra.mxu0 %v8280
    %8452 = vmatmul.bf16.gmra.mxu0 %v1694
    %v8453 = vpop.f32.mrf.mxu0
    %v8454 = vadd.f32 0.0, %v8453
    %v8455 = vpop.f32.mrf.mxu0
    %8456 = vdwg.mxu0
    %8457 = vmatpush.bf16.msra.mxu0 0
    %8458 = vmatpush.bf16.msra.mxu0 0
    %8459 = vmatpush.bf16.msra.mxu0 0
    %8460 = vmatpush.bf16.msra.mxu0 0
    %8461 = vmatpush.bf16.msra.mxu0 0
    %8462 = vmatpush.bf16.msra.mxu0 0
    %8463 = vmatpush.bf16.msra.mxu0 0
    %8464 = vmatpush.bf16.msra.mxu0 %v8283
    %8465 = vmatmul.bf16.gmra.mxu0 %v1694
    %v8466 = vpop.f32.mrf.mxu0
    %v8467 = vadd.f32 0.0, %v8466
    %v8468 = vpop.f32.mrf.mxu0
    %8469 = vdwg.mxu0
    %8470 = vmatpush.bf16.msra.mxu0 0
    %8471 = vmatpush.bf16.msra.mxu0 0
    %8472 = vmatpush.bf16.msra.mxu0 0
    %8473 = vmatpush.bf16.msra.mxu0 0
    %8474 = vmatpush.bf16.msra.mxu0 0
    %8475 = vmatpush.bf16.msra.mxu0 0
    %8476 = vmatpush.bf16.msra.mxu0 0
    %8477 = vmatpush.bf16.msra.mxu0 %v8286
    %8478 = vmatmul.bf16.gmra.mxu0 %v1694
    %v8479 = vpop.f32.mrf.mxu0
    %v8480 = vadd.f32 0.0, %v8479
    %v8481 = vpop.f32.mrf.mxu0
    %8482 = vdwg.mxu0
    %v8483 = vadd.f32 %v8142, %v8298
    %v8484 = vadd.f32 %v8143, %v8311
    %v8485 = vadd.f32 %v8144, %v8324
    %v8486 = vadd.f32 %v8145, %v8337
    %v8487 = vadd.f32 %v8146, %v8350
    %v8488 = vadd.f32 %v8147, %v8363
    %v8489 = vadd.f32 %v8148, %v8376
    %v8490 = vadd.f32 %v8149, %v8389
    %v8491 = vadd.f32 %v8150, %v8402
    %v8492 = vadd.f32 %v8151, %v8415
    %v8493 = vadd.f32 %v8152, %v8428
    %v8494 = vadd.f32 %v8153, %v8441
    %v8495 = vadd.f32 %v8154, %v8454
    %v8496 = vadd.f32 %v8155, %v8467
    %v8497 = vadd.f32 %v8156, %v8480
    %8498 = vst [vmem:[#allocation1] ss:$4 sm:$0xff] %v6641
    %s8499 = scalar_lea.vmem [#allocation1], 32
    %8500 = vst [vmem:[%s8499] ss:$4 sm:$0xff] %v6642
    %v8501 = vld.sshfl [vmem:[#allocation1 + $0x8] sm:$0xff pattern:$0x73625140]
    %v8503 = vld.sshfl [vmem:[#allocation1 + $0x10] sm:$0xff pattern:$0x73625140]
    %v8505 = vld.sshfl [vmem:[#allocation1 + $0x18] sm:$0xff pattern:$0x73625140]
    %v8507 = vld.sshfl [vmem:[#allocation1 + $0x20] sm:$0xff pattern:$0x73625140]
    %v8509 = vld.sshfl [vmem:[#allocation1 + $0x28] sm:$0xff pattern:$0x73625140]
    %v8511 = vld.sshfl [vmem:[#allocation1 + $0x30] sm:$0xff pattern:$0x73625140]
    %v8513 = vld.sshfl [vmem:[#allocation1 + $0x38] sm:$0xff pattern:$0x73625140]
    %8515 = vst [vmem:[#allocation1] ss:$4 sm:$0xff] %v6643
    %8516 = vst [vmem:[%s8499] ss:$4 sm:$0xff] %v6644
    %v8517 = vld.sshfl [vmem:[#allocation1] sm:$0xff pattern:$0x73625140]
    %v8519 = vld.sshfl [vmem:[#allocation1 + $0x8] sm:$0xff pattern:$0x73625140]
    %v8521 = vld.sshfl [vmem:[#allocation1 + $0x10] sm:$0xff pattern:$0x73625140]
    %v8523 = vld.sshfl [vmem:[#allocation1 + $0x18] sm:$0xff pattern:$0x73625140]
    %v8525 = vld.sshfl [vmem:[#allocation1 + $0x20] sm:$0xff pattern:$0x73625140]
    %v8527 = vld.sshfl [vmem:[#allocation1 + $0x28] sm:$0xff pattern:$0x73625140]
    %v8529 = vld.sshfl [vmem:[#allocation1 + $0x30] sm:$0xff pattern:$0x73625140]
    %v8531 = vld.sshfl [vmem:[#allocation1 + $0x38] sm:$0xff pattern:$0x73625140]
    %8533 = vst [vmem:[#allocation1] ss:$4 sm:$0xff] %v6645
    %v8534 = vld.sshfl [vmem:[#allocation1] sm:$0xff pattern:$0x73625140]
    %8536 = vrot.lane.b32.xlu0 %v8501, 126
    %v8537 = vpop.permute.xlu0 %8536
    %8538 = vrot.lane.b32.xlu0 %v8503, 126
    %v8539 = vpop.permute.xlu0 %8538
    %8540 = vrot.lane.b32.xlu0 %v8505, 126
    %v8541 = vpop.permute.xlu0 %8540
    %8542 = vrot.lane.b32.xlu0 %v8507, 126
    %v8543 = vpop.permute.xlu0 %8542
    %8544 = vrot.lane.b32.xlu0 %v8509, 126
    %v8545 = vpop.permute.xlu0 %8544
    %8546 = vrot.lane.b32.xlu0 %v8511, 126
    %v8547 = vpop.permute.xlu0 %8546
    %8548 = vrot.lane.b32.xlu0 %v8513, 126
    %v8549 = vpop.permute.xlu0 %8548
    %8550 = vrot.lane.b32.xlu0 %v8517, 126
    %v8551 = vpop.permute.xlu0 %8550
    %8552 = vrot.lane.b32.xlu0 %v8519, 126
    %v8553 = vpop.permute.xlu0 %8552
    %8554 = vrot.lane.b32.xlu0 %v8521, 126
    %v8555 = vpop.permute.xlu0 %8554
    %8556 = vrot.lane.b32.xlu0 %v8523, 126
    %v8557 = vpop.permute.xlu0 %8556
    %8558 = vrot.lane.b32.xlu0 %v8525, 126
    %v8559 = vpop.permute.xlu0 %8558
    %8560 = vrot.lane.b32.xlu0 %v8527, 126
    %v8561 = vpop.permute.xlu0 %8560
    %8562 = vrot.lane.b32.xlu0 %v8529, 126
    %v8563 = vpop.permute.xlu0 %8562
    %8564 = vrot.lane.b32.xlu0 %v8531, 126
    %v8565 = vpop.permute.xlu0 %8564
    %8566 = vrot.lane.b32.xlu0 %v8534, 126
    %v8567 = vpop.permute.xlu0 %8566
    %v8568 = vsel %vm721, %v8537, %v8539
    %v8569 = vsel %vm721, %v8539, %v8541
    %v8570 = vsel %vm721, %v8541, %v8543
    %v8571 = vsel %vm721, %v8543, %v8545
    %v8572 = vsel %vm721, %v8545, %v8547
    %v8573 = vsel %vm721, %v8547, %v8549
    %v8574 = vsel %vm721, %v8549, %v8551
    %v8575 = vsel %vm721, %v8551, %v8553
    %v8576 = vsel %vm721, %v8553, %v8555
    %v8577 = vsel %vm721, %v8555, %v8557
    %v8578 = vsel %vm721, %v8557, %v8559
    %v8579 = vsel %vm721, %v8559, %v8561
    %v8580 = vsel %vm721, %v8561, %v8563
    %v8581 = vsel %vm721, %v8563, %v8565
    %v8582 = vsel %vm721, %v8565, %v8567
    %v8584 = vsel %vm161, %v8568, 0
    %v8587 = vsel %vm161, %v8569, 0
    %v8590 = vsel %vm161, %v8570, 0
    %v8593 = vsel %vm161, %v8571, 0
    %v8596 = vsel %vm161, %v8572, 0
    %v8599 = vsel %vm161, %v8573, 0
    %v8602 = vsel %vm161, %v8574, 0
    %v8605 = vsel %vm161, %v8575, 0
    %v8608 = vsel %vm161, %v8576, 0
    %v8611 = vsel %vm161, %v8577, 0
    %v8614 = vsel %vm161, %v8578, 0
    %v8617 = vsel %vm161, %v8579, 0
    %v8620 = vsel %vm161, %v8580, 0
    %v8623 = vsel %vm161, %v8581, 0
    %v8626 = vsel %vm161, %v8582, 0
    %8628 = vmatpush.bf16.msra.mxu0 0
    %8629 = vmatpush.bf16.msra.mxu0 0
    %8630 = vmatpush.bf16.msra.mxu0 0
    %8631 = vmatpush.bf16.msra.mxu0 0
    %8632 = vmatpush.bf16.msra.mxu0 0
    %8633 = vmatpush.bf16.msra.mxu0 0
    %8634 = vmatpush.bf16.msra.mxu0 0
    %8635 = vmatpush.bf16.msra.mxu0 %v8584
    %8636 = vmatmul.bf16.gmra.mxu0 %v2039
    %v8637 = vpop.f32.mrf.mxu0
    %v8638 = vadd.f32 0.0, %v8637
    %v8639 = vpop.f32.mrf.mxu0
    %8640 = vdwg.mxu0
    %8641 = vmatpush.bf16.msra.mxu0 0
    %8642 = vmatpush.bf16.msra.mxu0 0
    %8643 = vmatpush.bf16.msra.mxu0 0
    %8644 = vmatpush.bf16.msra.mxu0 0
    %8645 = vmatpush.bf16.msra.mxu0 0
    %8646 = vmatpush.bf16.msra.mxu0 0
    %8647 = vmatpush.bf16.msra.mxu0 0
    %8648 = vmatpush.bf16.msra.mxu0 %v8587
    %8649 = vmatmul.bf16.gmra.mxu0 %v2039
    %v8650 = vpop.f32.mrf.mxu0
    %v8651 = vadd.f32 0.0, %v8650
    %v8652 = vpop.f32.mrf.mxu0
    %8653 = vdwg.mxu0
    %8654 = vmatpush.bf16.msra.mxu0 0
    %8655 = vmatpush.bf16.msra.mxu0 0
    %8656 = vmatpush.bf16.msra.mxu0 0
    %8657 = vmatpush.bf16.msra.mxu0 0
    %8658 = vmatpush.bf16.msra.mxu0 0
    %8659 = vmatpush.bf16.msra.mxu0 0
    %8660 = vmatpush.bf16.msra.mxu0 0
    %8661 = vmatpush.bf16.msra.mxu0 %v8590
    %8662 = vmatmul.bf16.gmra.mxu0 %v2039
    %v8663 = vpop.f32.mrf.mxu0
    %v8664 = vadd.f32 0.0, %v8663
    %v8665 = vpop.f32.mrf.mxu0
    %8666 = vdwg.mxu0
    %8667 = vmatpush.bf16.msra.mxu0 0
    %8668 = vmatpush.bf16.msra.mxu0 0
    %8669 = vmatpush.bf16.msra.mxu0 0
    %8670 = vmatpush.bf16.msra.mxu0 0
    %8671 = vmatpush.bf16.msra.mxu0 0
    %8672 = vmatpush.bf16.msra.mxu0 0
    %8673 = vmatpush.bf16.msra.mxu0 0
    %8674 = vmatpush.bf16.msra.mxu0 %v8593
    %8675 = vmatmul.bf16.gmra.mxu0 %v2039
    %v8676 = vpop.f32.mrf.mxu0
    %v8677 = vadd.f32 0.0, %v8676
    %v8678 = vpop.f32.mrf.mxu0
    %8679 = vdwg.mxu0
    %8680 = vmatpush.bf16.msra.mxu0 0
    %8681 = vmatpush.bf16.msra.mxu0 0
    %8682 = vmatpush.bf16.msra.mxu0 0
    %8683 = vmatpush.bf16.msra.mxu0 0
    %8684 = vmatpush.bf16.msra.mxu0 0
    %8685 = vmatpush.bf16.msra.mxu0 0
    %8686 = vmatpush.bf16.msra.mxu0 0
    %8687 = vmatpush.bf16.msra.mxu0 %v8596
    %8688 = vmatmul.bf16.gmra.mxu0 %v2039
    %v8689 = vpop.f32.mrf.mxu0
    %v8690 = vadd.f32 0.0, %v8689
    %v8691 = vpop.f32.mrf.mxu0
    %8692 = vdwg.mxu0
    %8693 = vmatpush.bf16.msra.mxu0 0
    %8694 = vmatpush.bf16.msra.mxu0 0
    %8695 = vmatpush.bf16.msra.mxu0 0
    %8696 = vmatpush.bf16.msra.mxu0 0
    %8697 = vmatpush.bf16.msra.mxu0 0
    %8698 = vmatpush.bf16.msra.mxu0 0
    %8699 = vmatpush.bf16.msra.mxu0 0
    %8700 = vmatpush.bf16.msra.mxu0 %v8599
    %8701 = vmatmul.bf16.gmra.mxu0 %v2039
    %v8702 = vpop.f32.mrf.mxu0
    %v8703 = vadd.f32 0.0, %v8702
    %v8704 = vpop.f32.mrf.mxu0
    %8705 = vdwg.mxu0
    %8706 = vmatpush.bf16.msra.mxu0 0
    %8707 = vmatpush.bf16.msra.mxu0 0
    %8708 = vmatpush.bf16.msra.mxu0 0
    %8709 = vmatpush.bf16.msra.mxu0 0
    %8710 = vmatpush.bf16.msra.mxu0 0
    %8711 = vmatpush.bf16.msra.mxu0 0
    %8712 = vmatpush.bf16.msra.mxu0 0
    %8713 = vmatpush.bf16.msra.mxu0 %v8602
    %8714 = vmatmul.bf16.gmra.mxu0 %v2039
    %v8715 = vpop.f32.mrf.mxu0
    %v8716 = vadd.f32 0.0, %v8715
    %v8717 = vpop.f32.mrf.mxu0
    %8718 = vdwg.mxu0
    %8719 = vmatpush.bf16.msra.mxu0 0
    %8720 = vmatpush.bf16.msra.mxu0 0
    %8721 = vmatpush.bf16.msra.mxu0 0
    %8722 = vmatpush.bf16.msra.mxu0 0
    %8723 = vmatpush.bf16.msra.mxu0 0
    %8724 = vmatpush.bf16.msra.mxu0 0
    %8725 = vmatpush.bf16.msra.mxu0 0
    %8726 = vmatpush.bf16.msra.mxu0 %v8605
    %8727 = vmatmul.bf16.gmra.mxu0 %v2039
    %v8728 = vpop.f32.mrf.mxu0
    %v8729 = vadd.f32 0.0, %v8728
    %v8730 = vpop.f32.mrf.mxu0
    %8731 = vdwg.mxu0
    %8732 = vmatpush.bf16.msra.mxu0 0
    %8733 = vmatpush.bf16.msra.mxu0 0
    %8734 = vmatpush.bf16.msra.mxu0 0
    %8735 = vmatpush.bf16.msra.mxu0 0
    %8736 = vmatpush.bf16.msra.mxu0 0
    %8737 = vmatpush.bf16.msra.mxu0 0
    %8738 = vmatpush.bf16.msra.mxu0 0
    %8739 = vmatpush.bf16.msra.mxu0 %v8608
    %8740 = vmatmul.bf16.gmra.mxu0 %v2039
    %v8741 = vpop.f32.mrf.mxu0
    %v8742 = vadd.f32 0.0, %v8741
    %v8743 = vpop.f32.mrf.mxu0
    %8744 = vdwg.mxu0
    %8745 = vmatpush.bf16.msra.mxu0 0
    %8746 = vmatpush.bf16.msra.mxu0 0
    %8747 = vmatpush.bf16.msra.mxu0 0
    %8748 = vmatpush.bf16.msra.mxu0 0
    %8749 = vmatpush.bf16.msra.mxu0 0
    %8750 = vmatpush.bf16.msra.mxu0 0
    %8751 = vmatpush.bf16.msra.mxu0 0
    %8752 = vmatpush.bf16.msra.mxu0 %v8611
    %8753 = vmatmul.bf16.gmra.mxu0 %v2039
    %v8754 = vpop.f32.mrf.mxu0
    %v8755 = vadd.f32 0.0, %v8754
    %v8756 = vpop.f32.mrf.mxu0
    %8757 = vdwg.mxu0
    %8758 = vmatpush.bf16.msra.mxu0 0
    %8759 = vmatpush.bf16.msra.mxu0 0
    %8760 = vmatpush.bf16.msra.mxu0 0
    %8761 = vmatpush.bf16.msra.mxu0 0
    %8762 = vmatpush.bf16.msra.mxu0 0
    %8763 = vmatpush.bf16.msra.mxu0 0
    %8764 = vmatpush.bf16.msra.mxu0 0
    %8765 = vmatpush.bf16.msra.mxu0 %v8614
    %8766 = vmatmul.bf16.gmra.mxu0 %v2039
    %v8767 = vpop.f32.mrf.mxu0
    %v8768 = vadd.f32 0.0, %v8767
    %v8769 = vpop.f32.mrf.mxu0
    %8770 = vdwg.mxu0
    %8771 = vmatpush.bf16.msra.mxu0 0
    %8772 = vmatpush.bf16.msra.mxu0 0
    %8773 = vmatpush.bf16.msra.mxu0 0
    %8774 = vmatpush.bf16.msra.mxu0 0
    %8775 = vmatpush.bf16.msra.mxu0 0
    %8776 = vmatpush.bf16.msra.mxu0 0
    %8777 = vmatpush.bf16.msra.mxu0 0
    %8778 = vmatpush.bf16.msra.mxu0 %v8617
    %8779 = vmatmul.bf16.gmra.mxu0 %v2039
    %v8780 = vpop.f32.mrf.mxu0
    %v8781 = vadd.f32 0.0, %v8780
    %v8782 = vpop.f32.mrf.mxu0
    %8783 = vdwg.mxu0
    %8784 = vmatpush.bf16.msra.mxu0 0
    %8785 = vmatpush.bf16.msra.mxu0 0
    %8786 = vmatpush.bf16.msra.mxu0 0
    %8787 = vmatpush.bf16.msra.mxu0 0
    %8788 = vmatpush.bf16.msra.mxu0 0
    %8789 = vmatpush.bf16.msra.mxu0 0
    %8790 = vmatpush.bf16.msra.mxu0 0
    %8791 = vmatpush.bf16.msra.mxu0 %v8620
    %8792 = vmatmul.bf16.gmra.mxu0 %v2039
    %v8793 = vpop.f32.mrf.mxu0
    %v8794 = vadd.f32 0.0, %v8793
    %v8795 = vpop.f32.mrf.mxu0
    %8796 = vdwg.mxu0
    %8797 = vmatpush.bf16.msra.mxu0 0
    %8798 = vmatpush.bf16.msra.mxu0 0
    %8799 = vmatpush.bf16.msra.mxu0 0
    %8800 = vmatpush.bf16.msra.mxu0 0
    %8801 = vmatpush.bf16.msra.mxu0 0
    %8802 = vmatpush.bf16.msra.mxu0 0
    %8803 = vmatpush.bf16.msra.mxu0 0
    %8804 = vmatpush.bf16.msra.mxu0 %v8623
    %8805 = vmatmul.bf16.gmra.mxu0 %v2039
    %v8806 = vpop.f32.mrf.mxu0
    %v8807 = vadd.f32 0.0, %v8806
    %v8808 = vpop.f32.mrf.mxu0
    %8809 = vdwg.mxu0
    %8810 = vmatpush.bf16.msra.mxu0 0
    %8811 = vmatpush.bf16.msra.mxu0 0
    %8812 = vmatpush.bf16.msra.mxu0 0
    %8813 = vmatpush.bf16.msra.mxu0 0
    %8814 = vmatpush.bf16.msra.mxu0 0
    %8815 = vmatpush.bf16.msra.mxu0 0
    %8816 = vmatpush.bf16.msra.mxu0 0
    %8817 = vmatpush.bf16.msra.mxu0 %v8626
    %8818 = vmatmul.bf16.gmra.mxu0 %v2039
    %v8819 = vpop.f32.mrf.mxu0
    %v8820 = vadd.f32 0.0, %v8819
    %v8821 = vpop.f32.mrf.mxu0
    %8822 = vdwg.mxu0
    %v8823 = vadd.f32 %v8483, %v8638
    %v8824 = vadd.f32 %v8484, %v8651
    %v8825 = vadd.f32 %v8485, %v8664
    %v8826 = vadd.f32 %v8486, %v8677
    %v8827 = vadd.f32 %v8487, %v8690
    %v8828 = vadd.f32 %v8488, %v8703
    %v8829 = vadd.f32 %v8489, %v8716
    %v8830 = vadd.f32 %v8490, %v8729
    %v8831 = vadd.f32 %v8491, %v8742
    %v8832 = vadd.f32 %v8492, %v8755
    %v8833 = vadd.f32 %v8493, %v8768
    %v8834 = vadd.f32 %v8494, %v8781
    %v8835 = vadd.f32 %v8495, %v8794
    %v8836 = vadd.f32 %v8496, %v8807
    %v8837 = vadd.f32 %v8497, %v8820
    %8838 = vst [vmem:[#allocation1] ss:$4 sm:$0xff] %v6641
    %s8839 = scalar_lea.vmem [#allocation1], 32
    %8840 = vst [vmem:[%s8839] ss:$4 sm:$0xff] %v6642
    %v8841 = vld.sshfl [vmem:[#allocation1 + $0x8] sm:$0xff pattern:$0x73625140]
    %v8843 = vld.sshfl [vmem:[#allocation1 + $0x10] sm:$0xff pattern:$0x73625140]
    %v8845 = vld.sshfl [vmem:[#allocation1 + $0x18] sm:$0xff pattern:$0x73625140]
    %v8847 = vld.sshfl [vmem:[#allocation1 + $0x20] sm:$0xff pattern:$0x73625140]
    %v8849 = vld.sshfl [vmem:[#allocation1 + $0x28] sm:$0xff pattern:$0x73625140]
    %v8851 = vld.sshfl [vmem:[#allocation1 + $0x30] sm:$0xff pattern:$0x73625140]
    %v8853 = vld.sshfl [vmem:[#allocation1 + $0x38] sm:$0xff pattern:$0x73625140]
    %8855 = vst [vmem:[#allocation1] ss:$4 sm:$0xff] %v6643
    %8856 = vst [vmem:[%s8839] ss:$4 sm:$0xff] %v6644
    %v8857 = vld.sshfl [vmem:[#allocation1] sm:$0xff pattern:$0x73625140]
    %v8859 = vld.sshfl [vmem:[#allocation1 + $0x8] sm:$0xff pattern:$0x73625140]
    %v8861 = vld.sshfl [vmem:[#allocation1 + $0x10] sm:$0xff pattern:$0x73625140]
    %v8863 = vld.sshfl [vmem:[#allocation1 + $0x18] sm:$0xff pattern:$0x73625140]
    %v8865 = vld.sshfl [vmem:[#allocation1 + $0x20] sm:$0xff pattern:$0x73625140]
    %v8867 = vld.sshfl [vmem:[#allocation1 + $0x28] sm:$0xff pattern:$0x73625140]
    %v8869 = vld.sshfl [vmem:[#allocation1 + $0x30] sm:$0xff pattern:$0x73625140]
    %v8871 = vld.sshfl [vmem:[#allocation1 + $0x38] sm:$0xff pattern:$0x73625140]
    %8873 = vst [vmem:[#allocation1] ss:$4 sm:$0xff] %v6645
    %v8874 = vld.sshfl [vmem:[#allocation1] sm:$0xff pattern:$0x73625140]
    %8876 = vrot.lane.b32.xlu0 %v8841, 125
    %v8877 = vpop.permute.xlu0 %8876
    %8878 = vrot.lane.b32.xlu0 %v8843, 125
    %v8879 = vpop.permute.xlu0 %8878
    %8880 = vrot.lane.b32.xlu0 %v8845, 125
    %v8881 = vpop.permute.xlu0 %8880
    %8882 = vrot.lane.b32.xlu0 %v8847, 125
    %v8883 = vpop.permute.xlu0 %8882
    %8884 = vrot.lane.b32.xlu0 %v8849, 125
    %v8885 = vpop.permute.xlu0 %8884
    %8886 = vrot.lane.b32.xlu0 %v8851, 125
    %v8887 = vpop.permute.xlu0 %8886
    %8888 = vrot.lane.b32.xlu0 %v8853, 125
    %v8889 = vpop.permute.xlu0 %8888
    %8890 = vrot.lane.b32.xlu0 %v8857, 125
    %v8891 = vpop.permute.xlu0 %8890
    %8892 = vrot.lane.b32.xlu0 %v8859, 125
    %v8893 = vpop.permute.xlu0 %8892
    %8894 = vrot.lane.b32.xlu0 %v8861, 125
    %v8895 = vpop.permute.xlu0 %8894
    %8896 = vrot.lane.b32.xlu0 %v8863, 125
    %v8897 = vpop.permute.xlu0 %8896
    %8898 = vrot.lane.b32.xlu0 %v8865, 125
    %v8899 = vpop.permute.xlu0 %8898
    %8900 = vrot.lane.b32.xlu0 %v8867, 125
    %v8901 = vpop.permute.xlu0 %8900
    %8902 = vrot.lane.b32.xlu0 %v8869, 125
    %v8903 = vpop.permute.xlu0 %8902
    %8904 = vrot.lane.b32.xlu0 %v8871, 125
    %v8905 = vpop.permute.xlu0 %8904
    %8906 = vrot.lane.b32.xlu0 %v8874, 125
    %v8907 = vpop.permute.xlu0 %8906
    %v8908 = vsel %vm1066, %v8877, %v8879
    %v8909 = vsel %vm1066, %v8879, %v8881
    %v8910 = vsel %vm1066, %v8881, %v8883
    %v8911 = vsel %vm1066, %v8883, %v8885
    %v8912 = vsel %vm1066, %v8885, %v8887
    %v8913 = vsel %vm1066, %v8887, %v8889
    %v8914 = vsel %vm1066, %v8889, %v8891
    %v8915 = vsel %vm1066, %v8891, %v8893
    %v8916 = vsel %vm1066, %v8893, %v8895
    %v8917 = vsel %vm1066, %v8895, %v8897
    %v8918 = vsel %vm1066, %v8897, %v8899
    %v8919 = vsel %vm1066, %v8899, %v8901
    %v8920 = vsel %vm1066, %v8901, %v8903
    %v8921 = vsel %vm1066, %v8903, %v8905
    %v8922 = vsel %vm1066, %v8905, %v8907
    %v8924 = vsel %vm161, %v8908, 0
    %v8927 = vsel %vm161, %v8909, 0
    %v8930 = vsel %vm161, %v8910, 0
    %v8933 = vsel %vm161, %v8911, 0
    %v8936 = vsel %vm161, %v8912, 0
    %v8939 = vsel %vm161, %v8913, 0
    %v8942 = vsel %vm161, %v8914, 0
    %v8945 = vsel %vm161, %v8915, 0
    %v8948 = vsel %vm161, %v8916, 0
    %v8951 = vsel %vm161, %v8917, 0
    %v8954 = vsel %vm161, %v8918, 0
    %v8957 = vsel %vm161, %v8919, 0
    %v8960 = vsel %vm161, %v8920, 0
    %v8963 = vsel %vm161, %v8921, 0
    %v8966 = vsel %vm161, %v8922, 0
    %8968 = vmatpush.bf16.msra.mxu0 0
    %8969 = vmatpush.bf16.msra.mxu0 0
    %8970 = vmatpush.bf16.msra.mxu0 0
    %8971 = vmatpush.bf16.msra.mxu0 0
    %8972 = vmatpush.bf16.msra.mxu0 0
    %8973 = vmatpush.bf16.msra.mxu0 0
    %8974 = vmatpush.bf16.msra.mxu0 0
    %8975 = vmatpush.bf16.msra.mxu0 %v8924
    %8976 = vmatmul.bf16.gmra.mxu0 %v2384
    %v8977 = vpop.f32.mrf.mxu0
    %v8978 = vadd.f32 0.0, %v8977
    %v8979 = vpop.f32.mrf.mxu0
    %8980 = vdwg.mxu0
    %8981 = vmatpush.bf16.msra.mxu0 0
    %8982 = vmatpush.bf16.msra.mxu0 0
    %8983 = vmatpush.bf16.msra.mxu0 0
    %8984 = vmatpush.bf16.msra.mxu0 0
    %8985 = vmatpush.bf16.msra.mxu0 0
    %8986 = vmatpush.bf16.msra.mxu0 0
    %8987 = vmatpush.bf16.msra.mxu0 0
    %8988 = vmatpush.bf16.msra.mxu0 %v8927
    %8989 = vmatmul.bf16.gmra.mxu0 %v2384
    %v8990 = vpop.f32.mrf.mxu0
    %v8991 = vadd.f32 0.0, %v8990
    %v8992 = vpop.f32.mrf.mxu0
    %8993 = vdwg.mxu0
    %8994 = vmatpush.bf16.msra.mxu0 0
    %8995 = vmatpush.bf16.msra.mxu0 0
    %8996 = vmatpush.bf16.msra.mxu0 0
    %8997 = vmatpush.bf16.msra.mxu0 0
    %8998 = vmatpush.bf16.msra.mxu0 0
    %8999 = vmatpush.bf16.msra.mxu0 0
    %9000 = vmatpush.bf16.msra.mxu0 0
    %9001 = vmatpush.bf16.msra.mxu0 %v8930
    %9002 = vmatmul.bf16.gmra.mxu0 %v2384
    %v9003 = vpop.f32.mrf.mxu0
    %v9004 = vadd.f32 0.0, %v9003
    %v9005 = vpop.f32.mrf.mxu0
    %9006 = vdwg.mxu0
    %9007 = vmatpush.bf16.msra.mxu0 0
    %9008 = vmatpush.bf16.msra.mxu0 0
    %9009 = vmatpush.bf16.msra.mxu0 0
    %9010 = vmatpush.bf16.msra.mxu0 0
    %9011 = vmatpush.bf16.msra.mxu0 0
    %9012 = vmatpush.bf16.msra.mxu0 0
    %9013 = vmatpush.bf16.msra.mxu0 0
    %9014 = vmatpush.bf16.msra.mxu0 %v8933
    %9015 = vmatmul.bf16.gmra.mxu0 %v2384
    %v9016 = vpop.f32.mrf.mxu0
    %v9017 = vadd.f32 0.0, %v9016
    %v9018 = vpop.f32.mrf.mxu0
    %9019 = vdwg.mxu0
    %9020 = vmatpush.bf16.msra.mxu0 0
    %9021 = vmatpush.bf16.msra.mxu0 0
    %9022 = vmatpush.bf16.msra.mxu0 0
    %9023 = vmatpush.bf16.msra.mxu0 0
    %9024 = vmatpush.bf16.msra.mxu0 0
    %9025 = vmatpush.bf16.msra.mxu0 0
    %9026 = vmatpush.bf16.msra.mxu0 0
    %9027 = vmatpush.bf16.msra.mxu0 %v8936
    %9028 = vmatmul.bf16.gmra.mxu0 %v2384
    %v9029 = vpop.f32.mrf.mxu0
    %v9030 = vadd.f32 0.0, %v9029
    %v9031 = vpop.f32.mrf.mxu0
    %9032 = vdwg.mxu0
    %9033 = vmatpush.bf16.msra.mxu0 0
    %9034 = vmatpush.bf16.msra.mxu0 0
    %9035 = vmatpush.bf16.msra.mxu0 0
    %9036 = vmatpush.bf16.msra.mxu0 0
    %9037 = vmatpush.bf16.msra.mxu0 0
    %9038 = vmatpush.bf16.msra.mxu0 0
    %9039 = vmatpush.bf16.msra.mxu0 0
    %9040 = vmatpush.bf16.msra.mxu0 %v8939
    %9041 = vmatmul.bf16.gmra.mxu0 %v2384
    %v9042 = vpop.f32.mrf.mxu0
    %v9043 = vadd.f32 0.0, %v9042
    %v9044 = vpop.f32.mrf.mxu0
    %9045 = vdwg.mxu0
    %9046 = vmatpush.bf16.msra.mxu0 0
    %9047 = vmatpush.bf16.msra.mxu0 0
    %9048 = vmatpush.bf16.msra.mxu0 0
    %9049 = vmatpush.bf16.msra.mxu0 0
    %9050 = vmatpush.bf16.msra.mxu0 0
    %9051 = vmatpush.bf16.msra.mxu0 0
    %9052 = vmatpush.bf16.msra.mxu0 0
    %9053 = vmatpush.bf16.msra.mxu0 %v8942
    %9054 = vmatmul.bf16.gmra.mxu0 %v2384
    %v9055 = vpop.f32.mrf.mxu0
    %v9056 = vadd.f32 0.0, %v9055
    %v9057 = vpop.f32.mrf.mxu0
    %9058 = vdwg.mxu0
    %9059 = vmatpush.bf16.msra.mxu0 0
    %9060 = vmatpush.bf16.msra.mxu0 0
    %9061 = vmatpush.bf16.msra.mxu0 0
    %9062 = vmatpush.bf16.msra.mxu0 0
    %9063 = vmatpush.bf16.msra.mxu0 0
    %9064 = vmatpush.bf16.msra.mxu0 0
    %9065 = vmatpush.bf16.msra.mxu0 0
    %9066 = vmatpush.bf16.msra.mxu0 %v8945
    %9067 = vmatmul.bf16.gmra.mxu0 %v2384
    %v9068 = vpop.f32.mrf.mxu0
    %v9069 = vadd.f32 0.0, %v9068
    %v9070 = vpop.f32.mrf.mxu0
    %9071 = vdwg.mxu0
    %9072 = vmatpush.bf16.msra.mxu0 0
    %9073 = vmatpush.bf16.msra.mxu0 0
    %9074 = vmatpush.bf16.msra.mxu0 0
    %9075 = vmatpush.bf16.msra.mxu0 0
    %9076 = vmatpush.bf16.msra.mxu0 0
    %9077 = vmatpush.bf16.msra.mxu0 0
    %9078 = vmatpush.bf16.msra.mxu0 0
    %9079 = vmatpush.bf16.msra.mxu0 %v8948
    %9080 = vmatmul.bf16.gmra.mxu0 %v2384
    %v9081 = vpop.f32.mrf.mxu0
    %v9082 = vadd.f32 0.0, %v9081
    %v9083 = vpop.f32.mrf.mxu0
    %9084 = vdwg.mxu0
    %9085 = vmatpush.bf16.msra.mxu0 0
    %9086 = vmatpush.bf16.msra.mxu0 0
    %9087 = vmatpush.bf16.msra.mxu0 0
    %9088 = vmatpush.bf16.msra.mxu0 0
    %9089 = vmatpush.bf16.msra.mxu0 0
    %9090 = vmatpush.bf16.msra.mxu0 0
    %9091 = vmatpush.bf16.msra.mxu0 0
    %9092 = vmatpush.bf16.msra.mxu0 %v8951
    %9093 = vmatmul.bf16.gmra.mxu0 %v2384
    %v9094 = vpop.f32.mrf.mxu0
    %v9095 = vadd.f32 0.0, %v9094
    %v9096 = vpop.f32.mrf.mxu0
    %9097 = vdwg.mxu0
    %9098 = vmatpush.bf16.msra.mxu0 0
    %9099 = vmatpush.bf16.msra.mxu0 0
    %9100 = vmatpush.bf16.msra.mxu0 0
    %9101 = vmatpush.bf16.msra.mxu0 0
    %9102 = vmatpush.bf16.msra.mxu0 0
    %9103 = vmatpush.bf16.msra.mxu0 0
    %9104 = vmatpush.bf16.msra.mxu0 0
    %9105 = vmatpush.bf16.msra.mxu0 %v8954
    %9106 = vmatmul.bf16.gmra.mxu0 %v2384
    %v9107 = vpop.f32.mrf.mxu0
    %v9108 = vadd.f32 0.0, %v9107
    %v9109 = vpop.f32.mrf.mxu0
    %9110 = vdwg.mxu0
    %9111 = vmatpush.bf16.msra.mxu0 0
    %9112 = vmatpush.bf16.msra.mxu0 0
    %9113 = vmatpush.bf16.msra.mxu0 0
    %9114 = vmatpush.bf16.msra.mxu0 0
    %9115 = vmatpush.bf16.msra.mxu0 0
    %9116 = vmatpush.bf16.msra.mxu0 0
    %9117 = vmatpush.bf16.msra.mxu0 0
    %9118 = vmatpush.bf16.msra.mxu0 %v8957
    %9119 = vmatmul.bf16.gmra.mxu0 %v2384
    %v9120 = vpop.f32.mrf.mxu0
    %v9121 = vadd.f32 0.0, %v9120
    %v9122 = vpop.f32.mrf.mxu0
    %9123 = vdwg.mxu0
    %9124 = vmatpush.bf16.msra.mxu0 0
    %9125 = vmatpush.bf16.msra.mxu0 0
    %9126 = vmatpush.bf16.msra.mxu0 0
    %9127 = vmatpush.bf16.msra.mxu0 0
    %9128 = vmatpush.bf16.msra.mxu0 0
    %9129 = vmatpush.bf16.msra.mxu0 0
    %9130 = vmatpush.bf16.msra.mxu0 0
    %9131 = vmatpush.bf16.msra.mxu0 %v8960
    %9132 = vmatmul.bf16.gmra.mxu0 %v2384
    %v9133 = vpop.f32.mrf.mxu0
    %v9134 = vadd.f32 0.0, %v9133
    %v9135 = vpop.f32.mrf.mxu0
    %9136 = vdwg.mxu0
    %9137 = vmatpush.bf16.msra.mxu0 0
    %9138 = vmatpush.bf16.msra.mxu0 0
    %9139 = vmatpush.bf16.msra.mxu0 0
    %9140 = vmatpush.bf16.msra.mxu0 0
    %9141 = vmatpush.bf16.msra.mxu0 0
    %9142 = vmatpush.bf16.msra.mxu0 0
    %9143 = vmatpush.bf16.msra.mxu0 0
    %9144 = vmatpush.bf16.msra.mxu0 %v8963
    %9145 = vmatmul.bf16.gmra.mxu0 %v2384
    %v9146 = vpop.f32.mrf.mxu0
    %v9147 = vadd.f32 0.0, %v9146
    %v9148 = vpop.f32.mrf.mxu0
    %9149 = vdwg.mxu0
    %9150 = vmatpush.bf16.msra.mxu0 0
    %9151 = vmatpush.bf16.msra.mxu0 0
    %9152 = vmatpush.bf16.msra.mxu0 0
    %9153 = vmatpush.bf16.msra.mxu0 0
    %9154 = vmatpush.bf16.msra.mxu0 0
    %9155 = vmatpush.bf16.msra.mxu0 0
    %9156 = vmatpush.bf16.msra.mxu0 0
    %9157 = vmatpush.bf16.msra.mxu0 %v8966
    %9158 = vmatmul.bf16.gmra.mxu0 %v2384
    %v9159 = vpop.f32.mrf.mxu0
    %v9160 = vadd.f32 0.0, %v9159
    %v9161 = vpop.f32.mrf.mxu0
    %9162 = vdwg.mxu0
    %v9163 = vadd.f32 %v8823, %v8978
    %v9164 = vadd.f32 %v8824, %v8991
    %v9165 = vadd.f32 %v8825, %v9004
    %v9166 = vadd.f32 %v8826, %v9017
    %v9167 = vadd.f32 %v8827, %v9030
    %v9168 = vadd.f32 %v8828, %v9043
    %v9169 = vadd.f32 %v8829, %v9056
    %v9170 = vadd.f32 %v8830, %v9069
    %v9171 = vadd.f32 %v8831, %v9082
    %v9172 = vadd.f32 %v8832, %v9095
    %v9173 = vadd.f32 %v8833, %v9108
    %v9174 = vadd.f32 %v8834, %v9121
    %v9175 = vadd.f32 %v8835, %v9134
    %v9176 = vadd.f32 %v8836, %v9147
    %v9177 = vadd.f32 %v8837, %v9160
    %9178 = vst [vmem:[#allocation1] ss:$4 sm:$0xff] %v6641
    %s9179 = scalar_lea.vmem [#allocation1], 32
    %9180 = vst [vmem:[%s9179] ss:$4 sm:$0xff] %v6642
    %v9181 = vld.sshfl [vmem:[#allocation1 + $0x10] sm:$0xff pattern:$0x73625140]
    %v9182 = vld.sshfl [vmem:[#allocation1 + $0x18] sm:$0xff pattern:$0x73625140]
    %v9183 = vld.sshfl [vmem:[#allocation1 + $0x20] sm:$0xff pattern:$0x73625140]
    %v9184 = vld.sshfl [vmem:[#allocation1 + $0x28] sm:$0xff pattern:$0x73625140]
    %v9185 = vld.sshfl [vmem:[#allocation1 + $0x30] sm:$0xff pattern:$0x73625140]
    %v9186 = vld.sshfl [vmem:[#allocation1 + $0x38] sm:$0xff pattern:$0x73625140]
    %9187 = vst [vmem:[#allocation1] ss:$4 sm:$0xff] %v6643
    %9188 = vst [vmem:[%s9179] ss:$4 sm:$0xff] %v6644
    %v9189 = vld.sshfl [vmem:[#allocation1] sm:$0xff pattern:$0x73625140]
    %v9190 = vld.sshfl [vmem:[#allocation1 + $0x8] sm:$0xff pattern:$0x73625140]
    %v9191 = vld.sshfl [vmem:[#allocation1 + $0x10] sm:$0xff pattern:$0x73625140]
    %v9192 = vld.sshfl [vmem:[#allocation1 + $0x18] sm:$0xff pattern:$0x73625140]
    %v9193 = vld.sshfl [vmem:[#allocation1 + $0x20] sm:$0xff pattern:$0x73625140]
    %v9194 = vld.sshfl [vmem:[#allocation1 + $0x28] sm:$0xff pattern:$0x73625140]
    %v9195 = vld.sshfl [vmem:[#allocation1 + $0x30] sm:$0xff pattern:$0x73625140]
    %v9196 = vld.sshfl [vmem:[#allocation1 + $0x38] sm:$0xff pattern:$0x73625140]
    %9197 = vst [vmem:[#allocation1] ss:$4 sm:$0xff] %v6645
    %v9198 = vld.sshfl [vmem:[#allocation1] sm:$0xff pattern:$0x73625140]
    %v9199 = vsel %vm161, %v9181, 0
    %v9201 = vsel %vm161, %v9182, 0
    %v9203 = vsel %vm161, %v9183, 0
    %v9205 = vsel %vm161, %v9184, 0
    %v9207 = vsel %vm161, %v9185, 0
    %v9209 = vsel %vm161, %v9186, 0
    %v9211 = vsel %vm161, %v9189, 0
    %v9213 = vsel %vm161, %v9190, 0
    %v9215 = vsel %vm161, %v9191, 0
    %v9217 = vsel %vm161, %v9192, 0
    %v9219 = vsel %vm161, %v9193, 0
    %v9221 = vsel %vm161, %v9194, 0
    %v9223 = vsel %vm161, %v9195, 0
    %v9225 = vsel %vm161, %v9196, 0
    %v9227 = vsel %vm161, %v9198, 0
    %9229 = vmatpush.bf16.msra.mxu0 0
    %9230 = vmatpush.bf16.msra.mxu0 0
    %9231 = vmatpush.bf16.msra.mxu0 0
    %9232 = vmatpush.bf16.msra.mxu0 0
    %9233 = vmatpush.bf16.msra.mxu0 0
    %9234 = vmatpush.bf16.msra.mxu0 0
    %9235 = vmatpush.bf16.msra.mxu0 0
    %9236 = vmatpush.bf16.msra.mxu0 %v9199
    %9237 = vmatmul.bf16.gmra.mxu0 %v2665
    %v9238 = vpop.f32.mrf.mxu0
    %v9239 = vadd.f32 0.0, %v9238
    %v9240 = vpop.f32.mrf.mxu0
    %9241 = vdwg.mxu0
    %9242 = vmatpush.bf16.msra.mxu0 0
    %9243 = vmatpush.bf16.msra.mxu0 0
    %9244 = vmatpush.bf16.msra.mxu0 0
    %9245 = vmatpush.bf16.msra.mxu0 0
    %9246 = vmatpush.bf16.msra.mxu0 0
    %9247 = vmatpush.bf16.msra.mxu0 0
    %9248 = vmatpush.bf16.msra.mxu0 0
    %9249 = vmatpush.bf16.msra.mxu0 %v9201
    %9250 = vmatmul.bf16.gmra.mxu0 %v2665
    %v9251 = vpop.f32.mrf.mxu0
    %v9252 = vadd.f32 0.0, %v9251
    %v9253 = vpop.f32.mrf.mxu0
    %9254 = vdwg.mxu0
    %9255 = vmatpush.bf16.msra.mxu0 0
    %9256 = vmatpush.bf16.msra.mxu0 0
    %9257 = vmatpush.bf16.msra.mxu0 0
    %9258 = vmatpush.bf16.msra.mxu0 0
    %9259 = vmatpush.bf16.msra.mxu0 0
    %9260 = vmatpush.bf16.msra.mxu0 0
    %9261 = vmatpush.bf16.msra.mxu0 0
    %9262 = vmatpush.bf16.msra.mxu0 %v9203
    %9263 = vmatmul.bf16.gmra.mxu0 %v2665
    %v9264 = vpop.f32.mrf.mxu0
    %v9265 = vadd.f32 0.0, %v9264
    %v9266 = vpop.f32.mrf.mxu0
    %9267 = vdwg.mxu0
    %9268 = vmatpush.bf16.msra.mxu0 0
    %9269 = vmatpush.bf16.msra.mxu0 0
    %9270 = vmatpush.bf16.msra.mxu0 0
    %9271 = vmatpush.bf16.msra.mxu0 0
    %9272 = vmatpush.bf16.msra.mxu0 0
    %9273 = vmatpush.bf16.msra.mxu0 0
    %9274 = vmatpush.bf16.msra.mxu0 0
    %9275 = vmatpush.bf16.msra.mxu0 %v9205
    %9276 = vmatmul.bf16.gmra.mxu0 %v2665
    %v9277 = vpop.f32.mrf.mxu0
    %v9278 = vadd.f32 0.0, %v9277
    %v9279 = vpop.f32.mrf.mxu0
    %9280 = vdwg.mxu0
    %9281 = vmatpush.bf16.msra.mxu0 0
    %9282 = vmatpush.bf16.msra.mxu0 0
    %9283 = vmatpush.bf16.msra.mxu0 0
    %9284 = vmatpush.bf16.msra.mxu0 0
    %9285 = vmatpush.bf16.msra.mxu0 0
    %9286 = vmatpush.bf16.msra.mxu0 0
    %9287 = vmatpush.bf16.msra.mxu0 0
    %9288 = vmatpush.bf16.msra.mxu0 %v9207
    %9289 = vmatmul.bf16.gmra.mxu0 %v2665
    %v9290 = vpop.f32.mrf.mxu0
    %v9291 = vadd.f32 0.0, %v9290
    %v9292 = vpop.f32.mrf.mxu0
    %9293 = vdwg.mxu0
    %9294 = vmatpush.bf16.msra.mxu0 0
    %9295 = vmatpush.bf16.msra.mxu0 0
    %9296 = vmatpush.bf16.msra.mxu0 0
    %9297 = vmatpush.bf16.msra.mxu0 0
    %9298 = vmatpush.bf16.msra.mxu0 0
    %9299 = vmatpush.bf16.msra.mxu0 0
    %9300 = vmatpush.bf16.msra.mxu0 0
    %9301 = vmatpush.bf16.msra.mxu0 %v9209
    %9302 = vmatmul.bf16.gmra.mxu0 %v2665
    %v9303 = vpop.f32.mrf.mxu0
    %v9304 = vadd.f32 0.0, %v9303
    %v9305 = vpop.f32.mrf.mxu0
    %9306 = vdwg.mxu0
    %9307 = vmatpush.bf16.msra.mxu0 0
    %9308 = vmatpush.bf16.msra.mxu0 0
    %9309 = vmatpush.bf16.msra.mxu0 0
    %9310 = vmatpush.bf16.msra.mxu0 0
    %9311 = vmatpush.bf16.msra.mxu0 0
    %9312 = vmatpush.bf16.msra.mxu0 0
    %9313 = vmatpush.bf16.msra.mxu0 0
    %9314 = vmatpush.bf16.msra.mxu0 %v9211
    %9315 = vmatmul.bf16.gmra.mxu0 %v2665
    %v9316 = vpop.f32.mrf.mxu0
    %v9317 = vadd.f32 0.0, %v9316
    %v9318 = vpop.f32.mrf.mxu0
    %9319 = vdwg.mxu0
    %9320 = vmatpush.bf16.msra.mxu0 0
    %9321 = vmatpush.bf16.msra.mxu0 0
    %9322 = vmatpush.bf16.msra.mxu0 0
    %9323 = vmatpush.bf16.msra.mxu0 0
    %9324 = vmatpush.bf16.msra.mxu0 0
    %9325 = vmatpush.bf16.msra.mxu0 0
    %9326 = vmatpush.bf16.msra.mxu0 0
    %9327 = vmatpush.bf16.msra.mxu0 %v9213
    %9328 = vmatmul.bf16.gmra.mxu0 %v2665
    %v9329 = vpop.f32.mrf.mxu0
    %v9330 = vadd.f32 0.0, %v9329
    %v9331 = vpop.f32.mrf.mxu0
    %9332 = vdwg.mxu0
    %9333 = vmatpush.bf16.msra.mxu0 0
    %9334 = vmatpush.bf16.msra.mxu0 0
    %9335 = vmatpush.bf16.msra.mxu0 0
    %9336 = vmatpush.bf16.msra.mxu0 0
    %9337 = vmatpush.bf16.msra.mxu0 0
    %9338 = vmatpush.bf16.msra.mxu0 0
    %9339 = vmatpush.bf16.msra.mxu0 0
    %9340 = vmatpush.bf16.msra.mxu0 %v9215
    %9341 = vmatmul.bf16.gmra.mxu0 %v2665
    %v9342 = vpop.f32.mrf.mxu0
    %v9343 = vadd.f32 0.0, %v9342
    %v9344 = vpop.f32.mrf.mxu0
    %9345 = vdwg.mxu0
    %9346 = vmatpush.bf16.msra.mxu0 0
    %9347 = vmatpush.bf16.msra.mxu0 0
    %9348 = vmatpush.bf16.msra.mxu0 0
    %9349 = vmatpush.bf16.msra.mxu0 0
    %9350 = vmatpush.bf16.msra.mxu0 0
    %9351 = vmatpush.bf16.msra.mxu0 0
    %9352 = vmatpush.bf16.msra.mxu0 0
    %9353 = vmatpush.bf16.msra.mxu0 %v9217
    %9354 = vmatmul.bf16.gmra.mxu0 %v2665
    %v9355 = vpop.f32.mrf.mxu0
    %v9356 = vadd.f32 0.0, %v9355
    %v9357 = vpop.f32.mrf.mxu0
    %9358 = vdwg.mxu0
    %9359 = vmatpush.bf16.msra.mxu0 0
    %9360 = vmatpush.bf16.msra.mxu0 0
    %9361 = vmatpush.bf16.msra.mxu0 0
    %9362 = vmatpush.bf16.msra.mxu0 0
    %9363 = vmatpush.bf16.msra.mxu0 0
    %9364 = vmatpush.bf16.msra.mxu0 0
    %9365 = vmatpush.bf16.msra.mxu0 0
    %9366 = vmatpush.bf16.msra.mxu0 %v9219
    %9367 = vmatmul.bf16.gmra.mxu0 %v2665
    %v9368 = vpop.f32.mrf.mxu0
    %v9369 = vadd.f32 0.0, %v9368
    %v9370 = vpop.f32.mrf.mxu0
    %9371 = vdwg.mxu0
    %9372 = vmatpush.bf16.msra.mxu0 0
    %9373 = vmatpush.bf16.msra.mxu0 0
    %9374 = vmatpush.bf16.msra.mxu0 0
    %9375 = vmatpush.bf16.msra.mxu0 0
    %9376 = vmatpush.bf16.msra.mxu0 0
    %9377 = vmatpush.bf16.msra.mxu0 0
    %9378 = vmatpush.bf16.msra.mxu0 0
    %9379 = vmatpush.bf16.msra.mxu0 %v9221
    %9380 = vmatmul.bf16.gmra.mxu0 %v2665
    %v9381 = vpop.f32.mrf.mxu0
    %v9382 = vadd.f32 0.0, %v9381
    %v9383 = vpop.f32.mrf.mxu0
    %9384 = vdwg.mxu0
    %9385 = vmatpush.bf16.msra.mxu0 0
    %9386 = vmatpush.bf16.msra.mxu0 0
    %9387 = vmatpush.bf16.msra.mxu0 0
    %9388 = vmatpush.bf16.msra.mxu0 0
    %9389 = vmatpush.bf16.msra.mxu0 0
    %9390 = vmatpush.bf16.msra.mxu0 0
    %9391 = vmatpush.bf16.msra.mxu0 0
    %9392 = vmatpush.bf16.msra.mxu0 %v9223
    %9393 = vmatmul.bf16.gmra.mxu0 %v2665
    %v9394 = vpop.f32.mrf.mxu0
    %v9395 = vadd.f32 0.0, %v9394
    %v9396 = vpop.f32.mrf.mxu0
    %9397 = vdwg.mxu0
    %9398 = vmatpush.bf16.msra.mxu0 0
    %9399 = vmatpush.bf16.msra.mxu0 0
    %9400 = vmatpush.bf16.msra.mxu0 0
    %9401 = vmatpush.bf16.msra.mxu0 0
    %9402 = vmatpush.bf16.msra.mxu0 0
    %9403 = vmatpush.bf16.msra.mxu0 0
    %9404 = vmatpush.bf16.msra.mxu0 0
    %9405 = vmatpush.bf16.msra.mxu0 %v9225
    %9406 = vmatmul.bf16.gmra.mxu0 %v2665
    %v9407 = vpop.f32.mrf.mxu0
    %v9408 = vadd.f32 0.0, %v9407
    %v9409 = vpop.f32.mrf.mxu0
    %9410 = vdwg.mxu0
    %9411 = vmatpush.bf16.msra.mxu0 0
    %9412 = vmatpush.bf16.msra.mxu0 0
    %9413 = vmatpush.bf16.msra.mxu0 0
    %9414 = vmatpush.bf16.msra.mxu0 0
    %9415 = vmatpush.bf16.msra.mxu0 0
    %9416 = vmatpush.bf16.msra.mxu0 0
    %9417 = vmatpush.bf16.msra.mxu0 0
    %9418 = vmatpush.bf16.msra.mxu0 %v9227
    %9419 = vmatmul.bf16.gmra.mxu0 %v2665
    %v9420 = vpop.f32.mrf.mxu0
    %v9421 = vadd.f32 0.0, %v9420
    %v9422 = vpop.f32.mrf.mxu0
    %9423 = vdwg.mxu0
    %v9424 = vadd.f32 %v9163, %v9239
    %v9425 = vadd.f32 %v9164, %v9252
    %v9426 = vadd.f32 %v9165, %v9265
    %v9427 = vadd.f32 %v9166, %v9278
    %v9428 = vadd.f32 %v9167, %v9291
    %v9429 = vadd.f32 %v9168, %v9304
    %v9430 = vadd.f32 %v9169, %v9317
    %v9431 = vadd.f32 %v9170, %v9330
    %v9432 = vadd.f32 %v9171, %v9343
    %v9433 = vadd.f32 %v9172, %v9356
    %v9434 = vadd.f32 %v9173, %v9369
    %v9435 = vadd.f32 %v9174, %v9382
    %v9436 = vadd.f32 %v9175, %v9395
    %v9437 = vadd.f32 %v9176, %v9408
    %v9438 = vadd.f32 %v9177, %v9421
    %9439 = vst [vmem:[#allocation1] ss:$4 sm:$0xff] %v6641
    %s9440 = scalar_lea.vmem [#allocation1], 32
    %9441 = vst [vmem:[%s9440] ss:$4 sm:$0xff] %v6642
    %v9442 = vld.sshfl [vmem:[#allocation1 + $0x10] sm:$0xff pattern:$0x73625140]
    %v9444 = vld.sshfl [vmem:[#allocation1 + $0x18] sm:$0xff pattern:$0x73625140]
    %v9446 = vld.sshfl [vmem:[#allocation1 + $0x20] sm:$0xff pattern:$0x73625140]
    %v9448 = vld.sshfl [vmem:[#allocation1 + $0x28] sm:$0xff pattern:$0x73625140]
    %v9450 = vld.sshfl [vmem:[#allocation1 + $0x30] sm:$0xff pattern:$0x73625140]
    %v9452 = vld.sshfl [vmem:[#allocation1 + $0x38] sm:$0xff pattern:$0x73625140]
    %9454 = vst [vmem:[#allocation1] ss:$4 sm:$0xff] %v6643
    %9455 = vst [vmem:[%s9440] ss:$4 sm:$0xff] %v6644
    %v9456 = vld.sshfl [vmem:[#allocation1] sm:$0xff pattern:$0x73625140]
    %v9458 = vld.sshfl [vmem:[#allocation1 + $0x8] sm:$0xff pattern:$0x73625140]
    %v9460 = vld.sshfl [vmem:[#allocation1 + $0x10] sm:$0xff pattern:$0x73625140]
    %v9462 = vld.sshfl [vmem:[#allocation1 + $0x18] sm:$0xff pattern:$0x73625140]
    %v9464 = vld.sshfl [vmem:[#allocation1 + $0x20] sm:$0xff pattern:$0x73625140]
    %v9466 = vld.sshfl [vmem:[#allocation1 + $0x28] sm:$0xff pattern:$0x73625140]
    %v9468 = vld.sshfl [vmem:[#allocation1 + $0x30] sm:$0xff pattern:$0x73625140]
    %v9470 = vld.sshfl [vmem:[#allocation1 + $0x38] sm:$0xff pattern:$0x73625140]
    %9472 = vst [vmem:[#allocation1] ss:$4 sm:$0xff] %v6645
    %v9473 = vld.sshfl [vmem:[#allocation1] sm:$0xff pattern:$0x73625140]
    %v9475 = vld.sshfl [vmem:[#allocation1 + $0x8] sm:$0xff pattern:$0x73625140]
    %9477 = vrot.lane.b32.xlu0 %v9442, 127
    %v9478 = vpop.permute.xlu0 %9477
    %9479 = vrot.lane.b32.xlu0 %v9444, 127
    %v9480 = vpop.permute.xlu0 %9479
    %9481 = vrot.lane.b32.xlu0 %v9446, 127
    %v9482 = vpop.permute.xlu0 %9481
    %9483 = vrot.lane.b32.xlu0 %v9448, 127
    %v9484 = vpop.permute.xlu0 %9483
    %9485 = vrot.lane.b32.xlu0 %v9450, 127
    %v9486 = vpop.permute.xlu0 %9485
    %9487 = vrot.lane.b32.xlu0 %v9452, 127
    %v9488 = vpop.permute.xlu0 %9487
    %9489 = vrot.lane.b32.xlu0 %v9456, 127
    %v9490 = vpop.permute.xlu0 %9489
    %9491 = vrot.lane.b32.xlu0 %v9458, 127
    %v9492 = vpop.permute.xlu0 %9491
    %9493 = vrot.lane.b32.xlu0 %v9460, 127
    %v9494 = vpop.permute.xlu0 %9493
    %9495 = vrot.lane.b32.xlu0 %v9462, 127
    %v9496 = vpop.permute.xlu0 %9495
    %9497 = vrot.lane.b32.xlu0 %v9464, 127
    %v9498 = vpop.permute.xlu0 %9497
    %9499 = vrot.lane.b32.xlu0 %v9466, 127
    %v9500 = vpop.permute.xlu0 %9499
    %9501 = vrot.lane.b32.xlu0 %v9468, 127
    %v9502 = vpop.permute.xlu0 %9501
    %9503 = vrot.lane.b32.xlu0 %v9470, 127
    %v9504 = vpop.permute.xlu0 %9503
    %9505 = vrot.lane.b32.xlu0 %v9473, 127
    %v9506 = vpop.permute.xlu0 %9505
    %9507 = vrot.lane.b32.xlu0 %v9475, 127
    %v9508 = vpop.permute.xlu0 %9507
    %v9509 = vsel %vm141, %v9478, %v9480
    %v9510 = vsel %vm141, %v9480, %v9482
    %v9511 = vsel %vm141, %v9482, %v9484
    %v9512 = vsel %vm141, %v9484, %v9486
    %v9513 = vsel %vm141, %v9486, %v9488
    %v9514 = vsel %vm141, %v9488, %v9490
    %v9515 = vsel %vm141, %v9490, %v9492
    %v9516 = vsel %vm141, %v9492, %v9494
    %v9517 = vsel %vm141, %v9494, %v9496
    %v9518 = vsel %vm141, %v9496, %v9498
    %v9519 = vsel %vm141, %v9498, %v9500
    %v9520 = vsel %vm141, %v9500, %v9502
    %v9521 = vsel %vm141, %v9502, %v9504
    %v9522 = vsel %vm141, %v9504, %v9506
    %v9523 = vsel %vm141, %v9506, %v9508
    %v9525 = vsel %vm161, %v9509, 0
    %v9528 = vsel %vm161, %v9510, 0
    %v9531 = vsel %vm161, %v9511, 0
    %v9534 = vsel %vm161, %v9512, 0
    %v9537 = vsel %vm161, %v9513, 0
    %v9540 = vsel %vm161, %v9514, 0
    %v9543 = vsel %vm161, %v9515, 0
    %v9546 = vsel %vm161, %v9516, 0
    %v9549 = vsel %vm161, %v9517, 0
    %v9552 = vsel %vm161, %v9518, 0
    %v9555 = vsel %vm161, %v9519, 0
    %v9558 = vsel %vm161, %v9520, 0
    %v9561 = vsel %vm161, %v9521, 0
    %v9564 = vsel %vm161, %v9522, 0
    %v9567 = vsel %vm161, %v9523, 0
    %9569 = vmatpush.bf16.msra.mxu0 0
    %9570 = vmatpush.bf16.msra.mxu0 0
    %9571 = vmatpush.bf16.msra.mxu0 0
    %9572 = vmatpush.bf16.msra.mxu0 0
    %9573 = vmatpush.bf16.msra.mxu0 0
    %9574 = vmatpush.bf16.msra.mxu0 0
    %9575 = vmatpush.bf16.msra.mxu0 0
    %9576 = vmatpush.bf16.msra.mxu0 %v9525
    %9577 = vmatmul.bf16.gmra.mxu0 %v2995
    %v9578 = vpop.f32.mrf.mxu0
    %v9579 = vadd.f32 0.0, %v9578
    %v9580 = vpop.f32.mrf.mxu0
    %9581 = vdwg.mxu0
    %9582 = vmatpush.bf16.msra.mxu0 0
    %9583 = vmatpush.bf16.msra.mxu0 0
    %9584 = vmatpush.bf16.msra.mxu0 0
    %9585 = vmatpush.bf16.msra.mxu0 0
    %9586 = vmatpush.bf16.msra.mxu0 0
    %9587 = vmatpush.bf16.msra.mxu0 0
    %9588 = vmatpush.bf16.msra.mxu0 0
    %9589 = vmatpush.bf16.msra.mxu0 %v9528
    %9590 = vmatmul.bf16.gmra.mxu0 %v2995
    %v9591 = vpop.f32.mrf.mxu0
    %v9592 = vadd.f32 0.0, %v9591
    %v9593 = vpop.f32.mrf.mxu0
    %9594 = vdwg.mxu0
    %9595 = vmatpush.bf16.msra.mxu0 0
    %9596 = vmatpush.bf16.msra.mxu0 0
    %9597 = vmatpush.bf16.msra.mxu0 0
    %9598 = vmatpush.bf16.msra.mxu0 0
    %9599 = vmatpush.bf16.msra.mxu0 0
    %9600 = vmatpush.bf16.msra.mxu0 0
    %9601 = vmatpush.bf16.msra.mxu0 0
    %9602 = vmatpush.bf16.msra.mxu0 %v9531
    %9603 = vmatmul.bf16.gmra.mxu0 %v2995
    %v9604 = vpop.f32.mrf.mxu0
    %v9605 = vadd.f32 0.0, %v9604
    %v9606 = vpop.f32.mrf.mxu0
    %9607 = vdwg.mxu0
    %9608 = vmatpush.bf16.msra.mxu0 0
    %9609 = vmatpush.bf16.msra.mxu0 0
    %9610 = vmatpush.bf16.msra.mxu0 0
    %9611 = vmatpush.bf16.msra.mxu0 0
    %9612 = vmatpush.bf16.msra.mxu0 0
    %9613 = vmatpush.bf16.msra.mxu0 0
    %9614 = vmatpush.bf16.msra.mxu0 0
    %9615 = vmatpush.bf16.msra.mxu0 %v9534
    %9616 = vmatmul.bf16.gmra.mxu0 %v2995
    %v9617 = vpop.f32.mrf.mxu0
    %v9618 = vadd.f32 0.0, %v9617
    %v9619 = vpop.f32.mrf.mxu0
    %9620 = vdwg.mxu0
    %9621 = vmatpush.bf16.msra.mxu0 0
    %9622 = vmatpush.bf16.msra.mxu0 0
    %9623 = vmatpush.bf16.msra.mxu0 0
    %9624 = vmatpush.bf16.msra.mxu0 0
    %9625 = vmatpush.bf16.msra.mxu0 0
    %9626 = vmatpush.bf16.msra.mxu0 0
    %9627 = vmatpush.bf16.msra.mxu0 0
    %9628 = vmatpush.bf16.msra.mxu0 %v9537
    %9629 = vmatmul.bf16.gmra.mxu0 %v2995
    %v9630 = vpop.f32.mrf.mxu0
    %v9631 = vadd.f32 0.0, %v9630
    %v9632 = vpop.f32.mrf.mxu0
    %9633 = vdwg.mxu0
    %9634 = vmatpush.bf16.msra.mxu0 0
    %9635 = vmatpush.bf16.msra.mxu0 0
    %9636 = vmatpush.bf16.msra.mxu0 0
    %9637 = vmatpush.bf16.msra.mxu0 0
    %9638 = vmatpush.bf16.msra.mxu0 0
    %9639 = vmatpush.bf16.msra.mxu0 0
    %9640 = vmatpush.bf16.msra.mxu0 0
    %9641 = vmatpush.bf16.msra.mxu0 %v9540
    %9642 = vmatmul.bf16.gmra.mxu0 %v2995
    %v9643 = vpop.f32.mrf.mxu0
    %v9644 = vadd.f32 0.0, %v9643
    %v9645 = vpop.f32.mrf.mxu0
    %9646 = vdwg.mxu0
    %9647 = vmatpush.bf16.msra.mxu0 0
    %9648 = vmatpush.bf16.msra.mxu0 0
    %9649 = vmatpush.bf16.msra.mxu0 0
    %9650 = vmatpush.bf16.msra.mxu0 0
    %9651 = vmatpush.bf16.msra.mxu0 0
    %9652 = vmatpush.bf16.msra.mxu0 0
    %9653 = vmatpush.bf16.msra.mxu0 0
    %9654 = vmatpush.bf16.msra.mxu0 %v9543
    %9655 = vmatmul.bf16.gmra.mxu0 %v2995
    %v9656 = vpop.f32.mrf.mxu0
    %v9657 = vadd.f32 0.0, %v9656
    %v9658 = vpop.f32.mrf.mxu0
    %9659 = vdwg.mxu0
    %9660 = vmatpush.bf16.msra.mxu0 0
    %9661 = vmatpush.bf16.msra.mxu0 0
    %9662 = vmatpush.bf16.msra.mxu0 0
    %9663 = vmatpush.bf16.msra.mxu0 0
    %9664 = vmatpush.bf16.msra.mxu0 0
    %9665 = vmatpush.bf16.msra.mxu0 0
    %9666 = vmatpush.bf16.msra.mxu0 0
    %9667 = vmatpush.bf16.msra.mxu0 %v9546
    %9668 = vmatmul.bf16.gmra.mxu0 %v2995
    %v9669 = vpop.f32.mrf.mxu0
    %v9670 = vadd.f32 0.0, %v9669
    %v9671 = vpop.f32.mrf.mxu0
    %9672 = vdwg.mxu0
    %9673 = vmatpush.bf16.msra.mxu0 0
    %9674 = vmatpush.bf16.msra.mxu0 0
    %9675 = vmatpush.bf16.msra.mxu0 0
    %9676 = vmatpush.bf16.msra.mxu0 0
    %9677 = vmatpush.bf16.msra.mxu0 0
    %9678 = vmatpush.bf16.msra.mxu0 0
    %9679 = vmatpush.bf16.msra.mxu0 0
    %9680 = vmatpush.bf16.msra.mxu0 %v9549
    %9681 = vmatmul.bf16.gmra.mxu0 %v2995
    %v9682 = vpop.f32.mrf.mxu0
    %v9683 = vadd.f32 0.0, %v9682
    %v9684 = vpop.f32.mrf.mxu0
    %9685 = vdwg.mxu0
    %9686 = vmatpush.bf16.msra.mxu0 0
    %9687 = vmatpush.bf16.msra.mxu0 0
    %9688 = vmatpush.bf16.msra.mxu0 0
    %9689 = vmatpush.bf16.msra.mxu0 0
    %9690 = vmatpush.bf16.msra.mxu0 0
    %9691 = vmatpush.bf16.msra.mxu0 0
    %9692 = vmatpush.bf16.msra.mxu0 0
    %9693 = vmatpush.bf16.msra.mxu0 %v9552
    %9694 = vmatmul.bf16.gmra.mxu0 %v2995
    %v9695 = vpop.f32.mrf.mxu0
    %v9696 = vadd.f32 0.0, %v9695
    %v9697 = vpop.f32.mrf.mxu0
    %9698 = vdwg.mxu0
    %9699 = vmatpush.bf16.msra.mxu0 0
    %9700 = vmatpush.bf16.msra.mxu0 0
    %9701 = vmatpush.bf16.msra.mxu0 0
    %9702 = vmatpush.bf16.msra.mxu0 0
    %9703 = vmatpush.bf16.msra.mxu0 0
    %9704 = vmatpush.bf16.msra.mxu0 0
    %9705 = vmatpush.bf16.msra.mxu0 0
    %9706 = vmatpush.bf16.msra.mxu0 %v9555
    %9707 = vmatmul.bf16.gmra.mxu0 %v2995
    %v9708 = vpop.f32.mrf.mxu0
    %v9709 = vadd.f32 0.0, %v9708
    %v9710 = vpop.f32.mrf.mxu0
    %9711 = vdwg.mxu0
    %9712 = vmatpush.bf16.msra.mxu0 0
    %9713 = vmatpush.bf16.msra.mxu0 0
    %9714 = vmatpush.bf16.msra.mxu0 0
    %9715 = vmatpush.bf16.msra.mxu0 0
    %9716 = vmatpush.bf16.msra.mxu0 0
    %9717 = vmatpush.bf16.msra.mxu0 0
    %9718 = vmatpush.bf16.msra.mxu0 0
    %9719 = vmatpush.bf16.msra.mxu0 %v9558
    %9720 = vmatmul.bf16.gmra.mxu0 %v2995
    %v9721 = vpop.f32.mrf.mxu0
    %v9722 = vadd.f32 0.0, %v9721
    %v9723 = vpop.f32.mrf.mxu0
    %9724 = vdwg.mxu0
    %9725 = vmatpush.bf16.msra.mxu0 0
    %9726 = vmatpush.bf16.msra.mxu0 0
    %9727 = vmatpush.bf16.msra.mxu0 0
    %9728 = vmatpush.bf16.msra.mxu0 0
    %9729 = vmatpush.bf16.msra.mxu0 0
    %9730 = vmatpush.bf16.msra.mxu0 0
    %9731 = vmatpush.bf16.msra.mxu0 0
    %9732 = vmatpush.bf16.msra.mxu0 %v9561
    %9733 = vmatmul.bf16.gmra.mxu0 %v2995
    %v9734 = vpop.f32.mrf.mxu0
    %v9735 = vadd.f32 0.0, %v9734
    %v9736 = vpop.f32.mrf.mxu0
    %9737 = vdwg.mxu0
    %9738 = vmatpush.bf16.msra.mxu0 0
    %9739 = vmatpush.bf16.msra.mxu0 0
    %9740 = vmatpush.bf16.msra.mxu0 0
    %9741 = vmatpush.bf16.msra.mxu0 0
    %9742 = vmatpush.bf16.msra.mxu0 0
    %9743 = vmatpush.bf16.msra.mxu0 0
    %9744 = vmatpush.bf16.msra.mxu0 0
    %9745 = vmatpush.bf16.msra.mxu0 %v9564
    %9746 = vmatmul.bf16.gmra.mxu0 %v2995
    %v9747 = vpop.f32.mrf.mxu0
    %v9748 = vadd.f32 0.0, %v9747
    %v9749 = vpop.f32.mrf.mxu0
    %9750 = vdwg.mxu0
    %9751 = vmatpush.bf16.msra.mxu0 0
    %9752 = vmatpush.bf16.msra.mxu0 0
    %9753 = vmatpush.bf16.msra.mxu0 0
    %9754 = vmatpush.bf16.msra.mxu0 0
    %9755 = vmatpush.bf16.msra.mxu0 0
    %9756 = vmatpush.bf16.msra.mxu0 0
    %9757 = vmatpush.bf16.msra.mxu0 0
    %9758 = vmatpush.bf16.msra.mxu0 %v9567
    %9759 = vmatmul.bf16.gmra.mxu0 %v2995
    %v9760 = vpop.f32.mrf.mxu0
    %v9761 = vadd.f32 0.0, %v9760
    %v9762 = vpop.f32.mrf.mxu0
    %9763 = vdwg.mxu0
    %v9764 = vadd.f32 %v9424, %v9579
    %v9765 = vadd.f32 %v9425, %v9592
    %v9766 = vadd.f32 %v9426, %v9605
    %v9767 = vadd.f32 %v9427, %v9618
    %v9768 = vadd.f32 %v9428, %v9631
    %v9769 = vadd.f32 %v9429, %v9644
    %v9770 = vadd.f32 %v9430, %v9657
    %v9771 = vadd.f32 %v9431, %v9670
    %v9772 = vadd.f32 %v9432, %v9683
    %v9773 = vadd.f32 %v9433, %v9696
    %v9774 = vadd.f32 %v9434, %v9709
    %v9775 = vadd.f32 %v9435, %v9722
    %v9776 = vadd.f32 %v9436, %v9735
    %v9777 = vadd.f32 %v9437, %v9748
    %v9778 = vadd.f32 %v9438, %v9761
    %9779 = vst [vmem:[#allocation1] ss:$4 sm:$0xff] %v6641
    %s9780 = scalar_lea.vmem [#allocation1], 32
    %9781 = vst [vmem:[%s9780] ss:$4 sm:$0xff] %v6642
    %v9782 = vld.sshfl [vmem:[#allocation1 + $0x10] sm:$0xff pattern:$0x73625140]
    %v9784 = vld.sshfl [vmem:[#allocation1 + $0x18] sm:$0xff pattern:$0x73625140]
    %v9786 = vld.sshfl [vmem:[#allocation1 + $0x20] sm:$0xff pattern:$0x73625140]
    %v9788 = vld.sshfl [vmem:[#allocation1 + $0x28] sm:$0xff pattern:$0x73625140]
    %v9790 = vld.sshfl [vmem:[#allocation1 + $0x30] sm:$0xff pattern:$0x73625140]
    %v9792 = vld.sshfl [vmem:[#allocation1 + $0x38] sm:$0xff pattern:$0x73625140]
    %9794 = vst [vmem:[#allocation1] ss:$4 sm:$0xff] %v6643
    %9795 = vst [vmem:[%s9780] ss:$4 sm:$0xff] %v6644
    %v9796 = vld.sshfl [vmem:[#allocation1] sm:$0xff pattern:$0x73625140]
    %v9798 = vld.sshfl [vmem:[#allocation1 + $0x8] sm:$0xff pattern:$0x73625140]
    %v9800 = vld.sshfl [vmem:[#allocation1 + $0x10] sm:$0xff pattern:$0x73625140]
    %v9802 = vld.sshfl [vmem:[#allocation1 + $0x18] sm:$0xff pattern:$0x73625140]
    %v9804 = vld.sshfl [vmem:[#allocation1 + $0x20] sm:$0xff pattern:$0x73625140]
    %v9806 = vld.sshfl [vmem:[#allocation1 + $0x28] sm:$0xff pattern:$0x73625140]
    %v9808 = vld.sshfl [vmem:[#allocation1 + $0x30] sm:$0xff pattern:$0x73625140]
    %v9810 = vld.sshfl [vmem:[#allocation1 + $0x38] sm:$0xff pattern:$0x73625140]
    %9812 = vst [vmem:[#allocation1] ss:$4 sm:$0xff] %v6645
    %v9813 = vld.sshfl [vmem:[#allocation1] sm:$0xff pattern:$0x73625140]
    %v9815 = vld.sshfl [vmem:[#allocation1 + $0x8] sm:$0xff pattern:$0x73625140]
    %9817 = vrot.lane.b32.xlu0 %v9782, 126
    %v9818 = vpop.permute.xlu0 %9817
    %9819 = vrot.lane.b32.xlu0 %v9784, 126
    %v9820 = vpop.permute.xlu0 %9819
    %9821 = vrot.lane.b32.xlu0 %v9786, 126
    %v9822 = vpop.permute.xlu0 %9821
    %9823 = vrot.lane.b32.xlu0 %v9788, 126
    %v9824 = vpop.permute.xlu0 %9823
    %9825 = vrot.lane.b32.xlu0 %v9790, 126
    %v9826 = vpop.permute.xlu0 %9825
    %9827 = vrot.lane.b32.xlu0 %v9792, 126
    %v9828 = vpop.permute.xlu0 %9827
    %9829 = vrot.lane.b32.xlu0 %v9796, 126
    %v9830 = vpop.permute.xlu0 %9829
    %9831 = vrot.lane.b32.xlu0 %v9798, 126
    %v9832 = vpop.permute.xlu0 %9831
    %9833 = vrot.lane.b32.xlu0 %v9800, 126
    %v9834 = vpop.permute.xlu0 %9833
    %9835 = vrot.lane.b32.xlu0 %v9802, 126
    %v9836 = vpop.permute.xlu0 %9835
    %9837 = vrot.lane.b32.xlu0 %v9804, 126
    %v9838 = vpop.permute.xlu0 %9837
    %9839 = vrot.lane.b32.xlu0 %v9806, 126
    %v9840 = vpop.permute.xlu0 %9839
    %9841 = vrot.lane.b32.xlu0 %v9808, 126
    %v9842 = vpop.permute.xlu0 %9841
    %9843 = vrot.lane.b32.xlu0 %v9810, 126
    %v9844 = vpop.permute.xlu0 %9843
    %9845 = vrot.lane.b32.xlu0 %v9813, 126
    %v9846 = vpop.permute.xlu0 %9845
    %9847 = vrot.lane.b32.xlu0 %v9815, 126
    %v9848 = vpop.permute.xlu0 %9847
    %v9849 = vsel %vm721, %v9818, %v9820
    %v9850 = vsel %vm721, %v9820, %v9822
    %v9851 = vsel %vm721, %v9822, %v9824
    %v9852 = vsel %vm721, %v9824, %v9826
    %v9853 = vsel %vm721, %v9826, %v9828
    %v9854 = vsel %vm721, %v9828, %v9830
    %v9855 = vsel %vm721, %v9830, %v9832
    %v9856 = vsel %vm721, %v9832, %v9834
    %v9857 = vsel %vm721, %v9834, %v9836
    %v9858 = vsel %vm721, %v9836, %v9838
    %v9859 = vsel %vm721, %v9838, %v9840
    %v9860 = vsel %vm721, %v9840, %v9842
    %v9861 = vsel %vm721, %v9842, %v9844
    %v9862 = vsel %vm721, %v9844, %v9846
    %v9863 = vsel %vm721, %v9846, %v9848
    %v9865 = vsel %vm161, %v9849, 0
    %v9868 = vsel %vm161, %v9850, 0
    %v9871 = vsel %vm161, %v9851, 0
    %v9874 = vsel %vm161, %v9852, 0
    %v9877 = vsel %vm161, %v9853, 0
    %v9880 = vsel %vm161, %v9854, 0
    %v9883 = vsel %vm161, %v9855, 0
    %v9886 = vsel %vm161, %v9856, 0
    %v9889 = vsel %vm161, %v9857, 0
    %v9892 = vsel %vm161, %v9858, 0
    %v9895 = vsel %vm161, %v9859, 0
    %v9898 = vsel %vm161, %v9860, 0
    %v9901 = vsel %vm161, %v9861, 0
    %v9904 = vsel %vm161, %v9862, 0
    %v9907 = vsel %vm161, %v9863, 0
    %9909 = vmatpush.bf16.msra.mxu0 0
    %9910 = vmatpush.bf16.msra.mxu0 0
    %9911 = vmatpush.bf16.msra.mxu0 0
    %9912 = vmatpush.bf16.msra.mxu0 0
    %9913 = vmatpush.bf16.msra.mxu0 0
    %9914 = vmatpush.bf16.msra.mxu0 0
    %9915 = vmatpush.bf16.msra.mxu0 0
    %9916 = vmatpush.bf16.msra.mxu0 %v9865
    %9917 = vmatmul.bf16.gmra.mxu0 %v3340
    %v9918 = vpop.f32.mrf.mxu0
    %v9919 = vadd.f32 0.0, %v9918
    %v9920 = vpop.f32.mrf.mxu0
    %9921 = vdwg.mxu0
    %9922 = vmatpush.bf16.msra.mxu0 0
    %9923 = vmatpush.bf16.msra.mxu0 0
    %9924 = vmatpush.bf16.msra.mxu0 0
    %9925 = vmatpush.bf16.msra.mxu0 0
    %9926 = vmatpush.bf16.msra.mxu0 0
    %9927 = vmatpush.bf16.msra.mxu0 0
    %9928 = vmatpush.bf16.msra.mxu0 0
    %9929 = vmatpush.bf16.msra.mxu0 %v9868
    %9930 = vmatmul.bf16.gmra.mxu0 %v3340
    %v9931 = vpop.f32.mrf.mxu0
    %v9932 = vadd.f32 0.0, %v9931
    %v9933 = vpop.f32.mrf.mxu0
    %9934 = vdwg.mxu0
    %9935 = vmatpush.bf16.msra.mxu0 0
    %9936 = vmatpush.bf16.msra.mxu0 0
    %9937 = vmatpush.bf16.msra.mxu0 0
    %9938 = vmatpush.bf16.msra.mxu0 0
    %9939 = vmatpush.bf16.msra.mxu0 0
    %9940 = vmatpush.bf16.msra.mxu0 0
    %9941 = vmatpush.bf16.msra.mxu0 0
    %9942 = vmatpush.bf16.msra.mxu0 %v9871
    %9943 = vmatmul.bf16.gmra.mxu0 %v3340
    %v9944 = vpop.f32.mrf.mxu0
    %v9945 = vadd.f32 0.0, %v9944
    %v9946 = vpop.f32.mrf.mxu0
    %9947 = vdwg.mxu0
    %9948 = vmatpush.bf16.msra.mxu0 0
    %9949 = vmatpush.bf16.msra.mxu0 0
    %9950 = vmatpush.bf16.msra.mxu0 0
    %9951 = vmatpush.bf16.msra.mxu0 0
    %9952 = vmatpush.bf16.msra.mxu0 0
    %9953 = vmatpush.bf16.msra.mxu0 0
    %9954 = vmatpush.bf16.msra.mxu0 0
    %9955 = vmatpush.bf16.msra.mxu0 %v9874
    %9956 = vmatmul.bf16.gmra.mxu0 %v3340
    %v9957 = vpop.f32.mrf.mxu0
    %v9958 = vadd.f32 0.0, %v9957
    %v9959 = vpop.f32.mrf.mxu0
    %9960 = vdwg.mxu0
    %9961 = vmatpush.bf16.msra.mxu0 0
    %9962 = vmatpush.bf16.msra.mxu0 0
    %9963 = vmatpush.bf16.msra.mxu0 0
    %9964 = vmatpush.bf16.msra.mxu0 0
    %9965 = vmatpush.bf16.msra.mxu0 0
    %9966 = vmatpush.bf16.msra.mxu0 0
    %9967 = vmatpush.bf16.msra.mxu0 0
    %9968 = vmatpush.bf16.msra.mxu0 %v9877
    %9969 = vmatmul.bf16.gmra.mxu0 %v3340
    %v9970 = vpop.f32.mrf.mxu0
    %v9971 = vadd.f32 0.0, %v9970
    %v9972 = vpop.f32.mrf.mxu0
    %9973 = vdwg.mxu0
    %9974 = vmatpush.bf16.msra.mxu0 0
    %9975 = vmatpush.bf16.msra.mxu0 0
    %9976 = vmatpush.bf16.msra.mxu0 0
    %9977 = vmatpush.bf16.msra.mxu0 0
    %9978 = vmatpush.bf16.msra.mxu0 0
    %9979 = vmatpush.bf16.msra.mxu0 0
    %9980 = vmatpush.bf16.msra.mxu0 0
    %9981 = vmatpush.bf16.msra.mxu0 %v9880
    %9982 = vmatmul.bf16.gmra.mxu0 %v3340
    %v9983 = vpop.f32.mrf.mxu0
    %v9984 = vadd.f32 0.0, %v9983
    %v9985 = vpop.f32.mrf.mxu0
    %9986 = vdwg.mxu0
    %9987 = vmatpush.bf16.msra.mxu0 0
    %9988 = vmatpush.bf16.msra.mxu0 0
    %9989 = vmatpush.bf16.msra.mxu0 0
    %9990 = vmatpush.bf16.msra.mxu0 0
    %9991 = vmatpush.bf16.msra.mxu0 0
    %9992 = vmatpush.bf16.msra.mxu0 0
    %9993 = vmatpush.bf16.msra.mxu0 0
    %9994 = vmatpush.bf16.msra.mxu0 %v9883
    %9995 = vmatmul.bf16.gmra.mxu0 %v3340
    %v9996 = vpop.f32.mrf.mxu0
    %v9997 = vadd.f32 0.0, %v9996
    %v9998 = vpop.f32.mrf.mxu0
    %9999 = vdwg.mxu0
    %10000 = vmatpush.bf16.msra.mxu0 0
    %10001 = vmatpush.bf16.msra.mxu0 0
    %10002 = vmatpush.bf16.msra.mxu0 0
    %10003 = vmatpush.bf16.msra.mxu0 0
    %10004 = vmatpush.bf16.msra.mxu0 0
    %10005 = vmatpush.bf16.msra.mxu0 0
    %10006 = vmatpush.bf16.msra.mxu0 0
    %10007 = vmatpush.bf16.msra.mxu0 %v9886
    %10008 = vmatmul.bf16.gmra.mxu0 %v3340
    %v10009 = vpop.f32.mrf.mxu0
    %v10010 = vadd.f32 0.0, %v10009
    %v10011 = vpop.f32.mrf.mxu0
    %10012 = vdwg.mxu0
    %10013 = vmatpush.bf16.msra.mxu0 0
    %10014 = vmatpush.bf16.msra.mxu0 0
    %10015 = vmatpush.bf16.msra.mxu0 0
    %10016 = vmatpush.bf16.msra.mxu0 0
    %10017 = vmatpush.bf16.msra.mxu0 0
    %10018 = vmatpush.bf16.msra.mxu0 0
    %10019 = vmatpush.bf16.msra.mxu0 0
    %10020 = vmatpush.bf16.msra.mxu0 %v9889
    %10021 = vmatmul.bf16.gmra.mxu0 %v3340
    %v10022 = vpop.f32.mrf.mxu0
    %v10023 = vadd.f32 0.0, %v10022
    %v10024 = vpop.f32.mrf.mxu0
    %10025 = vdwg.mxu0
    %10026 = vmatpush.bf16.msra.mxu0 0
    %10027 = vmatpush.bf16.msra.mxu0 0
    %10028 = vmatpush.bf16.msra.mxu0 0
    %10029 = vmatpush.bf16.msra.mxu0 0
    %10030 = vmatpush.bf16.msra.mxu0 0
    %10031 = vmatpush.bf16.msra.mxu0 0
    %10032 = vmatpush.bf16.msra.mxu0 0
    %10033 = vmatpush.bf16.msra.mxu0 %v9892
    %10034 = vmatmul.bf16.gmra.mxu0 %v3340
    %v10035 = vpop.f32.mrf.mxu0
    %v10036 = vadd.f32 0.0, %v10035
    %v10037 = vpop.f32.mrf.mxu0
    %10038 = vdwg.mxu0
    %10039 = vmatpush.bf16.msra.mxu0 0
    %10040 = vmatpush.bf16.msra.mxu0 0
    %10041 = vmatpush.bf16.msra.mxu0 0
    %10042 = vmatpush.bf16.msra.mxu0 0
    %10043 = vmatpush.bf16.msra.mxu0 0
    %10044 = vmatpush.bf16.msra.mxu0 0
    %10045 = vmatpush.bf16.msra.mxu0 0
    %10046 = vmatpush.bf16.msra.mxu0 %v9895
    %10047 = vmatmul.bf16.gmra.mxu0 %v3340
    %v10048 = vpop.f32.mrf.mxu0
    %v10049 = vadd.f32 0.0, %v10048
    %v10050 = vpop.f32.mrf.mxu0
    %10051 = vdwg.mxu0
    %10052 = vmatpush.bf16.msra.mxu0 0
    %10053 = vmatpush.bf16.msra.mxu0 0
    %10054 = vmatpush.bf16.msra.mxu0 0
    %10055 = vmatpush.bf16.msra.mxu0 0
    %10056 = vmatpush.bf16.msra.mxu0 0
    %10057 = vmatpush.bf16.msra.mxu0 0
    %10058 = vmatpush.bf16.msra.mxu0 0
    %10059 = vmatpush.bf16.msra.mxu0 %v9898
    %10060 = vmatmul.bf16.gmra.mxu0 %v3340
    %v10061 = vpop.f32.mrf.mxu0
    %v10062 = vadd.f32 0.0, %v10061
    %v10063 = vpop.f32.mrf.mxu0
    %10064 = vdwg.mxu0
    %10065 = vmatpush.bf16.msra.mxu0 0
    %10066 = vmatpush.bf16.msra.mxu0 0
    %10067 = vmatpush.bf16.msra.mxu0 0
    %10068 = vmatpush.bf16.msra.mxu0 0
    %10069 = vmatpush.bf16.msra.mxu0 0
    %10070 = vmatpush.bf16.msra.mxu0 0
    %10071 = vmatpush.bf16.msra.mxu0 0
    %10072 = vmatpush.bf16.msra.mxu0 %v9901
    %10073 = vmatmul.bf16.gmra.mxu0 %v3340
    %v10074 = vpop.f32.mrf.mxu0
    %v10075 = vadd.f32 0.0, %v10074
    %v10076 = vpop.f32.mrf.mxu0
    %10077 = vdwg.mxu0
    %10078 = vmatpush.bf16.msra.mxu0 0
    %10079 = vmatpush.bf16.msra.mxu0 0
    %10080 = vmatpush.bf16.msra.mxu0 0
    %10081 = vmatpush.bf16.msra.mxu0 0
    %10082 = vmatpush.bf16.msra.mxu0 0
    %10083 = vmatpush.bf16.msra.mxu0 0
    %10084 = vmatpush.bf16.msra.mxu0 0
    %10085 = vmatpush.bf16.msra.mxu0 %v9904
    %10086 = vmatmul.bf16.gmra.mxu0 %v3340
    %v10087 = vpop.f32.mrf.mxu0
    %v10088 = vadd.f32 0.0, %v10087
    %v10089 = vpop.f32.mrf.mxu0
    %10090 = vdwg.mxu0
    %10091 = vmatpush.bf16.msra.mxu0 0
    %10092 = vmatpush.bf16.msra.mxu0 0
    %10093 = vmatpush.bf16.msra.mxu0 0
    %10094 = vmatpush.bf16.msra.mxu0 0
    %10095 = vmatpush.bf16.msra.mxu0 0
    %10096 = vmatpush.bf16.msra.mxu0 0
    %10097 = vmatpush.bf16.msra.mxu0 0
    %10098 = vmatpush.bf16.msra.mxu0 %v9907
    %10099 = vmatmul.bf16.gmra.mxu0 %v3340
    %v10100 = vpop.f32.mrf.mxu0
    %v10101 = vadd.f32 0.0, %v10100
    %v10102 = vpop.f32.mrf.mxu0
    %10103 = vdwg.mxu0
    %v10104 = vadd.f32 %v9764, %v9919
    %v10105 = vadd.f32 %v9765, %v9932
    %v10106 = vadd.f32 %v9766, %v9945
    %v10107 = vadd.f32 %v9767, %v9958
    %v10108 = vadd.f32 %v9768, %v9971
    %v10109 = vadd.f32 %v9769, %v9984
    %v10110 = vadd.f32 %v9770, %v9997
    %v10111 = vadd.f32 %v9771, %v10010
    %v10112 = vadd.f32 %v9772, %v10023
    %v10113 = vadd.f32 %v9773, %v10036
    %v10114 = vadd.f32 %v9774, %v10049
    %v10115 = vadd.f32 %v9775, %v10062
    %v10116 = vadd.f32 %v9776, %v10075
    %v10117 = vadd.f32 %v9777, %v10088
    %v10118 = vadd.f32 %v9778, %v10101
    %10119 = vst [vmem:[#allocation1] ss:$4 sm:$0xff] %v6641
    %s10120 = scalar_lea.vmem [#allocation1], 32
    %10121 = vst [vmem:[%s10120] ss:$4 sm:$0xff] %v6642
    %v10122 = vld.sshfl [vmem:[#allocation1 + $0x10] sm:$0xff pattern:$0x73625140]
    %v10124 = vld.sshfl [vmem:[#allocation1 + $0x18] sm:$0xff pattern:$0x73625140]
    %v10126 = vld.sshfl [vmem:[#allocation1 + $0x20] sm:$0xff pattern:$0x73625140]
    %v10128 = vld.sshfl [vmem:[#allocation1 + $0x28] sm:$0xff pattern:$0x73625140]
    %v10130 = vld.sshfl [vmem:[#allocation1 + $0x30] sm:$0xff pattern:$0x73625140]
    %v10132 = vld.sshfl [vmem:[#allocation1 + $0x38] sm:$0xff pattern:$0x73625140]
    %10134 = vst [vmem:[#allocation1] ss:$4 sm:$0xff] %v6643
    %10135 = vst [vmem:[%s10120] ss:$4 sm:$0xff] %v6644
    %v10136 = vld.sshfl [vmem:[#allocation1] sm:$0xff pattern:$0x73625140]
    %v10138 = vld.sshfl [vmem:[#allocation1 + $0x8] sm:$0xff pattern:$0x73625140]
    %v10140 = vld.sshfl [vmem:[#allocation1 + $0x10] sm:$0xff pattern:$0x73625140]
    %v10142 = vld.sshfl [vmem:[#allocation1 + $0x18] sm:$0xff pattern:$0x73625140]
    %v10144 = vld.sshfl [vmem:[#allocation1 + $0x20] sm:$0xff pattern:$0x73625140]
    %v10146 = vld.sshfl [vmem:[#allocation1 + $0x28] sm:$0xff pattern:$0x73625140]
    %v10148 = vld.sshfl [vmem:[#allocation1 + $0x30] sm:$0xff pattern:$0x73625140]
    %v10150 = vld.sshfl [vmem:[#allocation1 + $0x38] sm:$0xff pattern:$0x73625140]
    %10152 = vst [vmem:[#allocation1] ss:$4 sm:$0xff] %v6645
    %v10153 = vld.sshfl [vmem:[#allocation1] sm:$0xff pattern:$0x73625140]
    %v10155 = vld.sshfl [vmem:[#allocation1 + $0x8] sm:$0xff pattern:$0x73625140]
    %10157 = vrot.lane.b32.xlu0 %v10122, 125
    %v10158 = vpop.permute.xlu0 %10157
    %10159 = vrot.lane.b32.xlu0 %v10124, 125
    %v10160 = vpop.permute.xlu0 %10159
    %10161 = vrot.lane.b32.xlu0 %v10126, 125
    %v10162 = vpop.permute.xlu0 %10161
    %10163 = vrot.lane.b32.xlu0 %v10128, 125
    %v10164 = vpop.permute.xlu0 %10163
    %10165 = vrot.lane.b32.xlu0 %v10130, 125
    %v10166 = vpop.permute.xlu0 %10165
    %10167 = vrot.lane.b32.xlu0 %v10132, 125
    %v10168 = vpop.permute.xlu0 %10167
    %10169 = vrot.lane.b32.xlu0 %v10136, 125
    %v10170 = vpop.permute.xlu0 %10169
    %10171 = vrot.lane.b32.xlu0 %v10138, 125
    %v10172 = vpop.permute.xlu0 %10171
    %10173 = vrot.lane.b32.xlu0 %v10140, 125
    %v10174 = vpop.permute.xlu0 %10173
    %10175 = vrot.lane.b32.xlu0 %v10142, 125
    %v10176 = vpop.permute.xlu0 %10175
    %10177 = vrot.lane.b32.xlu0 %v10144, 125
    %v10178 = vpop.permute.xlu0 %10177
    %10179 = vrot.lane.b32.xlu0 %v10146, 125
    %v10180 = vpop.permute.xlu0 %10179
    %10181 = vrot.lane.b32.xlu0 %v10148, 125
    %v10182 = vpop.permute.xlu0 %10181
    %10183 = vrot.lane.b32.xlu0 %v10150, 125
    %v10184 = vpop.permute.xlu0 %10183
    %10185 = vrot.lane.b32.xlu0 %v10153, 125
    %v10186 = vpop.permute.xlu0 %10185
    %10187 = vrot.lane.b32.xlu0 %v10155, 125
    %v10188 = vpop.permute.xlu0 %10187
    %v10189 = vsel %vm1066, %v10158, %v10160
    %v10190 = vsel %vm1066, %v10160, %v10162
    %v10191 = vsel %vm1066, %v10162, %v10164
    %v10192 = vsel %vm1066, %v10164, %v10166
    %v10193 = vsel %vm1066, %v10166, %v10168
    %v10194 = vsel %vm1066, %v10168, %v10170
    %v10195 = vsel %vm1066, %v10170, %v10172
    %v10196 = vsel %vm1066, %v10172, %v10174
    %v10197 = vsel %vm1066, %v10174, %v10176
    %v10198 = vsel %vm1066, %v10176, %v10178
    %v10199 = vsel %vm1066, %v10178, %v10180
    %v10200 = vsel %vm1066, %v10180, %v10182
    %v10201 = vsel %vm1066, %v10182, %v10184
    %v10202 = vsel %vm1066, %v10184, %v10186
    %v10203 = vsel %vm1066, %v10186, %v10188
    %v10205 = vsel %vm161, %v10189, 0
    %v10208 = vsel %vm161, %v10190, 0
    %v10211 = vsel %vm161, %v10191, 0
    %v10214 = vsel %vm161, %v10192, 0
    %v10217 = vsel %vm161, %v10193, 0
    %v10220 = vsel %vm161, %v10194, 0
    %v10223 = vsel %vm161, %v10195, 0
    %v10226 = vsel %vm161, %v10196, 0
    %v10229 = vsel %vm161, %v10197, 0
    %v10232 = vsel %vm161, %v10198, 0
    %v10235 = vsel %vm161, %v10199, 0
    %v10238 = vsel %vm161, %v10200, 0
    %v10241 = vsel %vm161, %v10201, 0
    %v10244 = vsel %vm161, %v10202, 0
    %v10247 = vsel %vm161, %v10203, 0
    %10249 = vmatpush.bf16.msra.mxu0 0
    %10250 = vmatpush.bf16.msra.mxu0 0
    %10251 = vmatpush.bf16.msra.mxu0 0
    %10252 = vmatpush.bf16.msra.mxu0 0
    %10253 = vmatpush.bf16.msra.mxu0 0
    %10254 = vmatpush.bf16.msra.mxu0 0
    %10255 = vmatpush.bf16.msra.mxu0 0
    %10256 = vmatpush.bf16.msra.mxu0 %v10205
    %10257 = vmatmul.bf16.gmra.mxu0 %v3685
    %v10258 = vpop.f32.mrf.mxu0
    %v10259 = vadd.f32 0.0, %v10258
    %v10260 = vpop.f32.mrf.mxu0
    %10261 = vdwg.mxu0
    %10262 = vmatpush.bf16.msra.mxu0 0
    %10263 = vmatpush.bf16.msra.mxu0 0
    %10264 = vmatpush.bf16.msra.mxu0 0
    %10265 = vmatpush.bf16.msra.mxu0 0
    %10266 = vmatpush.bf16.msra.mxu0 0
    %10267 = vmatpush.bf16.msra.mxu0 0
    %10268 = vmatpush.bf16.msra.mxu0 0
    %10269 = vmatpush.bf16.msra.mxu0 %v10208
    %10270 = vmatmul.bf16.gmra.mxu0 %v3685
    %v10271 = vpop.f32.mrf.mxu0
    %v10272 = vadd.f32 0.0, %v10271
    %v10273 = vpop.f32.mrf.mxu0
    %10274 = vdwg.mxu0
    %10275 = vmatpush.bf16.msra.mxu0 0
    %10276 = vmatpush.bf16.msra.mxu0 0
    %10277 = vmatpush.bf16.msra.mxu0 0
    %10278 = vmatpush.bf16.msra.mxu0 0
    %10279 = vmatpush.bf16.msra.mxu0 0
    %10280 = vmatpush.bf16.msra.mxu0 0
    %10281 = vmatpush.bf16.msra.mxu0 0
    %10282 = vmatpush.bf16.msra.mxu0 %v10211
    %10283 = vmatmul.bf16.gmra.mxu0 %v3685
    %v10284 = vpop.f32.mrf.mxu0
    %v10285 = vadd.f32 0.0, %v10284
    %v10286 = vpop.f32.mrf.mxu0
    %10287 = vdwg.mxu0
    %10288 = vmatpush.bf16.msra.mxu0 0
    %10289 = vmatpush.bf16.msra.mxu0 0
    %10290 = vmatpush.bf16.msra.mxu0 0
    %10291 = vmatpush.bf16.msra.mxu0 0
    %10292 = vmatpush.bf16.msra.mxu0 0
    %10293 = vmatpush.bf16.msra.mxu0 0
    %10294 = vmatpush.bf16.msra.mxu0 0
    %10295 = vmatpush.bf16.msra.mxu0 %v10214
    %10296 = vmatmul.bf16.gmra.mxu0 %v3685
    %v10297 = vpop.f32.mrf.mxu0
    %v10298 = vadd.f32 0.0, %v10297
    %v10299 = vpop.f32.mrf.mxu0
    %10300 = vdwg.mxu0
    %10301 = vmatpush.bf16.msra.mxu0 0
    %10302 = vmatpush.bf16.msra.mxu0 0
    %10303 = vmatpush.bf16.msra.mxu0 0
    %10304 = vmatpush.bf16.msra.mxu0 0
    %10305 = vmatpush.bf16.msra.mxu0 0
    %10306 = vmatpush.bf16.msra.mxu0 0
    %10307 = vmatpush.bf16.msra.mxu0 0
    %10308 = vmatpush.bf16.msra.mxu0 %v10217
    %10309 = vmatmul.bf16.gmra.mxu0 %v3685
    %v10310 = vpop.f32.mrf.mxu0
    %v10311 = vadd.f32 0.0, %v10310
    %v10312 = vpop.f32.mrf.mxu0
    %10313 = vdwg.mxu0
    %10314 = vmatpush.bf16.msra.mxu0 0
    %10315 = vmatpush.bf16.msra.mxu0 0
    %10316 = vmatpush.bf16.msra.mxu0 0
    %10317 = vmatpush.bf16.msra.mxu0 0
    %10318 = vmatpush.bf16.msra.mxu0 0
    %10319 = vmatpush.bf16.msra.mxu0 0
    %10320 = vmatpush.bf16.msra.mxu0 0
    %10321 = vmatpush.bf16.msra.mxu0 %v10220
    %10322 = vmatmul.bf16.gmra.mxu0 %v3685
    %v10323 = vpop.f32.mrf.mxu0
    %v10324 = vadd.f32 0.0, %v10323
    %v10325 = vpop.f32.mrf.mxu0
    %10326 = vdwg.mxu0
    %10327 = vmatpush.bf16.msra.mxu0 0
    %10328 = vmatpush.bf16.msra.mxu0 0
    %10329 = vmatpush.bf16.msra.mxu0 0
    %10330 = vmatpush.bf16.msra.mxu0 0
    %10331 = vmatpush.bf16.msra.mxu0 0
    %10332 = vmatpush.bf16.msra.mxu0 0
    %10333 = vmatpush.bf16.msra.mxu0 0
    %10334 = vmatpush.bf16.msra.mxu0 %v10223
    %10335 = vmatmul.bf16.gmra.mxu0 %v3685
    %v10336 = vpop.f32.mrf.mxu0
    %v10337 = vadd.f32 0.0, %v10336
    %v10338 = vpop.f32.mrf.mxu0
    %10339 = vdwg.mxu0
    %10340 = vmatpush.bf16.msra.mxu0 0
    %10341 = vmatpush.bf16.msra.mxu0 0
    %10342 = vmatpush.bf16.msra.mxu0 0
    %10343 = vmatpush.bf16.msra.mxu0 0
    %10344 = vmatpush.bf16.msra.mxu0 0
    %10345 = vmatpush.bf16.msra.mxu0 0
    %10346 = vmatpush.bf16.msra.mxu0 0
    %10347 = vmatpush.bf16.msra.mxu0 %v10226
    %10348 = vmatmul.bf16.gmra.mxu0 %v3685
    %v10349 = vpop.f32.mrf.mxu0
    %v10350 = vadd.f32 0.0, %v10349
    %v10351 = vpop.f32.mrf.mxu0
    %10352 = vdwg.mxu0
    %10353 = vmatpush.bf16.msra.mxu0 0
    %10354 = vmatpush.bf16.msra.mxu0 0
    %10355 = vmatpush.bf16.msra.mxu0 0
    %10356 = vmatpush.bf16.msra.mxu0 0
    %10357 = vmatpush.bf16.msra.mxu0 0
    %10358 = vmatpush.bf16.msra.mxu0 0
    %10359 = vmatpush.bf16.msra.mxu0 0
    %10360 = vmatpush.bf16.msra.mxu0 %v10229
    %10361 = vmatmul.bf16.gmra.mxu0 %v3685
    %v10362 = vpop.f32.mrf.mxu0
    %v10363 = vadd.f32 0.0, %v10362
    %v10364 = vpop.f32.mrf.mxu0
    %10365 = vdwg.mxu0
    %10366 = vmatpush.bf16.msra.mxu0 0
    %10367 = vmatpush.bf16.msra.mxu0 0
    %10368 = vmatpush.bf16.msra.mxu0 0
    %10369 = vmatpush.bf16.msra.mxu0 0
    %10370 = vmatpush.bf16.msra.mxu0 0
    %10371 = vmatpush.bf16.msra.mxu0 0
    %10372 = vmatpush.bf16.msra.mxu0 0
    %10373 = vmatpush.bf16.msra.mxu0 %v10232
    %10374 = vmatmul.bf16.gmra.mxu0 %v3685
    %v10375 = vpop.f32.mrf.mxu0
    %v10376 = vadd.f32 0.0, %v10375
    %v10377 = vpop.f32.mrf.mxu0
    %10378 = vdwg.mxu0
    %10379 = vmatpush.bf16.msra.mxu0 0
    %10380 = vmatpush.bf16.msra.mxu0 0
    %10381 = vmatpush.bf16.msra.mxu0 0
    %10382 = vmatpush.bf16.msra.mxu0 0
    %10383 = vmatpush.bf16.msra.mxu0 0
    %10384 = vmatpush.bf16.msra.mxu0 0
    %10385 = vmatpush.bf16.msra.mxu0 0
    %10386 = vmatpush.bf16.msra.mxu0 %v10235
    %10387 = vmatmul.bf16.gmra.mxu0 %v3685
    %v10388 = vpop.f32.mrf.mxu0
    %v10389 = vadd.f32 0.0, %v10388
    %v10390 = vpop.f32.mrf.mxu0
    %10391 = vdwg.mxu0
    %10392 = vmatpush.bf16.msra.mxu0 0
    %10393 = vmatpush.bf16.msra.mxu0 0
    %10394 = vmatpush.bf16.msra.mxu0 0
    %10395 = vmatpush.bf16.msra.mxu0 0
    %10396 = vmatpush.bf16.msra.mxu0 0
    %10397 = vmatpush.bf16.msra.mxu0 0
    %10398 = vmatpush.bf16.msra.mxu0 0
    %10399 = vmatpush.bf16.msra.mxu0 %v10238
    %10400 = vmatmul.bf16.gmra.mxu0 %v3685
    %v10401 = vpop.f32.mrf.mxu0
    %v10402 = vadd.f32 0.0, %v10401
    %v10403 = vpop.f32.mrf.mxu0
    %10404 = vdwg.mxu0
    %10405 = vmatpush.bf16.msra.mxu0 0
    %10406 = vmatpush.bf16.msra.mxu0 0
    %10407 = vmatpush.bf16.msra.mxu0 0
    %10408 = vmatpush.bf16.msra.mxu0 0
    %10409 = vmatpush.bf16.msra.mxu0 0
    %10410 = vmatpush.bf16.msra.mxu0 0
    %10411 = vmatpush.bf16.msra.mxu0 0
    %10412 = vmatpush.bf16.msra.mxu0 %v10241
    %10413 = vmatmul.bf16.gmra.mxu0 %v3685
    %v10414 = vpop.f32.mrf.mxu0
    %v10415 = vadd.f32 0.0, %v10414
    %v10416 = vpop.f32.mrf.mxu0
    %10417 = vdwg.mxu0
    %10418 = vmatpush.bf16.msra.mxu0 0
    %10419 = vmatpush.bf16.msra.mxu0 0
    %10420 = vmatpush.bf16.msra.mxu0 0
    %10421 = vmatpush.bf16.msra.mxu0 0
    %10422 = vmatpush.bf16.msra.mxu0 0
    %10423 = vmatpush.bf16.msra.mxu0 0
    %10424 = vmatpush.bf16.msra.mxu0 0
    %10425 = vmatpush.bf16.msra.mxu0 %v10244
    %10426 = vmatmul.bf16.gmra.mxu0 %v3685
    %v10427 = vpop.f32.mrf.mxu0
    %v10428 = vadd.f32 0.0, %v10427
    %v10429 = vpop.f32.mrf.mxu0
    %10430 = vdwg.mxu0
    %10431 = vmatpush.bf16.msra.mxu0 0
    %10432 = vmatpush.bf16.msra.mxu0 0
    %10433 = vmatpush.bf16.msra.mxu0 0
    %10434 = vmatpush.bf16.msra.mxu0 0
    %10435 = vmatpush.bf16.msra.mxu0 0
    %10436 = vmatpush.bf16.msra.mxu0 0
    %10437 = vmatpush.bf16.msra.mxu0 0
    %10438 = vmatpush.bf16.msra.mxu0 %v10247
    %10439 = vmatmul.bf16.gmra.mxu0 %v3685
    %v10440 = vpop.f32.mrf.mxu0
    %v10441 = vadd.f32 0.0, %v10440
    %v10442 = vpop.f32.mrf.mxu0
    %10443 = vdwg.mxu0
    %v10444 = vadd.f32 %v10104, %v10259
    %v10445 = vadd.f32 %v10105, %v10272
    %v10446 = vadd.f32 %v10106, %v10285
    %v10447 = vadd.f32 %v10107, %v10298
    %v10448 = vadd.f32 %v10108, %v10311
    %v10449 = vadd.f32 %v10109, %v10324
    %v10450 = vadd.f32 %v10110, %v10337
    %v10451 = vadd.f32 %v10111, %v10350
    %v10452 = vadd.f32 %v10112, %v10363
    %v10453 = vadd.f32 %v10113, %v10376
    %v10454 = vadd.f32 %v10114, %v10389
    %v10455 = vadd.f32 %v10115, %v10402
    %v10456 = vadd.f32 %v10116, %v10415
    %v10457 = vadd.f32 %v10117, %v10428
    %v10458 = vadd.f32 %v10118, %v10441
    %10459 = vst [vmem:[#allocation1] ss:$4 sm:$0xff] %v6641
    %s10460 = scalar_lea.vmem [#allocation1], 32
    %10461 = vst [vmem:[%s10460] ss:$4 sm:$0xff] %v6642
    %v10462 = vld.sshfl [vmem:[#allocation1 + $0x18] sm:$0xff pattern:$0x73625140]
    %v10463 = vld.sshfl [vmem:[#allocation1 + $0x20] sm:$0xff pattern:$0x73625140]
    %v10464 = vld.sshfl [vmem:[#allocation1 + $0x28] sm:$0xff pattern:$0x73625140]
    %v10465 = vld.sshfl [vmem:[#allocation1 + $0x30] sm:$0xff pattern:$0x73625140]
    %v10466 = vld.sshfl [vmem:[#allocation1 + $0x38] sm:$0xff pattern:$0x73625140]
    %10467 = vst [vmem:[#allocation1] ss:$4 sm:$0xff] %v6643
    %10468 = vst [vmem:[%s10460] ss:$4 sm:$0xff] %v6644
    %v10469 = vld.sshfl [vmem:[#allocation1] sm:$0xff pattern:$0x73625140]
    %v10470 = vld.sshfl [vmem:[#allocation1 + $0x8] sm:$0xff pattern:$0x73625140]
    %v10471 = vld.sshfl [vmem:[#allocation1 + $0x10] sm:$0xff pattern:$0x73625140]
    %v10472 = vld.sshfl [vmem:[#allocation1 + $0x18] sm:$0xff pattern:$0x73625140]
    %v10473 = vld.sshfl [vmem:[#allocation1 + $0x20] sm:$0xff pattern:$0x73625140]
    %v10474 = vld.sshfl [vmem:[#allocation1 + $0x28] sm:$0xff pattern:$0x73625140]
    %v10475 = vld.sshfl [vmem:[#allocation1 + $0x30] sm:$0xff pattern:$0x73625140]
    %v10476 = vld.sshfl [vmem:[#allocation1 + $0x38] sm:$0xff pattern:$0x73625140]
    %10477 = vst [vmem:[#allocation1] ss:$4 sm:$0xff] %v6645
    %v10478 = vld.sshfl [vmem:[#allocation1] sm:$0xff pattern:$0x73625140]
    %v10479 = vld.sshfl [vmem:[#allocation1 + $0x8] sm:$0xff pattern:$0x73625140]
    %v10480 = vsel %vm161, %v10462, 0
    %v10482 = vsel %vm161, %v10463, 0
    %v10484 = vsel %vm161, %v10464, 0
    %v10486 = vsel %vm161, %v10465, 0
    %v10488 = vsel %vm161, %v10466, 0
    %v10490 = vsel %vm161, %v10469, 0
    %v10492 = vsel %vm161, %v10470, 0
    %v10494 = vsel %vm161, %v10471, 0
    %v10496 = vsel %vm161, %v10472, 0
    %v10498 = vsel %vm161, %v10473, 0
    %v10500 = vsel %vm161, %v10474, 0
    %v10502 = vsel %vm161, %v10475, 0
    %v10504 = vsel %vm161, %v10476, 0
    %v10506 = vsel %vm161, %v10478, 0
    %v10508 = vsel %vm161, %v10479, 0
    %10510 = vmatpush.bf16.msra.mxu0 0
    %10511 = vmatpush.bf16.msra.mxu0 0
    %10512 = vmatpush.bf16.msra.mxu0 0
    %10513 = vmatpush.bf16.msra.mxu0 0
    %10514 = vmatpush.bf16.msra.mxu0 0
    %10515 = vmatpush.bf16.msra.mxu0 0
    %10516 = vmatpush.bf16.msra.mxu0 0
    %10517 = vmatpush.bf16.msra.mxu0 %v10480
    %10518 = vmatmul.bf16.gmra.mxu0 %v3966
    %v10519 = vpop.f32.mrf.mxu0
    %v10520 = vadd.f32 0.0, %v10519
    %v10521 = vpop.f32.mrf.mxu0
    %10522 = vdwg.mxu0
    %10523 = vmatpush.bf16.msra.mxu0 0
    %10524 = vmatpush.bf16.msra.mxu0 0
    %10525 = vmatpush.bf16.msra.mxu0 0
    %10526 = vmatpush.bf16.msra.mxu0 0
    %10527 = vmatpush.bf16.msra.mxu0 0
    %10528 = vmatpush.bf16.msra.mxu0 0
    %10529 = vmatpush.bf16.msra.mxu0 0
    %10530 = vmatpush.bf16.msra.mxu0 %v10482
    %10531 = vmatmul.bf16.gmra.mxu0 %v3966
    %v10532 = vpop.f32.mrf.mxu0
    %v10533 = vadd.f32 0.0, %v10532
    %v10534 = vpop.f32.mrf.mxu0
    %10535 = vdwg.mxu0
    %10536 = vmatpush.bf16.msra.mxu0 0
    %10537 = vmatpush.bf16.msra.mxu0 0
    %10538 = vmatpush.bf16.msra.mxu0 0
    %10539 = vmatpush.bf16.msra.mxu0 0
    %10540 = vmatpush.bf16.msra.mxu0 0
    %10541 = vmatpush.bf16.msra.mxu0 0
    %10542 = vmatpush.bf16.msra.mxu0 0
    %10543 = vmatpush.bf16.msra.mxu0 %v10484
    %10544 = vmatmul.bf16.gmra.mxu0 %v3966
    %v10545 = vpop.f32.mrf.mxu0
    %v10546 = vadd.f32 0.0, %v10545
    %v10547 = vpop.f32.mrf.mxu0
    %10548 = vdwg.mxu0
    %10549 = vmatpush.bf16.msra.mxu0 0
    %10550 = vmatpush.bf16.msra.mxu0 0
    %10551 = vmatpush.bf16.msra.mxu0 0
    %10552 = vmatpush.bf16.msra.mxu0 0
    %10553 = vmatpush.bf16.msra.mxu0 0
    %10554 = vmatpush.bf16.msra.mxu0 0
    %10555 = vmatpush.bf16.msra.mxu0 0
    %10556 = vmatpush.bf16.msra.mxu0 %v10486
    %10557 = vmatmul.bf16.gmra.mxu0 %v3966
    %v10558 = vpop.f32.mrf.mxu0
    %v10559 = vadd.f32 0.0, %v10558
    %v10560 = vpop.f32.mrf.mxu0
    %10561 = vdwg.mxu0
    %10562 = vmatpush.bf16.msra.mxu0 0
    %10563 = vmatpush.bf16.msra.mxu0 0
    %10564 = vmatpush.bf16.msra.mxu0 0
    %10565 = vmatpush.bf16.msra.mxu0 0
    %10566 = vmatpush.bf16.msra.mxu0 0
    %10567 = vmatpush.bf16.msra.mxu0 0
    %10568 = vmatpush.bf16.msra.mxu0 0
    %10569 = vmatpush.bf16.msra.mxu0 %v10488
    %10570 = vmatmul.bf16.gmra.mxu0 %v3966
    %v10571 = vpop.f32.mrf.mxu0
    %v10572 = vadd.f32 0.0, %v10571
    %v10573 = vpop.f32.mrf.mxu0
    %10574 = vdwg.mxu0
    %10575 = vmatpush.bf16.msra.mxu0 0
    %10576 = vmatpush.bf16.msra.mxu0 0
    %10577 = vmatpush.bf16.msra.mxu0 0
    %10578 = vmatpush.bf16.msra.mxu0 0
    %10579 = vmatpush.bf16.msra.mxu0 0
    %10580 = vmatpush.bf16.msra.mxu0 0
    %10581 = vmatpush.bf16.msra.mxu0 0
    %10582 = vmatpush.bf16.msra.mxu0 %v10490
    %10583 = vmatmul.bf16.gmra.mxu0 %v3966
    %v10584 = vpop.f32.mrf.mxu0
    %v10585 = vadd.f32 0.0, %v10584
    %v10586 = vpop.f32.mrf.mxu0
    %10587 = vdwg.mxu0
    %10588 = vmatpush.bf16.msra.mxu0 0
    %10589 = vmatpush.bf16.msra.mxu0 0
    %10590 = vmatpush.bf16.msra.mxu0 0
    %10591 = vmatpush.bf16.msra.mxu0 0
    %10592 = vmatpush.bf16.msra.mxu0 0
    %10593 = vmatpush.bf16.msra.mxu0 0
    %10594 = vmatpush.bf16.msra.mxu0 0
    %10595 = vmatpush.bf16.msra.mxu0 %v10492
    %10596 = vmatmul.bf16.gmra.mxu0 %v3966
    %v10597 = vpop.f32.mrf.mxu0
    %v10598 = vadd.f32 0.0, %v10597
    %v10599 = vpop.f32.mrf.mxu0
    %10600 = vdwg.mxu0
    %10601 = vmatpush.bf16.msra.mxu0 0
    %10602 = vmatpush.bf16.msra.mxu0 0
    %10603 = vmatpush.bf16.msra.mxu0 0
    %10604 = vmatpush.bf16.msra.mxu0 0
    %10605 = vmatpush.bf16.msra.mxu0 0
    %10606 = vmatpush.bf16.msra.mxu0 0
    %10607 = vmatpush.bf16.msra.mxu0 0
    %10608 = vmatpush.bf16.msra.mxu0 %v10494
    %10609 = vmatmul.bf16.gmra.mxu0 %v3966
    %v10610 = vpop.f32.mrf.mxu0
    %v10611 = vadd.f32 0.0, %v10610
    %v10612 = vpop.f32.mrf.mxu0
    %10613 = vdwg.mxu0
    %10614 = vmatpush.bf16.msra.mxu0 0
    %10615 = vmatpush.bf16.msra.mxu0 0
    %10616 = vmatpush.bf16.msra.mxu0 0
    %10617 = vmatpush.bf16.msra.mxu0 0
    %10618 = vmatpush.bf16.msra.mxu0 0
    %10619 = vmatpush.bf16.msra.mxu0 0
    %10620 = vmatpush.bf16.msra.mxu0 0
    %10621 = vmatpush.bf16.msra.mxu0 %v10496
    %10622 = vmatmul.bf16.gmra.mxu0 %v3966
    %v10623 = vpop.f32.mrf.mxu0
    %v10624 = vadd.f32 0.0, %v10623
    %v10625 = vpop.f32.mrf.mxu0
    %10626 = vdwg.mxu0
    %10627 = vmatpush.bf16.msra.mxu0 0
    %10628 = vmatpush.bf16.msra.mxu0 0
    %10629 = vmatpush.bf16.msra.mxu0 0
    %10630 = vmatpush.bf16.msra.mxu0 0
    %10631 = vmatpush.bf16.msra.mxu0 0
    %10632 = vmatpush.bf16.msra.mxu0 0
    %10633 = vmatpush.bf16.msra.mxu0 0
    %10634 = vmatpush.bf16.msra.mxu0 %v10498
    %10635 = vmatmul.bf16.gmra.mxu0 %v3966
    %v10636 = vpop.f32.mrf.mxu0
    %v10637 = vadd.f32 0.0, %v10636
    %v10638 = vpop.f32.mrf.mxu0
    %10639 = vdwg.mxu0
    %10640 = vmatpush.bf16.msra.mxu0 0
    %10641 = vmatpush.bf16.msra.mxu0 0
    %10642 = vmatpush.bf16.msra.mxu0 0
    %10643 = vmatpush.bf16.msra.mxu0 0
    %10644 = vmatpush.bf16.msra.mxu0 0
    %10645 = vmatpush.bf16.msra.mxu0 0
    %10646 = vmatpush.bf16.msra.mxu0 0
    %10647 = vmatpush.bf16.msra.mxu0 %v10500
    %10648 = vmatmul.bf16.gmra.mxu0 %v3966
    %v10649 = vpop.f32.mrf.mxu0
    %v10650 = vadd.f32 0.0, %v10649
    %v10651 = vpop.f32.mrf.mxu0
    %10652 = vdwg.mxu0
    %10653 = vmatpush.bf16.msra.mxu0 0
    %10654 = vmatpush.bf16.msra.mxu0 0
    %10655 = vmatpush.bf16.msra.mxu0 0
    %10656 = vmatpush.bf16.msra.mxu0 0
    %10657 = vmatpush.bf16.msra.mxu0 0
    %10658 = vmatpush.bf16.msra.mxu0 0
    %10659 = vmatpush.bf16.msra.mxu0 0
    %10660 = vmatpush.bf16.msra.mxu0 %v10502
    %10661 = vmatmul.bf16.gmra.mxu0 %v3966
    %v10662 = vpop.f32.mrf.mxu0
    %v10663 = vadd.f32 0.0, %v10662
    %v10664 = vpop.f32.mrf.mxu0
    %10665 = vdwg.mxu0
    %10666 = vmatpush.bf16.msra.mxu0 0
    %10667 = vmatpush.bf16.msra.mxu0 0
    %10668 = vmatpush.bf16.msra.mxu0 0
    %10669 = vmatpush.bf16.msra.mxu0 0
    %10670 = vmatpush.bf16.msra.mxu0 0
    %10671 = vmatpush.bf16.msra.mxu0 0
    %10672 = vmatpush.bf16.msra.mxu0 0
    %10673 = vmatpush.bf16.msra.mxu0 %v10504
    %10674 = vmatmul.bf16.gmra.mxu0 %v3966
    %v10675 = vpop.f32.mrf.mxu0
    %v10676 = vadd.f32 0.0, %v10675
    %v10677 = vpop.f32.mrf.mxu0
    %10678 = vdwg.mxu0
    %10679 = vmatpush.bf16.msra.mxu0 0
    %10680 = vmatpush.bf16.msra.mxu0 0
    %10681 = vmatpush.bf16.msra.mxu0 0
    %10682 = vmatpush.bf16.msra.mxu0 0
    %10683 = vmatpush.bf16.msra.mxu0 0
    %10684 = vmatpush.bf16.msra.mxu0 0
    %10685 = vmatpush.bf16.msra.mxu0 0
    %10686 = vmatpush.bf16.msra.mxu0 %v10506
    %10687 = vmatmul.bf16.gmra.mxu0 %v3966
    %v10688 = vpop.f32.mrf.mxu0
    %v10689 = vadd.f32 0.0, %v10688
    %v10690 = vpop.f32.mrf.mxu0
    %10691 = vdwg.mxu0
    %10692 = vmatpush.bf16.msra.mxu0 0
    %10693 = vmatpush.bf16.msra.mxu0 0
    %10694 = vmatpush.bf16.msra.mxu0 0
    %10695 = vmatpush.bf16.msra.mxu0 0
    %10696 = vmatpush.bf16.msra.mxu0 0
    %10697 = vmatpush.bf16.msra.mxu0 0
    %10698 = vmatpush.bf16.msra.mxu0 0
    %10699 = vmatpush.bf16.msra.mxu0 %v10508
    %10700 = vmatmul.bf16.gmra.mxu0 %v3966
    %v10701 = vpop.f32.mrf.mxu0
    %v10702 = vadd.f32 0.0, %v10701
    %v10703 = vpop.f32.mrf.mxu0
    %10704 = vdwg.mxu0
    %v10705 = vadd.f32 %v10444, %v10520
    %v10706 = vadd.f32 %v10445, %v10533
    %v10707 = vadd.f32 %v10446, %v10546
    %v10708 = vadd.f32 %v10447, %v10559
    %v10709 = vadd.f32 %v10448, %v10572
    %v10710 = vadd.f32 %v10449, %v10585
    %v10711 = vadd.f32 %v10450, %v10598
    %v10712 = vadd.f32 %v10451, %v10611
    %v10713 = vadd.f32 %v10452, %v10624
    %v10714 = vadd.f32 %v10453, %v10637
    %v10715 = vadd.f32 %v10454, %v10650
    %v10716 = vadd.f32 %v10455, %v10663
    %v10717 = vadd.f32 %v10456, %v10676
    %v10718 = vadd.f32 %v10457, %v10689
    %v10719 = vadd.f32 %v10458, %v10702
    %10720 = vst [vmem:[#allocation1] ss:$4 sm:$0xff] %v6641
    %s10721 = scalar_lea.vmem [#allocation1], 32
    %10722 = vst [vmem:[%s10721] ss:$4 sm:$0xff] %v6642
    %v10723 = vld.sshfl [vmem:[#allocation1 + $0x18] sm:$0xff pattern:$0x73625140]
    %v10725 = vld.sshfl [vmem:[#allocation1 + $0x20] sm:$0xff pattern:$0x73625140]
    %v10727 = vld.sshfl [vmem:[#allocation1 + $0x28] sm:$0xff pattern:$0x73625140]
    %v10729 = vld.sshfl [vmem:[#allocation1 + $0x30] sm:$0xff pattern:$0x73625140]
    %v10731 = vld.sshfl [vmem:[#allocation1 + $0x38] sm:$0xff pattern:$0x73625140]
    %10733 = vst [vmem:[#allocation1] ss:$4 sm:$0xff] %v6643
    %10734 = vst [vmem:[%s10721] ss:$4 sm:$0xff] %v6644
    %v10735 = vld.sshfl [vmem:[#allocation1] sm:$0xff pattern:$0x73625140]
    %v10737 = vld.sshfl [vmem:[#allocation1 + $0x8] sm:$0xff pattern:$0x73625140]
    %v10739 = vld.sshfl [vmem:[#allocation1 + $0x10] sm:$0xff pattern:$0x73625140]
    %v10741 = vld.sshfl [vmem:[#allocation1 + $0x18] sm:$0xff pattern:$0x73625140]
    %v10743 = vld.sshfl [vmem:[#allocation1 + $0x20] sm:$0xff pattern:$0x73625140]
    %v10745 = vld.sshfl [vmem:[#allocation1 + $0x28] sm:$0xff pattern:$0x73625140]
    %v10747 = vld.sshfl [vmem:[#allocation1 + $0x30] sm:$0xff pattern:$0x73625140]
    %v10749 = vld.sshfl [vmem:[#allocation1 + $0x38] sm:$0xff pattern:$0x73625140]
    %10751 = vst [vmem:[#allocation1] ss:$4 sm:$0xff] %v6645
    %v10752 = vld.sshfl [vmem:[#allocation1] sm:$0xff pattern:$0x73625140]
    %v10754 = vld.sshfl [vmem:[#allocation1 + $0x8] sm:$0xff pattern:$0x73625140]
    %v10756 = vld.sshfl [vmem:[#allocation1 + $0x10] sm:$0xff pattern:$0x73625140]
    %10758 = vrot.lane.b32.xlu0 %v10723, 127
    %v10759 = vpop.permute.xlu0 %10758
    %10760 = vrot.lane.b32.xlu0 %v10725, 127
    %v10761 = vpop.permute.xlu0 %10760
    %10762 = vrot.lane.b32.xlu0 %v10727, 127
    %v10763 = vpop.permute.xlu0 %10762
    %10764 = vrot.lane.b32.xlu0 %v10729, 127
    %v10765 = vpop.permute.xlu0 %10764
    %10766 = vrot.lane.b32.xlu0 %v10731, 127
    %v10767 = vpop.permute.xlu0 %10766
    %10768 = vrot.lane.b32.xlu0 %v10735, 127
    %v10769 = vpop.permute.xlu0 %10768
    %10770 = vrot.lane.b32.xlu0 %v10737, 127
    %v10771 = vpop.permute.xlu0 %10770
    %10772 = vrot.lane.b32.xlu0 %v10739, 127
    %v10773 = vpop.permute.xlu0 %10772
    %10774 = vrot.lane.b32.xlu0 %v10741, 127
    %v10775 = vpop.permute.xlu0 %10774
    %10776 = vrot.lane.b32.xlu0 %v10743, 127
    %v10777 = vpop.permute.xlu0 %10776
    %10778 = vrot.lane.b32.xlu0 %v10745, 127
    %v10779 = vpop.permute.xlu0 %10778
    %10780 = vrot.lane.b32.xlu0 %v10747, 127
    %v10781 = vpop.permute.xlu0 %10780
    %10782 = vrot.lane.b32.xlu0 %v10749, 127
    %v10783 = vpop.permute.xlu0 %10782
    %10784 = vrot.lane.b32.xlu0 %v10752, 127
    %v10785 = vpop.permute.xlu0 %10784
    %10786 = vrot.lane.b32.xlu0 %v10754, 127
    %v10787 = vpop.permute.xlu0 %10786
    %10788 = vrot.lane.b32.xlu0 %v10756, 127
    %v10789 = vpop.permute.xlu0 %10788
    %v10790 = vsel %vm141, %v10759, %v10761
    %v10791 = vsel %vm141, %v10761, %v10763
    %v10792 = vsel %vm141, %v10763, %v10765
    %v10793 = vsel %vm141, %v10765, %v10767
    %v10794 = vsel %vm141, %v10767, %v10769
    %v10795 = vsel %vm141, %v10769, %v10771
    %v10796 = vsel %vm141, %v10771, %v10773
    %v10797 = vsel %vm141, %v10773, %v10775
    %v10798 = vsel %vm141, %v10775, %v10777
    %v10799 = vsel %vm141, %v10777, %v10779
    %v10800 = vsel %vm141, %v10779, %v10781
    %v10801 = vsel %vm141, %v10781, %v10783
    %v10802 = vsel %vm141, %v10783, %v10785
    %v10803 = vsel %vm141, %v10785, %v10787
    %v10804 = vsel %vm141, %v10787, %v10789
    %v10806 = vsel %vm161, %v10790, 0
    %v10809 = vsel %vm161, %v10791, 0
    %v10812 = vsel %vm161, %v10792, 0
    %v10815 = vsel %vm161, %v10793, 0
    %v10818 = vsel %vm161, %v10794, 0
    %v10821 = vsel %vm161, %v10795, 0
    %v10824 = vsel %vm161, %v10796, 0
    %v10827 = vsel %vm161, %v10797, 0
    %v10830 = vsel %vm161, %v10798, 0
    %v10833 = vsel %vm161, %v10799, 0
    %v10836 = vsel %vm161, %v10800, 0
    %v10839 = vsel %vm161, %v10801, 0
    %v10842 = vsel %vm161, %v10802, 0
    %v10845 = vsel %vm161, %v10803, 0
    %v10848 = vsel %vm161, %v10804, 0
    %10850 = vmatpush.bf16.msra.mxu0 0
    %10851 = vmatpush.bf16.msra.mxu0 0
    %10852 = vmatpush.bf16.msra.mxu0 0
    %10853 = vmatpush.bf16.msra.mxu0 0
    %10854 = vmatpush.bf16.msra.mxu0 0
    %10855 = vmatpush.bf16.msra.mxu0 0
    %10856 = vmatpush.bf16.msra.mxu0 0
    %10857 = vmatpush.bf16.msra.mxu0 %v10806
    %10858 = vmatmul.bf16.gmra.mxu0 %v4296
    %v10859 = vpop.f32.mrf.mxu0
    %v10860 = vadd.f32 0.0, %v10859
    %v10861 = vpop.f32.mrf.mxu0
    %10862 = vdwg.mxu0
    %10863 = vmatpush.bf16.msra.mxu0 0
    %10864 = vmatpush.bf16.msra.mxu0 0
    %10865 = vmatpush.bf16.msra.mxu0 0
    %10866 = vmatpush.bf16.msra.mxu0 0
    %10867 = vmatpush.bf16.msra.mxu0 0
    %10868 = vmatpush.bf16.msra.mxu0 0
    %10869 = vmatpush.bf16.msra.mxu0 0
    %10870 = vmatpush.bf16.msra.mxu0 %v10809
    %10871 = vmatmul.bf16.gmra.mxu0 %v4296
    %v10872 = vpop.f32.mrf.mxu0
    %v10873 = vadd.f32 0.0, %v10872
    %v10874 = vpop.f32.mrf.mxu0
    %10875 = vdwg.mxu0
    %10876 = vmatpush.bf16.msra.mxu0 0
    %10877 = vmatpush.bf16.msra.mxu0 0
    %10878 = vmatpush.bf16.msra.mxu0 0
    %10879 = vmatpush.bf16.msra.mxu0 0
    %10880 = vmatpush.bf16.msra.mxu0 0
    %10881 = vmatpush.bf16.msra.mxu0 0
    %10882 = vmatpush.bf16.msra.mxu0 0
    %10883 = vmatpush.bf16.msra.mxu0 %v10812
    %10884 = vmatmul.bf16.gmra.mxu0 %v4296
    %v10885 = vpop.f32.mrf.mxu0
    %v10886 = vadd.f32 0.0, %v10885
    %v10887 = vpop.f32.mrf.mxu0
    %10888 = vdwg.mxu0
    %10889 = vmatpush.bf16.msra.mxu0 0
    %10890 = vmatpush.bf16.msra.mxu0 0
    %10891 = vmatpush.bf16.msra.mxu0 0
    %10892 = vmatpush.bf16.msra.mxu0 0
    %10893 = vmatpush.bf16.msra.mxu0 0
    %10894 = vmatpush.bf16.msra.mxu0 0
    %10895 = vmatpush.bf16.msra.mxu0 0
    %10896 = vmatpush.bf16.msra.mxu0 %v10815
    %10897 = vmatmul.bf16.gmra.mxu0 %v4296
    %v10898 = vpop.f32.mrf.mxu0
    %v10899 = vadd.f32 0.0, %v10898
    %v10900 = vpop.f32.mrf.mxu0
    %10901 = vdwg.mxu0
    %10902 = vmatpush.bf16.msra.mxu0 0
    %10903 = vmatpush.bf16.msra.mxu0 0
    %10904 = vmatpush.bf16.msra.mxu0 0
    %10905 = vmatpush.bf16.msra.mxu0 0
    %10906 = vmatpush.bf16.msra.mxu0 0
    %10907 = vmatpush.bf16.msra.mxu0 0
    %10908 = vmatpush.bf16.msra.mxu0 0
    %10909 = vmatpush.bf16.msra.mxu0 %v10818
    %10910 = vmatmul.bf16.gmra.mxu0 %v4296
    %v10911 = vpop.f32.mrf.mxu0
    %v10912 = vadd.f32 0.0, %v10911
    %v10913 = vpop.f32.mrf.mxu0
    %10914 = vdwg.mxu0
    %10915 = vmatpush.bf16.msra.mxu0 0
    %10916 = vmatpush.bf16.msra.mxu0 0
    %10917 = vmatpush.bf16.msra.mxu0 0
    %10918 = vmatpush.bf16.msra.mxu0 0
    %10919 = vmatpush.bf16.msra.mxu0 0
    %10920 = vmatpush.bf16.msra.mxu0 0
    %10921 = vmatpush.bf16.msra.mxu0 0
    %10922 = vmatpush.bf16.msra.mxu0 %v10821
    %10923 = vmatmul.bf16.gmra.mxu0 %v4296
    %v10924 = vpop.f32.mrf.mxu0
    %v10925 = vadd.f32 0.0, %v10924
    %v10926 = vpop.f32.mrf.mxu0
    %10927 = vdwg.mxu0
    %10928 = vmatpush.bf16.msra.mxu0 0
    %10929 = vmatpush.bf16.msra.mxu0 0
    %10930 = vmatpush.bf16.msra.mxu0 0
    %10931 = vmatpush.bf16.msra.mxu0 0
    %10932 = vmatpush.bf16.msra.mxu0 0
    %10933 = vmatpush.bf16.msra.mxu0 0
    %10934 = vmatpush.bf16.msra.mxu0 0
    %10935 = vmatpush.bf16.msra.mxu0 %v10824
    %10936 = vmatmul.bf16.gmra.mxu0 %v4296
    %v10937 = vpop.f32.mrf.mxu0
    %v10938 = vadd.f32 0.0, %v10937
    %v10939 = vpop.f32.mrf.mxu0
    %10940 = vdwg.mxu0
    %10941 = vmatpush.bf16.msra.mxu0 0
    %10942 = vmatpush.bf16.msra.mxu0 0
    %10943 = vmatpush.bf16.msra.mxu0 0
    %10944 = vmatpush.bf16.msra.mxu0 0
    %10945 = vmatpush.bf16.msra.mxu0 0
    %10946 = vmatpush.bf16.msra.mxu0 0
    %10947 = vmatpush.bf16.msra.mxu0 0
    %10948 = vmatpush.bf16.msra.mxu0 %v10827
    %10949 = vmatmul.bf16.gmra.mxu0 %v4296
    %v10950 = vpop.f32.mrf.mxu0
    %v10951 = vadd.f32 0.0, %v10950
    %v10952 = vpop.f32.mrf.mxu0
    %10953 = vdwg.mxu0
    %10954 = vmatpush.bf16.msra.mxu0 0
    %10955 = vmatpush.bf16.msra.mxu0 0
    %10956 = vmatpush.bf16.msra.mxu0 0
    %10957 = vmatpush.bf16.msra.mxu0 0
    %10958 = vmatpush.bf16.msra.mxu0 0
    %10959 = vmatpush.bf16.msra.mxu0 0
    %10960 = vmatpush.bf16.msra.mxu0 0
    %10961 = vmatpush.bf16.msra.mxu0 %v10830
    %10962 = vmatmul.bf16.gmra.mxu0 %v4296
    %v10963 = vpop.f32.mrf.mxu0
    %v10964 = vadd.f32 0.0, %v10963
    %v10965 = vpop.f32.mrf.mxu0
    %10966 = vdwg.mxu0
    %10967 = vmatpush.bf16.msra.mxu0 0
    %10968 = vmatpush.bf16.msra.mxu0 0
    %10969 = vmatpush.bf16.msra.mxu0 0
    %10970 = vmatpush.bf16.msra.mxu0 0
    %10971 = vmatpush.bf16.msra.mxu0 0
    %10972 = vmatpush.bf16.msra.mxu0 0
    %10973 = vmatpush.bf16.msra.mxu0 0
    %10974 = vmatpush.bf16.msra.mxu0 %v10833
    %10975 = vmatmul.bf16.gmra.mxu0 %v4296
    %v10976 = vpop.f32.mrf.mxu0
    %v10977 = vadd.f32 0.0, %v10976
    %v10978 = vpop.f32.mrf.mxu0
    %10979 = vdwg.mxu0
    %10980 = vmatpush.bf16.msra.mxu0 0
    %10981 = vmatpush.bf16.msra.mxu0 0
    %10982 = vmatpush.bf16.msra.mxu0 0
    %10983 = vmatpush.bf16.msra.mxu0 0
    %10984 = vmatpush.bf16.msra.mxu0 0
    %10985 = vmatpush.bf16.msra.mxu0 0
    %10986 = vmatpush.bf16.msra.mxu0 0
    %10987 = vmatpush.bf16.msra.mxu0 %v10836
    %10988 = vmatmul.bf16.gmra.mxu0 %v4296
    %v10989 = vpop.f32.mrf.mxu0
    %v10990 = vadd.f32 0.0, %v10989
    %v10991 = vpop.f32.mrf.mxu0
    %10992 = vdwg.mxu0
    %10993 = vmatpush.bf16.msra.mxu0 0
    %10994 = vmatpush.bf16.msra.mxu0 0
    %10995 = vmatpush.bf16.msra.mxu0 0
    %10996 = vmatpush.bf16.msra.mxu0 0
    %10997 = vmatpush.bf16.msra.mxu0 0
    %10998 = vmatpush.bf16.msra.mxu0 0
    %10999 = vmatpush.bf16.msra.mxu0 0
    %11000 = vmatpush.bf16.msra.mxu0 %v10839
    %11001 = vmatmul.bf16.gmra.mxu0 %v4296
    %v11002 = vpop.f32.mrf.mxu0
    %v11003 = vadd.f32 0.0, %v11002
    %v11004 = vpop.f32.mrf.mxu0
    %11005 = vdwg.mxu0
    %11006 = vmatpush.bf16.msra.mxu0 0
    %11007 = vmatpush.bf16.msra.mxu0 0
    %11008 = vmatpush.bf16.msra.mxu0 0
    %11009 = vmatpush.bf16.msra.mxu0 0
    %11010 = vmatpush.bf16.msra.mxu0 0
    %11011 = vmatpush.bf16.msra.mxu0 0
    %11012 = vmatpush.bf16.msra.mxu0 0
    %11013 = vmatpush.bf16.msra.mxu0 %v10842
    %11014 = vmatmul.bf16.gmra.mxu0 %v4296
    %v11015 = vpop.f32.mrf.mxu0
    %v11016 = vadd.f32 0.0, %v11015
    %v11017 = vpop.f32.mrf.mxu0
    %11018 = vdwg.mxu0
    %11019 = vmatpush.bf16.msra.mxu0 0
    %11020 = vmatpush.bf16.msra.mxu0 0
    %11021 = vmatpush.bf16.msra.mxu0 0
    %11022 = vmatpush.bf16.msra.mxu0 0
    %11023 = vmatpush.bf16.msra.mxu0 0
    %11024 = vmatpush.bf16.msra.mxu0 0
    %11025 = vmatpush.bf16.msra.mxu0 0
    %11026 = vmatpush.bf16.msra.mxu0 %v10845
    %11027 = vmatmul.bf16.gmra.mxu0 %v4296
    %v11028 = vpop.f32.mrf.mxu0
    %v11029 = vadd.f32 0.0, %v11028
    %v11030 = vpop.f32.mrf.mxu0
    %11031 = vdwg.mxu0
    %11032 = vmatpush.bf16.msra.mxu0 0
    %11033 = vmatpush.bf16.msra.mxu0 0
    %11034 = vmatpush.bf16.msra.mxu0 0
    %11035 = vmatpush.bf16.msra.mxu0 0
    %11036 = vmatpush.bf16.msra.mxu0 0
    %11037 = vmatpush.bf16.msra.mxu0 0
    %11038 = vmatpush.bf16.msra.mxu0 0
    %11039 = vmatpush.bf16.msra.mxu0 %v10848
    %11040 = vmatmul.bf16.gmra.mxu0 %v4296
    %v11041 = vpop.f32.mrf.mxu0
    %v11042 = vadd.f32 0.0, %v11041
    %v11043 = vpop.f32.mrf.mxu0
    %11044 = vdwg.mxu0
    %v11045 = vadd.f32 %v10705, %v10860
    %v11046 = vadd.f32 %v10706, %v10873
    %v11047 = vadd.f32 %v10707, %v10886
    %v11048 = vadd.f32 %v10708, %v10899
    %v11049 = vadd.f32 %v10709, %v10912
    %v11050 = vadd.f32 %v10710, %v10925
    %v11051 = vadd.f32 %v10711, %v10938
    %v11052 = vadd.f32 %v10712, %v10951
    %v11053 = vadd.f32 %v10713, %v10964
    %v11054 = vadd.f32 %v10714, %v10977
    %v11055 = vadd.f32 %v10715, %v10990
    %v11056 = vadd.f32 %v10716, %v11003
    %v11057 = vadd.f32 %v10717, %v11016
    %v11058 = vadd.f32 %v10718, %v11029
    %v11059 = vadd.f32 %v10719, %v11042
    %11060 = vst [vmem:[#allocation1] ss:$4 sm:$0xff] %v6641
    %s11061 = scalar_lea.vmem [#allocation1], 32
    %11062 = vst [vmem:[%s11061] ss:$4 sm:$0xff] %v6642
    %v11063 = vld.sshfl [vmem:[#allocation1 + $0x18] sm:$0xff pattern:$0x73625140]
    %v11065 = vld.sshfl [vmem:[#allocation1 + $0x20] sm:$0xff pattern:$0x73625140]
    %v11067 = vld.sshfl [vmem:[#allocation1 + $0x28] sm:$0xff pattern:$0x73625140]
    %v11069 = vld.sshfl [vmem:[#allocation1 + $0x30] sm:$0xff pattern:$0x73625140]
    %v11071 = vld.sshfl [vmem:[#allocation1 + $0x38] sm:$0xff pattern:$0x73625140]
    %11073 = vst [vmem:[#allocation1] ss:$4 sm:$0xff] %v6643
    %11074 = vst [vmem:[%s11061] ss:$4 sm:$0xff] %v6644
    %v11075 = vld.sshfl [vmem:[#allocation1] sm:$0xff pattern:$0x73625140]
    %v11077 = vld.sshfl [vmem:[#allocation1 + $0x8] sm:$0xff pattern:$0x73625140]
    %v11079 = vld.sshfl [vmem:[#allocation1 + $0x10] sm:$0xff pattern:$0x73625140]
    %v11081 = vld.sshfl [vmem:[#allocation1 + $0x18] sm:$0xff pattern:$0x73625140]
    %v11083 = vld.sshfl [vmem:[#allocation1 + $0x20] sm:$0xff pattern:$0x73625140]
    %v11085 = vld.sshfl [vmem:[#allocation1 + $0x28] sm:$0xff pattern:$0x73625140]
    %v11087 = vld.sshfl [vmem:[#allocation1 + $0x30] sm:$0xff pattern:$0x73625140]
    %v11089 = vld.sshfl [vmem:[#allocation1 + $0x38] sm:$0xff pattern:$0x73625140]
    %11091 = vst [vmem:[#allocation1] ss:$4 sm:$0xff] %v6645
    %v11092 = vld.sshfl [vmem:[#allocation1] sm:$0xff pattern:$0x73625140]
    %v11094 = vld.sshfl [vmem:[#allocation1 + $0x8] sm:$0xff pattern:$0x73625140]
    %v11096 = vld.sshfl [vmem:[#allocation1 + $0x10] sm:$0xff pattern:$0x73625140]
    %11098 = vrot.lane.b32.xlu0 %v11063, 126
    %v11099 = vpop.permute.xlu0 %11098
    %11100 = vrot.lane.b32.xlu0 %v11065, 126
    %v11101 = vpop.permute.xlu0 %11100
    %11102 = vrot.lane.b32.xlu0 %v11067, 126
    %v11103 = vpop.permute.xlu0 %11102
    %11104 = vrot.lane.b32.xlu0 %v11069, 126
    %v11105 = vpop.permute.xlu0 %11104
    %11106 = vrot.lane.b32.xlu0 %v11071, 126
    %v11107 = vpop.permute.xlu0 %11106
    %11108 = vrot.lane.b32.xlu0 %v11075, 126
    %v11109 = vpop.permute.xlu0 %11108
    %11110 = vrot.lane.b32.xlu0 %v11077, 126
    %v11111 = vpop.permute.xlu0 %11110
    %11112 = vrot.lane.b32.xlu0 %v11079, 126
    %v11113 = vpop.permute.xlu0 %11112
    %11114 = vrot.lane.b32.xlu0 %v11081, 126
    %v11115 = vpop.permute.xlu0 %11114
    %11116 = vrot.lane.b32.xlu0 %v11083, 126
    %v11117 = vpop.permute.xlu0 %11116
    %11118 = vrot.lane.b32.xlu0 %v11085, 126
    %v11119 = vpop.permute.xlu0 %11118
    %11120 = vrot.lane.b32.xlu0 %v11087, 126
    %v11121 = vpop.permute.xlu0 %11120
    %11122 = vrot.lane.b32.xlu0 %v11089, 126
    %v11123 = vpop.permute.xlu0 %11122
    %11124 = vrot.lane.b32.xlu0 %v11092, 126
    %v11125 = vpop.permute.xlu0 %11124
    %11126 = vrot.lane.b32.xlu0 %v11094, 126
    %v11127 = vpop.permute.xlu0 %11126
    %11128 = vrot.lane.b32.xlu0 %v11096, 126
    %v11129 = vpop.permute.xlu0 %11128
    %v11130 = vsel %vm721, %v11099, %v11101
    %v11131 = vsel %vm721, %v11101, %v11103
    %v11132 = vsel %vm721, %v11103, %v11105
    %v11133 = vsel %vm721, %v11105, %v11107
    %v11134 = vsel %vm721, %v11107, %v11109
    %v11135 = vsel %vm721, %v11109, %v11111
    %v11136 = vsel %vm721, %v11111, %v11113
    %v11137 = vsel %vm721, %v11113, %v11115
    %v11138 = vsel %vm721, %v11115, %v11117
    %v11139 = vsel %vm721, %v11117, %v11119
    %v11140 = vsel %vm721, %v11119, %v11121
    %v11141 = vsel %vm721, %v11121, %v11123
    %v11142 = vsel %vm721, %v11123, %v11125
    %v11143 = vsel %vm721, %v11125, %v11127
    %v11144 = vsel %vm721, %v11127, %v11129
    %v11146 = vsel %vm161, %v11130, 0
    %v11149 = vsel %vm161, %v11131, 0
    %v11152 = vsel %vm161, %v11132, 0
    %v11155 = vsel %vm161, %v11133, 0
    %v11158 = vsel %vm161, %v11134, 0
    %v11161 = vsel %vm161, %v11135, 0
    %v11164 = vsel %vm161, %v11136, 0
    %v11167 = vsel %vm161, %v11137, 0
    %v11170 = vsel %vm161, %v11138, 0
    %v11173 = vsel %vm161, %v11139, 0
    %v11176 = vsel %vm161, %v11140, 0
    %v11179 = vsel %vm161, %v11141, 0
    %v11182 = vsel %vm161, %v11142, 0
    %v11185 = vsel %vm161, %v11143, 0
    %v11188 = vsel %vm161, %v11144, 0
    %11190 = vmatpush.bf16.msra.mxu0 0
    %11191 = vmatpush.bf16.msra.mxu0 0
    %11192 = vmatpush.bf16.msra.mxu0 0
    %11193 = vmatpush.bf16.msra.mxu0 0
    %11194 = vmatpush.bf16.msra.mxu0 0
    %11195 = vmatpush.bf16.msra.mxu0 0
    %11196 = vmatpush.bf16.msra.mxu0 0
    %11197 = vmatpush.bf16.msra.mxu0 %v11146
    %11198 = vmatmul.bf16.gmra.mxu0 %v4641
    %v11199 = vpop.f32.mrf.mxu0
    %v11200 = vadd.f32 0.0, %v11199
    %v11201 = vpop.f32.mrf.mxu0
    %11202 = vdwg.mxu0
    %11203 = vmatpush.bf16.msra.mxu0 0
    %11204 = vmatpush.bf16.msra.mxu0 0
    %11205 = vmatpush.bf16.msra.mxu0 0
    %11206 = vmatpush.bf16.msra.mxu0 0
    %11207 = vmatpush.bf16.msra.mxu0 0
    %11208 = vmatpush.bf16.msra.mxu0 0
    %11209 = vmatpush.bf16.msra.mxu0 0
    %11210 = vmatpush.bf16.msra.mxu0 %v11149
    %11211 = vmatmul.bf16.gmra.mxu0 %v4641
    %v11212 = vpop.f32.mrf.mxu0
    %v11213 = vadd.f32 0.0, %v11212
    %v11214 = vpop.f32.mrf.mxu0
    %11215 = vdwg.mxu0
    %11216 = vmatpush.bf16.msra.mxu0 0
    %11217 = vmatpush.bf16.msra.mxu0 0
    %11218 = vmatpush.bf16.msra.mxu0 0
    %11219 = vmatpush.bf16.msra.mxu0 0
    %11220 = vmatpush.bf16.msra.mxu0 0
    %11221 = vmatpush.bf16.msra.mxu0 0
    %11222 = vmatpush.bf16.msra.mxu0 0
    %11223 = vmatpush.bf16.msra.mxu0 %v11152
    %11224 = vmatmul.bf16.gmra.mxu0 %v4641
    %v11225 = vpop.f32.mrf.mxu0
    %v11226 = vadd.f32 0.0, %v11225
    %v11227 = vpop.f32.mrf.mxu0
    %11228 = vdwg.mxu0
    %11229 = vmatpush.bf16.msra.mxu0 0
    %11230 = vmatpush.bf16.msra.mxu0 0
    %11231 = vmatpush.bf16.msra.mxu0 0
    %11232 = vmatpush.bf16.msra.mxu0 0
    %11233 = vmatpush.bf16.msra.mxu0 0
    %11234 = vmatpush.bf16.msra.mxu0 0
    %11235 = vmatpush.bf16.msra.mxu0 0
    %11236 = vmatpush.bf16.msra.mxu0 %v11155
    %11237 = vmatmul.bf16.gmra.mxu0 %v4641
    %v11238 = vpop.f32.mrf.mxu0
    %v11239 = vadd.f32 0.0, %v11238
    %v11240 = vpop.f32.mrf.mxu0
    %11241 = vdwg.mxu0
    %11242 = vmatpush.bf16.msra.mxu0 0
    %11243 = vmatpush.bf16.msra.mxu0 0
    %11244 = vmatpush.bf16.msra.mxu0 0
    %11245 = vmatpush.bf16.msra.mxu0 0
    %11246 = vmatpush.bf16.msra.mxu0 0
    %11247 = vmatpush.bf16.msra.mxu0 0
    %11248 = vmatpush.bf16.msra.mxu0 0
    %11249 = vmatpush.bf16.msra.mxu0 %v11158
    %11250 = vmatmul.bf16.gmra.mxu0 %v4641
    %v11251 = vpop.f32.mrf.mxu0
    %v11252 = vadd.f32 0.0, %v11251
    %v11253 = vpop.f32.mrf.mxu0
    %11254 = vdwg.mxu0
    %11255 = vmatpush.bf16.msra.mxu0 0
    %11256 = vmatpush.bf16.msra.mxu0 0
    %11257 = vmatpush.bf16.msra.mxu0 0
    %11258 = vmatpush.bf16.msra.mxu0 0
    %11259 = vmatpush.bf16.msra.mxu0 0
    %11260 = vmatpush.bf16.msra.mxu0 0
    %11261 = vmatpush.bf16.msra.mxu0 0
    %11262 = vmatpush.bf16.msra.mxu0 %v11161
    %11263 = vmatmul.bf16.gmra.mxu0 %v4641
    %v11264 = vpop.f32.mrf.mxu0
    %v11265 = vadd.f32 0.0, %v11264
    %v11266 = vpop.f32.mrf.mxu0
    %11267 = vdwg.mxu0
    %11268 = vmatpush.bf16.msra.mxu0 0
    %11269 = vmatpush.bf16.msra.mxu0 0
    %11270 = vmatpush.bf16.msra.mxu0 0
    %11271 = vmatpush.bf16.msra.mxu0 0
    %11272 = vmatpush.bf16.msra.mxu0 0
    %11273 = vmatpush.bf16.msra.mxu0 0
    %11274 = vmatpush.bf16.msra.mxu0 0
    %11275 = vmatpush.bf16.msra.mxu0 %v11164
    %11276 = vmatmul.bf16.gmra.mxu0 %v4641
    %v11277 = vpop.f32.mrf.mxu0
    %v11278 = vadd.f32 0.0, %v11277
    %v11279 = vpop.f32.mrf.mxu0
    %11280 = vdwg.mxu0
    %11281 = vmatpush.bf16.msra.mxu0 0
    %11282 = vmatpush.bf16.msra.mxu0 0
    %11283 = vmatpush.bf16.msra.mxu0 0
    %11284 = vmatpush.bf16.msra.mxu0 0
    %11285 = vmatpush.bf16.msra.mxu0 0
    %11286 = vmatpush.bf16.msra.mxu0 0
    %11287 = vmatpush.bf16.msra.mxu0 0
    %11288 = vmatpush.bf16.msra.mxu0 %v11167
    %11289 = vmatmul.bf16.gmra.mxu0 %v4641
    %v11290 = vpop.f32.mrf.mxu0
    %v11291 = vadd.f32 0.0, %v11290
    %v11292 = vpop.f32.mrf.mxu0
    %11293 = vdwg.mxu0
    %11294 = vmatpush.bf16.msra.mxu0 0
    %11295 = vmatpush.bf16.msra.mxu0 0
    %11296 = vmatpush.bf16.msra.mxu0 0
    %11297 = vmatpush.bf16.msra.mxu0 0
    %11298 = vmatpush.bf16.msra.mxu0 0
    %11299 = vmatpush.bf16.msra.mxu0 0
    %11300 = vmatpush.bf16.msra.mxu0 0
    %11301 = vmatpush.bf16.msra.mxu0 %v11170
    %11302 = vmatmul.bf16.gmra.mxu0 %v4641
    %v11303 = vpop.f32.mrf.mxu0
    %v11304 = vadd.f32 0.0, %v11303
    %v11305 = vpop.f32.mrf.mxu0
    %11306 = vdwg.mxu0
    %11307 = vmatpush.bf16.msra.mxu0 0
    %11308 = vmatpush.bf16.msra.mxu0 0
    %11309 = vmatpush.bf16.msra.mxu0 0
    %11310 = vmatpush.bf16.msra.mxu0 0
    %11311 = vmatpush.bf16.msra.mxu0 0
    %11312 = vmatpush.bf16.msra.mxu0 0
    %11313 = vmatpush.bf16.msra.mxu0 0
    %11314 = vmatpush.bf16.msra.mxu0 %v11173
    %11315 = vmatmul.bf16.gmra.mxu0 %v4641
    %v11316 = vpop.f32.mrf.mxu0
    %v11317 = vadd.f32 0.0, %v11316
    %v11318 = vpop.f32.mrf.mxu0
    %11319 = vdwg.mxu0
    %11320 = vmatpush.bf16.msra.mxu0 0
    %11321 = vmatpush.bf16.msra.mxu0 0
    %11322 = vmatpush.bf16.msra.mxu0 0
    %11323 = vmatpush.bf16.msra.mxu0 0
    %11324 = vmatpush.bf16.msra.mxu0 0
    %11325 = vmatpush.bf16.msra.mxu0 0
    %11326 = vmatpush.bf16.msra.mxu0 0
    %11327 = vmatpush.bf16.msra.mxu0 %v11176
    %11328 = vmatmul.bf16.gmra.mxu0 %v4641
    %v11329 = vpop.f32.mrf.mxu0
    %v11330 = vadd.f32 0.0, %v11329
    %v11331 = vpop.f32.mrf.mxu0
    %11332 = vdwg.mxu0
    %11333 = vmatpush.bf16.msra.mxu0 0
    %11334 = vmatpush.bf16.msra.mxu0 0
    %11335 = vmatpush.bf16.msra.mxu0 0
    %11336 = vmatpush.bf16.msra.mxu0 0
    %11337 = vmatpush.bf16.msra.mxu0 0
    %11338 = vmatpush.bf16.msra.mxu0 0
    %11339 = vmatpush.bf16.msra.mxu0 0
    %11340 = vmatpush.bf16.msra.mxu0 %v11179
    %11341 = vmatmul.bf16.gmra.mxu0 %v4641
    %v11342 = vpop.f32.mrf.mxu0
    %v11343 = vadd.f32 0.0, %v11342
    %v11344 = vpop.f32.mrf.mxu0
    %11345 = vdwg.mxu0
    %11346 = vmatpush.bf16.msra.mxu0 0
    %11347 = vmatpush.bf16.msra.mxu0 0
    %11348 = vmatpush.bf16.msra.mxu0 0
    %11349 = vmatpush.bf16.msra.mxu0 0
    %11350 = vmatpush.bf16.msra.mxu0 0
    %11351 = vmatpush.bf16.msra.mxu0 0
    %11352 = vmatpush.bf16.msra.mxu0 0
    %11353 = vmatpush.bf16.msra.mxu0 %v11182
    %11354 = vmatmul.bf16.gmra.mxu0 %v4641
    %v11355 = vpop.f32.mrf.mxu0
    %v11356 = vadd.f32 0.0, %v11355
    %v11357 = vpop.f32.mrf.mxu0
    %11358 = vdwg.mxu0
    %11359 = vmatpush.bf16.msra.mxu0 0
    %11360 = vmatpush.bf16.msra.mxu0 0
    %11361 = vmatpush.bf16.msra.mxu0 0
    %11362 = vmatpush.bf16.msra.mxu0 0
    %11363 = vmatpush.bf16.msra.mxu0 0
    %11364 = vmatpush.bf16.msra.mxu0 0
    %11365 = vmatpush.bf16.msra.mxu0 0
    %11366 = vmatpush.bf16.msra.mxu0 %v11185
    %11367 = vmatmul.bf16.gmra.mxu0 %v4641
    %v11368 = vpop.f32.mrf.mxu0
    %v11369 = vadd.f32 0.0, %v11368
    %v11370 = vpop.f32.mrf.mxu0
    %11371 = vdwg.mxu0
    %11372 = vmatpush.bf16.msra.mxu0 0
    %11373 = vmatpush.bf16.msra.mxu0 0
    %11374 = vmatpush.bf16.msra.mxu0 0
    %11375 = vmatpush.bf16.msra.mxu0 0
    %11376 = vmatpush.bf16.msra.mxu0 0
    %11377 = vmatpush.bf16.msra.mxu0 0
    %11378 = vmatpush.bf16.msra.mxu0 0
    %11379 = vmatpush.bf16.msra.mxu0 %v11188
    %11380 = vmatmul.bf16.gmra.mxu0 %v4641
    %v11381 = vpop.f32.mrf.mxu0
    %v11382 = vadd.f32 0.0, %v11381
    %v11383 = vpop.f32.mrf.mxu0
    %11384 = vdwg.mxu0
    %v11385 = vadd.f32 %v11045, %v11200
    %v11386 = vadd.f32 %v11046, %v11213
    %v11387 = vadd.f32 %v11047, %v11226
    %v11388 = vadd.f32 %v11048, %v11239
    %v11389 = vadd.f32 %v11049, %v11252
    %v11390 = vadd.f32 %v11050, %v11265
    %v11391 = vadd.f32 %v11051, %v11278
    %v11392 = vadd.f32 %v11052, %v11291
    %v11393 = vadd.f32 %v11053, %v11304
    %v11394 = vadd.f32 %v11054, %v11317
    %v11395 = vadd.f32 %v11055, %v11330
    %v11396 = vadd.f32 %v11056, %v11343
    %v11397 = vadd.f32 %v11057, %v11356
    %v11398 = vadd.f32 %v11058, %v11369
    %v11399 = vadd.f32 %v11059, %v11382
    %11400 = vst [vmem:[#allocation1] ss:$4 sm:$0xff] %v6641
    %s11401 = scalar_lea.vmem [#allocation1], 32
    %11402 = vst [vmem:[%s11401] ss:$4 sm:$0xff] %v6642
    %v11403 = vld.sshfl [vmem:[#allocation1 + $0x18] sm:$0xff pattern:$0x73625140]
    %v11405 = vld.sshfl [vmem:[#allocation1 + $0x20] sm:$0xff pattern:$0x73625140]
    %v11407 = vld.sshfl [vmem:[#allocation1 + $0x28] sm:$0xff pattern:$0x73625140]
    %v11409 = vld.sshfl [vmem:[#allocation1 + $0x30] sm:$0xff pattern:$0x73625140]
    %v11411 = vld.sshfl [vmem:[#allocation1 + $0x38] sm:$0xff pattern:$0x73625140]
    %11413 = vst [vmem:[#allocation1] ss:$4 sm:$0xff] %v6643
    %11414 = vst [vmem:[%s11401] ss:$4 sm:$0xff] %v6644
    %v11415 = vld.sshfl [vmem:[#allocation1] sm:$0xff pattern:$0x73625140]
    %v11417 = vld.sshfl [vmem:[#allocation1 + $0x8] sm:$0xff pattern:$0x73625140]
    %v11419 = vld.sshfl [vmem:[#allocation1 + $0x10] sm:$0xff pattern:$0x73625140]
    %v11421 = vld.sshfl [vmem:[#allocation1 + $0x18] sm:$0xff pattern:$0x73625140]
    %v11423 = vld.sshfl [vmem:[#allocation1 + $0x20] sm:$0xff pattern:$0x73625140]
    %v11425 = vld.sshfl [vmem:[#allocation1 + $0x28] sm:$0xff pattern:$0x73625140]
    %v11427 = vld.sshfl [vmem:[#allocation1 + $0x30] sm:$0xff pattern:$0x73625140]
    %v11429 = vld.sshfl [vmem:[#allocation1 + $0x38] sm:$0xff pattern:$0x73625140]
    %11431 = vst [vmem:[#allocation1] ss:$4 sm:$0xff] %v6645
    %v11432 = vld.sshfl [vmem:[#allocation1] sm:$0xff pattern:$0x73625140]
    %v11434 = vld.sshfl [vmem:[#allocation1 + $0x8] sm:$0xff pattern:$0x73625140]
    %v11436 = vld.sshfl [vmem:[#allocation1 + $0x10] sm:$0xff pattern:$0x73625140]
    %11438 = vrot.lane.b32.xlu0 %v11403, 125
    %v11439 = vpop.permute.xlu0 %11438
    %11440 = vrot.lane.b32.xlu0 %v11405, 125
    %v11441 = vpop.permute.xlu0 %11440
    %11442 = vrot.lane.b32.xlu0 %v11407, 125
    %v11443 = vpop.permute.xlu0 %11442
    %11444 = vrot.lane.b32.xlu0 %v11409, 125
    %v11445 = vpop.permute.xlu0 %11444
    %11446 = vrot.lane.b32.xlu0 %v11411, 125
    %v11447 = vpop.permute.xlu0 %11446
    %11448 = vrot.lane.b32.xlu0 %v11415, 125
    %v11449 = vpop.permute.xlu0 %11448
    %11450 = vrot.lane.b32.xlu0 %v11417, 125
    %v11451 = vpop.permute.xlu0 %11450
    %11452 = vrot.lane.b32.xlu0 %v11419, 125
    %v11453 = vpop.permute.xlu0 %11452
    %11454 = vrot.lane.b32.xlu0 %v11421, 125
    %v11455 = vpop.permute.xlu0 %11454
    %11456 = vrot.lane.b32.xlu0 %v11423, 125
    %v11457 = vpop.permute.xlu0 %11456
    %11458 = vrot.lane.b32.xlu0 %v11425, 125
    %v11459 = vpop.permute.xlu0 %11458
    %11460 = vrot.lane.b32.xlu0 %v11427, 125
    %v11461 = vpop.permute.xlu0 %11460
    %11462 = vrot.lane.b32.xlu0 %v11429, 125
    %v11463 = vpop.permute.xlu0 %11462
    %11464 = vrot.lane.b32.xlu0 %v11432, 125
    %v11465 = vpop.permute.xlu0 %11464
    %11466 = vrot.lane.b32.xlu0 %v11434, 125
    %v11467 = vpop.permute.xlu0 %11466
    %11468 = vrot.lane.b32.xlu0 %v11436, 125
    %v11469 = vpop.permute.xlu0 %11468
    %v11470 = vsel %vm1066, %v11439, %v11441
    %v11471 = vsel %vm1066, %v11441, %v11443
    %v11472 = vsel %vm1066, %v11443, %v11445
    %v11473 = vsel %vm1066, %v11445, %v11447
    %v11474 = vsel %vm1066, %v11447, %v11449
    %v11475 = vsel %vm1066, %v11449, %v11451
    %v11476 = vsel %vm1066, %v11451, %v11453
    %v11477 = vsel %vm1066, %v11453, %v11455
    %v11478 = vsel %vm1066, %v11455, %v11457
    %v11479 = vsel %vm1066, %v11457, %v11459
    %v11480 = vsel %vm1066, %v11459, %v11461
    %v11481 = vsel %vm1066, %v11461, %v11463
    %v11482 = vsel %vm1066, %v11463, %v11465
    %v11483 = vsel %vm1066, %v11465, %v11467
    %v11484 = vsel %vm1066, %v11467, %v11469
    %v11486 = vsel %vm161, %v11470, 0
    %v11489 = vsel %vm161, %v11471, 0
    %v11492 = vsel %vm161, %v11472, 0
    %v11495 = vsel %vm161, %v11473, 0
    %v11498 = vsel %vm161, %v11474, 0
    %v11501 = vsel %vm161, %v11475, 0
    %v11504 = vsel %vm161, %v11476, 0
    %v11507 = vsel %vm161, %v11477, 0
    %v11510 = vsel %vm161, %v11478, 0
    %v11513 = vsel %vm161, %v11479, 0
    %v11516 = vsel %vm161, %v11480, 0
    %v11519 = vsel %vm161, %v11481, 0
    %v11522 = vsel %vm161, %v11482, 0
    %v11525 = vsel %vm161, %v11483, 0
    %v11528 = vsel %vm161, %v11484, 0
    %11530 = vmatpush.bf16.msra.mxu0 0
    %11531 = vmatpush.bf16.msra.mxu0 0
    %11532 = vmatpush.bf16.msra.mxu0 0
    %11533 = vmatpush.bf16.msra.mxu0 0
    %11534 = vmatpush.bf16.msra.mxu0 0
    %11535 = vmatpush.bf16.msra.mxu0 0
    %11536 = vmatpush.bf16.msra.mxu0 0
    %11537 = vmatpush.bf16.msra.mxu0 %v11486
    %11538 = vmatmul.bf16.gmra.mxu0 %v4986
    %v11539 = vpop.f32.mrf.mxu0
    %v11540 = vadd.f32 0.0, %v11539
    %v11541 = vpop.f32.mrf.mxu0
    %11542 = vdwg.mxu0
    %11543 = vmatpush.bf16.msra.mxu0 0
    %11544 = vmatpush.bf16.msra.mxu0 0
    %11545 = vmatpush.bf16.msra.mxu0 0
    %11546 = vmatpush.bf16.msra.mxu0 0
    %11547 = vmatpush.bf16.msra.mxu0 0
    %11548 = vmatpush.bf16.msra.mxu0 0
    %11549 = vmatpush.bf16.msra.mxu0 0
    %11550 = vmatpush.bf16.msra.mxu0 %v11489
    %11551 = vmatmul.bf16.gmra.mxu0 %v4986
    %v11552 = vpop.f32.mrf.mxu0
    %v11553 = vadd.f32 0.0, %v11552
    %v11554 = vpop.f32.mrf.mxu0
    %11555 = vdwg.mxu0
    %11556 = vmatpush.bf16.msra.mxu0 0
    %11557 = vmatpush.bf16.msra.mxu0 0
    %11558 = vmatpush.bf16.msra.mxu0 0
    %11559 = vmatpush.bf16.msra.mxu0 0
    %11560 = vmatpush.bf16.msra.mxu0 0
    %11561 = vmatpush.bf16.msra.mxu0 0
    %11562 = vmatpush.bf16.msra.mxu0 0
    %11563 = vmatpush.bf16.msra.mxu0 %v11492
    %11564 = vmatmul.bf16.gmra.mxu0 %v4986
    %v11565 = vpop.f32.mrf.mxu0
    %v11566 = vadd.f32 0.0, %v11565
    %v11567 = vpop.f32.mrf.mxu0
    %11568 = vdwg.mxu0
    %11569 = vmatpush.bf16.msra.mxu0 0
    %11570 = vmatpush.bf16.msra.mxu0 0
    %11571 = vmatpush.bf16.msra.mxu0 0
    %11572 = vmatpush.bf16.msra.mxu0 0
    %11573 = vmatpush.bf16.msra.mxu0 0
    %11574 = vmatpush.bf16.msra.mxu0 0
    %11575 = vmatpush.bf16.msra.mxu0 0
    %11576 = vmatpush.bf16.msra.mxu0 %v11495
    %11577 = vmatmul.bf16.gmra.mxu0 %v4986
    %v11578 = vpop.f32.mrf.mxu0
    %v11579 = vadd.f32 0.0, %v11578
    %v11580 = vpop.f32.mrf.mxu0
    %11581 = vdwg.mxu0
    %11582 = vmatpush.bf16.msra.mxu0 0
    %11583 = vmatpush.bf16.msra.mxu0 0
    %11584 = vmatpush.bf16.msra.mxu0 0
    %11585 = vmatpush.bf16.msra.mxu0 0
    %11586 = vmatpush.bf16.msra.mxu0 0
    %11587 = vmatpush.bf16.msra.mxu0 0
    %11588 = vmatpush.bf16.msra.mxu0 0
    %11589 = vmatpush.bf16.msra.mxu0 %v11498
    %11590 = vmatmul.bf16.gmra.mxu0 %v4986
    %v11591 = vpop.f32.mrf.mxu0
    %v11592 = vadd.f32 0.0, %v11591
    %v11593 = vpop.f32.mrf.mxu0
    %11594 = vdwg.mxu0
    %11595 = vmatpush.bf16.msra.mxu0 0
    %11596 = vmatpush.bf16.msra.mxu0 0
    %11597 = vmatpush.bf16.msra.mxu0 0
    %11598 = vmatpush.bf16.msra.mxu0 0
    %11599 = vmatpush.bf16.msra.mxu0 0
    %11600 = vmatpush.bf16.msra.mxu0 0
    %11601 = vmatpush.bf16.msra.mxu0 0
    %11602 = vmatpush.bf16.msra.mxu0 %v11501
    %11603 = vmatmul.bf16.gmra.mxu0 %v4986
    %v11604 = vpop.f32.mrf.mxu0
    %v11605 = vadd.f32 0.0, %v11604
    %v11606 = vpop.f32.mrf.mxu0
    %11607 = vdwg.mxu0
    %11608 = vmatpush.bf16.msra.mxu0 0
    %11609 = vmatpush.bf16.msra.mxu0 0
    %11610 = vmatpush.bf16.msra.mxu0 0
    %11611 = vmatpush.bf16.msra.mxu0 0
    %11612 = vmatpush.bf16.msra.mxu0 0
    %11613 = vmatpush.bf16.msra.mxu0 0
    %11614 = vmatpush.bf16.msra.mxu0 0
    %11615 = vmatpush.bf16.msra.mxu0 %v11504
    %11616 = vmatmul.bf16.gmra.mxu0 %v4986
    %v11617 = vpop.f32.mrf.mxu0
    %v11618 = vadd.f32 0.0, %v11617
    %v11619 = vpop.f32.mrf.mxu0
    %11620 = vdwg.mxu0
    %11621 = vmatpush.bf16.msra.mxu0 0
    %11622 = vmatpush.bf16.msra.mxu0 0
    %11623 = vmatpush.bf16.msra.mxu0 0
    %11624 = vmatpush.bf16.msra.mxu0 0
    %11625 = vmatpush.bf16.msra.mxu0 0
    %11626 = vmatpush.bf16.msra.mxu0 0
    %11627 = vmatpush.bf16.msra.mxu0 0
    %11628 = vmatpush.bf16.msra.mxu0 %v11507
    %11629 = vmatmul.bf16.gmra.mxu0 %v4986
    %v11630 = vpop.f32.mrf.mxu0
    %v11631 = vadd.f32 0.0, %v11630
    %v11632 = vpop.f32.mrf.mxu0
    %11633 = vdwg.mxu0
    %11634 = vmatpush.bf16.msra.mxu0 0
    %11635 = vmatpush.bf16.msra.mxu0 0
    %11636 = vmatpush.bf16.msra.mxu0 0
    %11637 = vmatpush.bf16.msra.mxu0 0
    %11638 = vmatpush.bf16.msra.mxu0 0
    %11639 = vmatpush.bf16.msra.mxu0 0
    %11640 = vmatpush.bf16.msra.mxu0 0
    %11641 = vmatpush.bf16.msra.mxu0 %v11510
    %11642 = vmatmul.bf16.gmra.mxu0 %v4986
    %v11643 = vpop.f32.mrf.mxu0
    %v11644 = vadd.f32 0.0, %v11643
    %v11645 = vpop.f32.mrf.mxu0
    %11646 = vdwg.mxu0
    %11647 = vmatpush.bf16.msra.mxu0 0
    %11648 = vmatpush.bf16.msra.mxu0 0
    %11649 = vmatpush.bf16.msra.mxu0 0
    %11650 = vmatpush.bf16.msra.mxu0 0
    %11651 = vmatpush.bf16.msra.mxu0 0
    %11652 = vmatpush.bf16.msra.mxu0 0
    %11653 = vmatpush.bf16.msra.mxu0 0
    %11654 = vmatpush.bf16.msra.mxu0 %v11513
    %11655 = vmatmul.bf16.gmra.mxu0 %v4986
    %v11656 = vpop.f32.mrf.mxu0
    %v11657 = vadd.f32 0.0, %v11656
    %v11658 = vpop.f32.mrf.mxu0
    %11659 = vdwg.mxu0
    %11660 = vmatpush.bf16.msra.mxu0 0
    %11661 = vmatpush.bf16.msra.mxu0 0
    %11662 = vmatpush.bf16.msra.mxu0 0
    %11663 = vmatpush.bf16.msra.mxu0 0
    %11664 = vmatpush.bf16.msra.mxu0 0
    %11665 = vmatpush.bf16.msra.mxu0 0
    %11666 = vmatpush.bf16.msra.mxu0 0
    %11667 = vmatpush.bf16.msra.mxu0 %v11516
    %11668 = vmatmul.bf16.gmra.mxu0 %v4986
    %v11669 = vpop.f32.mrf.mxu0
    %v11670 = vadd.f32 0.0, %v11669
    %v11671 = vpop.f32.mrf.mxu0
    %11672 = vdwg.mxu0
    %11673 = vmatpush.bf16.msra.mxu0 0
    %11674 = vmatpush.bf16.msra.mxu0 0
    %11675 = vmatpush.bf16.msra.mxu0 0
    %11676 = vmatpush.bf16.msra.mxu0 0
    %11677 = vmatpush.bf16.msra.mxu0 0
    %11678 = vmatpush.bf16.msra.mxu0 0
    %11679 = vmatpush.bf16.msra.mxu0 0
    %11680 = vmatpush.bf16.msra.mxu0 %v11519
    %11681 = vmatmul.bf16.gmra.mxu0 %v4986
    %v11682 = vpop.f32.mrf.mxu0
    %v11683 = vadd.f32 0.0, %v11682
    %v11684 = vpop.f32.mrf.mxu0
    %11685 = vdwg.mxu0
    %11686 = vmatpush.bf16.msra.mxu0 0
    %11687 = vmatpush.bf16.msra.mxu0 0
    %11688 = vmatpush.bf16.msra.mxu0 0
    %11689 = vmatpush.bf16.msra.mxu0 0
    %11690 = vmatpush.bf16.msra.mxu0 0
    %11691 = vmatpush.bf16.msra.mxu0 0
    %11692 = vmatpush.bf16.msra.mxu0 0
    %11693 = vmatpush.bf16.msra.mxu0 %v11522
    %11694 = vmatmul.bf16.gmra.mxu0 %v4986
    %v11695 = vpop.f32.mrf.mxu0
    %v11696 = vadd.f32 0.0, %v11695
    %v11697 = vpop.f32.mrf.mxu0
    %11698 = vdwg.mxu0
    %11699 = vmatpush.bf16.msra.mxu0 0
    %11700 = vmatpush.bf16.msra.mxu0 0
    %11701 = vmatpush.bf16.msra.mxu0 0
    %11702 = vmatpush.bf16.msra.mxu0 0
    %11703 = vmatpush.bf16.msra.mxu0 0
    %11704 = vmatpush.bf16.msra.mxu0 0
    %11705 = vmatpush.bf16.msra.mxu0 0
    %11706 = vmatpush.bf16.msra.mxu0 %v11525
    %11707 = vmatmul.bf16.gmra.mxu0 %v4986
    %v11708 = vpop.f32.mrf.mxu0
    %v11709 = vadd.f32 0.0, %v11708
    %v11710 = vpop.f32.mrf.mxu0
    %11711 = vdwg.mxu0
    %11712 = vmatpush.bf16.msra.mxu0 0
    %11713 = vmatpush.bf16.msra.mxu0 0
    %11714 = vmatpush.bf16.msra.mxu0 0
    %11715 = vmatpush.bf16.msra.mxu0 0
    %11716 = vmatpush.bf16.msra.mxu0 0
    %11717 = vmatpush.bf16.msra.mxu0 0
    %11718 = vmatpush.bf16.msra.mxu0 0
    %11719 = vmatpush.bf16.msra.mxu0 %v11528
    %11720 = vmatmul.bf16.gmra.mxu0 %v4986
    %v11721 = vpop.f32.mrf.mxu0
    %v11722 = vadd.f32 0.0, %v11721
    %v11723 = vpop.f32.mrf.mxu0
    %11724 = vdwg.mxu0
    %v11725 = vadd.f32 %v11385, %v11540
    %v11726 = vadd.f32 %v11386, %v11553
    %v11727 = vadd.f32 %v11387, %v11566
    %v11728 = vadd.f32 %v11388, %v11579
    %v11729 = vadd.f32 %v11389, %v11592
    %v11730 = vadd.f32 %v11390, %v11605
    %v11731 = vadd.f32 %v11391, %v11618
    %v11732 = vadd.f32 %v11392, %v11631
    %v11733 = vadd.f32 %v11393, %v11644
    %v11734 = vadd.f32 %v11394, %v11657
    %v11735 = vadd.f32 %v11395, %v11670
    %v11736 = vadd.f32 %v11396, %v11683
    %v11737 = vadd.f32 %v11397, %v11696
    %v11738 = vadd.f32 %v11398, %v11709
    %v11739 = vadd.f32 %v11399, %v11722
    %v11740 = vmul.f32 %v11725, %v5245
    %v11741 = vmul.f32 %v11726, %v5246
    %v11742 = vmul.f32 %v11727, %v5247
    %v11743 = vmul.f32 %v11728, %v5248
    %v11744 = vmul.f32 %v11729, %v5249
    %v11745 = vmul.f32 %v11730, %v5250
    %v11746 = vmul.f32 %v11731, %v5251
    %v11747 = vmul.f32 %v11732, %v5252
    %v11748 = vmul.f32 %v11733, %v5253
    %v11749 = vmul.f32 %v11734, %v5254
    %v11750 = vmul.f32 %v11735, %v5255
    %v11751 = vmul.f32 %v11736, %v5256
    %v11752 = vmul.f32 %v11737, %v5257
    %v11753 = vmul.f32 %v11738, %v5258
    %v11754 = vmul.f32 %v11739, %v5259
    %v11755 = vadd.f32 %v11740, %v11741
    %v11756 = vadd.f32 %v11755, %v11742
    %v11757 = vadd.f32 %v11756, %v11743
    %v11758 = vadd.f32 %v11757, %v11744
    %v11759 = vadd.f32 %v11758, %v11745
    %v11760 = vadd.f32 %v11759, %v11746
    %v11761 = vadd.f32 %v11760, %v11747
    %v11762 = vadd.f32 %v11761, %v11748
    %v11763 = vadd.f32 %v11762, %v11749
    %v11764 = vadd.f32 %v11763, %v11750
    %v11765 = vadd.f32 %v11764, %v11751
    %v11766 = vadd.f32 %v11765, %v11752
    %v11767 = vadd.f32 %v11766, %v11753
    %v11768 = vadd.f32 %v11767, %v11754
    %11769 = vadd.xlane.f32.xlu0 %v11768
    %v11770 = vpop.xlane.xlu0 %11769
    %v11771 = vmul.f32 %v11770, 0.0044444446
    %v11772 = vsub.f32 %v11725, %v11771
    %v11773 = vsub.f32 %v11726, %v11771
    %v11774 = vsub.f32 %v11727, %v11771
    %v11775 = vsub.f32 %v11728, %v11771
    %v11776 = vsub.f32 %v11729, %v11771
    %v11777 = vsub.f32 %v11730, %v11771
    %v11778 = vsub.f32 %v11731, %v11771
    %v11779 = vsub.f32 %v11732, %v11771
    %v11780 = vsub.f32 %v11733, %v11771
    %v11781 = vsub.f32 %v11734, %v11771
    %v11782 = vsub.f32 %v11735, %v11771
    %v11783 = vsub.f32 %v11736, %v11771
    %v11784 = vsub.f32 %v11737, %v11771
    %v11785 = vsub.f32 %v11738, %v11771
    %v11786 = vsub.f32 %v11739, %v11771
    %v11787 = vmul.f32 %v11772, %v5245
    %v11788 = vmul.f32 %v11773, %v5246
    %v11789 = vmul.f32 %v11774, %v5247
    %v11790 = vmul.f32 %v11775, %v5248
    %v11791 = vmul.f32 %v11776, %v5249
    %v11792 = vmul.f32 %v11777, %v5250
    %v11793 = vmul.f32 %v11778, %v5251
    %v11794 = vmul.f32 %v11779, %v5252
    %v11795 = vmul.f32 %v11780, %v5253
    %v11796 = vmul.f32 %v11781, %v5254
    %v11797 = vmul.f32 %v11782, %v5255
    %v11798 = vmul.f32 %v11783, %v5256
    %v11799 = vmul.f32 %v11784, %v5257
    %v11800 = vmul.f32 %v11785, %v5258
    %v11801 = vmul.f32 %v11786, %v5259
    %v11802 = vmul.f32 %v11787, %v11787
    %v11803 = vmul.f32 %v11788, %v11788
    %v11804 = vmul.f32 %v11789, %v11789
    %v11805 = vmul.f32 %v11790, %v11790
    %v11806 = vmul.f32 %v11791, %v11791
    %v11807 = vmul.f32 %v11792, %v11792
    %v11808 = vmul.f32 %v11793, %v11793
    %v11809 = vmul.f32 %v11794, %v11794
    %v11810 = vmul.f32 %v11795, %v11795
    %v11811 = vmul.f32 %v11796, %v11796
    %v11812 = vmul.f32 %v11797, %v11797
    %v11813 = vmul.f32 %v11798, %v11798
    %v11814 = vmul.f32 %v11799, %v11799
    %v11815 = vmul.f32 %v11800, %v11800
    %v11816 = vmul.f32 %v11801, %v11801
    %v11817 = vadd.f32 %v11802, %v11803
    %v11818 = vadd.f32 %v11817, %v11804
    %v11819 = vadd.f32 %v11818, %v11805
    %v11820 = vadd.f32 %v11819, %v11806
    %v11821 = vadd.f32 %v11820, %v11807
    %v11822 = vadd.f32 %v11821, %v11808
    %v11823 = vadd.f32 %v11822, %v11809
    %v11824 = vadd.f32 %v11823, %v11810
    %v11825 = vadd.f32 %v11824, %v11811
    %v11826 = vadd.f32 %v11825, %v11812
    %v11827 = vadd.f32 %v11826, %v11813
    %v11828 = vadd.f32 %v11827, %v11814
    %v11829 = vadd.f32 %v11828, %v11815
    %v11830 = vadd.f32 %v11829, %v11816
    %11831 = vadd.xlane.f32.xlu0 %v11830
    %v11832 = vpop.xlane.xlu0 %11831
    %v11833 = vmul.f32 %v11832, 0.0044444446
    %v11834 = vadd.f32 %v11833, 1e-05
    %v11835 = vrsqrt.pop %v11834
    %v11836 = vmul.f32 %v11835, %v11834
    %v11837 = vmul.f32 %v11836, %v11835
    %v11838 = vmul.f32 0.5, %v11837
    %v11839 = vsub.f32 1.5, %v11838
    %v11840 = vmul.f32 %v11835, %v11839
    %vm11841 = vweird.f32 %v11834
    %vm11842 = vweird.f32 %v11835
    %vm11843 = vmor %vm11841, %vm11842
    %v11844 = vsel %vm11843, %v11835, %v11840
    %v11845 = vmul.f32 %v11787, %v11844
    %v11846 = vmul.f32 %v11788, %v11844
    %v11847 = vmul.f32 %v11789, %v11844
    %v11848 = vmul.f32 %v11790, %v11844
    %v11849 = vmul.f32 %v11791, %v11844
    %v11850 = vmul.f32 %v11792, %v11844
    %v11851 = vmul.f32 %v11793, %v11844
    %v11852 = vmul.f32 %v11794, %v11844
    %v11853 = vmul.f32 %v11795, %v11844
    %v11854 = vmul.f32 %v11796, %v11844
    %v11855 = vmul.f32 %v11797, %v11844
    %v11856 = vmul.f32 %v11798, %v11844
    %v11857 = vmul.f32 %v11799, %v11844
    %v11858 = vmul.f32 %v11800, %v11844
    %v11859 = vmul.f32 %v11801, %v11844
    %vm11860 = vcmp.gt.f32.partialorder %v11845, 0.0
    %vm11861 = vcmp.gt.f32.partialorder %v11846, 0.0
    %vm11862 = vcmp.gt.f32.partialorder %v11847, 0.0
    %vm11863 = vcmp.gt.f32.partialorder %v11848, 0.0
    %vm11864 = vcmp.gt.f32.partialorder %v11849, 0.0
    %vm11865 = vcmp.gt.f32.partialorder %v11850, 0.0
    %vm11866 = vcmp.gt.f32.partialorder %v11851, 0.0
    %vm11867 = vcmp.gt.f32.partialorder %v11852, 0.0
    %vm11868 = vcmp.gt.f32.partialorder %v11853, 0.0
    %vm11869 = vcmp.gt.f32.partialorder %v11854, 0.0
    %vm11870 = vcmp.gt.f32.partialorder %v11855, 0.0
    %vm11871 = vcmp.gt.f32.partialorder %v11856, 0.0
    %vm11872 = vcmp.gt.f32.partialorder %v11857, 0.0
    %vm11873 = vcmp.gt.f32.partialorder %v11858, 0.0
    %vm11874 = vcmp.gt.f32.partialorder %v11859, 0.0
    %v11875 = vmul.f32 %v11845, 0.2
    %v11876 = vmul.f32 %v11846, 0.2
    %v11877 = vmul.f32 %v11847, 0.2
    %v11878 = vmul.f32 %v11848, 0.2
    %v11879 = vmul.f32 %v11849, 0.2
    %v11880 = vmul.f32 %v11850, 0.2
    %v11881 = vmul.f32 %v11851, 0.2
    %v11882 = vmul.f32 %v11852, 0.2
    %v11883 = vmul.f32 %v11853, 0.2
    %v11884 = vmul.f32 %v11854, 0.2
    %v11885 = vmul.f32 %v11855, 0.2
    %v11886 = vmul.f32 %v11856, 0.2
    %v11887 = vmul.f32 %v11857, 0.2
    %v11888 = vmul.f32 %v11858, 0.2
    %v11889 = vmul.f32 %v11859, 0.2
    %v11890 = vsel %vm11860, %v11845, %v11875
    %v11891 = vsel %vm11861, %v11846, %v11876
    %v11892 = vsel %vm11862, %v11847, %v11877
    %v11893 = vsel %vm11863, %v11848, %v11878
    %v11894 = vsel %vm11864, %v11849, %v11879
    %v11895 = vsel %vm11865, %v11850, %v11880
    %v11896 = vsel %vm11866, %v11851, %v11881
    %v11897 = vsel %vm11867, %v11852, %v11882
    %v11898 = vsel %vm11868, %v11853, %v11883
    %v11899 = vsel %vm11869, %v11854, %v11884
    %v11900 = vsel %vm11870, %v11855, %v11885
    %v11901 = vsel %vm11871, %v11856, %v11886
    %v11902 = vsel %vm11872, %v11857, %v11887
    %v11903 = vsel %vm11873, %v11858, %v11888
    %v11904 = vsel %vm11874, %v11859, %v11889
    %v11905 = vpack.c.bf16 %v11891, %v11890
    %v11906 = vpack.c.bf16 %v11893, %v11892
    %v11907 = vpack.c.bf16 %v11895, %v11894
    %v11908 = vpack.c.bf16 %v11897, %v11896
    %v11909 = vpack.c.bf16 %v11899, %v11898
    %v11910 = vpack.c.bf16 %v11901, %v11900
    %v11911 = vpack.c.bf16 %v11903, %v11902
    %v11912 = vpack.c.bf16 %v11904, %v11904
    %v11921 = vunpack.c.l.b16 %v11905
    %v11922 = vunpack.c.h.b16 %v11905
    %v11923 = vunpack.c.l.b16 %v11906
    %v11924 = vunpack.c.h.b16 %v11906
    %v11925 = vunpack.c.l.b16 %v11907
    %v11926 = vunpack.c.h.b16 %v11907
    %v11927 = vunpack.c.l.b16 %v11908
    %v11928 = vunpack.c.h.b16 %v11908
    %v11929 = vunpack.c.l.b16 %v11909
    %v11930 = vunpack.c.h.b16 %v11909
    %v11931 = vunpack.c.l.b16 %v11910
    %v11932 = vunpack.c.h.b16 %v11910
    %v11933 = vunpack.c.l.b16 %v11911
    %v11934 = vunpack.c.h.b16 %v11911
    %v11935 = vunpack.c.l.b16 %v11912
    %v11936 = vpack.c.b16 %v11921, %v11921
    %v11937 = vpack.c.b16 %v11922, %v11922
    %v11938 = vpack.c.b16 %v11923, %v11923
    %v11939 = vpack.c.b16 %v11924, %v11924
    %v11940 = vpack.c.b16 %v11925, %v11925
    %v11941 = vpack.c.b16 %v11926, %v11926
    %v11942 = vpack.c.b16 %v11927, %v11927
    %v11943 = vpack.c.b16 %v11928, %v11928
    %v11944 = vpack.c.b16 %v11929, %v11929
    %v11945 = vpack.c.b16 %v11930, %v11930
    %v11946 = vpack.c.b16 %v11931, %v11931
    %v11947 = vpack.c.b16 %v11932, %v11932
    %v11948 = vpack.c.b16 %v11933, %v11933
    %v11949 = vpack.c.b16 %v11934, %v11934
    %v11950 = vpack.c.b16 %v11935, %v11935
    %v11966 = vsel %vm5501, %v11936, 0
    %v11968 = vshll.u32 %v11937, 16
    %v11970 = vsel %vm5506, %v11968, %v11966
    %v11971 = vrot.slane %v11938, 7
    %v11972 = vsel %vm5509, %v11971, %v11970
    %v11973 = vrot.slane %v11939, 7
    %v11975 = vshll.u32 %v11973, 16
    %v11977 = vsel %vm5515, %v11975, %v11972
    %v11978 = vrot.slane %v11940, 6
    %v11979 = vsel %vm5518, %v11978, %v11977
    %v11980 = vrot.slane %v11941, 6
    %v11982 = vshll.u32 %v11980, 16
    %v11984 = vsel %vm5524, %v11982, %v11979
    %v11985 = vrot.slane %v11942, 5
    %v11986 = vsel %vm5527, %v11985, %v11984
    %v11987 = vrot.slane %v11943, 5
    %v11989 = vshll.u32 %v11987, 16
    %v11991 = vsel %vm5533, %v11989, %v11986
    %v11992 = vrot.slane %v11944, 4
    %v11993 = vsel %vm5536, %v11992, %v11991
    %v11994 = vrot.slane %v11945, 4
    %v11996 = vshll.u32 %v11994, 16
    %v11998 = vsel %vm5542, %v11996, %v11993
    %v11999 = vrot.slane %v11946, 3
    %v12000 = vsel %vm5545, %v11999, %v11998
    %v12001 = vrot.slane %v11947, 3
    %v12003 = vshll.u32 %v12001, 16
    %v12005 = vsel %vm5551, %v12003, %v12000
    %v12006 = vrot.slane %v11948, 2
    %v12007 = vsel %vm5554, %v12006, %v12005
    %v12008 = vrot.slane %v11949, 2
    %v12010 = vshll.u32 %v12008, 16
    %v12012 = vsel %vm5560, %v12010, %v12007
    %v12013 = vrot.slane %v11950, 1
    %v12014 = vsel %vm5563, %v12013, %v12012
    %v12015 = vrot.slane %v11936, 1
    %v12016 = vsel %vm5566, %v12015, %v12014
    %v12017 = vshrl.u32 %v11937, 16
    %v12019 = vsel %vm5501, %v12017, 0
    %v12020 = vsel %vm5506, %v11938, %v12019
    %v12021 = vshrl.u32 %v11973, 16
    %v12023 = vsel %vm5509, %v12021, %v12020
    %v12024 = vrot.slane %v11940, 7
    %v12025 = vsel %vm5515, %v12024, %v12023
    %v12026 = vshrl.u32 %v11980, 16
    %v12028 = vsel %vm5518, %v12026, %v12025
    %v12029 = vrot.slane %v11942, 6
    %v12030 = vsel %vm5524, %v12029, %v12028
    %v12031 = vshrl.u32 %v11987, 16
    %v12033 = vsel %vm5527, %v12031, %v12030
    %v12034 = vrot.slane %v11944, 5
    %v12035 = vsel %vm5533, %v12034, %v12033
    %v12036 = vshrl.u32 %v11994, 16
    %v12038 = vsel %vm5536, %v12036, %v12035
    %v12039 = vrot.slane %v11946, 4
    %v12040 = vsel %vm5542, %v12039, %v12038
    %v12041 = vshrl.u32 %v12001, 16
    %v12043 = vsel %vm5545, %v12041, %v12040
    %v12044 = vrot.slane %v11948, 3
    %v12045 = vsel %vm5551, %v12044, %v12043
    %v12046 = vshrl.u32 %v12008, 16
    %v12048 = vsel %vm5554, %v12046, %v12045
    %v12049 = vrot.slane %v11950, 2
    %v12050 = vsel %vm5560, %v12049, %v12048
    %v12051 = vrot.slane %v11936, 2
    %v12052 = vsel %vm5563, %v12051, %v12050
    %v12053 = vrot.slane %v11937, 2
    %v12055 = vshll.u32 %v12053, 16
    %v12057 = vsel %vm5566, %v12055, %v12052
    %v12058 = vrot.slane %v11938, 1
    %v12059 = vsel %vm5501, %v12058, 0
    %v12060 = vrot.slane %v11939, 1
    %v12062 = vshll.u32 %v12060, 16
    %v12064 = vsel %vm5506, %v12062, %v12059
    %v12065 = vsel %vm5509, %v11940, %v12064
    %v12067 = vshll.u32 %v11941, 16
    %v12069 = vsel %vm5515, %v12067, %v12065
    %v12070 = vrot.slane %v11942, 7
    %v12071 = vsel %vm5518, %v12070, %v12069
    %v12072 = vrot.slane %v11943, 7
    %v12074 = vshll.u32 %v12072, 16
    %v12076 = vsel %vm5524, %v12074, %v12071
    %v12077 = vrot.slane %v11944, 6
    %v12078 = vsel %vm5527, %v12077, %v12076
    %v12079 = vrot.slane %v11945, 6
    %v12081 = vshll.u32 %v12079, 16
    %v12083 = vsel %vm5533, %v12081, %v12078
    %v12084 = vrot.slane %v11946, 5
    %v12085 = vsel %vm5536, %v12084, %v12083
    %v12086 = vrot.slane %v11947, 5
    %v12088 = vshll.u32 %v12086, 16
    %v12090 = vsel %vm5542, %v12088, %v12085
    %v12091 = vrot.slane %v11948, 4
    %v12092 = vsel %vm5545, %v12091, %v12090
    %v12093 = vrot.slane %v11949, 4
    %v12095 = vshll.u32 %v12093, 16
    %v12097 = vsel %vm5551, %v12095, %v12092
    %v12098 = vrot.slane %v11950, 3
    %v12099 = vsel %vm5554, %v12098, %v12097
    %v12100 = vrot.slane %v11936, 3
    %v12101 = vsel %vm5560, %v12100, %v12099
    %v12102 = vshrl.u32 %v12053, 16
    %v12104 = vsel %vm5563, %v12102, %v12101
    %v12105 = vrot.slane %v11938, 2
    %v12106 = vsel %vm5566, %v12105, %v12104
    %v12107 = vshrl.u32 %v12060, 16
    %v12109 = vsel %vm5501, %v12107, 0
    %v12110 = vrot.slane %v11940, 1
    %v12111 = vsel %vm5506, %v12110, %v12109
    %v12112 = vshrl.u32 %v11941, 16
    %v12114 = vsel %vm5509, %v12112, %v12111
    %v12115 = vsel %vm5515, %v11942, %v12114
    %v12116 = vshrl.u32 %v12072, 16
    %v12118 = vsel %vm5518, %v12116, %v12115
    %v12119 = vrot.slane %v11944, 7
    %v12120 = vsel %vm5524, %v12119, %v12118
    %v12121 = vshrl.u32 %v12079, 16
    %v12123 = vsel %vm5527, %v12121, %v12120
    %v12124 = vrot.slane %v11946, 6
    %v12125 = vsel %vm5533, %v12124, %v12123
    %v12126 = vshrl.u32 %v12086, 16
    %v12128 = vsel %vm5536, %v12126, %v12125
    %v12129 = vrot.slane %v11948, 5
    %v12130 = vsel %vm5542, %v12129, %v12128
    %v12131 = vshrl.u32 %v12093, 16
    %v12133 = vsel %vm5545, %v12131, %v12130
    %v12134 = vrot.slane %v11950, 4
    %v12135 = vsel %vm5551, %v12134, %v12133
    %v12136 = vrot.slane %v11936, 4
    %v12137 = vsel %vm5554, %v12136, %v12135
    %v12138 = vrot.slane %v11937, 4
    %v12140 = vshll.u32 %v12138, 16
    %v12142 = vsel %vm5560, %v12140, %v12137
    %v12143 = vrot.slane %v11938, 3
    %v12144 = vsel %vm5563, %v12143, %v12142
    %v12145 = vrot.slane %v11939, 3
    %v12147 = vshll.u32 %v12145, 16
    %v12149 = vsel %vm5566, %v12147, %v12144
    %v12150 = vrot.slane %v11940, 2
    %v12151 = vsel %vm5501, %v12150, 0
    %v12152 = vrot.slane %v11941, 2
    %v12154 = vshll.u32 %v12152, 16
    %v12156 = vsel %vm5506, %v12154, %v12151
    %v12157 = vrot.slane %v11942, 1
    %v12158 = vsel %vm5509, %v12157, %v12156
    %v12159 = vrot.slane %v11943, 1
    %v12161 = vshll.u32 %v12159, 16
    %v12163 = vsel %vm5515, %v12161, %v12158
    %v12164 = vsel %vm5518, %v11944, %v12163
    %v12166 = vshll.u32 %v11945, 16
    %v12168 = vsel %vm5524, %v12166, %v12164
    %v12169 = vrot.slane %v11946, 7
    %v12170 = vsel %vm5527, %v12169, %v12168
    %v12171 = vrot.slane %v11947, 7
    %v12173 = vshll.u32 %v12171, 16
    %v12175 = vsel %vm5533, %v12173, %v12170
    %v12176 = vrot.slane %v11948, 6
    %v12177 = vsel %vm5536, %v12176, %v12175
    %v12178 = vrot.slane %v11949, 6
    %v12180 = vshll.u32 %v12178, 16
    %v12182 = vsel %vm5542, %v12180, %v12177
    %v12183 = vrot.slane %v11950, 5
    %v12184 = vsel %vm5545, %v12183, %v12182
    %v12185 = vrot.slane %v11936, 5
    %v12186 = vsel %vm5551, %v12185, %v12184
    %v12187 = vshrl.u32 %v12138, 16
    %v12189 = vsel %vm5554, %v12187, %v12186
    %v12190 = vrot.slane %v11938, 4
    %v12191 = vsel %vm5560, %v12190, %v12189
    %v12192 = vshrl.u32 %v12145, 16
    %v12194 = vsel %vm5563, %v12192, %v12191
    %v12195 = vrot.slane %v11940, 3
    %v12196 = vsel %vm5566, %v12195, %v12194
    %v12197 = vshrl.u32 %v12152, 16
    %v12199 = vsel %vm5501, %v12197, 0
    %v12200 = vrot.slane %v11942, 2
    %v12201 = vsel %vm5506, %v12200, %v12199
    %v12202 = vshrl.u32 %v12159, 16
    %v12204 = vsel %vm5509, %v12202, %v12201
    %v12205 = vrot.slane %v11944, 1
    %v12206 = vsel %vm5515, %v12205, %v12204
    %v12207 = vshrl.u32 %v11945, 16
    %v12209 = vsel %vm5518, %v12207, %v12206
    %v12210 = vsel %vm5524, %v11946, %v12209
    %v12211 = vshrl.u32 %v12171, 16
    %v12213 = vsel %vm5527, %v12211, %v12210
    %v12214 = vrot.slane %v11948, 7
    %v12215 = vsel %vm5533, %v12214, %v12213
    %v12216 = vshrl.u32 %v12178, 16
    %v12218 = vsel %vm5536, %v12216, %v12215
    %v12219 = vrot.slane %v11950, 6
    %v12220 = vsel %vm5542, %v12219, %v12218
    %v12221 = vrot.slane %v11936, 6
    %v12222 = vsel %vm5545, %v12221, %v12220
    %v12223 = vrot.slane %v11937, 6
    %v12225 = vshll.u32 %v12223, 16
    %v12227 = vsel %vm5551, %v12225, %v12222
    %v12228 = vrot.slane %v11938, 5
    %v12229 = vsel %vm5554, %v12228, %v12227
    %v12230 = vrot.slane %v11939, 5
    %v12232 = vshll.u32 %v12230, 16
    %v12234 = vsel %vm5560, %v12232, %v12229
    %v12235 = vrot.slane %v11940, 4
    %v12236 = vsel %vm5563, %v12235, %v12234
    %v12237 = vrot.slane %v11941, 4
    %v12239 = vshll.u32 %v12237, 16
    %v12241 = vsel %vm5566, %v12239, %v12236
    %v12242 = vrot.slane %v11942, 3
    %v12243 = vsel %vm5501, %v12242, 0
    %v12244 = vrot.slane %v11943, 3
    %v12246 = vshll.u32 %v12244, 16
    %v12248 = vsel %vm5506, %v12246, %v12243
    %v12249 = vrot.slane %v11944, 2
    %v12250 = vsel %vm5509, %v12249, %v12248
    %v12251 = vrot.slane %v11945, 2
    %v12253 = vshll.u32 %v12251, 16
    %v12255 = vsel %vm5515, %v12253, %v12250
    %v12256 = vrot.slane %v11946, 1
    %v12257 = vsel %vm5518, %v12256, %v12255
    %v12258 = vrot.slane %v11947, 1
    %v12260 = vshll.u32 %v12258, 16
    %v12262 = vsel %vm5524, %v12260, %v12257
    %v12263 = vsel %vm5527, %v11948, %v12262
    %v12265 = vshll.u32 %v11949, 16
    %v12267 = vsel %vm5533, %v12265, %v12263
    %v12268 = vrot.slane %v11950, 7
    %v12269 = vsel %vm5536, %v12268, %v12267
    %v12270 = vrot.slane %v11936, 7
    %v12271 = vsel %vm5542, %v12270, %v12269
    %v12272 = vshrl.u32 %v12223, 16
    %v12274 = vsel %vm5545, %v12272, %v12271
    %v12275 = vrot.slane %v11938, 6
    %v12276 = vsel %vm5551, %v12275, %v12274
    %v12277 = vshrl.u32 %v12230, 16
    %v12279 = vsel %vm5554, %v12277, %v12276
    %v12280 = vrot.slane %v11940, 5
    %v12281 = vsel %vm5560, %v12280, %v12279
    %v12282 = vshrl.u32 %v12237, 16
    %v12284 = vsel %vm5563, %v12282, %v12281
    %v12285 = vrot.slane %v11942, 4
    %v12286 = vsel %vm5566, %v12285, %v12284
    %v12287 = vshrl.u32 %v12244, 16
    %v12289 = vsel %vm5501, %v12287, 0
    %v12290 = vrot.slane %v11944, 3
    %v12291 = vsel %vm5506, %v12290, %v12289
    %v12292 = vshrl.u32 %v12251, 16
    %v12294 = vsel %vm5509, %v12292, %v12291
    %v12295 = vrot.slane %v11946, 2
    %v12296 = vsel %vm5515, %v12295, %v12294
    %v12297 = vshrl.u32 %v12258, 16
    %v12299 = vsel %vm5518, %v12297, %v12296
    %v12300 = vrot.slane %v11948, 1
    %v12301 = vsel %vm5524, %v12300, %v12299
    %v12302 = vshrl.u32 %v11949, 16
    %v12304 = vsel %vm5527, %v12302, %v12301
    %v12305 = vsel %vm5533, %v11950, %v12304
    %12306 = vmatpush.bf16.msra.mxu0 %v5896
    %12307 = vmatpush.bf16.msra.mxu0 %v5895
    %12308 = vmatpush.bf16.msra.mxu0 %v5894
    %12309 = vmatpush.bf16.msra.mxu0 %v5893
    %12310 = vmatpush.bf16.msra.mxu0 %v5892
    %12311 = vmatpush.bf16.msra.mxu0 %v5891
    %12312 = vmatpush.bf16.msra.mxu0 %v5890
    %12313 = vmatpush.bf16.msra.mxu0 %v5889
    %12314 = vmatmul.bf16.gmra.mxu0 %v12016
    %v12315 = vpop.f32.mrf.mxu0
    %v12316 = vadd.f32 0.0, %v12315
    %v12317 = vpop.f32.mrf.mxu0
    %v12318 = vadd.f32 0.0, %v12317
    %12319 = vmatmul.bf16.gmra.mxu0 %v12057
    %v12320 = vpop.f32.mrf.mxu0
    %v12321 = vadd.f32 0.0, %v12320
    %v12322 = vpop.f32.mrf.mxu0
    %v12323 = vadd.f32 0.0, %v12322
    %12324 = vmatmul.bf16.gmra.mxu0 %v12106
    %v12325 = vpop.f32.mrf.mxu0
    %v12326 = vadd.f32 0.0, %v12325
    %v12327 = vpop.f32.mrf.mxu0
    %v12328 = vadd.f32 0.0, %v12327
    %12329 = vmatmul.bf16.gmra.mxu0 %v12149
    %v12330 = vpop.f32.mrf.mxu0
    %v12331 = vadd.f32 0.0, %v12330
    %v12332 = vpop.f32.mrf.mxu0
    %v12333 = vadd.f32 0.0, %v12332
    %12334 = vmatmul.bf16.gmra.mxu0 %v12196
    %v12335 = vpop.f32.mrf.mxu0
    %v12336 = vadd.f32 0.0, %v12335
    %v12337 = vpop.f32.mrf.mxu0
    %v12338 = vadd.f32 0.0, %v12337
    %12339 = vmatmul.bf16.gmra.mxu0 %v12241
    %v12340 = vpop.f32.mrf.mxu0
    %v12341 = vadd.f32 0.0, %v12340
    %v12342 = vpop.f32.mrf.mxu0
    %v12343 = vadd.f32 0.0, %v12342
    %12344 = vmatmul.bf16.gmra.mxu0 %v12286
    %v12345 = vpop.f32.mrf.mxu0
    %v12346 = vadd.f32 0.0, %v12345
    %v12347 = vpop.f32.mrf.mxu0
    %v12348 = vadd.f32 0.0, %v12347
    %12349 = vmatmul.bf16.gmra.mxu0 %v12305
    %v12350 = vpop.f32.mrf.mxu0
    %v12351 = vadd.f32 0.0, %v12350
    %v12352 = vpop.f32.mrf.mxu0
    %12353 = vdwg.mxu0
    %v12354 = vpack.c.bf16 %v12316, %v12316
    %v12355 = vpack.c.bf16 %v12318, %v12318
    %v12356 = vpack.c.bf16 %v12321, %v12321
    %v12357 = vpack.c.bf16 %v12323, %v12323
    %v12358 = vpack.c.bf16 %v12326, %v12326
    %v12359 = vpack.c.bf16 %v12328, %v12328
    %v12360 = vpack.c.bf16 %v12331, %v12331
    %v12361 = vpack.c.bf16 %v12333, %v12333
    %v12362 = vpack.c.bf16 %v12336, %v12336
    %v12363 = vpack.c.bf16 %v12338, %v12338
    %v12364 = vpack.c.bf16 %v12341, %v12341
    %v12365 = vpack.c.bf16 %v12343, %v12343
    %v12366 = vpack.c.bf16 %v12346, %v12346
    %v12367 = vpack.c.bf16 %v12348, %v12348
    %v12368 = vpack.c.bf16 %v12351, %v12351
    %v12384 = vrot.slane %v12354, 3
    %v12385 = vrot.slane %v12355, 3
    %v12386 = vrot.slane %v12356, 3
    %v12387 = vrot.slane %v12357, 3
    %v12388 = vrot.slane %v12358, 3
    %v12389 = vrot.slane %v12359, 3
    %v12390 = vrot.slane %v12360, 3
    %v12391 = vrot.slane %v12361, 3
    %v12392 = vrot.slane %v12362, 3
    %v12393 = vrot.slane %v12363, 3
    %v12394 = vrot.slane %v12364, 3
    %v12395 = vrot.slane %v12365, 3
    %v12396 = vrot.slane %v12366, 3
    %v12397 = vrot.slane %v12367, 3
    %v12398 = vrot.slane %v12368, 3
    %v12401 = vsel %vm5998, %v12354, %v12384
    %v12403 = vsel %vm6003, %v12354, %v12384
    %v12405 = vrot.slane %v12403, 1
    %v12406 = vsel %vm6007, %v12354, %v12384
    %v12408 = vrot.slane %v12406, 2
    %v12409 = vsel %vm6011, %v12354, %v12384
    %v12411 = vrot.slane %v12409, 3
    %v12414 = vsel %vm5998, %v12355, %v12385
    %v12416 = vsel %vm6003, %v12355, %v12385
    %v12418 = vrot.slane %v12416, 1
    %v12419 = vsel %vm6007, %v12355, %v12385
    %v12421 = vrot.slane %v12419, 2
    %v12422 = vsel %vm6011, %v12355, %v12385
    %v12424 = vrot.slane %v12422, 3
    %v12427 = vsel %vm5998, %v12356, %v12386
    %v12429 = vsel %vm6003, %v12356, %v12386
    %v12431 = vrot.slane %v12429, 1
    %v12432 = vsel %vm6007, %v12356, %v12386
    %v12434 = vrot.slane %v12432, 2
    %v12435 = vsel %vm6011, %v12356, %v12386
    %v12437 = vrot.slane %v12435, 3
    %v12440 = vsel %vm5998, %v12357, %v12387
    %v12442 = vsel %vm6003, %v12357, %v12387
    %v12444 = vrot.slane %v12442, 1
    %v12445 = vsel %vm6007, %v12357, %v12387
    %v12447 = vrot.slane %v12445, 2
    %v12448 = vsel %vm6011, %v12357, %v12387
    %v12450 = vrot.slane %v12448, 3
    %v12453 = vsel %vm5998, %v12358, %v12388
    %v12455 = vsel %vm6003, %v12358, %v12388
    %v12457 = vrot.slane %v12455, 1
    %v12458 = vsel %vm6007, %v12358, %v12388
    %v12460 = vrot.slane %v12458, 2
    %v12461 = vsel %vm6011, %v12358, %v12388
    %v12463 = vrot.slane %v12461, 3
    %v12466 = vsel %vm5998, %v12359, %v12389
    %v12468 = vsel %vm6003, %v12359, %v12389
    %v12470 = vrot.slane %v12468, 1
    %v12471 = vsel %vm6007, %v12359, %v12389
    %v12473 = vrot.slane %v12471, 2
    %v12474 = vsel %vm6011, %v12359, %v12389
    %v12476 = vrot.slane %v12474, 3
    %v12479 = vsel %vm5998, %v12360, %v12390
    %v12481 = vsel %vm6003, %v12360, %v12390
    %v12483 = vrot.slane %v12481, 1
    %v12484 = vsel %vm6007, %v12360, %v12390
    %v12486 = vrot.slane %v12484, 2
    %v12487 = vsel %vm6011, %v12360, %v12390
    %v12489 = vrot.slane %v12487, 3
    %v12492 = vsel %vm5998, %v12361, %v12391
    %v12494 = vsel %vm6003, %v12361, %v12391
    %v12496 = vrot.slane %v12494, 1
    %v12497 = vsel %vm6007, %v12361, %v12391
    %v12499 = vrot.slane %v12497, 2
    %v12500 = vsel %vm6011, %v12361, %v12391
    %v12502 = vrot.slane %v12500, 3
    %v12505 = vsel %vm5998, %v12362, %v12392
    %v12507 = vsel %vm6003, %v12362, %v12392
    %v12509 = vrot.slane %v12507, 1
    %v12510 = vsel %vm6007, %v12362, %v12392
    %v12512 = vrot.slane %v12510, 2
    %v12513 = vsel %vm6011, %v12362, %v12392
    %v12515 = vrot.slane %v12513, 3
    %v12518 = vsel %vm5998, %v12363, %v12393
    %v12520 = vsel %vm6003, %v12363, %v12393
    %v12522 = vrot.slane %v12520, 1
    %v12523 = vsel %vm6007, %v12363, %v12393
    %v12525 = vrot.slane %v12523, 2
    %v12526 = vsel %vm6011, %v12363, %v12393
    %v12528 = vrot.slane %v12526, 3
    %v12531 = vsel %vm5998, %v12364, %v12394
    %v12533 = vsel %vm6003, %v12364, %v12394
    %v12535 = vrot.slane %v12533, 1
    %v12536 = vsel %vm6007, %v12364, %v12394
    %v12538 = vrot.slane %v12536, 2
    %v12539 = vsel %vm6011, %v12364, %v12394
    %v12541 = vrot.slane %v12539, 3
    %v12544 = vsel %vm5998, %v12365, %v12395
    %v12546 = vsel %vm6003, %v12365, %v12395
    %v12548 = vrot.slane %v12546, 1
    %v12549 = vsel %vm6007, %v12365, %v12395
    %v12551 = vrot.slane %v12549, 2
    %v12552 = vsel %vm6011, %v12365, %v12395
    %v12554 = vrot.slane %v12552, 3
    %v12557 = vsel %vm5998, %v12366, %v12396
    %v12559 = vsel %vm6003, %v12366, %v12396
    %v12561 = vrot.slane %v12559, 1
    %v12562 = vsel %vm6007, %v12366, %v12396
    %v12564 = vrot.slane %v12562, 2
    %v12565 = vsel %vm6011, %v12366, %v12396
    %v12567 = vrot.slane %v12565, 3
    %v12570 = vsel %vm5998, %v12367, %v12397
    %v12572 = vsel %vm6003, %v12367, %v12397
    %v12574 = vrot.slane %v12572, 1
    %v12575 = vsel %vm6007, %v12367, %v12397
    %v12577 = vrot.slane %v12575, 2
    %v12578 = vsel %vm6011, %v12367, %v12397
    %v12580 = vrot.slane %v12578, 3
    %v12583 = vsel %vm5998, %v12368, %v12398
    %v12585 = vsel %vm6003, %v12368, %v12398
    %v12587 = vrot.slane %v12585, 1
    %v12588 = vsel %vm6007, %v12368, %v12398
    %v12590 = vrot.slane %v12588, 2
    %v12591 = vsel %vm6011, %v12368, %v12398
    %v12593 = vrot.slane %v12591, 3
    %v12594 = vunpack.i.l.s16 %v12401
    %v12595 = vunpack.i.h.s16 %v12401
    %v12596 = vunpack.i.l.s16 %v12405
    %v12597 = vunpack.i.h.s16 %v12405
    %v12598 = vunpack.i.l.s16 %v12408
    %v12599 = vunpack.i.h.s16 %v12408
    %v12600 = vunpack.i.l.s16 %v12411
    %v12601 = vunpack.i.h.s16 %v12411
    %v12602 = vunpack.i.l.s16 %v12414
    %v12603 = vunpack.i.h.s16 %v12414
    %v12604 = vunpack.i.l.s16 %v12418
    %v12605 = vunpack.i.h.s16 %v12418
    %v12606 = vunpack.i.l.s16 %v12421
    %v12607 = vunpack.i.h.s16 %v12421
    %v12608 = vunpack.i.l.s16 %v12424
    %v12609 = vunpack.i.h.s16 %v12424
    %v12610 = vunpack.i.l.s16 %v12427
    %v12611 = vunpack.i.h.s16 %v12427
    %v12612 = vunpack.i.l.s16 %v12431
    %v12613 = vunpack.i.h.s16 %v12431
    %v12614 = vunpack.i.l.s16 %v12434
    %v12615 = vunpack.i.h.s16 %v12434
    %v12616 = vunpack.i.l.s16 %v12437
    %v12617 = vunpack.i.h.s16 %v12437
    %v12618 = vunpack.i.l.s16 %v12440
    %v12619 = vunpack.i.h.s16 %v12440
    %v12620 = vunpack.i.l.s16 %v12444
    %v12621 = vunpack.i.h.s16 %v12444
    %v12622 = vunpack.i.l.s16 %v12447
    %v12623 = vunpack.i.h.s16 %v12447
    %v12624 = vunpack.i.l.s16 %v12450
    %v12625 = vunpack.i.h.s16 %v12450
    %v12626 = vunpack.i.l.s16 %v12453
    %v12627 = vunpack.i.h.s16 %v12453
    %v12628 = vunpack.i.l.s16 %v12457
    %v12629 = vunpack.i.h.s16 %v12457
    %v12630 = vunpack.i.l.s16 %v12460
    %v12631 = vunpack.i.h.s16 %v12460
    %v12632 = vunpack.i.l.s16 %v12463
    %v12633 = vunpack.i.h.s16 %v12463
    %v12634 = vunpack.i.l.s16 %v12466
    %v12635 = vunpack.i.h.s16 %v12466
    %v12636 = vunpack.i.l.s16 %v12470
    %v12637 = vunpack.i.h.s16 %v12470
    %v12638 = vunpack.i.l.s16 %v12473
    %v12639 = vunpack.i.h.s16 %v12473
    %v12640 = vunpack.i.l.s16 %v12476
    %v12641 = vunpack.i.h.s16 %v12476
    %v12642 = vunpack.i.l.s16 %v12479
    %v12643 = vunpack.i.h.s16 %v12479
    %v12644 = vunpack.i.l.s16 %v12483
    %v12645 = vunpack.i.h.s16 %v12483
    %v12646 = vunpack.i.l.s16 %v12486
    %v12647 = vunpack.i.h.s16 %v12486
    %v12648 = vunpack.i.l.s16 %v12489
    %v12649 = vunpack.i.h.s16 %v12489
    %v12650 = vunpack.i.l.s16 %v12492
    %v12651 = vunpack.i.h.s16 %v12492
    %v12652 = vunpack.i.l.s16 %v12496
    %v12653 = vunpack.i.h.s16 %v12496
    %v12654 = vunpack.i.l.s16 %v12499
    %v12655 = vunpack.i.h.s16 %v12499
    %v12656 = vunpack.i.l.s16 %v12502
    %v12657 = vunpack.i.h.s16 %v12502
    %v12658 = vunpack.i.l.s16 %v12505
    %v12659 = vunpack.i.h.s16 %v12505
    %v12660 = vunpack.i.l.s16 %v12509
    %v12661 = vunpack.i.h.s16 %v12509
    %v12662 = vunpack.i.l.s16 %v12512
    %v12663 = vunpack.i.h.s16 %v12512
    %v12664 = vunpack.i.l.s16 %v12515
    %v12665 = vunpack.i.h.s16 %v12515
    %v12666 = vunpack.i.l.s16 %v12518
    %v12667 = vunpack.i.h.s16 %v12518
    %v12668 = vunpack.i.l.s16 %v12522
    %v12669 = vunpack.i.h.s16 %v12522
    %v12670 = vunpack.i.l.s16 %v12525
    %v12671 = vunpack.i.h.s16 %v12525
    %v12672 = vunpack.i.l.s16 %v12528
    %v12673 = vunpack.i.h.s16 %v12528
    %v12674 = vunpack.i.l.s16 %v12531
    %v12675 = vunpack.i.h.s16 %v12531
    %v12676 = vunpack.i.l.s16 %v12535
    %v12677 = vunpack.i.h.s16 %v12535
    %v12678 = vunpack.i.l.s16 %v12538
    %v12679 = vunpack.i.h.s16 %v12538
    %v12680 = vunpack.i.l.s16 %v12541
    %v12681 = vunpack.i.h.s16 %v12541
    %v12682 = vunpack.i.l.s16 %v12544
    %v12683 = vunpack.i.h.s16 %v12544
    %v12684 = vunpack.i.l.s16 %v12548
    %v12685 = vunpack.i.h.s16 %v12548
    %v12686 = vunpack.i.l.s16 %v12551
    %v12687 = vunpack.i.h.s16 %v12551
    %v12688 = vunpack.i.l.s16 %v12554
    %v12689 = vunpack.i.h.s16 %v12554
    %v12690 = vunpack.i.l.s16 %v12557
    %v12691 = vunpack.i.h.s16 %v12557
    %v12692 = vunpack.i.l.s16 %v12561
    %v12693 = vunpack.i.h.s16 %v12561
    %v12694 = vunpack.i.l.s16 %v12564
    %v12695 = vunpack.i.h.s16 %v12564
    %v12696 = vunpack.i.l.s16 %v12567
    %v12697 = vunpack.i.h.s16 %v12567
    %v12698 = vunpack.i.l.s16 %v12570
    %v12699 = vunpack.i.h.s16 %v12570
    %v12700 = vunpack.i.l.s16 %v12574
    %v12701 = vunpack.i.h.s16 %v12574
    %v12702 = vunpack.i.l.s16 %v12577
    %v12703 = vunpack.i.h.s16 %v12577
    %v12704 = vunpack.i.l.s16 %v12580
    %v12705 = vunpack.i.h.s16 %v12580
    %v12706 = vunpack.i.l.s16 %v12583
    %v12707 = vunpack.i.h.s16 %v12583
    %v12708 = vunpack.i.l.s16 %v12587
    %v12709 = vunpack.i.h.s16 %v12587
    %v12710 = vunpack.i.l.s16 %v12590
    %v12711 = vunpack.i.h.s16 %v12590
    %v12712 = vunpack.i.l.s16 %v12593
    %v12713 = vunpack.i.h.s16 %v12593
    %v12714 = vpack.i.b16 %v12595, %v12594
    %v12715 = vpack.i.b16 %v12597, %v12596
    %v12716 = vpack.i.b16 %v12599, %v12598
    %v12717 = vpack.i.b16 %v12601, %v12600
    %v12718 = vpack.i.b16 %v12603, %v12602
    %v12719 = vpack.i.b16 %v12605, %v12604
    %v12720 = vpack.i.b16 %v12607, %v12606
    %12723 = vst [vmem:[#allocation1] ss:$9 sm:$0xff] %v12714
    %s12725 = scalar_lea.vmem [#allocation1], 1
    %12726 = vst [vmem:[%s12725] ss:$9 sm:$0xff] %v12715
    %s12728 = scalar_lea.vmem [#allocation1], 2
    %12729 = vst [vmem:[%s12728] ss:$9 sm:$0xff] %v12716
    %s12731 = scalar_lea.vmem [#allocation1], 3
    %12732 = vst [vmem:[%s12731] ss:$9 sm:$0xff] %v12717
    %s12734 = scalar_lea.vmem [#allocation1], 4
    %12735 = vst [vmem:[%s12734] ss:$9 sm:$0xff] %v12718
    %s12737 = scalar_lea.vmem [#allocation1], 5
    %12738 = vst [vmem:[%s12737] ss:$9 sm:$0xff] %v12719
    %s12740 = scalar_lea.vmem [#allocation1], 6
    %12741 = vst [vmem:[%s12740] ss:$9 sm:$0xff] %v12720
    %s12743 = scalar_lea.vmem [#allocation1], 7
    %12744 = vst [vmem:[%s12743] ss:$9 sm:$0xff] %v12608
    %v12745 = vld [vmem:[#allocation1] sm:$0xff]
    %v12746 = vpack.i.b16 %v12610, %v12609
    %v12747 = vpack.i.b16 %v12612, %v12611
    %v12748 = vpack.i.b16 %v12614, %v12613
    %v12749 = vpack.i.b16 %v12616, %v12615
    %v12750 = vpack.i.b16 %v12618, %v12617
    %v12751 = vpack.i.b16 %v12620, %v12619
    %v12752 = vpack.i.b16 %v12622, %v12621
    %12755 = vst [vmem:[#allocation1] ss:$9 sm:$0xff] %v12746
    %s12757 = scalar_lea.vmem [#allocation1], 1
    %12758 = vst [vmem:[%s12757] ss:$9 sm:$0xff] %v12747
    %s12760 = scalar_lea.vmem [#allocation1], 2
    %12761 = vst [vmem:[%s12760] ss:$9 sm:$0xff] %v12748
    %s12763 = scalar_lea.vmem [#allocation1], 3
    %12764 = vst [vmem:[%s12763] ss:$9 sm:$0xff] %v12749
    %s12766 = scalar_lea.vmem [#allocation1], 4
    %12767 = vst [vmem:[%s12766] ss:$9 sm:$0xff] %v12750
    %s12769 = scalar_lea.vmem [#allocation1], 5
    %12770 = vst [vmem:[%s12769] ss:$9 sm:$0xff] %v12751
    %s12772 = scalar_lea.vmem [#allocation1], 6
    %12773 = vst [vmem:[%s12772] ss:$9 sm:$0xff] %v12752
    %s12775 = scalar_lea.vmem [#allocation1], 7
    %12776 = vst [vmem:[%s12775] ss:$9 sm:$0xff] %v12623
    %v12777 = vld [vmem:[#allocation1] sm:$0xff]
    %12779 = vrot.lane.b32.xlu0 %v12777, 8
    %v12780 = vpop.permute.xlu0 %12779
    %v12781 = vpack.i.b16 %v12625, %v12624
    %v12782 = vpack.i.b16 %v12627, %v12626
    %v12783 = vpack.i.b16 %v12629, %v12628
    %v12784 = vpack.i.b16 %v12631, %v12630
    %v12785 = vpack.i.b16 %v12633, %v12632
    %v12786 = vpack.i.b16 %v12635, %v12634
    %v12787 = vpack.i.b16 %v12637, %v12636
    %12790 = vst [vmem:[#allocation1] ss:$9 sm:$0xff] %v12781
    %s12792 = scalar_lea.vmem [#allocation1], 1
    %12793 = vst [vmem:[%s12792] ss:$9 sm:$0xff] %v12782
    %s12795 = scalar_lea.vmem [#allocation1], 2
    %12796 = vst [vmem:[%s12795] ss:$9 sm:$0xff] %v12783
    %s12798 = scalar_lea.vmem [#allocation1], 3
    %12799 = vst [vmem:[%s12798] ss:$9 sm:$0xff] %v12784
    %s12801 = scalar_lea.vmem [#allocation1], 4
    %12802 = vst [vmem:[%s12801] ss:$9 sm:$0xff] %v12785
    %s12804 = scalar_lea.vmem [#allocation1], 5
    %12805 = vst [vmem:[%s12804] ss:$9 sm:$0xff] %v12786
    %s12807 = scalar_lea.vmem [#allocation1], 6
    %12808 = vst [vmem:[%s12807] ss:$9 sm:$0xff] %v12787
    %s12810 = scalar_lea.vmem [#allocation1], 7
    %12811 = vst [vmem:[%s12810] ss:$9 sm:$0xff] %v12638
    %v12812 = vld [vmem:[#allocation1] sm:$0xff]
    %12814 = vrot.lane.b32.xlu0 %v12812, 16
    %v12815 = vpop.permute.xlu0 %12814
    %v12816 = vpack.i.b16 %v12640, %v12639
    %v12817 = vpack.i.b16 %v12642, %v12641
    %v12818 = vpack.i.b16 %v12644, %v12643
    %v12819 = vpack.i.b16 %v12646, %v12645
    %v12820 = vpack.i.b16 %v12648, %v12647
    %v12821 = vpack.i.b16 %v12650, %v12649
    %v12822 = vpack.i.b16 %v12652, %v12651
    %12825 = vst [vmem:[#allocation1] ss:$9 sm:$0xff] %v12816
    %s12827 = scalar_lea.vmem [#allocation1], 1
    %12828 = vst [vmem:[%s12827] ss:$9 sm:$0xff] %v12817
    %s12830 = scalar_lea.vmem [#allocation1], 2
    %12831 = vst [vmem:[%s12830] ss:$9 sm:$0xff] %v12818
    %s12833 = scalar_lea.vmem [#allocation1], 3
    %12834 = vst [vmem:[%s12833] ss:$9 sm:$0xff] %v12819
    %s12836 = scalar_lea.vmem [#allocation1], 4
    %12837 = vst [vmem:[%s12836] ss:$9 sm:$0xff] %v12820
    %s12839 = scalar_lea.vmem [#allocation1], 5
    %12840 = vst [vmem:[%s12839] ss:$9 sm:$0xff] %v12821
    %s12842 = scalar_lea.vmem [#allocation1], 6
    %12843 = vst [vmem:[%s12842] ss:$9 sm:$0xff] %v12822
    %s12845 = scalar_lea.vmem [#allocation1], 7
    %12846 = vst [vmem:[%s12845] ss:$9 sm:$0xff] %v12653
    %v12847 = vld [vmem:[#allocation1] sm:$0xff]
    %12849 = vrot.lane.b32.xlu0 %v12847, 24
    %v12850 = vpop.permute.xlu0 %12849
    %v12851 = vpack.i.b16 %v12655, %v12654
    %v12852 = vpack.i.b16 %v12657, %v12656
    %v12853 = vpack.i.b16 %v12659, %v12658
    %v12854 = vpack.i.b16 %v12661, %v12660
    %v12855 = vpack.i.b16 %v12663, %v12662
    %v12856 = vpack.i.b16 %v12665, %v12664
    %v12857 = vpack.i.b16 %v12667, %v12666
    %12860 = vst [vmem:[#allocation1] ss:$9 sm:$0xff] %v12851
    %s12862 = scalar_lea.vmem [#allocation1], 1
    %12863 = vst [vmem:[%s12862] ss:$9 sm:$0xff] %v12852
    %s12865 = scalar_lea.vmem [#allocation1], 2
    %12866 = vst [vmem:[%s12865] ss:$9 sm:$0xff] %v12853
    %s12868 = scalar_lea.vmem [#allocation1], 3
    %12869 = vst [vmem:[%s12868] ss:$9 sm:$0xff] %v12854
    %s12871 = scalar_lea.vmem [#allocation1], 4
    %12872 = vst [vmem:[%s12871] ss:$9 sm:$0xff] %v12855
    %s12874 = scalar_lea.vmem [#allocation1], 5
    %12875 = vst [vmem:[%s12874] ss:$9 sm:$0xff] %v12856
    %s12877 = scalar_lea.vmem [#allocation1], 6
    %12878 = vst [vmem:[%s12877] ss:$9 sm:$0xff] %v12857
    %s12880 = scalar_lea.vmem [#allocation1], 7
    %12881 = vst [vmem:[%s12880] ss:$9 sm:$0xff] %v12668
    %v12882 = vld [vmem:[#allocation1] sm:$0xff]
    %12884 = vrot.lane.b32.xlu0 %v12882, 32
    %v12885 = vpop.permute.xlu0 %12884
    %v12886 = vpack.i.b16 %v12670, %v12669
    %v12887 = vpack.i.b16 %v12672, %v12671
    %v12888 = vpack.i.b16 %v12674, %v12673
    %v12889 = vpack.i.b16 %v12676, %v12675
    %v12890 = vpack.i.b16 %v12678, %v12677
    %v12891 = vpack.i.b16 %v12680, %v12679
    %v12892 = vpack.i.b16 %v12682, %v12681
    %12895 = vst [vmem:[#allocation1] ss:$9 sm:$0xff] %v12886
    %s12897 = scalar_lea.vmem [#allocation1], 1
    %12898 = vst [vmem:[%s12897] ss:$9 sm:$0xff] %v12887
    %s12900 = scalar_lea.vmem [#allocation1], 2
    %12901 = vst [vmem:[%s12900] ss:$9 sm:$0xff] %v12888
    %s12903 = scalar_lea.vmem [#allocation1], 3
    %12904 = vst [vmem:[%s12903] ss:$9 sm:$0xff] %v12889
    %s12906 = scalar_lea.vmem [#allocation1], 4
    %12907 = vst [vmem:[%s12906] ss:$9 sm:$0xff] %v12890
    %s12909 = scalar_lea.vmem [#allocation1], 5
    %12910 = vst [vmem:[%s12909] ss:$9 sm:$0xff] %v12891
    %s12912 = scalar_lea.vmem [#allocation1], 6
    %12913 = vst [vmem:[%s12912] ss:$9 sm:$0xff] %v12892
    %s12915 = scalar_lea.vmem [#allocation1], 7
    %12916 = vst [vmem:[%s12915] ss:$9 sm:$0xff] %v12683
    %v12917 = vld [vmem:[#allocation1] sm:$0xff]
    %12919 = vrot.lane.b32.xlu0 %v12917, 40
    %v12920 = vpop.permute.xlu0 %12919
    %v12921 = vpack.i.b16 %v12685, %v12684
    %v12922 = vpack.i.b16 %v12687, %v12686
    %v12923 = vpack.i.b16 %v12689, %v12688
    %v12924 = vpack.i.b16 %v12691, %v12690
    %v12925 = vpack.i.b16 %v12693, %v12692
    %v12926 = vpack.i.b16 %v12695, %v12694
    %v12927 = vpack.i.b16 %v12697, %v12696
    %12930 = vst [vmem:[#allocation1] ss:$9 sm:$0xff] %v12921
    %s12932 = scalar_lea.vmem [#allocation1], 1
    %12933 = vst [vmem:[%s12932] ss:$9 sm:$0xff] %v12922
    %s12935 = scalar_lea.vmem [#allocation1], 2
    %12936 = vst [vmem:[%s12935] ss:$9 sm:$0xff] %v12923
    %s12938 = scalar_lea.vmem [#allocation1], 3
    %12939 = vst [vmem:[%s12938] ss:$9 sm:$0xff] %v12924
    %s12941 = scalar_lea.vmem [#allocation1], 4
    %12942 = vst [vmem:[%s12941] ss:$9 sm:$0xff] %v12925
    %s12944 = scalar_lea.vmem [#allocation1], 5
    %12945 = vst [vmem:[%s12944] ss:$9 sm:$0xff] %v12926
    %s12947 = scalar_lea.vmem [#allocation1], 6
    %12948 = vst [vmem:[%s12947] ss:$9 sm:$0xff] %v12927
    %s12950 = scalar_lea.vmem [#allocation1], 7
    %12951 = vst [vmem:[%s12950] ss:$9 sm:$0xff] %v12698
    %v12952 = vld [vmem:[#allocation1] sm:$0xff]
    %12954 = vrot.lane.b32.xlu0 %v12952, 48
    %v12955 = vpop.permute.xlu0 %12954
    %v12956 = vpack.i.b16 %v12700, %v12699
    %v12957 = vpack.i.b16 %v12702, %v12701
    %v12958 = vpack.i.b16 %v12704, %v12703
    %v12959 = vpack.i.b16 %v12706, %v12705
    %v12960 = vpack.i.b16 %v12708, %v12707
    %v12961 = vpack.i.b16 %v12710, %v12709
    %v12962 = vpack.i.b16 %v12712, %v12711
    %12965 = vst [vmem:[#allocation1] ss:$9 sm:$0xff] %v12956
    %s12967 = scalar_lea.vmem [#allocation1], 1
    %12968 = vst [vmem:[%s12967] ss:$9 sm:$0xff] %v12957
    %s12970 = scalar_lea.vmem [#allocation1], 2
    %12971 = vst [vmem:[%s12970] ss:$9 sm:$0xff] %v12958
    %s12973 = scalar_lea.vmem [#allocation1], 3
    %12974 = vst [vmem:[%s12973] ss:$9 sm:$0xff] %v12959
    %s12976 = scalar_lea.vmem [#allocation1], 4
    %12977 = vst [vmem:[%s12976] ss:$9 sm:$0xff] %v12960
    %s12979 = scalar_lea.vmem [#allocation1], 5
    %12980 = vst [vmem:[%s12979] ss:$9 sm:$0xff] %v12961
    %s12982 = scalar_lea.vmem [#allocation1], 6
    %12983 = vst [vmem:[%s12982] ss:$9 sm:$0xff] %v12962
    %s12985 = scalar_lea.vmem [#allocation1], 7
    %12986 = vst [vmem:[%s12985] ss:$9 sm:$0xff] %v12713
    %v12987 = vld [vmem:[#allocation1] sm:$0xff]
    %12989 = vrot.lane.b32.xlu0 %v12987, 56
    %v12990 = vpop.permute.xlu0 %12989
    %v12992 = vsel %vm6594, %v12745, %v12780
    %v12994 = vsel %vm6597, %v12992, %v12815
    %v12996 = vsel %vm6600, %v12994, %v12850
    %v12998 = vsel %vm6603, %v12996, %v12885
    %v13000 = vsel %vm6606, %v12998, %v12920
    %v13002 = vsel %vm6609, %v13000, %v12955
    %v13004 = vsel %vm6612, %v13002, %v12990
    %v13005 = vand.u32 %v13004, %v6622
    %13007 = vmatpush.bf16.msra.mxu0 0
    %13008 = vmatpush.bf16.msra.mxu0 0
    %13009 = vmatpush.bf16.msra.mxu0 0
    %13010 = vmatpush.bf16.msra.mxu0 0
    %13011 = vmatpush.bf16.msra.mxu0 0
    %13012 = vmatpush.bf16.msra.mxu0 0
    %13013 = vmatpush.bf16.msra.mxu0 0
    %13014 = vmatpush.bf16.msra.mxu0 %v13005
    %13015 = vmatmul.bf16.gmra.mxu0 %v6617
    %v13016 = vpop.f32.mrf.mxu0
    %v13017 = vadd.f32 0.0, %v13016
    %v13018 = vpop.f32.mrf.mxu0
    %13019 = vdwg.mxu0
    %s13020 = scalar_lea.vmem [#allocation5], 8
    %13021 = vst.msk [vmem:[%s13020] sm:$0xff] %vm6638, %v13017
    // Predicated region
    $region26: #{tpu_custom_call.1} parent=1 // pred_check
      _
    $region27: #{tpu_custom_call.1} parent=1 // pred_check_branch
      %13023 = sbr.rel (0) target = $region29
    $region28: #{tpu_custom_call.1} parent=1 // pred_region
      %13025 = vsyncadd [#allocation4], 0
      %s13026 = sshll.u32 [#allocation5], 4
      %s13027 = int_to_ptr.vmem [resolvable:$true] %s13026
      %s13028 = sshll.u32 %s5, 4
      %s13029 = int_to_ptr.hbm [resolvable:$true] %s13028
      %13034 = dma.vmem_to_hbm [thread:$0]  %s13027, 256, %s13029, [#allocation4], 128, 128, 8
    $region29: #{tpu_custom_call.1} parent=1 // pred_fallthru
      _
    // Predicated region
    $region30: #{tpu_custom_call.1} parent=1 // pred_check
      _
    $region31: #{tpu_custom_call.1} parent=1 // pred_check_branch
      %13036 = sbr.rel (0) target = $region33
    $region32: #{tpu_custom_call.1} parent=1 // pred_region
      %13038 = dma.done [#allocation4], 256
    $region33: #{tpu_custom_call.1} parent=1 // pred_fallthru
      _
    %13039 = vsyncpa [#allocation3], 1
    %13040 = vsyncpa [#allocation4], 1

</llo_original>
